<compile_context>
chip_gen: v7x
topology: tpu7x:2x2x1
jax: 0.10.0
libtpu: 0.0.40
codegen_flags: <defaults>
</compile_context>

<pallas_src>
import functools
import math

import numpy as np
import jax
import jax.numpy as jnp
from jax.experimental import pallas as pl
from jax.experimental.pallas import tpu as pltpu

LN_EPS = 1e-5  # PyTorch LayerNorm default

_PACK_ORDER = ('qkv_w', 'qkv_b', 'out_w', 'out_b',
               'lin1_w', 'lin1_b', 'lin2_w', 'lin2_b',
               'ln1_w', 'ln1_b', 'ln2_w', 'ln2_b')


# ----------------------------------------------------------------------------
# shared in-kernel math
# ----------------------------------------------------------------------------
def _layer_norm(x, gamma, beta):
    mean = jnp.mean(x, axis=-1, keepdims=True)
    var = jnp.mean((x - mean) * (x - mean), axis=-1, keepdims=True)
    return (x - mean) * jax.lax.rsqrt(var + LN_EPS) * gamma + beta


def _transformer_layer_body(x, qkv_w_ref, qkv_b_ref, out_w_ref, out_b_ref,
                            lin1_w_ref, lin1_b_ref, lin2_w_ref, lin2_b_ref,
                            ln1_w_ref, ln1_b_ref, ln2_w_ref, ln2_b_ref, *,
                            nhead):
    """One post-norm nn.TransformerEncoderLayer (eval mode). x: (B, S, D) f32."""
    B, S, D = x.shape
    H = nhead
    Dh = D // H
    T = B * S
    x2 = x.reshape(T, D)                                   # f32
    xb = x2.astype(jnp.bfloat16)

    # ---- single fused QKV projection: (T,D) @ (D,3D), lane-dense output ----
    qkv = jnp.dot(xb, qkv_w_ref[...],
                  preferred_element_type=jnp.float32) + qkv_b_ref[...]  # (T,3D)

    # head split: lane slices + leading-dim stack (no sublane transposes)
    def heads(c):
        cols = [qkv[:, c * D + h * Dh: c * D + (h + 1) * Dh].reshape(B, S, Dh)
                for h in range(H)]
        return jnp.stack(cols, axis=0).reshape(H * B, S, Dh).astype(jnp.bfloat16)

    q, k, v = heads(0), heads(1), heads(2)                 # (H*B, S, Dh) bf16

    # ---- scaled dot-product attention (bf16 inputs, f32 accumulate) --------
    s = jnp.einsum('nqd,nkd->nqk', q, k,
                   preferred_element_type=jnp.float32) * (1.0 / math.sqrt(Dh))
    s = s - jnp.max(s, axis=-1, keepdims=True)
    p = jnp.exp(s)
    p = p / jnp.sum(p, axis=-1, keepdims=True)             # exact softmax
    ctx = jnp.einsum('nqk,nkd->nqd', p.astype(jnp.bfloat16), v,
                     preferred_element_type=jnp.float32)   # (H*B, S, Dh)

    # ---- reassemble heads into a lane-dense (T, D) slab, one out-proj ------
    ctx = ctx.reshape(H, B, S, Dh)
    ctx_cat = jnp.concatenate([ctx[h] for h in range(H)], axis=-1)  # (B, S, D)
    attn = jnp.dot(ctx_cat.reshape(T, D).astype(jnp.bfloat16), out_w_ref[...],
                   preferred_element_type=jnp.float32) + out_b_ref[...]

    h1 = _layer_norm(x2 + attn, ln1_w_ref[...], ln1_b_ref[...])

    # ---- feed-forward (ReLU, PyTorch default) ------------------------------
    # TODO(synk): tile the DFF axis into 512-1024 chunks (accumulate lin2) once
    # T = B*S reaches production scale; at demo sizes the (T, DFF) f32
    # intermediate is tiny.
    ff = jnp.dot(h1.astype(jnp.bfloat16), lin1_w_ref[...],
                 preferred_element_type=jnp.float32) + lin1_b_ref[...]
    ff = jnp.maximum(ff, 0.0)
    ff = jnp.dot(ff.astype(jnp.bfloat16), lin2_w_ref[...],
                 preferred_element_type=jnp.float32) + lin2_b_ref[...]

    h2 = _layer_norm(h1 + ff, ln2_w_ref[...], ln2_b_ref[...])
    return h2.reshape(B, S, D)


# ----------------------------------------------------------------------------
# Pallas kernels
# ----------------------------------------------------------------------------
def _encoder_stack_kernel(g_ref, b_ref, mul_ref, add_ref, x_in_ref,
                          qkv_w_ref, qkv_b_ref, out_w_ref, out_b_ref,
                          lin1_w_ref, lin1_b_ref, lin2_w_ref, lin2_b_ref,
                          ln1_w_ref, ln1_b_ref, ln2_w_ref, ln2_b_ref,
                          x_out_ref, scores_ref, carry_ref, *, nhead):
    l = pl.program_id(1)

    @pl.when(l == 0)
    def _():
        # FissionModule LayerNorm + full-seq PE + node PE + padding validity,
        # all fused into encoder layer 0 via the precomputed mul/add constants.
        x = x_in_ref[...].astype(jnp.float32)              # raw window (B,S,D)
        xf = _layer_norm(x, g_ref[...], b_ref[...])
        carry_ref[...] = xf * mul_ref[...][None] + add_ref[...][None]

    y = _transformer_layer_body(
        carry_ref[...], qkv_w_ref, qkv_b_ref, out_w_ref, out_b_ref,
        lin1_w_ref, lin1_b_ref, lin2_w_ref, lin2_b_ref,
        ln1_w_ref, ln1_b_ref, ln2_w_ref, ln2_b_ref, nhead=nhead)
    carry_ref[...] = y                                     # f32 carry in VMEM

    @pl.when(l == pl.num_programs(1) - 1)
    def _():
        x_out_ref[...] = y.astype(x_out_ref.dtype)         # single bf16 writeback
        scores_ref[...] = jnp.sqrt(jnp.sum(y * y, axis=-1))


def _decoder_stack_kernel(mask_ref, x_in_ref,
                          qkv_w_ref, qkv_b_ref, out_w_ref, out_b_ref,
                          lin1_w_ref, lin1_b_ref, lin2_w_ref, lin2_b_ref,
                          ln1_w_ref, ln1_b_ref, ln2_w_ref, ln2_b_ref,
                          x_out_ref, carry_ref, *, nhead):
    l = pl.program_id(1)

    @pl.when(l == 0)
    def _():
        # masked_fill(mask, 0.0) fused into decoder layer 0
        keep = 1.0 - mask_ref[...]
        carry_ref[...] = x_in_ref[...].astype(jnp.float32) * keep[:, :, None]

    y = _transformer_layer_body(
        carry_ref[...], qkv_w_ref, qkv_b_ref, out_w_ref, out_b_ref,
        lin1_w_ref, lin1_b_ref, lin2_w_ref, lin2_b_ref,
        ln1_w_ref, ln1_b_ref, ln2_w_ref, ln2_b_ref, nhead=nhead)
    carry_ref[...] = y

    @pl.when(l == pl.num_programs(1) - 1)
    def _():
        x_out_ref[...] = y.astype(x_out_ref.dtype)


def _fusion_kernel(x_ref, a_ref, invc_ref, g_ref, b_ref, o_ref):
    # overlap-add: static 0/1 scatter matrix (bf16, NOT broadcast per batch),
    # count normalisation + fusion LayerNorm.  x: (N,B,S,D) bf16, A: (L, N*S)
    x = x_ref[...]
    N, B, S, D = x.shape
    xr = jnp.transpose(x, (1, 0, 2, 3)).reshape(B, N * S, D)   # bf16, leading-swap only
    A = a_ref[...]                                             # (L, N*S) bf16
    invc = invc_ref[...]                                       # (L, 1) f32
    # TODO(synk): for production L >> S replace the dense scatter matmul with
    # per-node accumulation (grid over N + input_output_aliases).
    rows = []
    for b in range(B):
        f = jnp.dot(A, xr[b], preferred_element_type=jnp.float32)   # (L, D)
        f = f * invc
        rows.append(_layer_norm(f, g_ref[...], b_ref[...]))
    o_ref[...] = jnp.stack(rows, axis=0).astype(o_ref.dtype)        # (B, L, D)


# ----------------------------------------------------------------------------
# wrappers
# ----------------------------------------------------------------------------
def _vmem_spec():
    return pl.BlockSpec(memory_space=pltpu.MemorySpace.VMEM)


def _per_layer_spec(arr):
    """Block selecting the (node, layer) slice of a stacked weight array."""
    tail = tuple(int(d) for d in arr.shape[2:])

    def index_map(n, l, _nt=len(tail)):
        return (n, l) + (0,) * _nt

    return pl.BlockSpec((None, None) + tail, index_map)


def _stack_vmem_limit(packed, B, S, D):
    """Derive the scoped-VMEM request from the real footprint (per review):
    double-buffered per-layer weights + activation blocks + headroom."""
    weight_bytes = 0
    for k in _PACK_ORDER:
        arr = packed[k]
        weight_bytes += 2 * int(np.prod(arr.shape[2:])) * arr.dtype.itemsize
    act_bytes = 8 * B * S * D * 4          # carry + in/out blocks + slack
    need = weight_bytes + act_bytes + (8 << 20)
    # NOTE: v7x has only 64 MiB VMEM per TensorCore -- keep the request modest.
    return max(need, 32 << 20)


def _run_stack(kernel_fn, pre_args, pre_specs, x_nodes, packed,
               extra_out_shapes, extra_out_specs, *, nhead, out_dtype):
    N, B, S, D = x_nodes.shape
    n_layers = packed['qkv_w'].shape[1]
    x_in_spec = pl.BlockSpec((None, B, S, D), lambda n, l: (n, 0, 0, 0))
    x_out_spec = pl.BlockSpec((None, B, S, D), lambda n, l: (n, 0, 0, 0))
    in_specs = list(pre_specs) + [x_in_spec] + [_per_layer_spec(packed[k])
                                                for k in _PACK_ORDER]
    out_specs = [x_out_spec] + list(extra_out_specs)
    out_shape = [jax.ShapeDtypeStruct((N, B, S, D), out_dtype)] \
        + list(extra_out_shapes)
    return pl.pallas_call(
        functools.partial(kernel_fn, nhead=nhead),
        grid=(N, n_layers),
        in_specs=in_specs,
        out_specs=out_specs,
        out_shape=out_shape,
        scratch_shapes=[pltpu.VMEM((B, S, D), jnp.float32)],  # f32 layer carry
        compiler_params=pltpu.CompilerParams(
            dimension_semantics=("parallel", "arbitrary"),
            vmem_limit_bytes=_stack_vmem_limit(packed, B, S, D)),
    )(*pre_args, x_nodes, *[packed[k] for k in _PACK_ORDER])


def _fusion(x_dec, A, invc, ln_w, ln_b, out_len):
    _, B, _, D = x_dec.shape
    return pl.pallas_call(
        _fusion_kernel,
        out_shape=jax.ShapeDtypeStruct((B, out_len, D), jnp.float32),
        in_specs=[_vmem_spec()] * 5,
        out_specs=_vmem_spec(),
    )(x_dec, A, invc, ln_w, ln_b)


# ----------------------------------------------------------------------------
# static glue (numpy / plain JAX)
# ----------------------------------------------------------------------------
def _sinusoidal_pe_np(seq_len, d_model):
    position = np.arange(seq_len, dtype=np.float32)[:, None]
    div_term = np.exp(np.arange(0, d_model, 2, dtype=np.float32)
                      * (-math.log(10000.0) / d_model))
    pe = np.zeros((seq_len, d_model), np.float32)
    pe[:, 0::2] = np.sin(position * div_term)
    pe[:, 1::2] = np.cos(position * div_term)
    return pe


def _calc_step(seq_len, num_nodes, par_length):
    if num_nodes == 1 or seq_len <= par_length:
        return 1
    return max(1, (seq_len - par_length) // (num_nodes - 1))


def _fission_unfold(x, num_nodes, par_length):
    """torch.unfold(dim=1) on the *raw* input; static slicing glue."""
    B, L, D = x.shape
    eff = min(L, par_length)
    step = _calc_step(L, num_nodes, par_length)
    num_gen = (L - eff) // step + 1
    n_copy = min(num_gen, num_nodes)
    patches = [x[:, i * step:i * step + eff, :] for i in range(n_copy)]
    out = jnp.stack(patches, axis=0)                  # (n_copy, B, eff, D)
    if (num_nodes - n_copy) or (par_length - eff):
        out = jnp.pad(out, ((0, num_nodes - n_copy), (0, 0),
                            (0, par_length - eff), (0, 0)))
    return out                                        # (num_nodes, B, S, D)


def _fission_constants(L, num_nodes, par_length, d_model):
    """Per-node (S,D) constants so fission LN/PE/padding fuse into layer 0:
       encoder_input = LayerNorm(raw_window) * mul + add."""
    step = _calc_step(L, num_nodes, par_length)
    eff = min(L, par_length)
    num_gen = (L - eff) // step + 1
    n_copy = min(num_gen, num_nodes)
    pe_L = _sinusoidal_pe_np(L, d_model)
    pe_S = _sinusoidal_pe_np(par_length, d_model)
    mul = np.zeros((num_nodes, par_length, d_model), np.float32)
    add = np.zeros((num_nodes, par_length, d_model), np.float32)
    for n in range(num_nodes):
        add[n] += pe_S                                # BabyAutoencoder node PE
        if n < n_copy:
            start = n * step
            mul[n, :eff, :] = 1.0                     # valid (non-padded) tokens
            add[n, :eff, :] += pe_L[start:start + eff]  # full-sequence PE
    return jnp.asarray(mul), jnp.asarray(add)


def _overlap_add_constants(L, num_nodes, par_length):
    """Static scatter matrix A[(t, i*S+s)] (bf16) and 1/clamp(counts)."""
    step = _calc_step(L, num_nodes, par_length)
    eff = min(L, par_length)
    A = np.zeros((L, num_nodes * par_length), np.float32)
    counts = np.zeros((L,), np.float32)
    for i in range(num_nodes):
        start = i * step
        a_start = min(start, L)
        a_end = min(start + par_length, L)
        n_out = a_end - a_start
        if n_out <= 0:
            continue
        counts[a_start:a_end] += 1.0
        n_in = min(n_out, eff)
        for s in range(n_in):
            A[a_start + s, i * par_length + s] = 1.0
    inv = (1.0 / np.maximum(counts, 1e-8)).astype(np.float32)
    return jnp.asarray(A, jnp.bfloat16), jnp.asarray(inv.reshape(L, 1))


# ----------------------------------------------------------------------------
# forward pass
# ----------------------------------------------------------------------------
def hama_block_forward(x, params, *, num_nodes, par_length, nhead, n_mask,
                       use_masking=True):
    B, L, D = x.shape
    S = par_length

    # raw node windows (fission LN + PE are fused into the encoder kernel)
    node_x = _fission_unfold(x, num_nodes, par_length)       # (N, B, S, D) f32
    mul_c, add_c = _fission_constants(L, num_nodes, par_length, D)

    # ---- all nodes' encoder stacks in one pallas_call ----------------------
    x_enc, scores = _run_stack(
        _encoder_stack_kernel,
        [params['fission_ln_w'], params['fission_ln_b'], mul_c, add_c],
        [pl.BlockSpec((1, D), lambda n, l: (0, 0)),
         pl.BlockSpec((1, D), lambda n, l: (0, 0)),
         pl.BlockSpec((None, S, D), lambda n, l: (n, 0, 0)),
         pl.BlockSpec((None, S, D), lambda n, l: (n, 0, 0))],
        node_x, params['encoder'],
        [jax.ShapeDtypeStruct((num_nodes, B, S), jnp.float32)],
        [pl.BlockSpec((None, B, S), lambda n, l: (n, 0, 0))],
        nhead=nhead, out_dtype=jnp.bfloat16)

    # ---- importance-based token mask ---------------------------------------
    if use_masking and n_mask > 0:
        # TODO(synk): torch.topk(largest=False) index selection has no clean
        # Pallas equivalent; done in plain JAX (the norm reduction is in-kernel).
        _, idx = jax.lax.top_k(-scores, n_mask)               # (N, B, n_mask)
        mask = jnp.minimum(
            jnp.sum(jax.nn.one_hot(idx, S, dtype=jnp.float32), axis=-2), 1.0)
    else:
        mask = jnp.zeros((num_nodes, B, S), jnp.float32)

    # ---- all nodes' decoder stacks in one pallas_call (mask fused at l=0) --
    (x_dec,) = _run_stack(
        _decoder_stack_kernel, [mask],
        [pl.BlockSpec((None, B, S), lambda n, l: (n, 0, 0))],
        x_enc, params['decoder'], [], [],
        nhead=nhead, out_dtype=jnp.bfloat16)

    # ---- fusion: overlap-add + count normalisation + LayerNorm -------------
    A, invc = _overlap_add_constants(L, num_nodes, par_length)
    return _fusion(x_dec, A, invc, params['fusion_ln_w'], params['fusion_ln_b'], L)


# ----------------------------------------------------------------------------
# parameter init (PyTorch shapes) + one-time repacking for the kernels
# ----------------------------------------------------------------------------
def init_layer_params(key, d_model, dff):
    k = jax.random.split(key, 4)
    f32 = jnp.float32
    return dict(
        in_proj_w=jax.random.normal(k[0], (3 * d_model, d_model), f32) * 0.02,
        in_proj_b=jnp.zeros((3 * d_model,), f32),
        out_proj_w=jax.random.normal(k[1], (d_model, d_model), f32) * 0.02,
        out_proj_b=jnp.zeros((d_model,), f32),
        lin1_w=jax.random.normal(k[2], (dff, d_model), f32) * 0.02,
        lin1_b=jnp.zeros((dff,), f32),
        lin2_w=jax.random.normal(k[3], (d_model, dff), f32) * 0.02,
        lin2_b=jnp.zeros((d_model,), f32),
        ln1_w=jnp.ones((d_model,), f32), ln1_b=jnp.zeros((d_model,), f32),
        ln2_w=jnp.ones((d_model,), f32), ln2_b=jnp.zeros((d_model,), f32),
    )


def pack_stack(layers_per_node):
    """Stack per-(node, layer) weights; pre-transposed, lane-dense, bf16.
    QKV weight is one (D, 3D) slab, biases are lane-dense (1, N) rows."""
    extract = {
        'qkv_w': lambda p: p['in_proj_w'].T.astype(jnp.bfloat16),   # (D, 3D)
        'qkv_b': lambda p: p['in_proj_b'][None, :],                 # (1, 3D)
        'out_w': lambda p: p['out_proj_w'].T.astype(jnp.bfloat16),  # (D, D)
        'out_b': lambda p: p['out_proj_b'][None, :],
        'lin1_w': lambda p: p['lin1_w'].T.astype(jnp.bfloat16),     # (D, DFF)
        'lin1_b': lambda p: p['lin1_b'][None, :],
        'lin2_w': lambda p: p['lin2_w'].T.astype(jnp.bfloat16),     # (DFF, D)
        'lin2_b': lambda p: p['lin2_b'][None, :],
        'ln1_w': lambda p: p['ln1_w'][None, :],
        'ln1_b': lambda p: p['ln1_b'][None, :],
        'ln2_w': lambda p: p['ln2_w'][None, :],
        'ln2_b': lambda p: p['ln2_b'][None, :],
    }
    packed = {}
    for name in _PACK_ORDER:
        fn = extract[name]
        packed[name] = jnp.stack(
            [jnp.stack([fn(p) for p in node_layers], 0)
             for node_layers in layers_per_node], 0)                # (N, L, ...)
    return packed


def init_hama_params(key, *, num_nodes, num_layers, d_model, nhead, dff):
    del nhead  # head split is done in-kernel from the fused QKV result
    keys = jax.random.split(key, num_nodes * num_layers * 2)
    idx = 0
    enc_nodes, dec_nodes = [], []
    for _ in range(num_nodes):
        enc, dec = [], []
        for _ in range(num_layers):
            enc.append(init_layer_params(keys[idx], d_model, dff)); idx += 1
        for _ in range(num_layers):
            dec.append(init_layer_params(keys[idx], d_model, dff)); idx += 1
        enc_nodes.append(enc)
        dec_nodes.append(dec)
    return dict(
        encoder=pack_stack(enc_nodes),
        decoder=pack_stack(dec_nodes),
        fission_ln_w=jnp.ones((1, d_model), jnp.float32),
        fission_ln_b=jnp.zeros((1, d_model), jnp.float32),
        fusion_ln_w=jnp.ones((1, d_model), jnp.float32),
        fusion_ln_b=jnp.zeros((1, d_model), jnp.float32),
    )


# ----------------------------------------------------------------------------
if __name__ == "__main__":
    # HAMABlock config: small shapes consistent with forward: x is [B, L, D]
    B, L, D = 2, 16, 32
    NUM_NODES, PAR_LEN = 4, 8
    NHEAD, NUM_LAYERS, N_MASK = 4, 2, 2
    DFF = 2048  # nn.TransformerEncoderLayer default dim_feedforward
    # TODO(synk): dropout inside TransformerEncoderLayer is identity (eval mode).

    key = jax.random.PRNGKey(0)
    kx, kp = jax.random.split(key)
    x = jax.random.normal(kx, (B, L, D), jnp.float32)
    params = init_hama_params(kp, num_nodes=NUM_NODES, num_layers=NUM_LAYERS,
                              d_model=D, nhead=NHEAD, dff=DFF)

    fwd = jax.jit(functools.partial(
        hama_block_forward, num_nodes=NUM_NODES, par_length=PAR_LEN,
        nhead=NHEAD, n_mask=N_MASK, use_masking=True))

    y = fwd(x, params)
    jax.block_until_ready(y)
    assert y.shape == (B, L, D) and y.dtype == jnp.float32
    print("KERNEL_OK")
</pallas_src>

<mosaic_0001>
module attributes {stable_mosaic.version = 11 : i64} {
  func.func @_encoder_stack_kernel(%arg0: i32, %arg1: i32, %arg2: memref<1x32xf32, #tpu.memory_space<vmem>>, %arg3: memref<1x32xf32, #tpu.memory_space<vmem>>, %arg4: memref<1x8x32xf32, #tpu.memory_space<vmem>>, %arg5: memref<1x8x32xf32, #tpu.memory_space<vmem>>, %arg6: memref<1x2x8x32xf32, #tpu.memory_space<vmem>>, %arg7: memref<1x1x32x96xbf16, #tpu.memory_space<vmem>>, %arg8: memref<1x1x1x96xf32, #tpu.memory_space<vmem>>, %arg9: memref<1x1x32x32xbf16, #tpu.memory_space<vmem>>, %arg10: memref<1x1x1x32xf32, #tpu.memory_space<vmem>>, %arg11: memref<1x1x32x2048xbf16, #tpu.memory_space<vmem>>, %arg12: memref<1x1x1x2048xf32, #tpu.memory_space<vmem>>, %arg13: memref<1x1x2048x32xbf16, #tpu.memory_space<vmem>>, %arg14: memref<1x1x1x32xf32, #tpu.memory_space<vmem>>, %arg15: memref<1x1x1x32xf32, #tpu.memory_space<vmem>>, %arg16: memref<1x1x1x32xf32, #tpu.memory_space<vmem>>, %arg17: memref<1x1x1x32xf32, #tpu.memory_space<vmem>>, %arg18: memref<1x1x1x32xf32, #tpu.memory_space<vmem>>, %arg19: memref<1x2x8x32xbf16, #tpu.memory_space<vmem>>, %arg20: memref<1x2x8xf32, #tpu.memory_space<vmem>>, %arg21: memref<2x8x32xf32, #tpu.memory_space<vmem>>) attributes {dimension_semantics = [#tpu.dimension_semantics<parallel>, #tpu.dimension_semantics<arbitrary>], iteration_bounds = array<i64: 4, 2>, scalar_prefetch = 0 : i64, scratch_operands = 1 : i64, tpu.core_type = #tpu.core_type<tc>, window_params = [{pipeline_mode = #tpu.pipeline_mode<synchronous>, transform_indices = @transform_0, window_bounds = array<i64: 1, 32>}, {pipeline_mode = #tpu.pipeline_mode<synchronous>, transform_indices = @transform_1, window_bounds = array<i64: 1, 32>}, {transform_indices = @transform_2, window_bounds = array<i64: 1, 8, 32>}, {transform_indices = @transform_3, window_bounds = array<i64: 1, 8, 32>}, {transform_indices = @transform_4, window_bounds = array<i64: 1, 2, 8, 32>}, {transform_indices = @transform_5, window_bounds = array<i64: 1, 1, 32, 96>}, {transform_indices = @transform_6, window_bounds = array<i64: 1, 1, 1, 96>}, {transform_indices = @transform_7, window_bounds = array<i64: 1, 1, 32, 32>}, {transform_indices = @transform_8, window_bounds = array<i64: 1, 1, 1, 32>}, {transform_indices = @transform_9, window_bounds = array<i64: 1, 1, 32, 2048>}, {transform_indices = @transform_10, window_bounds = array<i64: 1, 1, 1, 2048>}, {transform_indices = @transform_11, window_bounds = array<i64: 1, 1, 2048, 32>}, {transform_indices = @transform_12, window_bounds = array<i64: 1, 1, 1, 32>}, {transform_indices = @transform_13, window_bounds = array<i64: 1, 1, 1, 32>}, {transform_indices = @transform_14, window_bounds = array<i64: 1, 1, 1, 32>}, {transform_indices = @transform_15, window_bounds = array<i64: 1, 1, 1, 32>}, {transform_indices = @transform_16, window_bounds = array<i64: 1, 1, 1, 32>}, {transform_indices = @transform_17, window_bounds = array<i64: 1, 2, 8, 32>}, {transform_indices = @transform_18, window_bounds = array<i64: 1, 2, 8>}]} {
    %c0_i32 = arith.constant 0 : i32
    %0 = arith.cmpi eq, %arg1, %c0_i32 : i32
    %1 = arith.extui %0 : i1 to i32
    %c0_i32_0 = arith.constant 0 : i32
    %2 = arith.cmpi ne, %1, %c0_i32_0 : i32
    scf.if %2 {
      %c0_74 = arith.constant 0 : index
      %c0_75 = arith.constant 0 : index
      %c0_76 = arith.constant 0 : index
      %c0_77 = arith.constant 0 : index
      %172 = vector.load %arg6[%c0_74, %c0_75, %c0_76, %c0_77] : memref<1x2x8x32xf32, #tpu.memory_space<vmem>>, vector<1x2x8x32xf32>
      %173 = vector.shape_cast %172 : vector<1x2x8x32xf32> to vector<2x8x32xf32>
      %c0_78 = arith.constant 0 : index
      %c0_79 = arith.constant 0 : index
      %174 = vector.load %arg2[%c0_78, %c0_79] : memref<1x32xf32, #tpu.memory_space<vmem>>, vector<1x32xf32>
      %c0_80 = arith.constant 0 : index
      %c0_81 = arith.constant 0 : index
      %175 = vector.load %arg3[%c0_80, %c0_81] : memref<1x32xf32, #tpu.memory_space<vmem>>, vector<1x32xf32>
      %cst_82 = arith.constant dense<0.000000e+00> : vector<2x8xf32>
      %176 = vector.multi_reduction <add>, %173, %cst_82 [2] : vector<2x8x32xf32> to vector<2x8xf32>
      %177 = vector.shape_cast %176 : vector<2x8xf32> to vector<2x8x1xf32>
      %cst_83 = arith.constant 3.200000e+01 : f32
      %178 = vector.broadcast %cst_83 : f32 to vector<2x8x1xf32>
      %179 = arith.divf %177, %178 : vector<2x8x1xf32>
      %180 = vector.broadcast %179 : vector<2x8x1xf32> to vector<2x8x32xf32>
      %181 = arith.subf %173, %180 : vector<2x8x32xf32>
      %182 = vector.broadcast %179 : vector<2x8x1xf32> to vector<2x8x32xf32>
      %183 = arith.subf %173, %182 : vector<2x8x32xf32>
      %184 = arith.mulf %181, %183 : vector<2x8x32xf32>
      %cst_84 = arith.constant dense<0.000000e+00> : vector<2x8xf32>
      %185 = vector.multi_reduction <add>, %184, %cst_84 [2] : vector<2x8x32xf32> to vector<2x8xf32>
      %186 = vector.shape_cast %185 : vector<2x8xf32> to vector<2x8x1xf32>
      %cst_85 = arith.constant 3.200000e+01 : f32
      %187 = vector.broadcast %cst_85 : f32 to vector<2x8x1xf32>
      %188 = arith.divf %186, %187 : vector<2x8x1xf32>
      %189 = vector.broadcast %179 : vector<2x8x1xf32> to vector<2x8x32xf32>
      %190 = arith.subf %173, %189 : vector<2x8x32xf32>
      %cst_86 = arith.constant 9.99999974E-6 : f32
      %191 = vector.broadcast %cst_86 : f32 to vector<2x8x1xf32>
      %192 = arith.addf %188, %191 : vector<2x8x1xf32>
      %193 = math.rsqrt %192 : vector<2x8x1xf32>
      %194 = vector.broadcast %193 : vector<2x8x1xf32> to vector<2x8x32xf32>
      %195 = arith.mulf %190, %194 : vector<2x8x32xf32>
      %196 = vector.shape_cast %174 : vector<1x32xf32> to vector<1x1x32xf32>
      %197 = vector.broadcast %196 : vector<1x1x32xf32> to vector<2x8x32xf32>
      %198 = arith.mulf %195, %197 : vector<2x8x32xf32>
      %199 = vector.shape_cast %175 : vector<1x32xf32> to vector<1x1x32xf32>
      %200 = vector.broadcast %199 : vector<1x1x32xf32> to vector<2x8x32xf32>
      %201 = arith.addf %198, %200 : vector<2x8x32xf32>
      %c0_87 = arith.constant 0 : index
      %c0_88 = arith.constant 0 : index
      %c0_89 = arith.constant 0 : index
      %202 = vector.load %arg4[%c0_87, %c0_88, %c0_89] : memref<1x8x32xf32, #tpu.memory_space<vmem>>, vector<1x8x32xf32>
      %203 = vector.shape_cast %202 : vector<1x8x32xf32> to vector<8x32xf32>
      %204 = vector.shape_cast %203 : vector<8x32xf32> to vector<1x8x32xf32>
      %205 = vector.broadcast %204 : vector<1x8x32xf32> to vector<2x8x32xf32>
      %206 = arith.mulf %201, %205 : vector<2x8x32xf32>
      %c0_90 = arith.constant 0 : index
      %c0_91 = arith.constant 0 : index
      %c0_92 = arith.constant 0 : index
      %207 = vector.load %arg5[%c0_90, %c0_91, %c0_92] : memref<1x8x32xf32, #tpu.memory_space<vmem>>, vector<1x8x32xf32>
      %208 = vector.shape_cast %207 : vector<1x8x32xf32> to vector<8x32xf32>
      %209 = vector.shape_cast %208 : vector<8x32xf32> to vector<1x8x32xf32>
      %210 = vector.broadcast %209 : vector<1x8x32xf32> to vector<2x8x32xf32>
      %211 = arith.addf %206, %210 : vector<2x8x32xf32>
      %c0_93 = arith.constant 0 : index
      %c0_94 = arith.constant 0 : index
      %c0_95 = arith.constant 0 : index
      %212 = vector.load %arg21[%c0_93, %c0_94, %c0_95] : memref<2x8x32xf32, #tpu.memory_space<vmem>>, vector<2x8x32xf32>
      tpu.vector_store %arg21[%c0_93, %c0_94, %c0_95], %211 {strides = array<i32>} : memref<2x8x32xf32, #tpu.memory_space<vmem>>, vector<2x8x32xf32>,
    } else {
    }
    %c0 = arith.constant 0 : index
    %c0_1 = arith.constant 0 : index
    %c0_2 = arith.constant 0 : index
    %3 = vector.load %arg21[%c0, %c0_1, %c0_2] : memref<2x8x32xf32, #tpu.memory_space<vmem>>, vector<2x8x32xf32>
    %4 = vector.shape_cast %3 : vector<2x8x32xf32> to vector<16x32xf32>
    %5 = arith.truncf %4 : vector<16x32xf32> to vector<16x32xbf16>
    %c0_3 = arith.constant 0 : index
    %c0_4 = arith.constant 0 : index
    %c0_5 = arith.constant 0 : index
    %c0_6 = arith.constant 0 : index
    %6 = vector.load %arg7[%c0_3, %c0_4, %c0_5, %c0_6] : memref<1x1x32x96xbf16, #tpu.memory_space<vmem>>, vector<1x1x32x96xbf16>
    %7 = vector.shape_cast %6 : vector<1x1x32x96xbf16> to vector<32x96xbf16>
    %cst = arith.constant dense<0.000000e+00> : vector<16x96xf32>
    %8 = tpu.matmul %5, %7, %cst {dimension_numbers = #tpu.dot_dimension_numbers<[1], [0], [0], [1], [0, 0, 1, 1], [], []>} : vector<16x32xbf16>, vector<32x96xbf16>, vector<16x96xf32> -> vector<16x96xf32>
    %c0_7 = arith.constant 0 : index
    %c0_8 = arith.constant 0 : index
    %c0_9 = arith.constant 0 : index
    %c0_10 = arith.constant 0 : index
    %9 = vector.load %arg8[%c0_7, %c0_8, %c0_9, %c0_10] : memref<1x1x1x96xf32, #tpu.memory_space<vmem>>, vector<1x1x1x96xf32>
    %10 = vector.shape_cast %9 : vector<1x1x1x96xf32> to vector<1x96xf32>
    %11 = vector.broadcast %10 : vector<1x96xf32> to vector<16x96xf32>
    %12 = arith.addf %8, %11 : vector<16x96xf32>
    %13 = vector.extract_strided_slice %12 {offsets = [0, 0], sizes = [16, 8], strides = [1, 1]} : vector<16x96xf32> to vector<16x8xf32>
    %14 = vector.shape_cast %13 : vector<16x8xf32> to vector<2x8x8xf32>
    %15 = vector.extract_strided_slice %12 {offsets = [0, 8], sizes = [16, 8], strides = [1, 1]} : vector<16x96xf32> to vector<16x8xf32>
    %16 = vector.shape_cast %15 : vector<16x8xf32> to vector<2x8x8xf32>
    %17 = vector.extract_strided_slice %12 {offsets = [0, 16], sizes = [16, 8], strides = [1, 1]} : vector<16x96xf32> to vector<16x8xf32>
    %18 = vector.shape_cast %17 : vector<16x8xf32> to vector<2x8x8xf32>
    %19 = vector.extract_strided_slice %12 {offsets = [0, 24], sizes = [16, 8], strides = [1, 1]} : vector<16x96xf32> to vector<16x8xf32>
    %20 = vector.shape_cast %19 : vector<16x8xf32> to vector<2x8x8xf32>
    %21 = vector.shape_cast %14 : vector<2x8x8xf32> to vector<1x2x8x8xf32>
    %22 = vector.shape_cast %16 : vector<2x8x8xf32> to vector<1x2x8x8xf32>
    %23 = vector.shape_cast %18 : vector<2x8x8xf32> to vector<1x2x8x8xf32>
    %24 = vector.shape_cast %20 : vector<2x8x8xf32> to vector<1x2x8x8xf32>
    %25 = tpu.concatenate %21, %22, %23, %24 in 0 : vector<1x2x8x8xf32>, vector<1x2x8x8xf32>, vector<1x2x8x8xf32>, vector<1x2x8x8xf32> -> vector<4x2x8x8xf32>
    %26 = vector.shape_cast %25 : vector<4x2x8x8xf32> to vector<8x8x8xf32>
    %27 = arith.truncf %26 : vector<8x8x8xf32> to vector<8x8x8xbf16>
    %28 = vector.extract_strided_slice %12 {offsets = [0, 32], sizes = [16, 8], strides = [1, 1]} : vector<16x96xf32> to vector<16x8xf32>
    %29 = vector.shape_cast %28 : vector<16x8xf32> to vector<2x8x8xf32>
    %30 = vector.extract_strided_slice %12 {offsets = [0, 40], sizes = [16, 8], strides = [1, 1]} : vector<16x96xf32> to vector<16x8xf32>
    %31 = vector.shape_cast %30 : vector<16x8xf32> to vector<2x8x8xf32>
    %32 = vector.extract_strided_slice %12 {offsets = [0, 48], sizes = [16, 8], strides = [1, 1]} : vector<16x96xf32> to vector<16x8xf32>
    %33 = vector.shape_cast %32 : vector<16x8xf32> to vector<2x8x8xf32>
    %34 = vector.extract_strided_slice %12 {offsets = [0, 56], sizes = [16, 8], strides = [1, 1]} : vector<16x96xf32> to vector<16x8xf32>
    %35 = vector.shape_cast %34 : vector<16x8xf32> to vector<2x8x8xf32>
    %36 = vector.shape_cast %29 : vector<2x8x8xf32> to vector<1x2x8x8xf32>
    %37 = vector.shape_cast %31 : vector<2x8x8xf32> to vector<1x2x8x8xf32>
    %38 = vector.shape_cast %33 : vector<2x8x8xf32> to vector<1x2x8x8xf32>
    %39 = vector.shape_cast %35 : vector<2x8x8xf32> to vector<1x2x8x8xf32>
    %40 = tpu.concatenate %36, %37, %38, %39 in 0 : vector<1x2x8x8xf32>, vector<1x2x8x8xf32>, vector<1x2x8x8xf32>, vector<1x2x8x8xf32> -> vector<4x2x8x8xf32>
    %41 = vector.shape_cast %40 : vector<4x2x8x8xf32> to vector<8x8x8xf32>
    %42 = arith.truncf %41 : vector<8x8x8xf32> to vector<8x8x8xbf16>
    %43 = vector.extract_strided_slice %12 {offsets = [0, 64], sizes = [16, 8], strides = [1, 1]} : vector<16x96xf32> to vector<16x8xf32>
    %44 = vector.shape_cast %43 : vector<16x8xf32> to vector<2x8x8xf32>
    %45 = vector.extract_strided_slice %12 {offsets = [0, 72], sizes = [16, 8], strides = [1, 1]} : vector<16x96xf32> to vector<16x8xf32>
    %46 = vector.shape_cast %45 : vector<16x8xf32> to vector<2x8x8xf32>
    %47 = vector.extract_strided_slice %12 {offsets = [0, 80], sizes = [16, 8], strides = [1, 1]} : vector<16x96xf32> to vector<16x8xf32>
    %48 = vector.shape_cast %47 : vector<16x8xf32> to vector<2x8x8xf32>
    %49 = vector.extract_strided_slice %12 {offsets = [0, 88], sizes = [16, 8], strides = [1, 1]} : vector<16x96xf32> to vector<16x8xf32>
    %50 = vector.shape_cast %49 : vector<16x8xf32> to vector<2x8x8xf32>
    %51 = vector.shape_cast %44 : vector<2x8x8xf32> to vector<1x2x8x8xf32>
    %52 = vector.shape_cast %46 : vector<2x8x8xf32> to vector<1x2x8x8xf32>
    %53 = vector.shape_cast %48 : vector<2x8x8xf32> to vector<1x2x8x8xf32>
    %54 = vector.shape_cast %50 : vector<2x8x8xf32> to vector<1x2x8x8xf32>
    %55 = tpu.concatenate %51, %52, %53, %54 in 0 : vector<1x2x8x8xf32>, vector<1x2x8x8xf32>, vector<1x2x8x8xf32>, vector<1x2x8x8xf32> -> vector<4x2x8x8xf32>
    %56 = vector.shape_cast %55 : vector<4x2x8x8xf32> to vector<8x8x8xf32>
    %57 = arith.truncf %56 : vector<8x8x8xf32> to vector<8x8x8xbf16>
    "tpu.trace_start"() <{level = 10 : i32, message = "nqd,nkd->nqk"}> : () -> ()
    %cst_11 = arith.constant dense<0.000000e+00> : vector<8x8x8xf32>
    %58 = tpu.matmul %27, %42, %cst_11 {dimension_numbers = #tpu.dot_dimension_numbers<[2], [2], [1], [1], [0, 0, 0, 1, 1, 1], [0], [0]>} : vector<8x8x8xbf16>, vector<8x8x8xbf16>, vector<8x8x8xf32> -> vector<8x8x8xf32>
    "tpu.trace_stop"() : () -> ()
    %cst_12 = arith.constant 0.353553385 : f32
    %59 = vector.broadcast %cst_12 : f32 to vector<8x8x8xf32>
    %60 = arith.mulf %58, %59 : vector<8x8x8xf32>
    %cst_13 = arith.constant dense<0xFF800000> : vector<8x8xf32>
    %61 = vector.multi_reduction <maximumf>, %60, %cst_13 [2] : vector<8x8x8xf32> to vector<8x8xf32>
    %62 = vector.shape_cast %61 : vector<8x8xf32> to vector<8x8x1xf32>
    %63 = vector.broadcast %62 : vector<8x8x1xf32> to vector<8x8x8xf32>
    %64 = arith.subf %60, %63 : vector<8x8x8xf32>
    %65 = math.exp %64 : vector<8x8x8xf32>
    %cst_14 = arith.constant dense<0.000000e+00> : vector<8x8xf32>
    %66 = vector.multi_reduction <add>, %65, %cst_14 [2] : vector<8x8x8xf32> to vector<8x8xf32>
    %67 = vector.shape_cast %66 : vector<8x8xf32> to vector<8x8x1xf32>
    %68 = vector.broadcast %67 : vector<8x8x1xf32> to vector<8x8x8xf32>
    %69 = arith.divf %65, %68 : vector<8x8x8xf32>
    %70 = arith.truncf %69 : vector<8x8x8xf32> to vector<8x8x8xbf16>
    "tpu.trace_start"() <{level = 10 : i32, message = "nqk,nkd->nqd"}> : () -> ()
    %cst_15 = arith.constant dense<0.000000e+00> : vector<8x8x8xf32>
    %71 = tpu.matmul %70, %57, %cst_15 {dimension_numbers = #tpu.dot_dimension_numbers<[2], [1], [1], [2], [0, 0, 0, 1, 1, 2], [0], [0]>} : vector<8x8x8xbf16>, vector<8x8x8xbf16>, vector<8x8x8xf32> -> vector<8x8x8xf32>
    "tpu.trace_stop"() : () -> ()
    %72 = vector.shape_cast %71 : vector<8x8x8xf32> to vector<4x2x8x8xf32>
    %73 = vector.extract_strided_slice %72 {offsets = [0, 0, 0, 0], sizes = [1, 2, 8, 8], strides = [1, 1, 1, 1]} : vector<4x2x8x8xf32> to vector<1x2x8x8xf32>
    %74 = vector.shape_cast %73 : vector<1x2x8x8xf32> to vector<2x8x8xf32>
    %75 = vector.extract_strided_slice %72 {offsets = [1, 0, 0, 0], sizes = [1, 2, 8, 8], strides = [1, 1, 1, 1]} : vector<4x2x8x8xf32> to vector<1x2x8x8xf32>
    %76 = vector.shape_cast %75 : vector<1x2x8x8xf32> to vector<2x8x8xf32>
    %77 = vector.extract_strided_slice %72 {offsets = [2, 0, 0, 0], sizes = [1, 2, 8, 8], strides = [1, 1, 1, 1]} : vector<4x2x8x8xf32> to vector<1x2x8x8xf32>
    %78 = vector.shape_cast %77 : vector<1x2x8x8xf32> to vector<2x8x8xf32>
    %79 = vector.extract_strided_slice %72 {offsets = [3, 0, 0, 0], sizes = [1, 2, 8, 8], strides = [1, 1, 1, 1]} : vector<4x2x8x8xf32> to vector<1x2x8x8xf32>
    %80 = vector.shape_cast %79 : vector<1x2x8x8xf32> to vector<2x8x8xf32>
    %81 = tpu.concatenate %74, %76, %78, %80 in 2 : vector<2x8x8xf32>, vector<2x8x8xf32>, vector<2x8x8xf32>, vector<2x8x8xf32> -> vector<2x8x32xf32>
    %82 = vector.shape_cast %81 : vector<2x8x32xf32> to vector<16x32xf32>
    %83 = arith.truncf %82 : vector<16x32xf32> to vector<16x32xbf16>
    %c0_16 = arith.constant 0 : index
    %c0_17 = arith.constant 0 : index
    %c0_18 = arith.constant 0 : index
    %c0_19 = arith.constant 0 : index
    %84 = vector.load %arg9[%c0_16, %c0_17, %c0_18, %c0_19] : memref<1x1x32x32xbf16, #tpu.memory_space<vmem>>, vector<1x1x32x32xbf16>
    %85 = vector.shape_cast %84 : vector<1x1x32x32xbf16> to vector<32x32xbf16>
    %cst_20 = arith.constant dense<0.000000e+00> : vector<16x32xf32>
    %86 = tpu.matmul %83, %85, %cst_20 {dimension_numbers = #tpu.dot_dimension_numbers<[1], [0], [0], [1], [0, 0, 1, 1], [], []>} : vector<16x32xbf16>, vector<32x32xbf16>, vector<16x32xf32> -> vector<16x32xf32>
    %c0_21 = arith.constant 0 : index
    %c0_22 = arith.constant 0 : index
    %c0_23 = arith.constant 0 : index
    %c0_24 = arith.constant 0 : index
    %87 = vector.load %arg10[%c0_21, %c0_22, %c0_23, %c0_24] : memref<1x1x1x32xf32, #tpu.memory_space<vmem>>, vector<1x1x1x32xf32>
    %88 = vector.shape_cast %87 : vector<1x1x1x32xf32> to vector<1x32xf32>
    %89 = vector.broadcast %88 : vector<1x32xf32> to vector<16x32xf32>
    %90 = arith.addf %86, %89 : vector<16x32xf32>
    %91 = arith.addf %4, %90 : vector<16x32xf32>
    %c0_25 = arith.constant 0 : index
    %c0_26 = arith.constant 0 : index
    %c0_27 = arith.constant 0 : index
    %c0_28 = arith.constant 0 : index
    %92 = vector.load %arg15[%c0_25, %c0_26, %c0_27, %c0_28] : memref<1x1x1x32xf32, #tpu.memory_space<vmem>>, vector<1x1x1x32xf32>
    %93 = vector.shape_cast %92 : vector<1x1x1x32xf32> to vector<1x32xf32>
    %c0_29 = arith.constant 0 : index
    %c0_30 = arith.constant 0 : index
    %c0_31 = arith.constant 0 : index
    %c0_32 = arith.constant 0 : index
    %94 = vector.load %arg16[%c0_29, %c0_30, %c0_31, %c0_32] : memref<1x1x1x32xf32, #tpu.memory_space<vmem>>, vector<1x1x1x32xf32>
    %95 = vector.shape_cast %94 : vector<1x1x1x32xf32> to vector<1x32xf32>
    %cst_33 = arith.constant dense<0.000000e+00> : vector<16xf32>
    %96 = vector.multi_reduction <add>, %91, %cst_33 [1] : vector<16x32xf32> to vector<16xf32>
    %97 = vector.shape_cast %96 : vector<16xf32> to vector<16x1xf32>
    %cst_34 = arith.constant 3.200000e+01 : f32
    %98 = vector.broadcast %cst_34 : f32 to vector<16x1xf32>
    %99 = arith.divf %97, %98 : vector<16x1xf32>
    %100 = vector.broadcast %99 : vector<16x1xf32> to vector<16x32xf32>
    %101 = arith.subf %91, %100 : vector<16x32xf32>
    %102 = vector.broadcast %99 : vector<16x1xf32> to vector<16x32xf32>
    %103 = arith.subf %91, %102 : vector<16x32xf32>
    %104 = arith.mulf %101, %103 : vector<16x32xf32>
    %cst_35 = arith.constant dense<0.000000e+00> : vector<16xf32>
    %105 = vector.multi_reduction <add>, %104, %cst_35 [1] : vector<16x32xf32> to vector<16xf32>
    %106 = vector.shape_cast %105 : vector<16xf32> to vector<16x1xf32>
    %cst_36 = arith.constant 3.200000e+01 : f32
    %107 = vector.broadcast %cst_36 : f32 to vector<16x1xf32>
    %108 = arith.divf %106, %107 : vector<16x1xf32>
    %109 = vector.broadcast %99 : vector<16x1xf32> to vector<16x32xf32>
    %110 = arith.subf %91, %109 : vector<16x32xf32>
    %cst_37 = arith.constant 9.99999974E-6 : f32
    %111 = vector.broadcast %cst_37 : f32 to vector<16x1xf32>
    %112 = arith.addf %108, %111 : vector<16x1xf32>
    %113 = math.rsqrt %112 : vector<16x1xf32>
    %114 = vector.broadcast %113 : vector<16x1xf32> to vector<16x32xf32>
    %115 = arith.mulf %110, %114 : vector<16x32xf32>
    %116 = vector.broadcast %93 : vector<1x32xf32> to vector<16x32xf32>
    %117 = arith.mulf %115, %116 : vector<16x32xf32>
    %118 = vector.broadcast %95 : vector<1x32xf32> to vector<16x32xf32>
    %119 = arith.addf %117, %118 : vector<16x32xf32>
    %120 = arith.truncf %119 : vector<16x32xf32> to vector<16x32xbf16>
    %c0_38 = arith.constant 0 : index
    %c0_39 = arith.constant 0 : index
    %c0_40 = arith.constant 0 : index
    %c0_41 = arith.constant 0 : index
    %121 = vector.load %arg11[%c0_38, %c0_39, %c0_40, %c0_41] : memref<1x1x32x2048xbf16, #tpu.memory_space<vmem>>, vector<1x1x32x2048xbf16>
    %122 = vector.shape_cast %121 : vector<1x1x32x2048xbf16> to vector<32x2048xbf16>
    %cst_42 = arith.constant dense<0.000000e+00> : vector<16x2048xf32>
    %123 = tpu.matmul %120, %122, %cst_42 {dimension_numbers = #tpu.dot_dimension_numbers<[1], [0], [0], [1], [0, 0, 1, 1], [], []>} : vector<16x32xbf16>, vector<32x2048xbf16>, vector<16x2048xf32> -> vector<16x2048xf32>
    %c0_43 = arith.constant 0 : index
    %c0_44 = arith.constant 0 : index
    %c0_45 = arith.constant 0 : index
    %c0_46 = arith.constant 0 : index
    %124 = vector.load %arg12[%c0_43, %c0_44, %c0_45, %c0_46] : memref<1x1x1x2048xf32, #tpu.memory_space<vmem>>, vector<1x1x1x2048xf32>
    %125 = vector.shape_cast %124 : vector<1x1x1x2048xf32> to vector<1x2048xf32>
    %126 = vector.broadcast %125 : vector<1x2048xf32> to vector<16x2048xf32>
    %127 = arith.addf %123, %126 : vector<16x2048xf32>
    %cst_47 = arith.constant 0.000000e+00 : f32
    %128 = vector.broadcast %cst_47 : f32 to vector<16x2048xf32>
    %129 = arith.maximumf %127, %128 : vector<16x2048xf32>
    %130 = arith.truncf %129 : vector<16x2048xf32> to vector<16x2048xbf16>
    %c0_48 = arith.constant 0 : index
    %c0_49 = arith.constant 0 : index
    %c0_50 = arith.constant 0 : index
    %c0_51 = arith.constant 0 : index
    %131 = vector.load %arg13[%c0_48, %c0_49, %c0_50, %c0_51] : memref<1x1x2048x32xbf16, #tpu.memory_space<vmem>>, vector<1x1x2048x32xbf16>
    %132 = vector.shape_cast %131 : vector<1x1x2048x32xbf16> to vector<2048x32xbf16>
    %cst_52 = arith.constant dense<0.000000e+00> : vector<16x32xf32>
    %133 = tpu.matmul %130, %132, %cst_52 {dimension_numbers = #tpu.dot_dimension_numbers<[1], [0], [0], [1], [0, 0, 1, 1], [], []>} : vector<16x2048xbf16>, vector<2048x32xbf16>, vector<16x32xf32> -> vector<16x32xf32>
    %c0_53 = arith.constant 0 : index
    %c0_54 = arith.constant 0 : index
    %c0_55 = arith.constant 0 : index
    %c0_56 = arith.constant 0 : index
    %134 = vector.load %arg14[%c0_53, %c0_54, %c0_55, %c0_56] : memref<1x1x1x32xf32, #tpu.memory_space<vmem>>, vector<1x1x1x32xf32>
    %135 = vector.shape_cast %134 : vector<1x1x1x32xf32> to vector<1x32xf32>
    %136 = vector.broadcast %135 : vector<1x32xf32> to vector<16x32xf32>
    %137 = arith.addf %133, %136 : vector<16x32xf32>
    %138 = arith.addf %119, %137 : vector<16x32xf32>
    %c0_57 = arith.constant 0 : index
    %c0_58 = arith.constant 0 : index
    %c0_59 = arith.constant 0 : index
    %c0_60 = arith.constant 0 : index
    %139 = vector.load %arg17[%c0_57, %c0_58, %c0_59, %c0_60] : memref<1x1x1x32xf32, #tpu.memory_space<vmem>>, vector<1x1x1x32xf32>
    %140 = vector.shape_cast %139 : vector<1x1x1x32xf32> to vector<1x32xf32>
    %c0_61 = arith.constant 0 : index
    %c0_62 = arith.constant 0 : index
    %c0_63 = arith.constant 0 : index
    %c0_64 = arith.constant 0 : index
    %141 = vector.load %arg18[%c0_61, %c0_62, %c0_63, %c0_64] : memref<1x1x1x32xf32, #tpu.memory_space<vmem>>, vector<1x1x1x32xf32>
    %142 = vector.shape_cast %141 : vector<1x1x1x32xf32> to vector<1x32xf32>
    %cst_65 = arith.constant dense<0.000000e+00> : vector<16xf32>
    %143 = vector.multi_reduction <add>, %138, %cst_65 [1] : vector<16x32xf32> to vector<16xf32>
    %144 = vector.shape_cast %143 : vector<16xf32> to vector<16x1xf32>
    %cst_66 = arith.constant 3.200000e+01 : f32
    %145 = vector.broadcast %cst_66 : f32 to vector<16x1xf32>
    %146 = arith.divf %144, %145 : vector<16x1xf32>
    %147 = vector.broadcast %146 : vector<16x1xf32> to vector<16x32xf32>
    %148 = arith.subf %138, %147 : vector<16x32xf32>
    %149 = vector.broadcast %146 : vector<16x1xf32> to vector<16x32xf32>
    %150 = arith.subf %138, %149 : vector<16x32xf32>
    %151 = arith.mulf %148, %150 : vector<16x32xf32>
    %cst_67 = arith.constant dense<0.000000e+00> : vector<16xf32>
    %152 = vector.multi_reduction <add>, %151, %cst_67 [1] : vector<16x32xf32> to vector<16xf32>
    %153 = vector.shape_cast %152 : vector<16xf32> to vector<16x1xf32>
    %cst_68 = arith.constant 3.200000e+01 : f32
    %154 = vector.broadcast %cst_68 : f32 to vector<16x1xf32>
    %155 = arith.divf %153, %154 : vector<16x1xf32>
    %156 = vector.broadcast %146 : vector<16x1xf32> to vector<16x32xf32>
    %157 = arith.subf %138, %156 : vector<16x32xf32>
    %cst_69 = arith.constant 9.99999974E-6 : f32
    %158 = vector.broadcast %cst_69 : f32 to vector<16x1xf32>
    %159 = arith.addf %155, %158 : vector<16x1xf32>
    %160 = math.rsqrt %159 : vector<16x1xf32>
    %161 = vector.broadcast %160 : vector<16x1xf32> to vector<16x32xf32>
    %162 = arith.mulf %157, %161 : vector<16x32xf32>
    %163 = vector.broadcast %140 : vector<1x32xf32> to vector<16x32xf32>
    %164 = arith.mulf %162, %163 : vector<16x32xf32>
    %165 = vector.broadcast %142 : vector<1x32xf32> to vector<16x32xf32>
    %166 = arith.addf %164, %165 : vector<16x32xf32>
    %167 = vector.shape_cast %166 : vector<16x32xf32> to vector<2x8x32xf32>
    %c0_70 = arith.constant 0 : index
    %c0_71 = arith.constant 0 : index
    %c0_72 = arith.constant 0 : index
    %168 = vector.load %arg21[%c0_70, %c0_71, %c0_72] : memref<2x8x32xf32, #tpu.memory_space<vmem>>, vector<2x8x32xf32>
    tpu.vector_store %arg21[%c0_70, %c0_71, %c0_72], %167 {strides = array<i32>} : memref<2x8x32xf32, #tpu.memory_space<vmem>>, vector<2x8x32xf32>,
    %c1_i32 = arith.constant 1 : i32
    %169 = arith.cmpi eq, %arg1, %c1_i32 : i32
    %170 = arith.extui %169 : i1 to i32
    %c0_i32_73 = arith.constant 0 : i32
    %171 = arith.cmpi ne, %170, %c0_i32_73 : i32
    scf.if %171 {
      %172 = arith.truncf %167 : vector<2x8x32xf32> to vector<2x8x32xbf16>
      %c0_74 = arith.constant 0 : index
      %c0_75 = arith.constant 0 : index
      %c0_76 = arith.constant 0 : index
      %c0_77 = arith.constant 0 : index
      %173 = vector.load %arg19[%c0_74, %c0_75, %c0_76, %c0_77] : memref<1x2x8x32xbf16, #tpu.memory_space<vmem>>, vector<1x2x8x32xbf16>
      %174 = vector.shape_cast %173 : vector<1x2x8x32xbf16> to vector<2x8x32xbf16>
      %175 = vector.shape_cast %172 : vector<2x8x32xbf16> to vector<1x2x8x32xbf16>
      tpu.vector_store %arg19[%c0_74, %c0_75, %c0_76, %c0_77], %175 {strides = array<i32>} : memref<1x2x8x32xbf16, #tpu.memory_space<vmem>>, vector<1x2x8x32xbf16>,
      %176 = arith.mulf %167, %167 : vector<2x8x32xf32>
      %cst_78 = arith.constant dense<0.000000e+00> : vector<2x8xf32>
      %177 = vector.multi_reduction <add>, %176, %cst_78 [2] : vector<2x8x32xf32> to vector<2x8xf32>
      %178 = math.sqrt %177 : vector<2x8xf32>
      %c0_79 = arith.constant 0 : index
      %c0_80 = arith.constant 0 : index
      %c0_81 = arith.constant 0 : index
      %179 = vector.load %arg20[%c0_79, %c0_80, %c0_81] : memref<1x2x8xf32, #tpu.memory_space<vmem>>, vector<1x2x8xf32>
      %180 = vector.shape_cast %179 : vector<1x2x8xf32> to vector<2x8xf32>
      %181 = vector.shape_cast %178 : vector<2x8xf32> to vector<1x2x8xf32>
      tpu.vector_store %arg20[%c0_79, %c0_80, %c0_81], %181 {strides = array<i32>} : memref<1x2x8xf32, #tpu.memory_space<vmem>>, vector<1x2x8xf32>,
    } else {
    }
    return
  }
  func.func @transform_0(%arg0: i32, %arg1: i32) -> (i32, i32) {
    %c0_i32 = arith.constant 0 : i32
    %c0_i32_0 = arith.constant 0 : i32
    %c0_i32_1 = arith.constant 0 : i32
    return %c0_i32, %c0_i32_0 : i32, i32
  }
  func.func @transform_1(%arg0: i32, %arg1: i32) -> (i32, i32) {
    %c0_i32 = arith.constant 0 : i32
    %c0_i32_0 = arith.constant 0 : i32
    %c0_i32_1 = arith.constant 0 : i32
    return %c0_i32, %c0_i32_0 : i32, i32
  }
  func.func @transform_2(%arg0: i32, %arg1: i32) -> (i32, i32, i32) {
    %c0_i32 = arith.constant 0 : i32
    %c0_i32_0 = arith.constant 0 : i32
    %c0_i32_1 = arith.constant 0 : i32
    return %arg0, %c0_i32, %c0_i32_0 : i32, i32, i32
  }
  func.func @transform_3(%arg0: i32, %arg1: i32) -> (i32, i32, i32) {
    %c0_i32 = arith.constant 0 : i32
    %c0_i32_0 = arith.constant 0 : i32
    %c0_i32_1 = arith.constant 0 : i32
    return %arg0, %c0_i32, %c0_i32_0 : i32, i32, i32
  }
  func.func @transform_4(%arg0: i32, %arg1: i32) -> (i32, i32, i32, i32) {
    %c0_i32 = arith.constant 0 : i32
    %c0_i32_0 = arith.constant 0 : i32
    %c0_i32_1 = arith.constant 0 : i32
    %c0_i32_2 = arith.constant 0 : i32
    return %arg0, %c0_i32, %c0_i32_0, %c0_i32_1 : i32, i32, i32, i32
  }
  func.func @transform_5(%arg0: i32, %arg1: i32) -> (i32, i32, i32, i32) {
    %c0_i32 = arith.constant 0 : i32
    %c0_i32_0 = arith.constant 0 : i32
    %c0_i32_1 = arith.constant 0 : i32
    return %arg0, %arg1, %c0_i32, %c0_i32_0 : i32, i32, i32, i32
  }
  func.func @transform_6(%arg0: i32, %arg1: i32) -> (i32, i32, i32, i32) {
    %c0_i32 = arith.constant 0 : i32
    %c0_i32_0 = arith.constant 0 : i32
    %c0_i32_1 = arith.constant 0 : i32
    return %arg0, %arg1, %c0_i32, %c0_i32_0 : i32, i32, i32, i32
  }
  func.func @transform_7(%arg0: i32, %arg1: i32) -> (i32, i32, i32, i32) {
    %c0_i32 = arith.constant 0 : i32
    %c0_i32_0 = arith.constant 0 : i32
    %c0_i32_1 = arith.constant 0 : i32
    return %arg0, %arg1, %c0_i32, %c0_i32_0 : i32, i32, i32, i32
  }
  func.func @transform_8(%arg0: i32, %arg1: i32) -> (i32, i32, i32, i32) {
    %c0_i32 = arith.constant 0 : i32
    %c0_i32_0 = arith.constant 0 : i32
    %c0_i32_1 = arith.constant 0 : i32
    return %arg0, %arg1, %c0_i32, %c0_i32_0 : i32, i32, i32, i32
  }
  func.func @transform_9(%arg0: i32, %arg1: i32) -> (i32, i32, i32, i32) {
    %c0_i32 = arith.constant 0 : i32
    %c0_i32_0 = arith.constant 0 : i32
    %c0_i32_1 = arith.constant 0 : i32
    return %arg0, %arg1, %c0_i32, %c0_i32_0 : i32, i32, i32, i32
  }
  func.func @transform_10(%arg0: i32, %arg1: i32) -> (i32, i32, i32, i32) {
    %c0_i32 = arith.constant 0 : i32
    %c0_i32_0 = arith.constant 0 : i32
    %c0_i32_1 = arith.constant 0 : i32
    return %arg0, %arg1, %c0_i32, %c0_i32_0 : i32, i32, i32, i32
  }
  func.func @transform_11(%arg0: i32, %arg1: i32) -> (i32, i32, i32, i32) {
    %c0_i32 = arith.constant 0 : i32
    %c0_i32_0 = arith.constant 0 : i32
    %c0_i32_1 = arith.constant 0 : i32
    return %arg0, %arg1, %c0_i32, %c0_i32_0 : i32, i32, i32, i32
  }
  func.func @transform_12(%arg0: i32, %arg1: i32) -> (i32, i32, i32, i32) {
    %c0_i32 = arith.constant 0 : i32
    %c0_i32_0 = arith.constant 0 : i32
    %c0_i32_1 = arith.constant 0 : i32
    return %arg0, %arg1, %c0_i32, %c0_i32_0 : i32, i32, i32, i32
  }
  func.func @transform_13(%arg0: i32, %arg1: i32) -> (i32, i32, i32, i32) {
    %c0_i32 = arith.constant 0 : i32
    %c0_i32_0 = arith.constant 0 : i32
    %c0_i32_1 = arith.constant 0 : i32
    return %arg0, %arg1, %c0_i32, %c0_i32_0 : i32, i32, i32, i32
  }
  func.func @transform_14(%arg0: i32, %arg1: i32) -> (i32, i32, i32, i32) {
    %c0_i32 = arith.constant 0 : i32
    %c0_i32_0 = arith.constant 0 : i32
    %c0_i32_1 = arith.constant 0 : i32
    return %arg0, %arg1, %c0_i32, %c0_i32_0 : i32, i32, i32, i32
  }
  func.func @transform_15(%arg0: i32, %arg1: i32) -> (i32, i32, i32, i32) {
    %c0_i32 = arith.constant 0 : i32
    %c0_i32_0 = arith.constant 0 : i32
    %c0_i32_1 = arith.constant 0 : i32
    return %arg0, %arg1, %c0_i32, %c0_i32_0 : i32, i32, i32, i32
  }
  func.func @transform_16(%arg0: i32, %arg1: i32) -> (i32, i32, i32, i32) {
    %c0_i32 = arith.constant 0 : i32
    %c0_i32_0 = arith.constant 0 : i32
    %c0_i32_1 = arith.constant 0 : i32
    return %arg0, %arg1, %c0_i32, %c0_i32_0 : i32, i32, i32, i32
  }
  func.func @transform_17(%arg0: i32, %arg1: i32) -> (i32, i32, i32, i32) {
    %c0_i32 = arith.constant 0 : i32
    %c0_i32_0 = arith.constant 0 : i32
    %c0_i32_1 = arith.constant 0 : i32
    %c0_i32_2 = arith.constant 0 : i32
    return %arg0, %c0_i32, %c0_i32_0, %c0_i32_1 : i32, i32, i32, i32
  }
  func.func @transform_18(%arg0: i32, %arg1: i32) -> (i32, i32, i32) {
    %c0_i32 = arith.constant 0 : i32
    %c0_i32_0 = arith.constant 0 : i32
    %c0_i32_1 = arith.constant 0 : i32
    return %arg0, %c0_i32, %c0_i32_0 : i32, i32, i32
  }
}

module attributes {stable_mosaic.version = 11 : i64} {
  func.func @_decoder_stack_kernel(%arg0: i32, %arg1: i32, %arg2: memref<1x2x8xf32, #tpu.memory_space<vmem>>, %arg3: memref<1x2x8x32xbf16, #tpu.memory_space<vmem>>, %arg4: memref<1x1x32x96xbf16, #tpu.memory_space<vmem>>, %arg5: memref<1x1x1x96xf32, #tpu.memory_space<vmem>>, %arg6: memref<1x1x32x32xbf16, #tpu.memory_space<vmem>>, %arg7: memref<1x1x1x32xf32, #tpu.memory_space<vmem>>, %arg8: memref<1x1x32x2048xbf16, #tpu.memory_space<vmem>>, %arg9: memref<1x1x1x2048xf32, #tpu.memory_space<vmem>>, %arg10: memref<1x1x2048x32xbf16, #tpu.memory_space<vmem>>, %arg11: memref<1x1x1x32xf32, #tpu.memory_space<vmem>>, %arg12: memref<1x1x1x32xf32, #tpu.memory_space<vmem>>, %arg13: memref<1x1x1x32xf32, #tpu.memory_space<vmem>>, %arg14: memref<1x1x1x32xf32, #tpu.memory_space<vmem>>, %arg15: memref<1x1x1x32xf32, #tpu.memory_space<vmem>>, %arg16: memref<1x2x8x32xbf16, #tpu.memory_space<vmem>>, %arg17: memref<2x8x32xf32, #tpu.memory_space<vmem>>) attributes {dimension_semantics = [#tpu.dimension_semantics<parallel>, #tpu.dimension_semantics<arbitrary>], iteration_bounds = array<i64: 4, 2>, scalar_prefetch = 0 : i64, scratch_operands = 1 : i64, tpu.core_type = #tpu.core_type<tc>, window_params = [{transform_indices = @transform_0, window_bounds = array<i64: 1, 2, 8>}, {transform_indices = @transform_1, window_bounds = array<i64: 1, 2, 8, 32>}, {transform_indices = @transform_2, window_bounds = array<i64: 1, 1, 32, 96>}, {transform_indices = @transform_3, window_bounds = array<i64: 1, 1, 1, 96>}, {transform_indices = @transform_4, window_bounds = array<i64: 1, 1, 32, 32>}, {transform_indices = @transform_5, window_bounds = array<i64: 1, 1, 1, 32>}, {transform_indices = @transform_6, window_bounds = array<i64: 1, 1, 32, 2048>}, {transform_indices = @transform_7, window_bounds = array<i64: 1, 1, 1, 2048>}, {transform_indices = @transform_8, window_bounds = array<i64: 1, 1, 2048, 32>}, {transform_indices = @transform_9, window_bounds = array<i64: 1, 1, 1, 32>}, {transform_indices = @transform_10, window_bounds = array<i64: 1, 1, 1, 32>}, {transform_indices = @transform_11, window_bounds = array<i64: 1, 1, 1, 32>}, {transform_indices = @transform_12, window_bounds = array<i64: 1, 1, 1, 32>}, {transform_indices = @transform_13, window_bounds = array<i64: 1, 1, 1, 32>}, {transform_indices = @transform_14, window_bounds = array<i64: 1, 2, 8, 32>}]} {
    %c0_i32 = arith.constant 0 : i32
    %0 = arith.cmpi eq, %arg1, %c0_i32 : i32
    %1 = arith.extui %0 : i1 to i32
    %c0_i32_0 = arith.constant 0 : i32
    %2 = arith.cmpi ne, %1, %c0_i32_0 : i32
    scf.if %2 {
      %c0_74 = arith.constant 0 : index
      %c0_75 = arith.constant 0 : index
      %c0_76 = arith.constant 0 : index
      %172 = vector.load %arg2[%c0_74, %c0_75, %c0_76] : memref<1x2x8xf32, #tpu.memory_space<vmem>>, vector<1x2x8xf32>
      %173 = vector.shape_cast %172 : vector<1x2x8xf32> to vector<2x8xf32>
      %cst_77 = arith.constant 1.000000e+00 : f32
      %174 = vector.broadcast %cst_77 : f32 to vector<2x8xf32>
      %175 = arith.subf %174, %173 : vector<2x8xf32>
      %c0_78 = arith.constant 0 : index
      %c0_79 = arith.constant 0 : index
      %c0_80 = arith.constant 0 : index
      %c0_81 = arith.constant 0 : index
      %176 = vector.load %arg3[%c0_78, %c0_79, %c0_80, %c0_81] : memref<1x2x8x32xbf16, #tpu.memory_space<vmem>>, vector<1x2x8x32xbf16>
      %177 = vector.shape_cast %176 : vector<1x2x8x32xbf16> to vector<2x8x32xbf16>
      %178 = arith.extf %177 : vector<2x8x32xbf16> to vector<2x8x32xf32>
      %179 = vector.shape_cast %175 : vector<2x8xf32> to vector<2x8x1xf32>
      %180 = vector.broadcast %179 : vector<2x8x1xf32> to vector<2x8x32xf32>
      %181 = arith.mulf %178, %180 : vector<2x8x32xf32>
      %c0_82 = arith.constant 0 : index
      %c0_83 = arith.constant 0 : index
      %c0_84 = arith.constant 0 : index
      %182 = vector.load %arg17[%c0_82, %c0_83, %c0_84] : memref<2x8x32xf32, #tpu.memory_space<vmem>>, vector<2x8x32xf32>
      tpu.vector_store %arg17[%c0_82, %c0_83, %c0_84], %181 {strides = array<i32>} : memref<2x8x32xf32, #tpu.memory_space<vmem>>, vector<2x8x32xf32>,
    } else {
    }
    %c0 = arith.constant 0 : index
    %c0_1 = arith.constant 0 : index
    %c0_2 = arith.constant 0 : index
    %3 = vector.load %arg17[%c0, %c0_1, %c0_2] : memref<2x8x32xf32, #tpu.memory_space<vmem>>, vector<2x8x32xf32>
    %4 = vector.shape_cast %3 : vector<2x8x32xf32> to vector<16x32xf32>
    %5 = arith.truncf %4 : vector<16x32xf32> to vector<16x32xbf16>
    %c0_3 = arith.constant 0 : index
    %c0_4 = arith.constant 0 : index
    %c0_5 = arith.constant 0 : index
    %c0_6 = arith.constant 0 : index
    %6 = vector.load %arg4[%c0_3, %c0_4, %c0_5, %c0_6] : memref<1x1x32x96xbf16, #tpu.memory_space<vmem>>, vector<1x1x32x96xbf16>
    %7 = vector.shape_cast %6 : vector<1x1x32x96xbf16> to vector<32x96xbf16>
    %cst = arith.constant dense<0.000000e+00> : vector<16x96xf32>
    %8 = tpu.matmul %5, %7, %cst {dimension_numbers = #tpu.dot_dimension_numbers<[1], [0], [0], [1], [0, 0, 1, 1], [], []>} : vector<16x32xbf16>, vector<32x96xbf16>, vector<16x96xf32> -> vector<16x96xf32>
    %c0_7 = arith.constant 0 : index
    %c0_8 = arith.constant 0 : index
    %c0_9 = arith.constant 0 : index
    %c0_10 = arith.constant 0 : index
    %9 = vector.load %arg5[%c0_7, %c0_8, %c0_9, %c0_10] : memref<1x1x1x96xf32, #tpu.memory_space<vmem>>, vector<1x1x1x96xf32>
    %10 = vector.shape_cast %9 : vector<1x1x1x96xf32> to vector<1x96xf32>
    %11 = vector.broadcast %10 : vector<1x96xf32> to vector<16x96xf32>
    %12 = arith.addf %8, %11 : vector<16x96xf32>
    %13 = vector.extract_strided_slice %12 {offsets = [0, 0], sizes = [16, 8], strides = [1, 1]} : vector<16x96xf32> to vector<16x8xf32>
    %14 = vector.shape_cast %13 : vector<16x8xf32> to vector<2x8x8xf32>
    %15 = vector.extract_strided_slice %12 {offsets = [0, 8], sizes = [16, 8], strides = [1, 1]} : vector<16x96xf32> to vector<16x8xf32>
    %16 = vector.shape_cast %15 : vector<16x8xf32> to vector<2x8x8xf32>
    %17 = vector.extract_strided_slice %12 {offsets = [0, 16], sizes = [16, 8], strides = [1, 1]} : vector<16x96xf32> to vector<16x8xf32>
    %18 = vector.shape_cast %17 : vector<16x8xf32> to vector<2x8x8xf32>
    %19 = vector.extract_strided_slice %12 {offsets = [0, 24], sizes = [16, 8], strides = [1, 1]} : vector<16x96xf32> to vector<16x8xf32>
    %20 = vector.shape_cast %19 : vector<16x8xf32> to vector<2x8x8xf32>
    %21 = vector.shape_cast %14 : vector<2x8x8xf32> to vector<1x2x8x8xf32>
    %22 = vector.shape_cast %16 : vector<2x8x8xf32> to vector<1x2x8x8xf32>
    %23 = vector.shape_cast %18 : vector<2x8x8xf32> to vector<1x2x8x8xf32>
    %24 = vector.shape_cast %20 : vector<2x8x8xf32> to vector<1x2x8x8xf32>
    %25 = tpu.concatenate %21, %22, %23, %24 in 0 : vector<1x2x8x8xf32>, vector<1x2x8x8xf32>, vector<1x2x8x8xf32>, vector<1x2x8x8xf32> -> vector<4x2x8x8xf32>
    %26 = vector.shape_cast %25 : vector<4x2x8x8xf32> to vector<8x8x8xf32>
    %27 = arith.truncf %26 : vector<8x8x8xf32> to vector<8x8x8xbf16>
    %28 = vector.extract_strided_slice %12 {offsets = [0, 32], sizes = [16, 8], strides = [1, 1]} : vector<16x96xf32> to vector<16x8xf32>
    %29 = vector.shape_cast %28 : vector<16x8xf32> to vector<2x8x8xf32>
    %30 = vector.extract_strided_slice %12 {offsets = [0, 40], sizes = [16, 8], strides = [1, 1]} : vector<16x96xf32> to vector<16x8xf32>
    %31 = vector.shape_cast %30 : vector<16x8xf32> to vector<2x8x8xf32>
    %32 = vector.extract_strided_slice %12 {offsets = [0, 48], sizes = [16, 8], strides = [1, 1]} : vector<16x96xf32> to vector<16x8xf32>
    %33 = vector.shape_cast %32 : vector<16x8xf32> to vector<2x8x8xf32>
    %34 = vector.extract_strided_slice %12 {offsets = [0, 56], sizes = [16, 8], strides = [1, 1]} : vector<16x96xf32> to vector<16x8xf32>
    %35 = vector.shape_cast %34 : vector<16x8xf32> to vector<2x8x8xf32>
    %36 = vector.shape_cast %29 : vector<2x8x8xf32> to vector<1x2x8x8xf32>
    %37 = vector.shape_cast %31 : vector<2x8x8xf32> to vector<1x2x8x8xf32>
    %38 = vector.shape_cast %33 : vector<2x8x8xf32> to vector<1x2x8x8xf32>
    %39 = vector.shape_cast %35 : vector<2x8x8xf32> to vector<1x2x8x8xf32>
    %40 = tpu.concatenate %36, %37, %38, %39 in 0 : vector<1x2x8x8xf32>, vector<1x2x8x8xf32>, vector<1x2x8x8xf32>, vector<1x2x8x8xf32> -> vector<4x2x8x8xf32>
    %41 = vector.shape_cast %40 : vector<4x2x8x8xf32> to vector<8x8x8xf32>
    %42 = arith.truncf %41 : vector<8x8x8xf32> to vector<8x8x8xbf16>
    %43 = vector.extract_strided_slice %12 {offsets = [0, 64], sizes = [16, 8], strides = [1, 1]} : vector<16x96xf32> to vector<16x8xf32>
    %44 = vector.shape_cast %43 : vector<16x8xf32> to vector<2x8x8xf32>
    %45 = vector.extract_strided_slice %12 {offsets = [0, 72], sizes = [16, 8], strides = [1, 1]} : vector<16x96xf32> to vector<16x8xf32>
    %46 = vector.shape_cast %45 : vector<16x8xf32> to vector<2x8x8xf32>
    %47 = vector.extract_strided_slice %12 {offsets = [0, 80], sizes = [16, 8], strides = [1, 1]} : vector<16x96xf32> to vector<16x8xf32>
    %48 = vector.shape_cast %47 : vector<16x8xf32> to vector<2x8x8xf32>
    %49 = vector.extract_strided_slice %12 {offsets = [0, 88], sizes = [16, 8], strides = [1, 1]} : vector<16x96xf32> to vector<16x8xf32>
    %50 = vector.shape_cast %49 : vector<16x8xf32> to vector<2x8x8xf32>
    %51 = vector.shape_cast %44 : vector<2x8x8xf32> to vector<1x2x8x8xf32>
    %52 = vector.shape_cast %46 : vector<2x8x8xf32> to vector<1x2x8x8xf32>
    %53 = vector.shape_cast %48 : vector<2x8x8xf32> to vector<1x2x8x8xf32>
    %54 = vector.shape_cast %50 : vector<2x8x8xf32> to vector<1x2x8x8xf32>
    %55 = tpu.concatenate %51, %52, %53, %54 in 0 : vector<1x2x8x8xf32>, vector<1x2x8x8xf32>, vector<1x2x8x8xf32>, vector<1x2x8x8xf32> -> vector<4x2x8x8xf32>
    %56 = vector.shape_cast %55 : vector<4x2x8x8xf32> to vector<8x8x8xf32>
    %57 = arith.truncf %56 : vector<8x8x8xf32> to vector<8x8x8xbf16>
    "tpu.trace_start"() <{level = 10 : i32, message = "nqd,nkd->nqk"}> : () -> ()
    %cst_11 = arith.constant dense<0.000000e+00> : vector<8x8x8xf32>
    %58 = tpu.matmul %27, %42, %cst_11 {dimension_numbers = #tpu.dot_dimension_numbers<[2], [2], [1], [1], [0, 0, 0, 1, 1, 1], [0], [0]>} : vector<8x8x8xbf16>, vector<8x8x8xbf16>, vector<8x8x8xf32> -> vector<8x8x8xf32>
    "tpu.trace_stop"() : () -> ()
    %cst_12 = arith.constant 0.353553385 : f32
    %59 = vector.broadcast %cst_12 : f32 to vector<8x8x8xf32>
    %60 = arith.mulf %58, %59 : vector<8x8x8xf32>
    %cst_13 = arith.constant dense<0xFF800000> : vector<8x8xf32>
    %61 = vector.multi_reduction <maximumf>, %60, %cst_13 [2] : vector<8x8x8xf32> to vector<8x8xf32>
    %62 = vector.shape_cast %61 : vector<8x8xf32> to vector<8x8x1xf32>
    %63 = vector.broadcast %62 : vector<8x8x1xf32> to vector<8x8x8xf32>
    %64 = arith.subf %60, %63 : vector<8x8x8xf32>
    %65 = math.exp %64 : vector<8x8x8xf32>
    %cst_14 = arith.constant dense<0.000000e+00> : vector<8x8xf32>
    %66 = vector.multi_reduction <add>, %65, %cst_14 [2] : vector<8x8x8xf32> to vector<8x8xf32>
    %67 = vector.shape_cast %66 : vector<8x8xf32> to vector<8x8x1xf32>
    %68 = vector.broadcast %67 : vector<8x8x1xf32> to vector<8x8x8xf32>
    %69 = arith.divf %65, %68 : vector<8x8x8xf32>
    %70 = arith.truncf %69 : vector<8x8x8xf32> to vector<8x8x8xbf16>
    "tpu.trace_start"() <{level = 10 : i32, message = "nqk,nkd->nqd"}> : () -> ()
    %cst_15 = arith.constant dense<0.000000e+00> : vector<8x8x8xf32>
    %71 = tpu.matmul %70, %57, %cst_15 {dimension_numbers = #tpu.dot_dimension_numbers<[2], [1], [1], [2], [0, 0, 0, 1, 1, 2], [0], [0]>} : vector<8x8x8xbf16>, vector<8x8x8xbf16>, vector<8x8x8xf32> -> vector<8x8x8xf32>
    "tpu.trace_stop"() : () -> ()
    %72 = vector.shape_cast %71 : vector<8x8x8xf32> to vector<4x2x8x8xf32>
    %73 = vector.extract_strided_slice %72 {offsets = [0, 0, 0, 0], sizes = [1, 2, 8, 8], strides = [1, 1, 1, 1]} : vector<4x2x8x8xf32> to vector<1x2x8x8xf32>
    %74 = vector.shape_cast %73 : vector<1x2x8x8xf32> to vector<2x8x8xf32>
    %75 = vector.extract_strided_slice %72 {offsets = [1, 0, 0, 0], sizes = [1, 2, 8, 8], strides = [1, 1, 1, 1]} : vector<4x2x8x8xf32> to vector<1x2x8x8xf32>
    %76 = vector.shape_cast %75 : vector<1x2x8x8xf32> to vector<2x8x8xf32>
    %77 = vector.extract_strided_slice %72 {offsets = [2, 0, 0, 0], sizes = [1, 2, 8, 8], strides = [1, 1, 1, 1]} : vector<4x2x8x8xf32> to vector<1x2x8x8xf32>
    %78 = vector.shape_cast %77 : vector<1x2x8x8xf32> to vector<2x8x8xf32>
    %79 = vector.extract_strided_slice %72 {offsets = [3, 0, 0, 0], sizes = [1, 2, 8, 8], strides = [1, 1, 1, 1]} : vector<4x2x8x8xf32> to vector<1x2x8x8xf32>
    %80 = vector.shape_cast %79 : vector<1x2x8x8xf32> to vector<2x8x8xf32>
    %81 = tpu.concatenate %74, %76, %78, %80 in 2 : vector<2x8x8xf32>, vector<2x8x8xf32>, vector<2x8x8xf32>, vector<2x8x8xf32> -> vector<2x8x32xf32>
    %82 = vector.shape_cast %81 : vector<2x8x32xf32> to vector<16x32xf32>
    %83 = arith.truncf %82 : vector<16x32xf32> to vector<16x32xbf16>
    %c0_16 = arith.constant 0 : index
    %c0_17 = arith.constant 0 : index
    %c0_18 = arith.constant 0 : index
    %c0_19 = arith.constant 0 : index
    %84 = vector.load %arg6[%c0_16, %c0_17, %c0_18, %c0_19] : memref<1x1x32x32xbf16, #tpu.memory_space<vmem>>, vector<1x1x32x32xbf16>
    %85 = vector.shape_cast %84 : vector<1x1x32x32xbf16> to vector<32x32xbf16>
    %cst_20 = arith.constant dense<0.000000e+00> : vector<16x32xf32>
    %86 = tpu.matmul %83, %85, %cst_20 {dimension_numbers = #tpu.dot_dimension_numbers<[1], [0], [0], [1], [0, 0, 1, 1], [], []>} : vector<16x32xbf16>, vector<32x32xbf16>, vector<16x32xf32> -> vector<16x32xf32>
    %c0_21 = arith.constant 0 : index
    %c0_22 = arith.constant 0 : index
    %c0_23 = arith.constant 0 : index
    %c0_24 = arith.constant 0 : index
    %87 = vector.load %arg7[%c0_21, %c0_22, %c0_23, %c0_24] : memref<1x1x1x32xf32, #tpu.memory_space<vmem>>, vector<1x1x1x32xf32>
    %88 = vector.shape_cast %87 : vector<1x1x1x32xf32> to vector<1x32xf32>
    %89 = vector.broadcast %88 : vector<1x32xf32> to vector<16x32xf32>
    %90 = arith.addf %86, %89 : vector<16x32xf32>
    %91 = arith.addf %4, %90 : vector<16x32xf32>
    %c0_25 = arith.constant 0 : index
    %c0_26 = arith.constant 0 : index
    %c0_27 = arith.constant 0 : index
    %c0_28 = arith.constant 0 : index
    %92 = vector.load %arg12[%c0_25, %c0_26, %c0_27, %c0_28] : memref<1x1x1x32xf32, #tpu.memory_space<vmem>>, vector<1x1x1x32xf32>
    %93 = vector.shape_cast %92 : vector<1x1x1x32xf32> to vector<1x32xf32>
    %c0_29 = arith.constant 0 : index
    %c0_30 = arith.constant 0 : index
    %c0_31 = arith.constant 0 : index
    %c0_32 = arith.constant 0 : index
    %94 = vector.load %arg13[%c0_29, %c0_30, %c0_31, %c0_32] : memref<1x1x1x32xf32, #tpu.memory_space<vmem>>, vector<1x1x1x32xf32>
    %95 = vector.shape_cast %94 : vector<1x1x1x32xf32> to vector<1x32xf32>
    %cst_33 = arith.constant dense<0.000000e+00> : vector<16xf32>
    %96 = vector.multi_reduction <add>, %91, %cst_33 [1] : vector<16x32xf32> to vector<16xf32>
    %97 = vector.shape_cast %96 : vector<16xf32> to vector<16x1xf32>
    %cst_34 = arith.constant 3.200000e+01 : f32
    %98 = vector.broadcast %cst_34 : f32 to vector<16x1xf32>
    %99 = arith.divf %97, %98 : vector<16x1xf32>
    %100 = vector.broadcast %99 : vector<16x1xf32> to vector<16x32xf32>
    %101 = arith.subf %91, %100 : vector<16x32xf32>
    %102 = vector.broadcast %99 : vector<16x1xf32> to vector<16x32xf32>
    %103 = arith.subf %91, %102 : vector<16x32xf32>
    %104 = arith.mulf %101, %103 : vector<16x32xf32>
    %cst_35 = arith.constant dense<0.000000e+00> : vector<16xf32>
    %105 = vector.multi_reduction <add>, %104, %cst_35 [1] : vector<16x32xf32> to vector<16xf32>
    %106 = vector.shape_cast %105 : vector<16xf32> to vector<16x1xf32>
    %cst_36 = arith.constant 3.200000e+01 : f32
    %107 = vector.broadcast %cst_36 : f32 to vector<16x1xf32>
    %108 = arith.divf %106, %107 : vector<16x1xf32>
    %109 = vector.broadcast %99 : vector<16x1xf32> to vector<16x32xf32>
    %110 = arith.subf %91, %109 : vector<16x32xf32>
    %cst_37 = arith.constant 9.99999974E-6 : f32
    %111 = vector.broadcast %cst_37 : f32 to vector<16x1xf32>
    %112 = arith.addf %108, %111 : vector<16x1xf32>
    %113 = math.rsqrt %112 : vector<16x1xf32>
    %114 = vector.broadcast %113 : vector<16x1xf32> to vector<16x32xf32>
    %115 = arith.mulf %110, %114 : vector<16x32xf32>
    %116 = vector.broadcast %93 : vector<1x32xf32> to vector<16x32xf32>
    %117 = arith.mulf %115, %116 : vector<16x32xf32>
    %118 = vector.broadcast %95 : vector<1x32xf32> to vector<16x32xf32>
    %119 = arith.addf %117, %118 : vector<16x32xf32>
    %120 = arith.truncf %119 : vector<16x32xf32> to vector<16x32xbf16>
    %c0_38 = arith.constant 0 : index
    %c0_39 = arith.constant 0 : index
    %c0_40 = arith.constant 0 : index
    %c0_41 = arith.constant 0 : index
    %121 = vector.load %arg8[%c0_38, %c0_39, %c0_40, %c0_41] : memref<1x1x32x2048xbf16, #tpu.memory_space<vmem>>, vector<1x1x32x2048xbf16>
    %122 = vector.shape_cast %121 : vector<1x1x32x2048xbf16> to vector<32x2048xbf16>
    %cst_42 = arith.constant dense<0.000000e+00> : vector<16x2048xf32>
    %123 = tpu.matmul %120, %122, %cst_42 {dimension_numbers = #tpu.dot_dimension_numbers<[1], [0], [0], [1], [0, 0, 1, 1], [], []>} : vector<16x32xbf16>, vector<32x2048xbf16>, vector<16x2048xf32> -> vector<16x2048xf32>
    %c0_43 = arith.constant 0 : index
    %c0_44 = arith.constant 0 : index
    %c0_45 = arith.constant 0 : index
    %c0_46 = arith.constant 0 : index
    %124 = vector.load %arg9[%c0_43, %c0_44, %c0_45, %c0_46] : memref<1x1x1x2048xf32, #tpu.memory_space<vmem>>, vector<1x1x1x2048xf32>
    %125 = vector.shape_cast %124 : vector<1x1x1x2048xf32> to vector<1x2048xf32>
    %126 = vector.broadcast %125 : vector<1x2048xf32> to vector<16x2048xf32>
    %127 = arith.addf %123, %126 : vector<16x2048xf32>
    %cst_47 = arith.constant 0.000000e+00 : f32
    %128 = vector.broadcast %cst_47 : f32 to vector<16x2048xf32>
    %129 = arith.maximumf %127, %128 : vector<16x2048xf32>
    %130 = arith.truncf %129 : vector<16x2048xf32> to vector<16x2048xbf16>
    %c0_48 = arith.constant 0 : index
    %c0_49 = arith.constant 0 : index
    %c0_50 = arith.constant 0 : index
    %c0_51 = arith.constant 0 : index
    %131 = vector.load %arg10[%c0_48, %c0_49, %c0_50, %c0_51] : memref<1x1x2048x32xbf16, #tpu.memory_space<vmem>>, vector<1x1x2048x32xbf16>
    %132 = vector.shape_cast %131 : vector<1x1x2048x32xbf16> to vector<2048x32xbf16>
    %cst_52 = arith.constant dense<0.000000e+00> : vector<16x32xf32>
    %133 = tpu.matmul %130, %132, %cst_52 {dimension_numbers = #tpu.dot_dimension_numbers<[1], [0], [0], [1], [0, 0, 1, 1], [], []>} : vector<16x2048xbf16>, vector<2048x32xbf16>, vector<16x32xf32> -> vector<16x32xf32>
    %c0_53 = arith.constant 0 : index
    %c0_54 = arith.constant 0 : index
    %c0_55 = arith.constant 0 : index
    %c0_56 = arith.constant 0 : index
    %134 = vector.load %arg11[%c0_53, %c0_54, %c0_55, %c0_56] : memref<1x1x1x32xf32, #tpu.memory_space<vmem>>, vector<1x1x1x32xf32>
    %135 = vector.shape_cast %134 : vector<1x1x1x32xf32> to vector<1x32xf32>
    %136 = vector.broadcast %135 : vector<1x32xf32> to vector<16x32xf32>
    %137 = arith.addf %133, %136 : vector<16x32xf32>
    %138 = arith.addf %119, %137 : vector<16x32xf32>
    %c0_57 = arith.constant 0 : index
    %c0_58 = arith.constant 0 : index
    %c0_59 = arith.constant 0 : index
    %c0_60 = arith.constant 0 : index
    %139 = vector.load %arg14[%c0_57, %c0_58, %c0_59, %c0_60] : memref<1x1x1x32xf32, #tpu.memory_space<vmem>>, vector<1x1x1x32xf32>
    %140 = vector.shape_cast %139 : vector<1x1x1x32xf32> to vector<1x32xf32>
    %c0_61 = arith.constant 0 : index
    %c0_62 = arith.constant 0 : index
    %c0_63 = arith.constant 0 : index
    %c0_64 = arith.constant 0 : index
    %141 = vector.load %arg15[%c0_61, %c0_62, %c0_63, %c0_64] : memref<1x1x1x32xf32, #tpu.memory_space<vmem>>, vector<1x1x1x32xf32>
    %142 = vector.shape_cast %141 : vector<1x1x1x32xf32> to vector<1x32xf32>
    %cst_65 = arith.constant dense<0.000000e+00> : vector<16xf32>
    %143 = vector.multi_reduction <add>, %138, %cst_65 [1] : vector<16x32xf32> to vector<16xf32>
    %144 = vector.shape_cast %143 : vector<16xf32> to vector<16x1xf32>
    %cst_66 = arith.constant 3.200000e+01 : f32
    %145 = vector.broadcast %cst_66 : f32 to vector<16x1xf32>
    %146 = arith.divf %144, %145 : vector<16x1xf32>
    %147 = vector.broadcast %146 : vector<16x1xf32> to vector<16x32xf32>
    %148 = arith.subf %138, %147 : vector<16x32xf32>
    %149 = vector.broadcast %146 : vector<16x1xf32> to vector<16x32xf32>
    %150 = arith.subf %138, %149 : vector<16x32xf32>
    %151 = arith.mulf %148, %150 : vector<16x32xf32>
    %cst_67 = arith.constant dense<0.000000e+00> : vector<16xf32>
    %152 = vector.multi_reduction <add>, %151, %cst_67 [1] : vector<16x32xf32> to vector<16xf32>
    %153 = vector.shape_cast %152 : vector<16xf32> to vector<16x1xf32>
    %cst_68 = arith.constant 3.200000e+01 : f32
    %154 = vector.broadcast %cst_68 : f32 to vector<16x1xf32>
    %155 = arith.divf %153, %154 : vector<16x1xf32>
    %156 = vector.broadcast %146 : vector<16x1xf32> to vector<16x32xf32>
    %157 = arith.subf %138, %156 : vector<16x32xf32>
    %cst_69 = arith.constant 9.99999974E-6 : f32
    %158 = vector.broadcast %cst_69 : f32 to vector<16x1xf32>
    %159 = arith.addf %155, %158 : vector<16x1xf32>
    %160 = math.rsqrt %159 : vector<16x1xf32>
    %161 = vector.broadcast %160 : vector<16x1xf32> to vector<16x32xf32>
    %162 = arith.mulf %157, %161 : vector<16x32xf32>
    %163 = vector.broadcast %140 : vector<1x32xf32> to vector<16x32xf32>
    %164 = arith.mulf %162, %163 : vector<16x32xf32>
    %165 = vector.broadcast %142 : vector<1x32xf32> to vector<16x32xf32>
    %166 = arith.addf %164, %165 : vector<16x32xf32>
    %167 = vector.shape_cast %166 : vector<16x32xf32> to vector<2x8x32xf32>
    %c0_70 = arith.constant 0 : index
    %c0_71 = arith.constant 0 : index
    %c0_72 = arith.constant 0 : index
    %168 = vector.load %arg17[%c0_70, %c0_71, %c0_72] : memref<2x8x32xf32, #tpu.memory_space<vmem>>, vector<2x8x32xf32>
    tpu.vector_store %arg17[%c0_70, %c0_71, %c0_72], %167 {strides = array<i32>} : memref<2x8x32xf32, #tpu.memory_space<vmem>>, vector<2x8x32xf32>,
    %c1_i32 = arith.constant 1 : i32
    %169 = arith.cmpi eq, %arg1, %c1_i32 : i32
    %170 = arith.extui %169 : i1 to i32
    %c0_i32_73 = arith.constant 0 : i32
    %171 = arith.cmpi ne, %170, %c0_i32_73 : i32
    scf.if %171 {
      %172 = arith.truncf %167 : vector<2x8x32xf32> to vector<2x8x32xbf16>
      %c0_74 = arith.constant 0 : index
      %c0_75 = arith.constant 0 : index
      %c0_76 = arith.constant 0 : index
      %c0_77 = arith.constant 0 : index
      %173 = vector.load %arg16[%c0_74, %c0_75, %c0_76, %c0_77] : memref<1x2x8x32xbf16, #tpu.memory_space<vmem>>, vector<1x2x8x32xbf16>
      %174 = vector.shape_cast %173 : vector<1x2x8x32xbf16> to vector<2x8x32xbf16>
      %175 = vector.shape_cast %172 : vector<2x8x32xbf16> to vector<1x2x8x32xbf16>
      tpu.vector_store %arg16[%c0_74, %c0_75, %c0_76, %c0_77], %175 {strides = array<i32>} : memref<1x2x8x32xbf16, #tpu.memory_space<vmem>>, vector<1x2x8x32xbf16>,
    } else {
    }
    return
  }
  func.func @transform_0(%arg0: i32, %arg1: i32) -> (i32, i32, i32) {
    %c0_i32 = arith.constant 0 : i32
    %c0_i32_0 = arith.constant 0 : i32
    %c0_i32_1 = arith.constant 0 : i32
    return %arg0, %c0_i32, %c0_i32_0 : i32, i32, i32
  }
  func.func @transform_1(%arg0: i32, %arg1: i32) -> (i32, i32, i32, i32) {
    %c0_i32 = arith.constant 0 : i32
    %c0_i32_0 = arith.constant 0 : i32
    %c0_i32_1 = arith.constant 0 : i32
    %c0_i32_2 = arith.constant 0 : i32
    return %arg0, %c0_i32, %c0_i32_0, %c0_i32_1 : i32, i32, i32, i32
  }
  func.func @transform_2(%arg0: i32, %arg1: i32) -> (i32, i32, i32, i32) {
    %c0_i32 = arith.constant 0 : i32
    %c0_i32_0 = arith.constant 0 : i32
    %c0_i32_1 = arith.constant 0 : i32
    return %arg0, %arg1, %c0_i32, %c0_i32_0 : i32, i32, i32, i32
  }
  func.func @transform_3(%arg0: i32, %arg1: i32) -> (i32, i32, i32, i32) {
    %c0_i32 = arith.constant 0 : i32
    %c0_i32_0 = arith.constant 0 : i32
    %c0_i32_1 = arith.constant 0 : i32
    return %arg0, %arg1, %c0_i32, %c0_i32_0 : i32, i32, i32, i32
  }
  func.func @transform_4(%arg0: i32, %arg1: i32) -> (i32, i32, i32, i32) {
    %c0_i32 = arith.constant 0 : i32
    %c0_i32_0 = arith.constant 0 : i32
    %c0_i32_1 = arith.constant 0 : i32
    return %arg0, %arg1, %c0_i32, %c0_i32_0 : i32, i32, i32, i32
  }
  func.func @transform_5(%arg0: i32, %arg1: i32) -> (i32, i32, i32, i32) {
    %c0_i32 = arith.constant 0 : i32
    %c0_i32_0 = arith.constant 0 : i32
    %c0_i32_1 = arith.constant 0 : i32
    return %arg0, %arg1, %c0_i32, %c0_i32_0 : i32, i32, i32, i32
  }
  func.func @transform_6(%arg0: i32, %arg1: i32) -> (i32, i32, i32, i32) {
    %c0_i32 = arith.constant 0 : i32
    %c0_i32_0 = arith.constant 0 : i32
    %c0_i32_1 = arith.constant 0 : i32
    return %arg0, %arg1, %c0_i32, %c0_i32_0 : i32, i32, i32, i32
  }
  func.func @transform_7(%arg0: i32, %arg1: i32) -> (i32, i32, i32, i32) {
    %c0_i32 = arith.constant 0 : i32
    %c0_i32_0 = arith.constant 0 : i32
    %c0_i32_1 = arith.constant 0 : i32
    return %arg0, %arg1, %c0_i32, %c0_i32_0 : i32, i32, i32, i32
  }
  func.func @transform_8(%arg0: i32, %arg1: i32) -> (i32, i32, i32, i32) {
    %c0_i32 = arith.constant 0 : i32
    %c0_i32_0 = arith.constant 0 : i32
    %c0_i32_1 = arith.constant 0 : i32
    return %arg0, %arg1, %c0_i32, %c0_i32_0 : i32, i32, i32, i32
  }
  func.func @transform_9(%arg0: i32, %arg1: i32) -> (i32, i32, i32, i32) {
    %c0_i32 = arith.constant 0 : i32
    %c0_i32_0 = arith.constant 0 : i32
    %c0_i32_1 = arith.constant 0 : i32
    return %arg0, %arg1, %c0_i32, %c0_i32_0 : i32, i32, i32, i32
  }
  func.func @transform_10(%arg0: i32, %arg1: i32) -> (i32, i32, i32, i32) {
    %c0_i32 = arith.constant 0 : i32
    %c0_i32_0 = arith.constant 0 : i32
    %c0_i32_1 = arith.constant 0 : i32
    return %arg0, %arg1, %c0_i32, %c0_i32_0 : i32, i32, i32, i32
  }
  func.func @transform_11(%arg0: i32, %arg1: i32) -> (i32, i32, i32, i32) {
    %c0_i32 = arith.constant 0 : i32
    %c0_i32_0 = arith.constant 0 : i32
    %c0_i32_1 = arith.constant 0 : i32
    return %arg0, %arg1, %c0_i32, %c0_i32_0 : i32, i32, i32, i32
  }
  func.func @transform_12(%arg0: i32, %arg1: i32) -> (i32, i32, i32, i32) {
    %c0_i32 = arith.constant 0 : i32
    %c0_i32_0 = arith.constant 0 : i32
    %c0_i32_1 = arith.constant 0 : i32
    return %arg0, %arg1, %c0_i32, %c0_i32_0 : i32, i32, i32, i32
  }
  func.func @transform_13(%arg0: i32, %arg1: i32) -> (i32, i32, i32, i32) {
    %c0_i32 = arith.constant 0 : i32
    %c0_i32_0 = arith.constant 0 : i32
    %c0_i32_1 = arith.constant 0 : i32
    return %arg0, %arg1, %c0_i32, %c0_i32_0 : i32, i32, i32, i32
  }
  func.func @transform_14(%arg0: i32, %arg1: i32) -> (i32, i32, i32, i32) {
    %c0_i32 = arith.constant 0 : i32
    %c0_i32_0 = arith.constant 0 : i32
    %c0_i32_1 = arith.constant 0 : i32
    %c0_i32_2 = arith.constant 0 : i32
    return %arg0, %c0_i32, %c0_i32_0, %c0_i32_1 : i32, i32, i32, i32
  }
}

module attributes {stable_mosaic.version = 11 : i64} {
  func.func @_fusion_kernel(%arg0: memref<4x2x8x32xbf16, #tpu.memory_space<vmem>>, %arg1: memref<16x32xbf16, #tpu.memory_space<vmem>>, %arg2: memref<16x1xf32, #tpu.memory_space<vmem>>, %arg3: memref<1x32xf32, #tpu.memory_space<vmem>>, %arg4: memref<1x32xf32, #tpu.memory_space<vmem>>, %arg5: memref<2x16x32xf32, #tpu.memory_space<vmem>>) attributes {dimension_semantics = [], scalar_prefetch = 0 : i64, scratch_operands = 0 : i64, tpu.core_type = #tpu.core_type<tc>} {
    %c0 = arith.constant 0 : index
    %c0_0 = arith.constant 0 : index
    %c0_1 = arith.constant 0 : index
    %c0_2 = arith.constant 0 : index
    %0 = vector.load %arg0[%c0, %c0_0, %c0_1, %c0_2] : memref<4x2x8x32xbf16, #tpu.memory_space<vmem>>, vector<4x2x8x32xbf16>
    %1 = tpu.transpose %0, [1, 0, 2, 3] : vector<4x2x8x32xbf16> -> vector<2x4x8x32xbf16>
    %2 = vector.shape_cast %1 : vector<2x4x8x32xbf16> to vector<2x32x32xbf16>
    %c0_3 = arith.constant 0 : index
    %c0_4 = arith.constant 0 : index
    %3 = vector.load %arg1[%c0_3, %c0_4] : memref<16x32xbf16, #tpu.memory_space<vmem>>, vector<16x32xbf16>
    %c0_5 = arith.constant 0 : index
    %c0_6 = arith.constant 0 : index
    %4 = vector.load %arg2[%c0_5, %c0_6] : memref<16x1xf32, #tpu.memory_space<vmem>>, vector<16x1xf32>
    %5 = vector.extract_strided_slice %2 {offsets = [0, 0, 0], sizes = [1, 32, 32], strides = [1, 1, 1]} : vector<2x32x32xbf16> to vector<1x32x32xbf16>
    %6 = vector.shape_cast %5 : vector<1x32x32xbf16> to vector<32x32xbf16>
    %cst = arith.constant dense<0.000000e+00> : vector<16x32xf32>
    %7 = tpu.matmul %3, %6, %cst {dimension_numbers = #tpu.dot_dimension_numbers<[1], [0], [0], [1], [0, 0, 1, 1], [], []>} : vector<16x32xbf16>, vector<32x32xbf16>, vector<16x32xf32> -> vector<16x32xf32>
    %8 = vector.broadcast %4 : vector<16x1xf32> to vector<16x32xf32>
    %9 = arith.mulf %7, %8 : vector<16x32xf32>
    %c0_7 = arith.constant 0 : index
    %c0_8 = arith.constant 0 : index
    %10 = vector.load %arg3[%c0_7, %c0_8] : memref<1x32xf32, #tpu.memory_space<vmem>>, vector<1x32xf32>
    %c0_9 = arith.constant 0 : index
    %c0_10 = arith.constant 0 : index
    %11 = vector.load %arg4[%c0_9, %c0_10] : memref<1x32xf32, #tpu.memory_space<vmem>>, vector<1x32xf32>
    %cst_11 = arith.constant dense<0.000000e+00> : vector<16xf32>
    %12 = vector.multi_reduction <add>, %9, %cst_11 [1] : vector<16x32xf32> to vector<16xf32>
    %13 = vector.shape_cast %12 : vector<16xf32> to vector<16x1xf32>
    %cst_12 = arith.constant 3.200000e+01 : f32
    %14 = vector.broadcast %cst_12 : f32 to vector<16x1xf32>
    %15 = arith.divf %13, %14 : vector<16x1xf32>
    %16 = vector.broadcast %15 : vector<16x1xf32> to vector<16x32xf32>
    %17 = arith.subf %9, %16 : vector<16x32xf32>
    %18 = vector.broadcast %15 : vector<16x1xf32> to vector<16x32xf32>
    %19 = arith.subf %9, %18 : vector<16x32xf32>
    %20 = arith.mulf %17, %19 : vector<16x32xf32>
    %cst_13 = arith.constant dense<0.000000e+00> : vector<16xf32>
    %21 = vector.multi_reduction <add>, %20, %cst_13 [1] : vector<16x32xf32> to vector<16xf32>
    %22 = vector.shape_cast %21 : vector<16xf32> to vector<16x1xf32>
    %cst_14 = arith.constant 3.200000e+01 : f32
    %23 = vector.broadcast %cst_14 : f32 to vector<16x1xf32>
    %24 = arith.divf %22, %23 : vector<16x1xf32>
    %25 = vector.broadcast %15 : vector<16x1xf32> to vector<16x32xf32>
    %26 = arith.subf %9, %25 : vector<16x32xf32>
    %cst_15 = arith.constant 9.99999974E-6 : f32
    %27 = vector.broadcast %cst_15 : f32 to vector<16x1xf32>
    %28 = arith.addf %24, %27 : vector<16x1xf32>
    %29 = math.rsqrt %28 : vector<16x1xf32>
    %30 = vector.broadcast %29 : vector<16x1xf32> to vector<16x32xf32>
    %31 = arith.mulf %26, %30 : vector<16x32xf32>
    %32 = vector.broadcast %10 : vector<1x32xf32> to vector<16x32xf32>
    %33 = arith.mulf %31, %32 : vector<16x32xf32>
    %34 = vector.broadcast %11 : vector<1x32xf32> to vector<16x32xf32>
    %35 = arith.addf %33, %34 : vector<16x32xf32>
    %36 = vector.extract_strided_slice %2 {offsets = [1, 0, 0], sizes = [1, 32, 32], strides = [1, 1, 1]} : vector<2x32x32xbf16> to vector<1x32x32xbf16>
    %37 = vector.shape_cast %36 : vector<1x32x32xbf16> to vector<32x32xbf16>
    %cst_16 = arith.constant dense<0.000000e+00> : vector<16x32xf32>
    %38 = tpu.matmul %3, %37, %cst_16 {dimension_numbers = #tpu.dot_dimension_numbers<[1], [0], [0], [1], [0, 0, 1, 1], [], []>} : vector<16x32xbf16>, vector<32x32xbf16>, vector<16x32xf32> -> vector<16x32xf32>
    %39 = vector.broadcast %4 : vector<16x1xf32> to vector<16x32xf32>
    %40 = arith.mulf %38, %39 : vector<16x32xf32>
    %c0_17 = arith.constant 0 : index
    %c0_18 = arith.constant 0 : index
    %41 = vector.load %arg3[%c0_17, %c0_18] : memref<1x32xf32, #tpu.memory_space<vmem>>, vector<1x32xf32>
    %c0_19 = arith.constant 0 : index
    %c0_20 = arith.constant 0 : index
    %42 = vector.load %arg4[%c0_19, %c0_20] : memref<1x32xf32, #tpu.memory_space<vmem>>, vector<1x32xf32>
    %cst_21 = arith.constant dense<0.000000e+00> : vector<16xf32>
    %43 = vector.multi_reduction <add>, %40, %cst_21 [1] : vector<16x32xf32> to vector<16xf32>
    %44 = vector.shape_cast %43 : vector<16xf32> to vector<16x1xf32>
    %cst_22 = arith.constant 3.200000e+01 : f32
    %45 = vector.broadcast %cst_22 : f32 to vector<16x1xf32>
    %46 = arith.divf %44, %45 : vector<16x1xf32>
    %47 = vector.broadcast %46 : vector<16x1xf32> to vector<16x32xf32>
    %48 = arith.subf %40, %47 : vector<16x32xf32>
    %49 = vector.broadcast %46 : vector<16x1xf32> to vector<16x32xf32>
    %50 = arith.subf %40, %49 : vector<16x32xf32>
    %51 = arith.mulf %48, %50 : vector<16x32xf32>
    %cst_23 = arith.constant dense<0.000000e+00> : vector<16xf32>
    %52 = vector.multi_reduction <add>, %51, %cst_23 [1] : vector<16x32xf32> to vector<16xf32>
    %53 = vector.shape_cast %52 : vector<16xf32> to vector<16x1xf32>
    %cst_24 = arith.constant 3.200000e+01 : f32
    %54 = vector.broadcast %cst_24 : f32 to vector<16x1xf32>
    %55 = arith.divf %53, %54 : vector<16x1xf32>
    %56 = vector.broadcast %46 : vector<16x1xf32> to vector<16x32xf32>
    %57 = arith.subf %40, %56 : vector<16x32xf32>
    %cst_25 = arith.constant 9.99999974E-6 : f32
    %58 = vector.broadcast %cst_25 : f32 to vector<16x1xf32>
    %59 = arith.addf %55, %58 : vector<16x1xf32>
    %60 = math.rsqrt %59 : vector<16x1xf32>
    %61 = vector.broadcast %60 : vector<16x1xf32> to vector<16x32xf32>
    %62 = arith.mulf %57, %61 : vector<16x32xf32>
    %63 = vector.broadcast %41 : vector<1x32xf32> to vector<16x32xf32>
    %64 = arith.mulf %62, %63 : vector<16x32xf32>
    %65 = vector.broadcast %42 : vector<1x32xf32> to vector<16x32xf32>
    %66 = arith.addf %64, %65 : vector<16x32xf32>
    %67 = vector.shape_cast %35 : vector<16x32xf32> to vector<1x16x32xf32>
    %68 = vector.shape_cast %66 : vector<16x32xf32> to vector<1x16x32xf32>
    %69 = tpu.concatenate %67, %68 in 0 : vector<1x16x32xf32>, vector<1x16x32xf32> -> vector<2x16x32xf32>
    %c0_26 = arith.constant 0 : index
    %c0_27 = arith.constant 0 : index
    %c0_28 = arith.constant 0 : index
    %70 = vector.load %arg5[%c0_26, %c0_27, %c0_28] : memref<2x16x32xf32, #tpu.memory_space<vmem>>, vector<2x16x32xf32>
    tpu.vector_store %arg5[%c0_26, %c0_27, %c0_28], %69 {strides = array<i32>} : memref<2x16x32xf32, #tpu.memory_space<vmem>>, vector<2x16x32xf32>,
    return
  }
}

</mosaic_0001>

<llo_original>
// kernel: neg.1
$region0: #{neg.1}
  #allocation0 [shape = 's32[1]{0}', space=sflag, size = 0x4, scoped, tag = 'scoped memory for neg.1']
  %s0 = inlined_call_operand.vmem [shape: f32[4,2,8], index: 0, kind: input, shape index: {}]
  %s1 = inlined_call_operand.vmem [shape: f32[4,2,8], index: 1, kind: output, shape index: {}]
  %v2 = vld [vmem:[%s0] sm:$0x3]
  %3 = xla_tuple %v2
  %4 = xla_tuple %3
  %v5 = vxor.u32 %v2, 2147483648
  %6 = xla_tuple %v5
  %7 = vst [vmem:[%s1] sm:$0x3] %v5
  %s8 = scalar_lea.vmem %s0, 2
  %v9 = vld [vmem:[%s8] sm:$0x3]
  %10 = xla_tuple %v9
  %11 = xla_tuple %10
  %v12 = vxor.u32 %v9, 2147483648
  %13 = xla_tuple %v12
  %s14 = scalar_lea.vmem %s1, 2
  %15 = vst [vmem:[%s14] sm:$0x3] %v12
  %s16 = scalar_lea.vmem %s0, 4
  %v17 = vld [vmem:[%s16] sm:$0x3]
  %18 = xla_tuple %v17
  %19 = xla_tuple %18
  %v20 = vxor.u32 %v17, 2147483648
  %21 = xla_tuple %v20
  %s22 = scalar_lea.vmem %s1, 4
  %23 = vst [vmem:[%s22] sm:$0x3] %v20
  %s24 = scalar_lea.vmem %s0, 6
  %v25 = vld [vmem:[%s24] sm:$0x3]
  %26 = xla_tuple %v25
  %27 = xla_tuple %26
  %v28 = vxor.u32 %v25, 2147483648
  %29 = xla_tuple %v28
  %s30 = scalar_lea.vmem %s1, 6
  %31 = vst [vmem:[%s30] sm:$0x3] %v28

// kernel: hama_block_forward.5
$region0: #{hama_block_forward.5}
  #allocation0 [shape = 'u32[]', space=smem, size = 0x4, offset = 0x4, fixed_abs, tag = 'smem constant byte address 0x4 - core index']
  #allocation1 [shape = 'u32[144,128]{1,0:T(1,128)}', space=vmem, size = 0x12000, scoped, tag = 'internal scratch']
  %s0 = inlined_call_operand.vmem [shape: bf16[4,2,8,32], index: 0, kind: input, shape index: {}]
  %s1 = inlined_call_operand.vmem [shape: bf16[16,32], index: 1, kind: input, shape index: {}]
  %s2 = inlined_call_operand.vmem [shape: f32[16,1], index: 2, kind: input, shape index: {}]
  %s3 = inlined_call_operand.vmem [shape: f32[1,32], index: 3, kind: input, shape index: {}]
  %s4 = inlined_call_operand.vmem [shape: f32[1,32], index: 4, kind: input, shape index: {}]
  %s5 = inlined_call_operand.hbm [shape: f32[2,16,32], index: 5, kind: output, shape index: {}]
  %s6 = sld [smem:[#allocation0]]
  $region30: #{hama_block_forward.5} parent=0
    _
  %s8 = ssub.s32 1, %s6
  %s9 = scalar_select 0, %s8, %s6
  $region1: #{hama_block_forward.5} parent=0
    #allocation2 [shape = 'u8[16384]{0}', space=vmem, size = 0x4000, scoped, tag = 'output window, operand 0, single buffered']
    #allocation3 [shape = 's32[1]{0}', space=sflag, size = 0x4, scoped, tag = 'scoped memory for hama_block_forward.5']
    %10 = vsyncpa [#allocation3], 0
    // Predicated region
    $region2: #{hama_block_forward.5} parent=1 // pred_check
      _
    $region3: #{hama_block_forward.5} parent=1 // pred_check_branch
      %12 = sbr.rel (0) target = $region5
    $region4: #{hama_block_forward.5} parent=1 // pred_region
      _
    $region5: #{hama_block_forward.5} parent=1 // pred_fallthru
      _
    // Predicated region
    $region6: #{hama_block_forward.5} parent=1 // pred_check
      _
    $region7: #{hama_block_forward.5} parent=1 // pred_check_branch
      %14 = sbr.rel (0) target = $region9
    $region8: #{hama_block_forward.5} parent=1 // pred_region
      _
    $region9: #{hama_block_forward.5} parent=1 // pred_fallthru
      _
    // Predicated region
    $region10: #{hama_block_forward.5} parent=1 // pred_check
      _
    $region11: #{hama_block_forward.5} parent=1 // pred_check_branch
      %16 = sbr.rel (0) target = $region13
    $region12: #{hama_block_forward.5} parent=1 // pred_region
      _
    $region13: #{hama_block_forward.5} parent=1 // pred_fallthru
      _
    // Predicated region
    $region14: #{hama_block_forward.5} parent=1 // pred_check
      _
    $region15: #{hama_block_forward.5} parent=1 // pred_check_branch
      %18 = sbr.rel (0) target = $region17
    $region16: #{hama_block_forward.5} parent=1 // pred_region
      _
    $region17: #{hama_block_forward.5} parent=1 // pred_fallthru
      _
    // Predicated region
    $region18: #{hama_block_forward.5} parent=1 // pred_check
      _
    $region19: #{hama_block_forward.5} parent=1 // pred_check_branch
      %20 = sbr.rel (0) target = $region21
    $region20: #{hama_block_forward.5} parent=1 // pred_region
      _
    $region21: #{hama_block_forward.5} parent=1 // pred_fallthru
      _
    %v22 = vld [vmem:[%s0] sm:$0xf]
    %v23 = vld [vmem:[%s0 + $0x4] sm:$0xf]
    %v24 = vld [vmem:[%s0 + $0x8] sm:$0xf]
    %v25 = vld [vmem:[%s0 + $0xc] sm:$0xf]
    %v26 = vld [vmem:[%s0 + $0x10] sm:$0xf]
    %v27 = vld [vmem:[%s0 + $0x14] sm:$0xf]
    %v28 = vld [vmem:[%s0 + $0x18] sm:$0xf]
    %v29 = vld [vmem:[%s0 + $0x1c] sm:$0xf]
    %v30 = vld [vmem:[%s1] sm:$0xf]
    %v31 = vld [vmem:[%s1 + $0x4] sm:$0xf]
    %v32 = vld [vmem:[%s2] sm:$0xff]
    %v33 = vld [vmem:[%s2 + $0x8] sm:$0xff]
    %v36 = vunpack.c.l.b16 %v30
    %v37 = vunpack.c.l.b16 %v31
    %v38 = vpack.c.b16 %v37, %v36
    %v43 = vunpack.c.l.b16 %v22
    %v44 = vunpack.c.l.b16 %v24
    %v45 = vunpack.c.l.b16 %v26
    %v46 = vunpack.c.l.b16 %v28
    %v47 = vpack.c.b16 %v44, %v43
    %v48 = vpack.c.b16 %v46, %v45
    %vm51 = vcmask 261120
    %v53 = vsel %vm51, %v38, 0
    %55 = vmatprep.subr.bf16.mxu0 0
    %56 = vmatpush1.bf16.msra.mxu0 %v47
    %57 = vmatprep.subr.bf16.mxu0 0
    %58 = vmatpush1.bf16.msra.mxu0 %v48
    %59 = vmatprep.subr.bf16.mxu0 0
    %60 = vmatpush1.bf16.msra.mxu0 0
    %61 = vmatprep.subr.bf16.mxu0 0
    %62 = vmatpush1.bf16.msra.mxu0 0
    %63 = vmatprep.subr.bf16.mxu0 0
    %64 = vmatpush1.bf16.msra.mxu0 0
    %65 = vmatprep.subr.bf16.mxu0 0
    %66 = vmatpush1.bf16.msra.mxu0 0
    %67 = vmatprep.subr.bf16.mxu0 0
    %68 = vmatpush1.bf16.msra.mxu0 0
    %69 = vmatprep.subr.bf16.mxu0 0
    %70 = vmatpush1.bf16.msra.mxu0 0
    %71 = vmatprep.subr.bf16.mxu0 0
    %72 = vmatpush1.bf16.msra.mxu0 0
    %73 = vmatprep.subr.bf16.mxu0 0
    %74 = vmatpush1.bf16.msra.mxu0 0
    %75 = vmatprep.subr.bf16.mxu0 0
    %76 = vmatpush1.bf16.msra.mxu0 0
    %77 = vmatprep.subr.bf16.mxu0 0
    %78 = vmatpush1.bf16.msra.mxu0 0
    %79 = vmatprep.subr.bf16.mxu0 0
    %80 = vmatpush1.bf16.msra.mxu0 0
    %81 = vmatprep.subr.bf16.mxu0 0
    %82 = vmatpush1.bf16.msra.mxu0 0
    %83 = vmatprep.subr.bf16.mxu0 0
    %84 = vmatpush1.bf16.msra.mxu0 0
    %85 = vmatprep.subr.bf16.mxu0 0
    %86 = vmatpush1.bf16.msra.mxu0 0
    %87 = vmatprep.mubr.bf16.mxu0 0
    %88 = vmatmul.mubr.bf16.gmra.mrb[0].mxu0 %v53
    %v89 = vpop.f32.mrb[0].mxu0
    %v90 = vadd.f32 0.0, %v89
    %v91 = vpop.f32.mrb[0].mxu0
    %v92 = vpop.f32.mrb[0].mxu0
    %v93 = vadd.f32 0.0, %v92
    %v94 = vpop.f32.mrb[0].mxu0
    %95 = vdwg.mxu0
    %97 = vset.pattern.permute.xlu0 0
    %98 = vperm.xlu0 %97, %v32
    %v99 = vpop.permute.xlu0 %98
    %102 = vset.pattern.permute.xlu0 0
    %103 = vperm.xlu0 %102, %v33
    %v104 = vpop.permute.xlu0 %103
    %v106 = vmul.f32 %v90, %v99
    %v107 = vmul.f32 %v93, %v104
    %v108 = vld [vmem:[%s3] sm:$0x1]
    %v109 = vld [vmem:[%s4] sm:$0x1]
    %v110 = vsel %vm51, %v106, 0.0
    %111 = vadd.xlane.f32.xlu0 %v110
    %v112 = vpop.xlane.xlu0 %111
    %v113 = vsel %vm51, %v107, 0.0
    %114 = vadd.xlane.f32.xlu0 %v113
    %v115 = vpop.xlane.xlu0 %114
    %v116 = vrcp.pop 32.0
    %v117 = vmul.f32 %v112, %v116
    %v118 = vmul.f32 %v115, %v116
    %v119 = vsub.f32 %v106, %v117
    %v120 = vsub.f32 %v107, %v118
    %v121 = vmul.f32 %v119, %v119
    %v122 = vmul.f32 %v120, %v120
    %v123 = vsel %vm51, %v121, 0.0
    %124 = vadd.xlane.f32.xlu0 %v123
    %v125 = vpop.xlane.xlu0 %124
    %v126 = vsel %vm51, %v122, 0.0
    %127 = vadd.xlane.f32.xlu0 %v126
    %v128 = vpop.xlane.xlu0 %127
    %v129 = vmul.f32 %v125, %v116
    %v130 = vmul.f32 %v128, %v116
    %v131 = vadd.f32 %v129, 1e-05
    %v132 = vadd.f32 %v130, 1e-05
    %v133 = vrsqrt.pop %v131
    %v134 = vrsqrt.pop %v132
    %v135 = vmul.f32 %v119, %v133
    %v136 = vmul.f32 %v120, %v134
    %v138 = vlaneseq
    %v139 = vshrl.u32 %v138, 7
    %v140 = vsub.s32 0, %v139
    %v141 = vrot.slane %v108, %v140
    %v143 = vmul.f32 %v135, %v141
    %v144 = vmul.f32 %v136, %v141
    %v146 = vlaneseq
    %v147 = vshrl.u32 %v146, 7
    %v148 = vsub.s32 0, %v147
    %v149 = vrot.slane %v109, %v148
    %v151 = vadd.f32 %v143, %v149
    %v152 = vadd.f32 %v144, %v149
    %v157 = vunpack.c.l.b16 %v23
    %v158 = vunpack.c.l.b16 %v25
    %v159 = vunpack.c.l.b16 %v27
    %v160 = vunpack.c.l.b16 %v29
    %v161 = vpack.c.b16 %v158, %v157
    %v162 = vpack.c.b16 %v160, %v159
    %165 = vmatprep.subr.bf16.mxu0 0
    %166 = vmatpush1.bf16.msra.mxu0 %v161
    %167 = vmatprep.subr.bf16.mxu0 0
    %168 = vmatpush1.bf16.msra.mxu0 %v162
    %169 = vmatprep.subr.bf16.mxu0 0
    %170 = vmatpush1.bf16.msra.mxu0 0
    %171 = vmatprep.subr.bf16.mxu0 0
    %172 = vmatpush1.bf16.msra.mxu0 0
    %173 = vmatprep.subr.bf16.mxu0 0
    %174 = vmatpush1.bf16.msra.mxu0 0
    %175 = vmatprep.subr.bf16.mxu0 0
    %176 = vmatpush1.bf16.msra.mxu0 0
    %177 = vmatprep.subr.bf16.mxu0 0
    %178 = vmatpush1.bf16.msra.mxu0 0
    %179 = vmatprep.subr.bf16.mxu0 0
    %180 = vmatpush1.bf16.msra.mxu0 0
    %181 = vmatprep.subr.bf16.mxu0 0
    %182 = vmatpush1.bf16.msra.mxu0 0
    %183 = vmatprep.subr.bf16.mxu0 0
    %184 = vmatpush1.bf16.msra.mxu0 0
    %185 = vmatprep.subr.bf16.mxu0 0
    %186 = vmatpush1.bf16.msra.mxu0 0
    %187 = vmatprep.subr.bf16.mxu0 0
    %188 = vmatpush1.bf16.msra.mxu0 0
    %189 = vmatprep.subr.bf16.mxu0 0
    %190 = vmatpush1.bf16.msra.mxu0 0
    %191 = vmatprep.subr.bf16.mxu0 0
    %192 = vmatpush1.bf16.msra.mxu0 0
    %193 = vmatprep.subr.bf16.mxu0 0
    %194 = vmatpush1.bf16.msra.mxu0 0
    %195 = vmatprep.subr.bf16.mxu0 0
    %196 = vmatpush1.bf16.msra.mxu0 0
    %197 = vmatprep.mubr.bf16.mxu0 0
    %198 = vmatmul.mubr.bf16.gmra.mrb[0].mxu0 %v53
    %v199 = vpop.f32.mrb[0].mxu0
    %v200 = vadd.f32 0.0, %v199
    %v201 = vpop.f32.mrb[0].mxu0
    %v202 = vpop.f32.mrb[0].mxu0
    %v203 = vadd.f32 0.0, %v202
    %v204 = vpop.f32.mrb[0].mxu0
    %205 = vdwg.mxu0
    %v206 = vmul.f32 %v200, %v99
    %v207 = vmul.f32 %v203, %v104
    %v208 = vsel %vm51, %v206, 0.0
    %209 = vadd.xlane.f32.xlu0 %v208
    %v210 = vpop.xlane.xlu0 %209
    %v211 = vsel %vm51, %v207, 0.0
    %212 = vadd.xlane.f32.xlu0 %v211
    %v213 = vpop.xlane.xlu0 %212
    %v214 = vmul.f32 %v210, %v116
    %v215 = vmul.f32 %v213, %v116
    %v216 = vsub.f32 %v206, %v214
    %v217 = vsub.f32 %v207, %v215
    %v218 = vmul.f32 %v216, %v216
    %v219 = vmul.f32 %v217, %v217
    %v220 = vsel %vm51, %v218, 0.0
    %221 = vadd.xlane.f32.xlu0 %v220
    %v222 = vpop.xlane.xlu0 %221
    %v223 = vsel %vm51, %v219, 0.0
    %224 = vadd.xlane.f32.xlu0 %v223
    %v225 = vpop.xlane.xlu0 %224
    %v226 = vmul.f32 %v222, %v116
    %v227 = vmul.f32 %v225, %v116
    %v228 = vadd.f32 %v226, 1e-05
    %v229 = vadd.f32 %v227, 1e-05
    %v230 = vrsqrt.pop %v228
    %v231 = vrsqrt.pop %v229
    %v232 = vmul.f32 %v216, %v230
    %v233 = vmul.f32 %v217, %v231
    %v234 = vmul.f32 %v232, %v141
    %v235 = vmul.f32 %v233, %v141
    %v236 = vadd.f32 %v234, %v149
    %v237 = vadd.f32 %v235, %v149
    %238 = vst.msk [vmem:[#allocation2] sm:$0xff] %vm51, %v151
    %239 = vst.msk [vmem:[#allocation2 + $0x8] sm:$0xff] %vm51, %v152
    %240 = vst.msk [vmem:[#allocation2 + $0x10] sm:$0xff] %vm51, %v236
    %241 = vst.msk [vmem:[#allocation2 + $0x18] sm:$0xff] %vm51, %v237
    // Predicated region
    $region22: #{hama_block_forward.5} parent=1 // pred_check
      _
    $region23: #{hama_block_forward.5} parent=1 // pred_check_branch
      %243 = sbr.rel (0) target = $region25
    $region24: #{hama_block_forward.5} parent=1 // pred_region
      %s245 = ssub.s32 512, 512
      %246 = vsyncadd [#allocation3], %s245
      %s247 = sshll.u32 [#allocation2], 4
      %s248 = int_to_ptr.vmem [resolvable:$true] %s247
      %253 = dma.vmem_to_hbm [thread:$0]  %s248, 512, %s5, [#allocation3], 128, 128, 8
    $region25: #{hama_block_forward.5} parent=1 // pred_fallthru
      _
    // Predicated region
    $region26: #{hama_block_forward.5} parent=1 // pred_check
      _
    $region27: #{hama_block_forward.5} parent=1 // pred_check_branch
      %255 = sbr.rel (0) target = $region29
    $region28: #{hama_block_forward.5} parent=1 // pred_region
      %256 = dma.done [#allocation3], 512
    $region29: #{hama_block_forward.5} parent=1 // pred_fallthru
      _
    %257 = vsyncpa [#allocation3], 1

// kernel: hama_block_forward.4
$region0: #{hama_block_forward.4}
  #allocation0 [shape = 'u32[]', space=smem, size = 0x4, offset = 0x4, fixed_abs, tag = 'smem constant byte address 0x4 - core index']
  #allocation1 [shape = 'u32[144,128]{1,0:T(1,128)}', space=vmem, size = 0x12000, scoped, tag = 'internal scratch']
  #allocation2 [shape = 'f32[2,8,32]{2,1,0:T(8,128)}', space=vmem, size = 0x2000, scoped, tag = 'scratch operand']
  %s0 = inlined_call_operand.vmem [shape: f32[4,2,8], index: 0, kind: input, shape index: {}]
  %s1 = inlined_call_operand.vmem [shape: bf16[4,2,8,32], index: 1, kind: input, shape index: {}]
  %s2 = inlined_call_operand.vmem [shape: bf16[4,2,32,96], index: 2, kind: input, shape index: {}]
  %s3 = inlined_call_operand.vmem [shape: f32[4,2,1,96], index: 3, kind: input, shape index: {}]
  %s4 = inlined_call_operand.vmem [shape: bf16[4,2,32,32], index: 4, kind: input, shape index: {}]
  %s5 = inlined_call_operand.vmem [shape: f32[4,2,1,32], index: 5, kind: input, shape index: {}]
  %s6 = inlined_call_operand.vmem [shape: bf16[4,2,32,2048], index: 6, kind: input, shape index: {}]
  %s7 = inlined_call_operand.vmem [shape: f32[4,2,1,2048], index: 7, kind: input, shape index: {}]
  %s8 = inlined_call_operand.vmem [shape: bf16[4,2,2048,32], index: 8, kind: input, shape index: {}]
  %s9 = inlined_call_operand.vmem [shape: f32[4,2,1,32], index: 9, kind: input, shape index: {}]
  %s10 = inlined_call_operand.vmem [shape: f32[4,2,1,32], index: 10, kind: input, shape index: {}]
  %s11 = inlined_call_operand.vmem [shape: f32[4,2,1,32], index: 11, kind: input, shape index: {}]
  %s12 = inlined_call_operand.vmem [shape: f32[4,2,1,32], index: 12, kind: input, shape index: {}]
  %s13 = inlined_call_operand.vmem [shape: f32[4,2,1,32], index: 13, kind: input, shape index: {}]
  %s14 = inlined_call_operand.vmem [shape: bf16[4,2,8,32], index: 14, kind: output, shape index: {}]
  %s15 = sld [smem:[#allocation0]]
  $region97: #{hama_block_forward.4} parent=0
    _
  %s17 = ssub.s32 1, %s15
  %s18 = scalar_select 0, %s17, %s15
  loop: start=0, step=1, limit=10
  $region2: #{hama_block_forward.4} parent=0 // loop_pre_header
    _
  $region3: #{hama_block_forward.4} parent=0 // loop_header
    %s20 = sphi 0, %s24
    %p21 = scmp.ge.s32.totalorder %s20, 10
    %s27 = sphi 0, %s39
    %s28 = sphi 0, %s35
    %s29 = sphi 0, %s27
    %s30 = sphi 0, %s28
    %s31 = sphi 0, %s29
    %s32 = sphi 0, %s30
    %s42 = sphi 0, %s44
    %s45 = sphi 0, %s42
    %s46 = sphi 0, %s45
    %s62 = sphi 0, %s46
    %s68 = sphi 0, %s70
    %s71 = sphi 0, %s68
    %s72 = sphi 0, %s71
    %s88 = sphi 0, %s72
    %s96 = sphi 0, %s98
    %s99 = sphi 0, %s96
    %s100 = sphi 0, %s99
    %s116 = sphi 0, %s100
    %s124 = sphi 0, %s126
    %s127 = sphi 0, %s124
    %s128 = sphi 0, %s127
    %s144 = sphi 0, %s128
    %s152 = sphi 0, %s154
    %s155 = sphi 0, %s152
    %s156 = sphi 0, %s155
    %s172 = sphi 0, %s156
    %s180 = sphi 0, %s182
    %s183 = sphi 0, %s180
    %s184 = sphi 0, %s183
    %s200 = sphi 0, %s184
    %s208 = sphi 0, %s210
    %s211 = sphi 0, %s208
    %s212 = sphi 0, %s211
    %s228 = sphi 0, %s212
    %s236 = sphi 0, %s238
    %s239 = sphi 0, %s236
    %s240 = sphi 0, %s239
    %s256 = sphi 0, %s240
    %s264 = sphi 0, %s266
    %s267 = sphi 0, %s264
    %s268 = sphi 0, %s267
    %s284 = sphi 0, %s268
    %s292 = sphi 0, %s294
    %s295 = sphi 0, %s292
    %s296 = sphi 0, %s295
    %s312 = sphi 0, %s296
    %s320 = sphi 0, %s322
    %s323 = sphi 0, %s320
    %s324 = sphi 0, %s323
    %s340 = sphi 0, %s324
    %s348 = sphi 0, %s350
    %s351 = sphi 0, %s348
    %s352 = sphi 0, %s351
    %s368 = sphi 0, %s352
    %s376 = sphi 0, %s378
    %s379 = sphi 0, %s376
    %s380 = sphi 0, %s379
    %s396 = sphi 0, %s380
    %s404 = sphi 0, %s406
    %s407 = sphi 0, %s404
    %s408 = sphi 0, %s407
    %s424 = sphi 0, %s408
    %s430 = sphi 0, %s432
    %s433 = sphi 0, %s430
    %s434 = sphi 0, %s433
    %s450 = sphi 0, %s434
  $region4: #{hama_block_forward.4} parent=0 // loop_header_branch
    %23 = sbr.rel (%p21) target = $region8
  $region5: #{hama_block_forward.4} parent=0 // loop_body
    %s25 = ssub.s32 %s20, 1
    %s26 = ssub.s32 %s20, 2
    %s33 = sadd.s32 1, %s28
    %p34 = scmp.ge.s32.totalorder %s33, 2
    %s35 = scalar_select %p34, 0, %s33
    %s36 = sadd.s32 1, %s27
    %s37 = scalar_select %p34, %s36, %s27
    %p38 = scmp.ge.s32.totalorder %s37, 4
    %s39 = scalar_select %p38, 0, %s37
    %s40 = ssub.s32 %s27, %s39
    %p41 = scmp.eq.s32.totalorder %s40, 0
    %s43 = sadd.s32 %s42, 1
    %s44 = scalar_select %p41, %s42, %s43
    %p47 = pneg %p41
    %p48 = scmp.eq.s32.totalorder %s20, 7
    %p49 = por %p47, %p48
    %p50 = scmp.ne.s32.totalorder %s42, %s45
    %p51 = scmp.eq.s32.totalorder %s20, 0
    %p52 = por %p50, %p51
    %p53 = scmp.ne.s32.totalorder %s42, %s45
    %p54 = scmp.eq.s32.totalorder %s25, 7
    %p55 = por %p53, %p54
    %p56 = scmp.ne.s32.totalorder %s45, %s46
    %p57 = scmp.eq.s32.totalorder %s25, 0
    %p58 = por %p56, %p57
    %p59 = scmp.ne.s32.totalorder %s45, %s46
    %p60 = scmp.eq.s32.totalorder %s26, 7
    %p61 = por %p59, %p60
    %p63 = scmp.ne.s32.totalorder %s46, %s62
    %p64 = scmp.eq.s32.totalorder %s26, 0
    %p65 = por %p63, %p64
    %s66 = ssub.s32 %s27, %s39
    %p67 = scmp.eq.s32.totalorder %s66, 0
    %s69 = sadd.s32 %s68, 1
    %s70 = scalar_select %p67, %s68, %s69
    %p73 = pneg %p67
    %p74 = scmp.eq.s32.totalorder %s20, 7
    %p75 = por %p73, %p74
    %p76 = scmp.ne.s32.totalorder %s68, %s71
    %p77 = scmp.eq.s32.totalorder %s20, 0
    %p78 = por %p76, %p77
    %p79 = scmp.ne.s32.totalorder %s68, %s71
    %p80 = scmp.eq.s32.totalorder %s25, 7
    %p81 = por %p79, %p80
    %p82 = scmp.ne.s32.totalorder %s71, %s72
    %p83 = scmp.eq.s32.totalorder %s25, 0
    %p84 = por %p82, %p83
    %p85 = scmp.ne.s32.totalorder %s71, %s72
    %p86 = scmp.eq.s32.totalorder %s26, 7
    %p87 = por %p85, %p86
    %p89 = scmp.ne.s32.totalorder %s72, %s88
    %p90 = scmp.eq.s32.totalorder %s26, 0
    %p91 = por %p89, %p90
    %s92 = ssub.s32 %s27, %s39
    %s93 = ssub.s32 %s28, %s35
    %s94 = sor.u32 %s92, %s93
    %p95 = scmp.eq.s32.totalorder %s94, 0
    %s97 = sadd.s32 %s96, 1
    %s98 = scalar_select %p95, %s96, %s97
    %p101 = pneg %p95
    %p102 = scmp.eq.s32.totalorder %s20, 7
    %p103 = por %p101, %p102
    %p104 = scmp.ne.s32.totalorder %s96, %s99
    %p105 = scmp.eq.s32.totalorder %s20, 0
    %p106 = por %p104, %p105
    %p107 = scmp.ne.s32.totalorder %s96, %s99
    %p108 = scmp.eq.s32.totalorder %s25, 7
    %p109 = por %p107, %p108
    %p110 = scmp.ne.s32.totalorder %s99, %s100
    %p111 = scmp.eq.s32.totalorder %s25, 0
    %p112 = por %p110, %p111
    %p113 = scmp.ne.s32.totalorder %s99, %s100
    %p114 = scmp.eq.s32.totalorder %s26, 7
    %p115 = por %p113, %p114
    %p117 = scmp.ne.s32.totalorder %s100, %s116
    %p118 = scmp.eq.s32.totalorder %s26, 0
    %p119 = por %p117, %p118
    %s120 = ssub.s32 %s27, %s39
    %s121 = ssub.s32 %s28, %s35
    %s122 = sor.u32 %s120, %s121
    %p123 = scmp.eq.s32.totalorder %s122, 0
    %s125 = sadd.s32 %s124, 1
    %s126 = scalar_select %p123, %s124, %s125
    %p129 = pneg %p123
    %p130 = scmp.eq.s32.totalorder %s20, 7
    %p131 = por %p129, %p130
    %p132 = scmp.ne.s32.totalorder %s124, %s127
    %p133 = scmp.eq.s32.totalorder %s20, 0
    %p134 = por %p132, %p133
    %p135 = scmp.ne.s32.totalorder %s124, %s127
    %p136 = scmp.eq.s32.totalorder %s25, 7
    %p137 = por %p135, %p136
    %p138 = scmp.ne.s32.totalorder %s127, %s128
    %p139 = scmp.eq.s32.totalorder %s25, 0
    %p140 = por %p138, %p139
    %p141 = scmp.ne.s32.totalorder %s127, %s128
    %p142 = scmp.eq.s32.totalorder %s26, 7
    %p143 = por %p141, %p142
    %p145 = scmp.ne.s32.totalorder %s128, %s144
    %p146 = scmp.eq.s32.totalorder %s26, 0
    %p147 = por %p145, %p146
    %s148 = ssub.s32 %s27, %s39
    %s149 = ssub.s32 %s28, %s35
    %s150 = sor.u32 %s148, %s149
    %p151 = scmp.eq.s32.totalorder %s150, 0
    %s153 = sadd.s32 %s152, 1
    %s154 = scalar_select %p151, %s152, %s153
    %p157 = pneg %p151
    %p158 = scmp.eq.s32.totalorder %s20, 7
    %p159 = por %p157, %p158
    %p160 = scmp.ne.s32.totalorder %s152, %s155
    %p161 = scmp.eq.s32.totalorder %s20, 0
    %p162 = por %p160, %p161
    %p163 = scmp.ne.s32.totalorder %s152, %s155
    %p164 = scmp.eq.s32.totalorder %s25, 7
    %p165 = por %p163, %p164
    %p166 = scmp.ne.s32.totalorder %s155, %s156
    %p167 = scmp.eq.s32.totalorder %s25, 0
    %p168 = por %p166, %p167
    %p169 = scmp.ne.s32.totalorder %s155, %s156
    %p170 = scmp.eq.s32.totalorder %s26, 7
    %p171 = por %p169, %p170
    %p173 = scmp.ne.s32.totalorder %s156, %s172
    %p174 = scmp.eq.s32.totalorder %s26, 0
    %p175 = por %p173, %p174
    %s176 = ssub.s32 %s27, %s39
    %s177 = ssub.s32 %s28, %s35
    %s178 = sor.u32 %s176, %s177
    %p179 = scmp.eq.s32.totalorder %s178, 0
    %s181 = sadd.s32 %s180, 1
    %s182 = scalar_select %p179, %s180, %s181
    %p185 = pneg %p179
    %p186 = scmp.eq.s32.totalorder %s20, 7
    %p187 = por %p185, %p186
    %p188 = scmp.ne.s32.totalorder %s180, %s183
    %p189 = scmp.eq.s32.totalorder %s20, 0
    %p190 = por %p188, %p189
    %p191 = scmp.ne.s32.totalorder %s180, %s183
    %p192 = scmp.eq.s32.totalorder %s25, 7
    %p193 = por %p191, %p192
    %p194 = scmp.ne.s32.totalorder %s183, %s184
    %p195 = scmp.eq.s32.totalorder %s25, 0
    %p196 = por %p194, %p195
    %p197 = scmp.ne.s32.totalorder %s183, %s184
    %p198 = scmp.eq.s32.totalorder %s26, 7
    %p199 = por %p197, %p198
    %p201 = scmp.ne.s32.totalorder %s184, %s200
    %p202 = scmp.eq.s32.totalorder %s26, 0
    %p203 = por %p201, %p202
    %s204 = ssub.s32 %s27, %s39
    %s205 = ssub.s32 %s28, %s35
    %s206 = sor.u32 %s204, %s205
    %p207 = scmp.eq.s32.totalorder %s206, 0
    %s209 = sadd.s32 %s208, 1
    %s210 = scalar_select %p207, %s208, %s209
    %p213 = pneg %p207
    %p214 = scmp.eq.s32.totalorder %s20, 7
    %p215 = por %p213, %p214
    %p216 = scmp.ne.s32.totalorder %s208, %s211
    %p217 = scmp.eq.s32.totalorder %s20, 0
    %p218 = por %p216, %p217
    %p219 = scmp.ne.s32.totalorder %s208, %s211
    %p220 = scmp.eq.s32.totalorder %s25, 7
    %p221 = por %p219, %p220
    %p222 = scmp.ne.s32.totalorder %s211, %s212
    %p223 = scmp.eq.s32.totalorder %s25, 0
    %p224 = por %p222, %p223
    %p225 = scmp.ne.s32.totalorder %s211, %s212
    %p226 = scmp.eq.s32.totalorder %s26, 7
    %p227 = por %p225, %p226
    %p229 = scmp.ne.s32.totalorder %s212, %s228
    %p230 = scmp.eq.s32.totalorder %s26, 0
    %p231 = por %p229, %p230
    %s232 = ssub.s32 %s27, %s39
    %s233 = ssub.s32 %s28, %s35
    %s234 = sor.u32 %s232, %s233
    %p235 = scmp.eq.s32.totalorder %s234, 0
    %s237 = sadd.s32 %s236, 1
    %s238 = scalar_select %p235, %s236, %s237
    %p241 = pneg %p235
    %p242 = scmp.eq.s32.totalorder %s20, 7
    %p243 = por %p241, %p242
    %p244 = scmp.ne.s32.totalorder %s236, %s239
    %p245 = scmp.eq.s32.totalorder %s20, 0
    %p246 = por %p244, %p245
    %p247 = scmp.ne.s32.totalorder %s236, %s239
    %p248 = scmp.eq.s32.totalorder %s25, 7
    %p249 = por %p247, %p248
    %p250 = scmp.ne.s32.totalorder %s239, %s240
    %p251 = scmp.eq.s32.totalorder %s25, 0
    %p252 = por %p250, %p251
    %p253 = scmp.ne.s32.totalorder %s239, %s240
    %p254 = scmp.eq.s32.totalorder %s26, 7
    %p255 = por %p253, %p254
    %p257 = scmp.ne.s32.totalorder %s240, %s256
    %p258 = scmp.eq.s32.totalorder %s26, 0
    %p259 = por %p257, %p258
    %s260 = ssub.s32 %s27, %s39
    %s261 = ssub.s32 %s28, %s35
    %s262 = sor.u32 %s260, %s261
    %p263 = scmp.eq.s32.totalorder %s262, 0
    %s265 = sadd.s32 %s264, 1
    %s266 = scalar_select %p263, %s264, %s265
    %p269 = pneg %p263
    %p270 = scmp.eq.s32.totalorder %s20, 7
    %p271 = por %p269, %p270
    %p272 = scmp.ne.s32.totalorder %s264, %s267
    %p273 = scmp.eq.s32.totalorder %s20, 0
    %p274 = por %p272, %p273
    %p275 = scmp.ne.s32.totalorder %s264, %s267
    %p276 = scmp.eq.s32.totalorder %s25, 7
    %p277 = por %p275, %p276
    %p278 = scmp.ne.s32.totalorder %s267, %s268
    %p279 = scmp.eq.s32.totalorder %s25, 0
    %p280 = por %p278, %p279
    %p281 = scmp.ne.s32.totalorder %s267, %s268
    %p282 = scmp.eq.s32.totalorder %s26, 7
    %p283 = por %p281, %p282
    %p285 = scmp.ne.s32.totalorder %s268, %s284
    %p286 = scmp.eq.s32.totalorder %s26, 0
    %p287 = por %p285, %p286
    %s288 = ssub.s32 %s27, %s39
    %s289 = ssub.s32 %s28, %s35
    %s290 = sor.u32 %s288, %s289
    %p291 = scmp.eq.s32.totalorder %s290, 0
    %s293 = sadd.s32 %s292, 1
    %s294 = scalar_select %p291, %s292, %s293
    %p297 = pneg %p291
    %p298 = scmp.eq.s32.totalorder %s20, 7
    %p299 = por %p297, %p298
    %p300 = scmp.ne.s32.totalorder %s292, %s295
    %p301 = scmp.eq.s32.totalorder %s20, 0
    %p302 = por %p300, %p301
    %p303 = scmp.ne.s32.totalorder %s292, %s295
    %p304 = scmp.eq.s32.totalorder %s25, 7
    %p305 = por %p303, %p304
    %p306 = scmp.ne.s32.totalorder %s295, %s296
    %p307 = scmp.eq.s32.totalorder %s25, 0
    %p308 = por %p306, %p307
    %p309 = scmp.ne.s32.totalorder %s295, %s296
    %p310 = scmp.eq.s32.totalorder %s26, 7
    %p311 = por %p309, %p310
    %p313 = scmp.ne.s32.totalorder %s296, %s312
    %p314 = scmp.eq.s32.totalorder %s26, 0
    %p315 = por %p313, %p314
    %s316 = ssub.s32 %s27, %s39
    %s317 = ssub.s32 %s28, %s35
    %s318 = sor.u32 %s316, %s317
    %p319 = scmp.eq.s32.totalorder %s318, 0
    %s321 = sadd.s32 %s320, 1
    %s322 = scalar_select %p319, %s320, %s321
    %p325 = pneg %p319
    %p326 = scmp.eq.s32.totalorder %s20, 7
    %p327 = por %p325, %p326
    %p328 = scmp.ne.s32.totalorder %s320, %s323
    %p329 = scmp.eq.s32.totalorder %s20, 0
    %p330 = por %p328, %p329
    %p331 = scmp.ne.s32.totalorder %s320, %s323
    %p332 = scmp.eq.s32.totalorder %s25, 7
    %p333 = por %p331, %p332
    %p334 = scmp.ne.s32.totalorder %s323, %s324
    %p335 = scmp.eq.s32.totalorder %s25, 0
    %p336 = por %p334, %p335
    %p337 = scmp.ne.s32.totalorder %s323, %s324
    %p338 = scmp.eq.s32.totalorder %s26, 7
    %p339 = por %p337, %p338
    %p341 = scmp.ne.s32.totalorder %s324, %s340
    %p342 = scmp.eq.s32.totalorder %s26, 0
    %p343 = por %p341, %p342
    %s344 = ssub.s32 %s27, %s39
    %s345 = ssub.s32 %s28, %s35
    %s346 = sor.u32 %s344, %s345
    %p347 = scmp.eq.s32.totalorder %s346, 0
    %s349 = sadd.s32 %s348, 1
    %s350 = scalar_select %p347, %s348, %s349
    %p353 = pneg %p347
    %p354 = scmp.eq.s32.totalorder %s20, 7
    %p355 = por %p353, %p354
    %p356 = scmp.ne.s32.totalorder %s348, %s351
    %p357 = scmp.eq.s32.totalorder %s20, 0
    %p358 = por %p356, %p357
    %p359 = scmp.ne.s32.totalorder %s348, %s351
    %p360 = scmp.eq.s32.totalorder %s25, 7
    %p361 = por %p359, %p360
    %p362 = scmp.ne.s32.totalorder %s351, %s352
    %p363 = scmp.eq.s32.totalorder %s25, 0
    %p364 = por %p362, %p363
    %p365 = scmp.ne.s32.totalorder %s351, %s352
    %p366 = scmp.eq.s32.totalorder %s26, 7
    %p367 = por %p365, %p366
    %p369 = scmp.ne.s32.totalorder %s352, %s368
    %p370 = scmp.eq.s32.totalorder %s26, 0
    %p371 = por %p369, %p370
    %s372 = ssub.s32 %s27, %s39
    %s373 = ssub.s32 %s28, %s35
    %s374 = sor.u32 %s372, %s373
    %p375 = scmp.eq.s32.totalorder %s374, 0
    %s377 = sadd.s32 %s376, 1
    %s378 = scalar_select %p375, %s376, %s377
    %p381 = pneg %p375
    %p382 = scmp.eq.s32.totalorder %s20, 7
    %p383 = por %p381, %p382
    %p384 = scmp.ne.s32.totalorder %s376, %s379
    %p385 = scmp.eq.s32.totalorder %s20, 0
    %p386 = por %p384, %p385
    %p387 = scmp.ne.s32.totalorder %s376, %s379
    %p388 = scmp.eq.s32.totalorder %s25, 7
    %p389 = por %p387, %p388
    %p390 = scmp.ne.s32.totalorder %s379, %s380
    %p391 = scmp.eq.s32.totalorder %s25, 0
    %p392 = por %p390, %p391
    %p393 = scmp.ne.s32.totalorder %s379, %s380
    %p394 = scmp.eq.s32.totalorder %s26, 7
    %p395 = por %p393, %p394
    %p397 = scmp.ne.s32.totalorder %s380, %s396
    %p398 = scmp.eq.s32.totalorder %s26, 0
    %p399 = por %p397, %p398
    %s400 = ssub.s32 %s27, %s39
    %s401 = ssub.s32 %s28, %s35
    %s402 = sor.u32 %s400, %s401
    %p403 = scmp.eq.s32.totalorder %s402, 0
    %s405 = sadd.s32 %s404, 1
    %s406 = scalar_select %p403, %s404, %s405
    %p409 = pneg %p403
    %p410 = scmp.eq.s32.totalorder %s20, 7
    %p411 = por %p409, %p410
    %p412 = scmp.ne.s32.totalorder %s404, %s407
    %p413 = scmp.eq.s32.totalorder %s20, 0
    %p414 = por %p412, %p413
    %p415 = scmp.ne.s32.totalorder %s404, %s407
    %p416 = scmp.eq.s32.totalorder %s25, 7
    %p417 = por %p415, %p416
    %p418 = scmp.ne.s32.totalorder %s407, %s408
    %p419 = scmp.eq.s32.totalorder %s25, 0
    %p420 = por %p418, %p419
    %p421 = scmp.ne.s32.totalorder %s407, %s408
    %p422 = scmp.eq.s32.totalorder %s26, 7
    %p423 = por %p421, %p422
    %p425 = scmp.ne.s32.totalorder %s408, %s424
    %p426 = scmp.eq.s32.totalorder %s26, 0
    %p427 = por %p425, %p426
    %s428 = ssub.s32 %s27, %s39
    %p429 = scmp.eq.s32.totalorder %s428, 0
    %s431 = sadd.s32 %s430, 1
    %s432 = scalar_select %p429, %s430, %s431
    %p435 = pneg %p429
    %p436 = scmp.eq.s32.totalorder %s20, 7
    %p437 = por %p435, %p436
    %p438 = scmp.ne.s32.totalorder %s430, %s433
    %p439 = scmp.eq.s32.totalorder %s20, 0
    %p440 = por %p438, %p439
    %p441 = scmp.ne.s32.totalorder %s430, %s433
    %p442 = scmp.eq.s32.totalorder %s25, 7
    %p443 = por %p441, %p442
    %p444 = scmp.ne.s32.totalorder %s433, %s434
    %p445 = scmp.eq.s32.totalorder %s25, 0
    %p446 = por %p444, %p445
    %p447 = scmp.ne.s32.totalorder %s433, %s434
    %p448 = scmp.eq.s32.totalorder %s26, 7
    %p449 = por %p447, %p448
    %p451 = scmp.ne.s32.totalorder %s434, %s450
    %p452 = scmp.eq.s32.totalorder %s26, 0
    %p453 = por %p451, %p452
    %p454 = scmp.le.s32.totalorder 1, %s20
    %p455 = scmp.lt.s32.totalorder %s20, 9
    %p456 = pnand %p454, %p455
    %p457 = pneg %p456
    // Predicated region
    $region9: #{hama_block_forward.4} parent=5 // pred_check
      _
    $region10: #{hama_block_forward.4} parent=5 // pred_check_branch
      %459 = sbr.rel (%p456) target = $region12
    $region11: #{hama_block_forward.4} parent=5 // pred_region
      %s460 = ssub.s32 %s20, 1
    $region12: #{hama_block_forward.4} parent=5 // pred_fallthru
      _
    %p461 = scmp.lt.s32.totalorder %s20, 8
    // Predicated region
    $region13: #{hama_block_forward.4} parent=5 // pred_check
      %p462 = pneg %p461
    $region14: #{hama_block_forward.4} parent=5 // pred_check_branch
      %464 = sbr.rel (%p462) target = $region16
    $region15: #{hama_block_forward.4} parent=5 // pred_region
      // Predicated region
      $region17: #{hama_block_forward.4} parent=15 // pred_check
        %p465 = pneg %p52
      $region18: #{hama_block_forward.4} parent=15 // pred_check_branch
        %467 = sbr.rel (%p465) target = $region20
      $region19: #{hama_block_forward.4} parent=15 // pred_region
        %p468 = scmp.lt.s32.totalorder %s27, 3
        %s469 = scalar_select %p468, %s27, 3
        %s470 = smul.addr %s469, 2
        %s471 = scalar_lea.vmem %s0, %s470
      $region20: #{hama_block_forward.4} parent=15 // pred_fallthru
        _
      // Predicated region
      $region21: #{hama_block_forward.4} parent=15 // pred_check
        %p472 = pneg %p78
      $region22: #{hama_block_forward.4} parent=15 // pred_check_branch
        %474 = sbr.rel (%p472) target = $region24
      $region23: #{hama_block_forward.4} parent=15 // pred_region
        %p475 = scmp.lt.s32.totalorder %s27, 3
        %s476 = scalar_select %p475, %s27, 3
        %s477 = smul.addr %s476, 2
        %s478 = smul.addr %s477, 4
        %s479 = scalar_lea.vmem %s1, %s478
      $region24: #{hama_block_forward.4} parent=15 // pred_fallthru
        _
      // Predicated region
      $region25: #{hama_block_forward.4} parent=15 // pred_check
        %p480 = pneg %p106
      $region26: #{hama_block_forward.4} parent=15 // pred_check_branch
        %482 = sbr.rel (%p480) target = $region28
      $region27: #{hama_block_forward.4} parent=15 // pred_region
        %p483 = scmp.lt.s32.totalorder %s27, 3
        %s484 = scalar_select %p483, %s27, 3
        %p485 = scmp.lt.s32.totalorder %s28, 1
        %s486 = scalar_select %p485, %s28, 1
        %s487 = smul.addr %s486, 4
        %s488 = smul.addr %s484, 8
        %s489 = sadd.s32 %s487, %s488
        %s490 = smul.addr %s489, 4
        %s491 = scalar_lea.vmem %s2, %s490
      $region28: #{hama_block_forward.4} parent=15 // pred_fallthru
        _
      // Predicated region
      $region29: #{hama_block_forward.4} parent=15 // pred_check
        %p492 = pneg %p134
      $region30: #{hama_block_forward.4} parent=15 // pred_check_branch
        %494 = sbr.rel (%p492) target = $region32
      $region31: #{hama_block_forward.4} parent=15 // pred_region
        %p495 = scmp.lt.s32.totalorder %s27, 3
        %s496 = scalar_select %p495, %s27, 3
        %p497 = scmp.lt.s32.totalorder %s28, 1
        %s498 = scalar_select %p497, %s28, 1
        %s499 = smul.addr %s496, 2
        %s500 = sadd.s32 %s498, %s499
        %s501 = scalar_lea.vmem %s3, %s500
      $region32: #{hama_block_forward.4} parent=15 // pred_fallthru
        _
      // Predicated region
      $region33: #{hama_block_forward.4} parent=15 // pred_check
        %p502 = pneg %p162
      $region34: #{hama_block_forward.4} parent=15 // pred_check_branch
        %504 = sbr.rel (%p502) target = $region36
      $region35: #{hama_block_forward.4} parent=15 // pred_region
        %p505 = scmp.lt.s32.totalorder %s27, 3
        %s506 = scalar_select %p505, %s27, 3
        %p507 = scmp.lt.s32.totalorder %s28, 1
        %s508 = scalar_select %p507, %s28, 1
        %s509 = smul.addr %s508, 4
        %s510 = smul.addr %s506, 8
        %s511 = sadd.s32 %s509, %s510
        %s512 = smul.addr %s511, 4
        %s513 = scalar_lea.vmem %s4, %s512
      $region36: #{hama_block_forward.4} parent=15 // pred_fallthru
        _
      // Predicated region
      $region37: #{hama_block_forward.4} parent=15 // pred_check
        %p514 = pneg %p190
      $region38: #{hama_block_forward.4} parent=15 // pred_check_branch
        %516 = sbr.rel (%p514) target = $region40
      $region39: #{hama_block_forward.4} parent=15 // pred_region
        %p517 = scmp.lt.s32.totalorder %s27, 3
        %s518 = scalar_select %p517, %s27, 3
        %p519 = scmp.lt.s32.totalorder %s28, 1
        %s520 = scalar_select %p519, %s28, 1
        %s521 = smul.addr %s518, 2
        %s522 = sadd.s32 %s520, %s521
        %s523 = scalar_lea.vmem %s5, %s522
      $region40: #{hama_block_forward.4} parent=15 // pred_fallthru
        _
      // Predicated region
      $region41: #{hama_block_forward.4} parent=15 // pred_check
        %p524 = pneg %p218
      $region42: #{hama_block_forward.4} parent=15 // pred_check_branch
        %526 = sbr.rel (%p524) target = $region44
      $region43: #{hama_block_forward.4} parent=15 // pred_region
        %p527 = scmp.lt.s32.totalorder %s27, 3
        %s528 = scalar_select %p527, %s27, 3
        %p529 = scmp.lt.s32.totalorder %s28, 1
        %s530 = scalar_select %p529, %s28, 1
        %s531 = smul.addr %s530, 64
        %s532 = smul.addr %s528, 128
        %s533 = sadd.s32 %s531, %s532
        %s534 = smul.addr %s533, 4
        %s535 = scalar_lea.vmem %s6, %s534
      $region44: #{hama_block_forward.4} parent=15 // pred_fallthru
        _
      // Predicated region
      $region45: #{hama_block_forward.4} parent=15 // pred_check
        %p536 = pneg %p246
      $region46: #{hama_block_forward.4} parent=15 // pred_check_branch
        %538 = sbr.rel (%p536) target = $region48
      $region47: #{hama_block_forward.4} parent=15 // pred_region
        %p539 = scmp.lt.s32.totalorder %s27, 3
        %s540 = scalar_select %p539, %s27, 3
        %p541 = scmp.lt.s32.totalorder %s28, 1
        %s542 = scalar_select %p541, %s28, 1
        %s543 = smul.addr %s542, 16
        %s544 = smul.addr %s540, 32
        %s545 = sadd.s32 %s543, %s544
        %s546 = scalar_lea.vmem %s7, %s545
      $region48: #{hama_block_forward.4} parent=15 // pred_fallthru
        _
      // Predicated region
      $region49: #{hama_block_forward.4} parent=15 // pred_check
        %p547 = pneg %p274
      $region50: #{hama_block_forward.4} parent=15 // pred_check_branch
        %549 = sbr.rel (%p547) target = $region52
      $region51: #{hama_block_forward.4} parent=15 // pred_region
        %p550 = scmp.lt.s32.totalorder %s27, 3
        %s551 = scalar_select %p550, %s27, 3
        %p552 = scmp.lt.s32.totalorder %s28, 1
        %s553 = scalar_select %p552, %s28, 1
        %s554 = smul.addr %s553, 256
        %s555 = smul.addr %s551, 512
        %s556 = sadd.s32 %s554, %s555
        %s557 = smul.addr %s556, 4
        %s558 = scalar_lea.vmem %s8, %s557
      $region52: #{hama_block_forward.4} parent=15 // pred_fallthru
        _
      // Predicated region
      $region53: #{hama_block_forward.4} parent=15 // pred_check
        %p559 = pneg %p302
      $region54: #{hama_block_forward.4} parent=15 // pred_check_branch
        %561 = sbr.rel (%p559) target = $region56
      $region55: #{hama_block_forward.4} parent=15 // pred_region
        %p562 = scmp.lt.s32.totalorder %s27, 3
        %s563 = scalar_select %p562, %s27, 3
        %p564 = scmp.lt.s32.totalorder %s28, 1
        %s565 = scalar_select %p564, %s28, 1
        %s566 = smul.addr %s563, 2
        %s567 = sadd.s32 %s565, %s566
        %s568 = scalar_lea.vmem %s9, %s567
      $region56: #{hama_block_forward.4} parent=15 // pred_fallthru
        _
      // Predicated region
      $region57: #{hama_block_forward.4} parent=15 // pred_check
        %p569 = pneg %p330
      $region58: #{hama_block_forward.4} parent=15 // pred_check_branch
        %571 = sbr.rel (%p569) target = $region60
      $region59: #{hama_block_forward.4} parent=15 // pred_region
        %p572 = scmp.lt.s32.totalorder %s27, 3
        %s573 = scalar_select %p572, %s27, 3
        %p574 = scmp.lt.s32.totalorder %s28, 1
        %s575 = scalar_select %p574, %s28, 1
        %s576 = smul.addr %s573, 2
        %s577 = sadd.s32 %s575, %s576
        %s578 = scalar_lea.vmem %s10, %s577
      $region60: #{hama_block_forward.4} parent=15 // pred_fallthru
        _
      // Predicated region
      $region61: #{hama_block_forward.4} parent=15 // pred_check
        %p579 = pneg %p358
      $region62: #{hama_block_forward.4} parent=15 // pred_check_branch
        %581 = sbr.rel (%p579) target = $region64
      $region63: #{hama_block_forward.4} parent=15 // pred_region
        %p582 = scmp.lt.s32.totalorder %s27, 3
        %s583 = scalar_select %p582, %s27, 3
        %p584 = scmp.lt.s32.totalorder %s28, 1
        %s585 = scalar_select %p584, %s28, 1
        %s586 = smul.addr %s583, 2
        %s587 = sadd.s32 %s585, %s586
        %s588 = scalar_lea.vmem %s11, %s587
      $region64: #{hama_block_forward.4} parent=15 // pred_fallthru
        _
      // Predicated region
      $region65: #{hama_block_forward.4} parent=15 // pred_check
        %p589 = pneg %p386
      $region66: #{hama_block_forward.4} parent=15 // pred_check_branch
        %591 = sbr.rel (%p589) target = $region68
      $region67: #{hama_block_forward.4} parent=15 // pred_region
        %p592 = scmp.lt.s32.totalorder %s27, 3
        %s593 = scalar_select %p592, %s27, 3
        %p594 = scmp.lt.s32.totalorder %s28, 1
        %s595 = scalar_select %p594, %s28, 1
        %s596 = smul.addr %s593, 2
        %s597 = sadd.s32 %s595, %s596
        %s598 = scalar_lea.vmem %s12, %s597
      $region68: #{hama_block_forward.4} parent=15 // pred_fallthru
        _
      // Predicated region
      $region69: #{hama_block_forward.4} parent=15 // pred_check
        %p599 = pneg %p414
      $region70: #{hama_block_forward.4} parent=15 // pred_check_branch
        %601 = sbr.rel (%p599) target = $region72
      $region71: #{hama_block_forward.4} parent=15 // pred_region
        %p602 = scmp.lt.s32.totalorder %s27, 3
        %s603 = scalar_select %p602, %s27, 3
        %p604 = scmp.lt.s32.totalorder %s28, 1
        %s605 = scalar_select %p604, %s28, 1
        %s606 = smul.addr %s603, 2
        %s607 = sadd.s32 %s605, %s606
        %s608 = scalar_lea.vmem %s13, %s607
      $region72: #{hama_block_forward.4} parent=15 // pred_fallthru
        _
    $region16: #{hama_block_forward.4} parent=5 // pred_fallthru
      _
    %p609 = scmp.le.s32.totalorder 1, %s20
    %p610 = scmp.lt.s32.totalorder %s20, 9
    %p611 = pnand %p609, %p610
    %p612 = pneg %p611
    // Predicated region
    $region73: #{hama_block_forward.4} parent=5 // pred_check
      _
    $region74: #{hama_block_forward.4} parent=5 // pred_check_branch
      %614 = sbr.rel (%p611) target = $region76
    $region75: #{hama_block_forward.4} parent=5 // pred_region
      %s615 = ssub.s32 %s20, 1
      %p616 = scmp.lt.s32.totalorder %s29, 3
      %s617 = scalar_select %p616, %s29, 3
      %s618 = smul.addr %s617, 2
      %s619 = scalar_lea.vmem %s0, %s618
      %p620 = pneg %p58
      %p621 = pneg %p55
      %p622 = scmp.lt.s32.totalorder %s29, 3
      %s623 = scalar_select %p622, %s29, 3
      %s624 = smul.addr %s623, 2
      %s625 = smul.addr %s624, 4
      %s626 = scalar_lea.vmem %s1, %s625
      %p627 = pneg %p84
      %p628 = pneg %p81
      %p629 = scmp.lt.s32.totalorder %s29, 3
      %s630 = scalar_select %p629, %s29, 3
      %p631 = scmp.lt.s32.totalorder %s30, 1
      %s632 = scalar_select %p631, %s30, 1
      %s633 = smul.addr %s632, 4
      %s634 = smul.addr %s630, 8
      %s635 = sadd.s32 %s633, %s634
      %s636 = smul.addr %s635, 4
      %s637 = scalar_lea.vmem %s2, %s636
      %p638 = pneg %p112
      %p639 = pneg %p109
      %p640 = scmp.lt.s32.totalorder %s29, 3
      %s641 = scalar_select %p640, %s29, 3
      %p642 = scmp.lt.s32.totalorder %s30, 1
      %s643 = scalar_select %p642, %s30, 1
      %s644 = smul.addr %s641, 2
      %s645 = sadd.s32 %s643, %s644
      %s646 = scalar_lea.vmem %s3, %s645
      %p647 = pneg %p140
      %p648 = pneg %p137
      %p649 = scmp.lt.s32.totalorder %s29, 3
      %s650 = scalar_select %p649, %s29, 3
      %p651 = scmp.lt.s32.totalorder %s30, 1
      %s652 = scalar_select %p651, %s30, 1
      %s653 = smul.addr %s652, 4
      %s654 = smul.addr %s650, 8
      %s655 = sadd.s32 %s653, %s654
      %s656 = smul.addr %s655, 4
      %s657 = scalar_lea.vmem %s4, %s656
      %p658 = pneg %p168
      %p659 = pneg %p165
      %p660 = scmp.lt.s32.totalorder %s29, 3
      %s661 = scalar_select %p660, %s29, 3
      %p662 = scmp.lt.s32.totalorder %s30, 1
      %s663 = scalar_select %p662, %s30, 1
      %s664 = smul.addr %s661, 2
      %s665 = sadd.s32 %s663, %s664
      %s666 = scalar_lea.vmem %s5, %s665
      %p667 = pneg %p196
      %p668 = pneg %p193
      %p669 = scmp.lt.s32.totalorder %s29, 3
      %s670 = scalar_select %p669, %s29, 3
      %p671 = scmp.lt.s32.totalorder %s30, 1
      %s672 = scalar_select %p671, %s30, 1
      %s673 = smul.addr %s672, 64
      %s674 = smul.addr %s670, 128
      %s675 = sadd.s32 %s673, %s674
      %s676 = smul.addr %s675, 4
      %s677 = scalar_lea.vmem %s6, %s676
      %p678 = pneg %p224
      %p679 = pneg %p221
      %p680 = scmp.lt.s32.totalorder %s29, 3
      %s681 = scalar_select %p680, %s29, 3
      %p682 = scmp.lt.s32.totalorder %s30, 1
      %s683 = scalar_select %p682, %s30, 1
      %s684 = smul.addr %s683, 16
      %s685 = smul.addr %s681, 32
      %s686 = sadd.s32 %s684, %s685
      %s687 = scalar_lea.vmem %s7, %s686
      %p688 = pneg %p252
      %p689 = pneg %p249
      %p690 = scmp.lt.s32.totalorder %s29, 3
      %s691 = scalar_select %p690, %s29, 3
      %p692 = scmp.lt.s32.totalorder %s30, 1
      %s693 = scalar_select %p692, %s30, 1
      %s694 = smul.addr %s693, 256
      %s695 = smul.addr %s691, 512
      %s696 = sadd.s32 %s694, %s695
      %s697 = smul.addr %s696, 4
      %s698 = scalar_lea.vmem %s8, %s697
      %p699 = pneg %p280
      %p700 = pneg %p277
      %p701 = scmp.lt.s32.totalorder %s29, 3
      %s702 = scalar_select %p701, %s29, 3
      %p703 = scmp.lt.s32.totalorder %s30, 1
      %s704 = scalar_select %p703, %s30, 1
      %s705 = smul.addr %s702, 2
      %s706 = sadd.s32 %s704, %s705
      %s707 = scalar_lea.vmem %s9, %s706
      %p708 = pneg %p308
      %p709 = pneg %p305
      %p710 = scmp.lt.s32.totalorder %s29, 3
      %s711 = scalar_select %p710, %s29, 3
      %p712 = scmp.lt.s32.totalorder %s30, 1
      %s713 = scalar_select %p712, %s30, 1
      %s714 = smul.addr %s711, 2
      %s715 = sadd.s32 %s713, %s714
      %s716 = scalar_lea.vmem %s10, %s715
      %p717 = pneg %p336
      %p718 = pneg %p333
      %p719 = scmp.lt.s32.totalorder %s29, 3
      %s720 = scalar_select %p719, %s29, 3
      %p721 = scmp.lt.s32.totalorder %s30, 1
      %s722 = scalar_select %p721, %s30, 1
      %s723 = smul.addr %s720, 2
      %s724 = sadd.s32 %s722, %s723
      %s725 = scalar_lea.vmem %s11, %s724
      %p726 = pneg %p364
      %p727 = pneg %p361
      %p728 = scmp.lt.s32.totalorder %s29, 3
      %s729 = scalar_select %p728, %s29, 3
      %p730 = scmp.lt.s32.totalorder %s30, 1
      %s731 = scalar_select %p730, %s30, 1
      %s732 = smul.addr %s729, 2
      %s733 = sadd.s32 %s731, %s732
      %s734 = scalar_lea.vmem %s12, %s733
      %p735 = pneg %p392
      %p736 = pneg %p389
      %p737 = scmp.lt.s32.totalorder %s29, 3
      %s738 = scalar_select %p737, %s29, 3
      %p739 = scmp.lt.s32.totalorder %s30, 1
      %s740 = scalar_select %p739, %s30, 1
      %s741 = smul.addr %s738, 2
      %s742 = sadd.s32 %s740, %s741
      %s743 = scalar_lea.vmem %s13, %s742
      %p744 = pneg %p420
      %p745 = pneg %p417
      %p746 = pneg %p446
      %p747 = pneg %p443
      %p748 = scmp.lt.s32.totalorder %s29, 3
      %s749 = scalar_select %p748, %s29, 3
      %s750 = smul.addr %s749, 2
      %s751 = smul.addr %s750, 4
      %s752 = scalar_lea.vmem %s14, %s751
      %p753 = scmp.lt.s32.totalorder %s29, 3
      %s754 = scalar_select %p753, %s29, 3
      %s755 = smul.addr %s754, 2
      %s756 = scalar_lea.vmem %s0, %s755
      %p757 = scmp.lt.s32.totalorder %s29, 3
      %s758 = scalar_select %p757, %s29, 3
      %s759 = smul.addr %s758, 2
      %s760 = smul.addr %s759, 4
      %s761 = scalar_lea.vmem %s1, %s760
      %p762 = scmp.lt.s32.totalorder %s29, 3
      %s763 = scalar_select %p762, %s29, 3
      %p764 = scmp.lt.s32.totalorder %s30, 1
      %s765 = scalar_select %p764, %s30, 1
      %s766 = smul.addr %s765, 4
      %s767 = smul.addr %s763, 8
      %s768 = sadd.s32 %s766, %s767
      %s769 = smul.addr %s768, 4
      %s770 = scalar_lea.vmem %s2, %s769
      %p771 = scmp.lt.s32.totalorder %s29, 3
      %s772 = scalar_select %p771, %s29, 3
      %p773 = scmp.lt.s32.totalorder %s30, 1
      %s774 = scalar_select %p773, %s30, 1
      %s775 = smul.addr %s772, 2
      %s776 = sadd.s32 %s774, %s775
      %s777 = scalar_lea.vmem %s3, %s776
      %p778 = scmp.lt.s32.totalorder %s29, 3
      %s779 = scalar_select %p778, %s29, 3
      %p780 = scmp.lt.s32.totalorder %s30, 1
      %s781 = scalar_select %p780, %s30, 1
      %s782 = smul.addr %s781, 4
      %s783 = smul.addr %s779, 8
      %s784 = sadd.s32 %s782, %s783
      %s785 = smul.addr %s784, 4
      %s786 = scalar_lea.vmem %s4, %s785
      %p787 = scmp.lt.s32.totalorder %s29, 3
      %s788 = scalar_select %p787, %s29, 3
      %p789 = scmp.lt.s32.totalorder %s30, 1
      %s790 = scalar_select %p789, %s30, 1
      %s791 = smul.addr %s788, 2
      %s792 = sadd.s32 %s790, %s791
      %s793 = scalar_lea.vmem %s5, %s792
      %p794 = scmp.lt.s32.totalorder %s29, 3
      %s795 = scalar_select %p794, %s29, 3
      %p796 = scmp.lt.s32.totalorder %s30, 1
      %s797 = scalar_select %p796, %s30, 1
      %s798 = smul.addr %s797, 64
      %s799 = smul.addr %s795, 128
      %s800 = sadd.s32 %s798, %s799
      %s801 = smul.addr %s800, 4
      %s802 = scalar_lea.vmem %s6, %s801
      %p803 = scmp.lt.s32.totalorder %s29, 3
      %s804 = scalar_select %p803, %s29, 3
      %p805 = scmp.lt.s32.totalorder %s30, 1
      %s806 = scalar_select %p805, %s30, 1
      %s807 = smul.addr %s806, 16
      %s808 = smul.addr %s804, 32
      %s809 = sadd.s32 %s807, %s808
      %s810 = scalar_lea.vmem %s7, %s809
      %p811 = scmp.lt.s32.totalorder %s29, 3
      %s812 = scalar_select %p811, %s29, 3
      %p813 = scmp.lt.s32.totalorder %s30, 1
      %s814 = scalar_select %p813, %s30, 1
      %s815 = smul.addr %s814, 256
      %s816 = smul.addr %s812, 512
      %s817 = sadd.s32 %s815, %s816
      %s818 = smul.addr %s817, 4
      %s819 = scalar_lea.vmem %s8, %s818
      %p820 = scmp.lt.s32.totalorder %s29, 3
      %s821 = scalar_select %p820, %s29, 3
      %p822 = scmp.lt.s32.totalorder %s30, 1
      %s823 = scalar_select %p822, %s30, 1
      %s824 = smul.addr %s821, 2
      %s825 = sadd.s32 %s823, %s824
      %s826 = scalar_lea.vmem %s9, %s825
      %p827 = scmp.lt.s32.totalorder %s29, 3
      %s828 = scalar_select %p827, %s29, 3
      %p829 = scmp.lt.s32.totalorder %s30, 1
      %s830 = scalar_select %p829, %s30, 1
      %s831 = smul.addr %s828, 2
      %s832 = sadd.s32 %s830, %s831
      %s833 = scalar_lea.vmem %s10, %s832
      %p834 = scmp.lt.s32.totalorder %s29, 3
      %s835 = scalar_select %p834, %s29, 3
      %p836 = scmp.lt.s32.totalorder %s30, 1
      %s837 = scalar_select %p836, %s30, 1
      %s838 = smul.addr %s835, 2
      %s839 = sadd.s32 %s837, %s838
      %s840 = scalar_lea.vmem %s11, %s839
      %p841 = scmp.lt.s32.totalorder %s29, 3
      %s842 = scalar_select %p841, %s29, 3
      %p843 = scmp.lt.s32.totalorder %s30, 1
      %s844 = scalar_select %p843, %s30, 1
      %s845 = smul.addr %s842, 2
      %s846 = sadd.s32 %s844, %s845
      %s847 = scalar_lea.vmem %s12, %s846
      %p848 = scmp.lt.s32.totalorder %s29, 3
      %s849 = scalar_select %p848, %s29, 3
      %p850 = scmp.lt.s32.totalorder %s30, 1
      %s851 = scalar_select %p850, %s30, 1
      %s852 = smul.addr %s849, 2
      %s853 = sadd.s32 %s851, %s852
      %s854 = scalar_lea.vmem %s13, %s853
      %p855 = scmp.lt.s32.totalorder %s29, 3
      %s856 = scalar_select %p855, %s29, 3
      %s857 = smul.addr %s856, 2
      %s858 = smul.addr %s857, 4
      %s859 = scalar_lea.vmem %s14, %s858
      %p861 = scmp.eq.s32.totalorder %s30, 0
      // Predicated region
      $region77: #{hama_block_forward.4} parent=75 // pred_check
        %p862 = pneg %p861
      $region78: #{hama_block_forward.4} parent=75 // pred_check_branch
        %864 = sbr.rel (%p862) target = $region80
      $region79: #{hama_block_forward.4} parent=75 // pred_region
        %v865 = vld [vmem:[%s756] sm:$0x3]
        %v866 = vsub.f32 1.0, %v865
        %v867 = vld [vmem:[%s761] sm:$0xf]
        %v868 = vld [vmem:[%s761 + $0x4] sm:$0xf]
        %v869 = vunpack.c.l.bf16 %v867
        %v870 = vunpack.c.l.bf16 %v868
        %v871 = vlaneseq
        %v872 = vshrl.u32 %v871, 7
        %v873 = vsub.s32 0, %v872
        %v874 = vrot.slane %v866, %v873
        %876 = vbcast.lane.b32.xlu0 %v874, 256
        %v877 = vpop.permute.xlu0 %876
        %v878 = vlaneseq
        %v879 = vshrl.u32 %v878, 7
        %v880 = vsub.s32 1, %v879
        %v881 = vrot.slane %v866, %v880
        %883 = vbcast.lane.b32.xlu0 %v881, 256
        %v884 = vpop.permute.xlu0 %883
        %v885 = vmul.f32 %v869, %v877
        %v886 = vmul.f32 %v870, %v884
        %vm887 = vcmask 261120
        %888 = vst.msk [vmem:[#allocation2] sm:$0xff] %vm887, %v885
        %889 = vst.msk [vmem:[#allocation2 + $0x8] sm:$0xff] %vm887, %v886
      $region80: #{hama_block_forward.4} parent=75 // pred_fallthru
        _
      %v890 = vld [vmem:[#allocation2] sm:$0xff]
      %v891 = vld [vmem:[#allocation2 + $0x8] sm:$0xff]
      %v892 = vpack.c.bf16 %v891, %v890
      %v893 = vld [vmem:[%s770] sm:$0xf]
      %v894 = vld [vmem:[%s770 + $0x4] sm:$0xf]
      %v895 = vld [vmem:[%s770 + $0x8] sm:$0xf]
      %v896 = vld [vmem:[%s770 + $0xc] sm:$0xf]
      %v897 = vld [vmem:[%s777] sm:$0x1]
      %v899 = vlaneseq
      %v900 = vshrl.u32 %v899, 7
      %v901 = vsub.s32 0, %v900
      %v902 = vrot.slane %v897, %v901
      %v908 = vunpack.c.l.b16 %v893
      %v909 = vunpack.c.l.b16 %v894
      %v910 = vunpack.c.l.b16 %v895
      %v911 = vunpack.c.l.b16 %v896
      %v912 = vpack.c.b16 %v909, %v908
      %v913 = vpack.c.b16 %v911, %v910
      %vm916 = vcmask 261120
      %v918 = vsel %vm916, %v892, 0
      %920 = vmatprep.subr.bf16.mxu0 0
      %921 = vmatpush1.bf16.msra.mxu0 %v912
      %922 = vmatprep.subr.bf16.mxu0 0
      %923 = vmatpush1.bf16.msra.mxu0 %v913
      %924 = vmatprep.subr.bf16.mxu0 0
      %925 = vmatpush1.bf16.msra.mxu0 0
      %926 = vmatprep.subr.bf16.mxu0 0
      %927 = vmatpush1.bf16.msra.mxu0 0
      %928 = vmatprep.subr.bf16.mxu0 0
      %929 = vmatpush1.bf16.msra.mxu0 0
      %930 = vmatprep.subr.bf16.mxu0 0
      %931 = vmatpush1.bf16.msra.mxu0 0
      %932 = vmatprep.subr.bf16.mxu0 0
      %933 = vmatpush1.bf16.msra.mxu0 0
      %934 = vmatprep.subr.bf16.mxu0 0
      %935 = vmatpush1.bf16.msra.mxu0 0
      %936 = vmatprep.subr.bf16.mxu0 0
      %937 = vmatpush1.bf16.msra.mxu0 0
      %938 = vmatprep.subr.bf16.mxu0 0
      %939 = vmatpush1.bf16.msra.mxu0 0
      %940 = vmatprep.subr.bf16.mxu0 0
      %941 = vmatpush1.bf16.msra.mxu0 0
      %942 = vmatprep.subr.bf16.mxu0 0
      %943 = vmatpush1.bf16.msra.mxu0 0
      %944 = vmatprep.subr.bf16.mxu0 0
      %945 = vmatpush1.bf16.msra.mxu0 0
      %946 = vmatprep.subr.bf16.mxu0 0
      %947 = vmatpush1.bf16.msra.mxu0 0
      %948 = vmatprep.subr.bf16.mxu0 0
      %949 = vmatpush1.bf16.msra.mxu0 0
      %950 = vmatprep.subr.bf16.mxu0 0
      %951 = vmatpush1.bf16.msra.mxu0 0
      %952 = vmatprep.mubr.bf16.mxu0 0
      %953 = vmatmul.mubr.bf16.gmra.mrb[0].mxu0 %v918
      %v954 = vpop.f32.mrb[0].mxu0
      %v955 = vadd.f32 %v902, %v954
      %v956 = vpop.f32.mrb[0].mxu0
      %v957 = vpop.f32.mrb[0].mxu0
      %v958 = vadd.f32 %v902, %v957
      %v959 = vpop.f32.mrb[0].mxu0
      %960 = vdwg.mxu0
      %963 = vrot.lane.b32.xlu0 %v955, 120
      %v964 = vpop.permute.xlu0 %963
      %965 = vrot.lane.b32.xlu0 %v958, 120
      %v966 = vpop.permute.xlu0 %965
      %969 = vrot.lane.b32.xlu0 %v955, 112
      %v970 = vpop.permute.xlu0 %969
      %971 = vrot.lane.b32.xlu0 %v958, 112
      %v972 = vpop.permute.xlu0 %971
      %975 = vrot.lane.b32.xlu0 %v955, 104
      %v976 = vpop.permute.xlu0 %975
      %977 = vrot.lane.b32.xlu0 %v958, 104
      %v978 = vpop.permute.xlu0 %977
      %v981 = vpack.c.bf16 %v955, %v955
      %v982 = vpack.c.bf16 %v958, %v958
      %v983 = vpack.c.bf16 %v964, %v964
      %v984 = vpack.c.bf16 %v966, %v966
      %v985 = vpack.c.bf16 %v970, %v970
      %v986 = vpack.c.bf16 %v972, %v972
      %v987 = vpack.c.bf16 %v976, %v976
      %v988 = vpack.c.bf16 %v978, %v978
      %990 = vrot.lane.b32.xlu0 %v981, 96
      %v991 = vpop.permute.xlu0 %990
      %vm992 = vcmask 64512
      %v994 = vsel %vm992, %v981, 0
      %v997 = vsel %vm992, %v991, 0
      %999 = vmatprep.subr.bf16.mxu0 0
      %1000 = vmatpush1.bf16.xpose.msra.mxu0 %v997
      %1001 = vmatprep.subr.bf16.mxu0 0
      %1002 = vmatpush1.bf16.xpose.msra.mxu0 0
      %1003 = vmatprep.subr.bf16.mxu0 0
      %1004 = vmatpush1.bf16.xpose.msra.mxu0 0
      %1005 = vmatprep.subr.bf16.mxu0 0
      %1006 = vmatpush1.bf16.xpose.msra.mxu0 0
      %1007 = vmatprep.subr.bf16.mxu0 0
      %1008 = vmatpush1.bf16.xpose.msra.mxu0 0
      %1009 = vmatprep.subr.bf16.mxu0 0
      %1010 = vmatpush1.bf16.xpose.msra.mxu0 0
      %1011 = vmatprep.subr.bf16.mxu0 0
      %1012 = vmatpush1.bf16.xpose.msra.mxu0 0
      %1013 = vmatprep.subr.bf16.mxu0 0
      %1014 = vmatpush1.bf16.xpose.msra.mxu0 0
      %1015 = vmatprep.subr.bf16.mxu0 0
      %1016 = vmatpush1.bf16.xpose.msra.mxu0 0
      %1017 = vmatprep.subr.bf16.mxu0 0
      %1018 = vmatpush1.bf16.xpose.msra.mxu0 0
      %1019 = vmatprep.subr.bf16.mxu0 0
      %1020 = vmatpush1.bf16.xpose.msra.mxu0 0
      %1021 = vmatprep.subr.bf16.mxu0 0
      %1022 = vmatpush1.bf16.xpose.msra.mxu0 0
      %1023 = vmatprep.subr.bf16.mxu0 0
      %1024 = vmatpush1.bf16.xpose.msra.mxu0 0
      %1025 = vmatprep.subr.bf16.mxu0 0
      %1026 = vmatpush1.bf16.xpose.msra.mxu0 0
      %1027 = vmatprep.subr.bf16.mxu0 0
      %1028 = vmatpush1.bf16.xpose.msra.mxu0 0
      %1029 = vmatprep.subr.bf16.mxu0 0
      %1030 = vmatpush1.bf16.xpose.msra.mxu0 0
      %1031 = vmatprep.mubr.bf16.mxu0 0
      %1032 = vmatmul.mubr.bf16.gmra.mrb[0].mxu0 %v994
      %v1033 = vpop.f32.mrb[0].mxu0
      %v1034 = vadd.f32 0.0, %v1033
      %v1035 = vpop.f32.mrb[0].mxu0
      %v1036 = vpop.f32.mrb[0].mxu0
      %v1037 = vpop.f32.mrb[0].mxu0
      %1038 = vdwg.mxu0
      %1040 = vrot.lane.b32.xlu0 %v982, 96
      %v1041 = vpop.permute.xlu0 %1040
      %v1043 = vsel %vm992, %v982, 0
      %v1046 = vsel %vm992, %v1041, 0
      %1048 = vmatprep.subr.bf16.mxu0 0
      %1049 = vmatpush1.bf16.xpose.msra.mxu0 %v1046
      %1050 = vmatprep.subr.bf16.mxu0 0
      %1051 = vmatpush1.bf16.xpose.msra.mxu0 0
      %1052 = vmatprep.subr.bf16.mxu0 0
      %1053 = vmatpush1.bf16.xpose.msra.mxu0 0
      %1054 = vmatprep.subr.bf16.mxu0 0
      %1055 = vmatpush1.bf16.xpose.msra.mxu0 0
      %1056 = vmatprep.subr.bf16.mxu0 0
      %1057 = vmatpush1.bf16.xpose.msra.mxu0 0
      %1058 = vmatprep.subr.bf16.mxu0 0
      %1059 = vmatpush1.bf16.xpose.msra.mxu0 0
      %1060 = vmatprep.subr.bf16.mxu0 0
      %1061 = vmatpush1.bf16.xpose.msra.mxu0 0
      %1062 = vmatprep.subr.bf16.mxu0 0
      %1063 = vmatpush1.bf16.xpose.msra.mxu0 0
      %1064 = vmatprep.subr.bf16.mxu0 0
      %1065 = vmatpush1.bf16.xpose.msra.mxu0 0
      %1066 = vmatprep.subr.bf16.mxu0 0
      %1067 = vmatpush1.bf16.xpose.msra.mxu0 0
      %1068 = vmatprep.subr.bf16.mxu0 0
      %1069 = vmatpush1.bf16.xpose.msra.mxu0 0
      %1070 = vmatprep.subr.bf16.mxu0 0
      %1071 = vmatpush1.bf16.xpose.msra.mxu0 0
      %1072 = vmatprep.subr.bf16.mxu0 0
      %1073 = vmatpush1.bf16.xpose.msra.mxu0 0
      %1074 = vmatprep.subr.bf16.mxu0 0
      %1075 = vmatpush1.bf16.xpose.msra.mxu0 0
      %1076 = vmatprep.subr.bf16.mxu0 0
      %1077 = vmatpush1.bf16.xpose.msra.mxu0 0
      %1078 = vmatprep.subr.bf16.mxu0 0
      %1079 = vmatpush1.bf16.xpose.msra.mxu0 0
      %1080 = vmatprep.mubr.bf16.mxu0 0
      %1081 = vmatmul.mubr.bf16.gmra.mrb[0].mxu0 %v1043
      %v1082 = vpop.f32.mrb[0].mxu0
      %v1083 = vadd.f32 0.0, %v1082
      %v1084 = vpop.f32.mrb[0].mxu0
      %v1085 = vpop.f32.mrb[0].mxu0
      %v1086 = vpop.f32.mrb[0].mxu0
      %1087 = vdwg.mxu0
      %1089 = vrot.lane.b32.xlu0 %v983, 96
      %v1090 = vpop.permute.xlu0 %1089
      %v1092 = vsel %vm992, %v983, 0
      %v1095 = vsel %vm992, %v1090, 0
      %1097 = vmatprep.subr.bf16.mxu0 0
      %1098 = vmatpush1.bf16.xpose.msra.mxu0 %v1095
      %1099 = vmatprep.subr.bf16.mxu0 0
      %1100 = vmatpush1.bf16.xpose.msra.mxu0 0
      %1101 = vmatprep.subr.bf16.mxu0 0
      %1102 = vmatpush1.bf16.xpose.msra.mxu0 0
      %1103 = vmatprep.subr.bf16.mxu0 0
      %1104 = vmatpush1.bf16.xpose.msra.mxu0 0
      %1105 = vmatprep.subr.bf16.mxu0 0
      %1106 = vmatpush1.bf16.xpose.msra.mxu0 0
      %1107 = vmatprep.subr.bf16.mxu0 0
      %1108 = vmatpush1.bf16.xpose.msra.mxu0 0
      %1109 = vmatprep.subr.bf16.mxu0 0
      %1110 = vmatpush1.bf16.xpose.msra.mxu0 0
      %1111 = vmatprep.subr.bf16.mxu0 0
      %1112 = vmatpush1.bf16.xpose.msra.mxu0 0
      %1113 = vmatprep.subr.bf16.mxu0 0
      %1114 = vmatpush1.bf16.xpose.msra.mxu0 0
      %1115 = vmatprep.subr.bf16.mxu0 0
      %1116 = vmatpush1.bf16.xpose.msra.mxu0 0
      %1117 = vmatprep.subr.bf16.mxu0 0
      %1118 = vmatpush1.bf16.xpose.msra.mxu0 0
      %1119 = vmatprep.subr.bf16.mxu0 0
      %1120 = vmatpush1.bf16.xpose.msra.mxu0 0
      %1121 = vmatprep.subr.bf16.mxu0 0
      %1122 = vmatpush1.bf16.xpose.msra.mxu0 0
      %1123 = vmatprep.subr.bf16.mxu0 0
      %1124 = vmatpush1.bf16.xpose.msra.mxu0 0
      %1125 = vmatprep.subr.bf16.mxu0 0
      %1126 = vmatpush1.bf16.xpose.msra.mxu0 0
      %1127 = vmatprep.subr.bf16.mxu0 0
      %1128 = vmatpush1.bf16.xpose.msra.mxu0 0
      %1129 = vmatprep.mubr.bf16.mxu0 0
      %1130 = vmatmul.mubr.bf16.gmra.mrb[0].mxu0 %v1092
      %v1131 = vpop.f32.mrb[0].mxu0
      %v1132 = vadd.f32 0.0, %v1131
      %v1133 = vpop.f32.mrb[0].mxu0
      %v1134 = vpop.f32.mrb[0].mxu0
      %v1135 = vpop.f32.mrb[0].mxu0
      %1136 = vdwg.mxu0
      %1138 = vrot.lane.b32.xlu0 %v984, 96
      %v1139 = vpop.permute.xlu0 %1138
      %v1141 = vsel %vm992, %v984, 0
      %v1144 = vsel %vm992, %v1139, 0
      %1146 = vmatprep.subr.bf16.mxu0 0
      %1147 = vmatpush1.bf16.xpose.msra.mxu0 %v1144
      %1148 = vmatprep.subr.bf16.mxu0 0
      %1149 = vmatpush1.bf16.xpose.msra.mxu0 0
      %1150 = vmatprep.subr.bf16.mxu0 0
      %1151 = vmatpush1.bf16.xpose.msra.mxu0 0
      %1152 = vmatprep.subr.bf16.mxu0 0
      %1153 = vmatpush1.bf16.xpose.msra.mxu0 0
      %1154 = vmatprep.subr.bf16.mxu0 0
      %1155 = vmatpush1.bf16.xpose.msra.mxu0 0
      %1156 = vmatprep.subr.bf16.mxu0 0
      %1157 = vmatpush1.bf16.xpose.msra.mxu0 0
      %1158 = vmatprep.subr.bf16.mxu0 0
      %1159 = vmatpush1.bf16.xpose.msra.mxu0 0
      %1160 = vmatprep.subr.bf16.mxu0 0
      %1161 = vmatpush1.bf16.xpose.msra.mxu0 0
      %1162 = vmatprep.subr.bf16.mxu0 0
      %1163 = vmatpush1.bf16.xpose.msra.mxu0 0
      %1164 = vmatprep.subr.bf16.mxu0 0
      %1165 = vmatpush1.bf16.xpose.msra.mxu0 0
      %1166 = vmatprep.subr.bf16.mxu0 0
      %1167 = vmatpush1.bf16.xpose.msra.mxu0 0
      %1168 = vmatprep.subr.bf16.mxu0 0
      %1169 = vmatpush1.bf16.xpose.msra.mxu0 0
      %1170 = vmatprep.subr.bf16.mxu0 0
      %1171 = vmatpush1.bf16.xpose.msra.mxu0 0
      %1172 = vmatprep.subr.bf16.mxu0 0
      %1173 = vmatpush1.bf16.xpose.msra.mxu0 0
      %1174 = vmatprep.subr.bf16.mxu0 0
      %1175 = vmatpush1.bf16.xpose.msra.mxu0 0
      %1176 = vmatprep.subr.bf16.mxu0 0
      %1177 = vmatpush1.bf16.xpose.msra.mxu0 0
      %1178 = vmatprep.mubr.bf16.mxu0 0
      %1179 = vmatmul.mubr.bf16.gmra.mrb[0].mxu0 %v1141
      %v1180 = vpop.f32.mrb[0].mxu0
      %v1181 = vadd.f32 0.0, %v1180
      %v1182 = vpop.f32.mrb[0].mxu0
      %v1183 = vpop.f32.mrb[0].mxu0
      %v1184 = vpop.f32.mrb[0].mxu0
      %1185 = vdwg.mxu0
      %1187 = vrot.lane.b32.xlu0 %v985, 96
      %v1188 = vpop.permute.xlu0 %1187
      %v1190 = vsel %vm992, %v985, 0
      %v1193 = vsel %vm992, %v1188, 0
      %1195 = vmatprep.subr.bf16.mxu0 0
      %1196 = vmatpush1.bf16.xpose.msra.mxu0 %v1193
      %1197 = vmatprep.subr.bf16.mxu0 0
      %1198 = vmatpush1.bf16.xpose.msra.mxu0 0
      %1199 = vmatprep.subr.bf16.mxu0 0
      %1200 = vmatpush1.bf16.xpose.msra.mxu0 0
      %1201 = vmatprep.subr.bf16.mxu0 0
      %1202 = vmatpush1.bf16.xpose.msra.mxu0 0
      %1203 = vmatprep.subr.bf16.mxu0 0
      %1204 = vmatpush1.bf16.xpose.msra.mxu0 0
      %1205 = vmatprep.subr.bf16.mxu0 0
      %1206 = vmatpush1.bf16.xpose.msra.mxu0 0
      %1207 = vmatprep.subr.bf16.mxu0 0
      %1208 = vmatpush1.bf16.xpose.msra.mxu0 0
      %1209 = vmatprep.subr.bf16.mxu0 0
      %1210 = vmatpush1.bf16.xpose.msra.mxu0 0
      %1211 = vmatprep.subr.bf16.mxu0 0
      %1212 = vmatpush1.bf16.xpose.msra.mxu0 0
      %1213 = vmatprep.subr.bf16.mxu0 0
      %1214 = vmatpush1.bf16.xpose.msra.mxu0 0
      %1215 = vmatprep.subr.bf16.mxu0 0
      %1216 = vmatpush1.bf16.xpose.msra.mxu0 0
      %1217 = vmatprep.subr.bf16.mxu0 0
      %1218 = vmatpush1.bf16.xpose.msra.mxu0 0
      %1219 = vmatprep.subr.bf16.mxu0 0
      %1220 = vmatpush1.bf16.xpose.msra.mxu0 0
      %1221 = vmatprep.subr.bf16.mxu0 0
      %1222 = vmatpush1.bf16.xpose.msra.mxu0 0
      %1223 = vmatprep.subr.bf16.mxu0 0
      %1224 = vmatpush1.bf16.xpose.msra.mxu0 0
      %1225 = vmatprep.subr.bf16.mxu0 0
      %1226 = vmatpush1.bf16.xpose.msra.mxu0 0
      %1227 = vmatprep.mubr.bf16.mxu0 0
      %1228 = vmatmul.mubr.bf16.gmra.mrb[0].mxu0 %v1190
      %v1229 = vpop.f32.mrb[0].mxu0
      %v1230 = vadd.f32 0.0, %v1229
      %v1231 = vpop.f32.mrb[0].mxu0
      %v1232 = vpop.f32.mrb[0].mxu0
      %v1233 = vpop.f32.mrb[0].mxu0
      %1234 = vdwg.mxu0
      %1236 = vrot.lane.b32.xlu0 %v986, 96
      %v1237 = vpop.permute.xlu0 %1236
      %v1239 = vsel %vm992, %v986, 0
      %v1242 = vsel %vm992, %v1237, 0
      %1244 = vmatprep.subr.bf16.mxu0 0
      %1245 = vmatpush1.bf16.xpose.msra.mxu0 %v1242
      %1246 = vmatprep.subr.bf16.mxu0 0
      %1247 = vmatpush1.bf16.xpose.msra.mxu0 0
      %1248 = vmatprep.subr.bf16.mxu0 0
      %1249 = vmatpush1.bf16.xpose.msra.mxu0 0
      %1250 = vmatprep.subr.bf16.mxu0 0
      %1251 = vmatpush1.bf16.xpose.msra.mxu0 0
      %1252 = vmatprep.subr.bf16.mxu0 0
      %1253 = vmatpush1.bf16.xpose.msra.mxu0 0
      %1254 = vmatprep.subr.bf16.mxu0 0
      %1255 = vmatpush1.bf16.xpose.msra.mxu0 0
      %1256 = vmatprep.subr.bf16.mxu0 0
      %1257 = vmatpush1.bf16.xpose.msra.mxu0 0
      %1258 = vmatprep.subr.bf16.mxu0 0
      %1259 = vmatpush1.bf16.xpose.msra.mxu0 0
      %1260 = vmatprep.subr.bf16.mxu0 0
      %1261 = vmatpush1.bf16.xpose.msra.mxu0 0
      %1262 = vmatprep.subr.bf16.mxu0 0
      %1263 = vmatpush1.bf16.xpose.msra.mxu0 0
      %1264 = vmatprep.subr.bf16.mxu0 0
      %1265 = vmatpush1.bf16.xpose.msra.mxu0 0
      %1266 = vmatprep.subr.bf16.mxu0 0
      %1267 = vmatpush1.bf16.xpose.msra.mxu0 0
      %1268 = vmatprep.subr.bf16.mxu0 0
      %1269 = vmatpush1.bf16.xpose.msra.mxu0 0
      %1270 = vmatprep.subr.bf16.mxu0 0
      %1271 = vmatpush1.bf16.xpose.msra.mxu0 0
      %1272 = vmatprep.subr.bf16.mxu0 0
      %1273 = vmatpush1.bf16.xpose.msra.mxu0 0
      %1274 = vmatprep.subr.bf16.mxu0 0
      %1275 = vmatpush1.bf16.xpose.msra.mxu0 0
      %1276 = vmatprep.mubr.bf16.mxu0 0
      %1277 = vmatmul.mubr.bf16.gmra.mrb[0].mxu0 %v1239
      %v1278 = vpop.f32.mrb[0].mxu0
      %v1279 = vadd.f32 0.0, %v1278
      %v1280 = vpop.f32.mrb[0].mxu0
      %v1281 = vpop.f32.mrb[0].mxu0
      %v1282 = vpop.f32.mrb[0].mxu0
      %1283 = vdwg.mxu0
      %1285 = vrot.lane.b32.xlu0 %v987, 96
      %v1286 = vpop.permute.xlu0 %1285
      %v1288 = vsel %vm992, %v987, 0
      %v1291 = vsel %vm992, %v1286, 0
      %1293 = vmatprep.subr.bf16.mxu0 0
      %1294 = vmatpush1.bf16.xpose.msra.mxu0 %v1291
      %1295 = vmatprep.subr.bf16.mxu0 0
      %1296 = vmatpush1.bf16.xpose.msra.mxu0 0
      %1297 = vmatprep.subr.bf16.mxu0 0
      %1298 = vmatpush1.bf16.xpose.msra.mxu0 0
      %1299 = vmatprep.subr.bf16.mxu0 0
      %1300 = vmatpush1.bf16.xpose.msra.mxu0 0
      %1301 = vmatprep.subr.bf16.mxu0 0
      %1302 = vmatpush1.bf16.xpose.msra.mxu0 0
      %1303 = vmatprep.subr.bf16.mxu0 0
      %1304 = vmatpush1.bf16.xpose.msra.mxu0 0
      %1305 = vmatprep.subr.bf16.mxu0 0
      %1306 = vmatpush1.bf16.xpose.msra.mxu0 0
      %1307 = vmatprep.subr.bf16.mxu0 0
      %1308 = vmatpush1.bf16.xpose.msra.mxu0 0
      %1309 = vmatprep.subr.bf16.mxu0 0
      %1310 = vmatpush1.bf16.xpose.msra.mxu0 0
      %1311 = vmatprep.subr.bf16.mxu0 0
      %1312 = vmatpush1.bf16.xpose.msra.mxu0 0
      %1313 = vmatprep.subr.bf16.mxu0 0
      %1314 = vmatpush1.bf16.xpose.msra.mxu0 0
      %1315 = vmatprep.subr.bf16.mxu0 0
      %1316 = vmatpush1.bf16.xpose.msra.mxu0 0
      %1317 = vmatprep.subr.bf16.mxu0 0
      %1318 = vmatpush1.bf16.xpose.msra.mxu0 0
      %1319 = vmatprep.subr.bf16.mxu0 0
      %1320 = vmatpush1.bf16.xpose.msra.mxu0 0
      %1321 = vmatprep.subr.bf16.mxu0 0
      %1322 = vmatpush1.bf16.xpose.msra.mxu0 0
      %1323 = vmatprep.subr.bf16.mxu0 0
      %1324 = vmatpush1.bf16.xpose.msra.mxu0 0
      %1325 = vmatprep.mubr.bf16.mxu0 0
      %1326 = vmatmul.mubr.bf16.gmra.mrb[0].mxu0 %v1288
      %v1327 = vpop.f32.mrb[0].mxu0
      %v1328 = vadd.f32 0.0, %v1327
      %v1329 = vpop.f32.mrb[0].mxu0
      %v1330 = vpop.f32.mrb[0].mxu0
      %v1331 = vpop.f32.mrb[0].mxu0
      %1332 = vdwg.mxu0
      %1334 = vrot.lane.b32.xlu0 %v988, 96
      %v1335 = vpop.permute.xlu0 %1334
      %v1337 = vsel %vm992, %v988, 0
      %v1340 = vsel %vm992, %v1335, 0
      %1342 = vmatprep.subr.bf16.mxu0 0
      %1343 = vmatpush1.bf16.xpose.msra.mxu0 %v1340
      %1344 = vmatprep.subr.bf16.mxu0 0
      %1345 = vmatpush1.bf16.xpose.msra.mxu0 0
      %1346 = vmatprep.subr.bf16.mxu0 0
      %1347 = vmatpush1.bf16.xpose.msra.mxu0 0
      %1348 = vmatprep.subr.bf16.mxu0 0
      %1349 = vmatpush1.bf16.xpose.msra.mxu0 0
      %1350 = vmatprep.subr.bf16.mxu0 0
      %1351 = vmatpush1.bf16.xpose.msra.mxu0 0
      %1352 = vmatprep.subr.bf16.mxu0 0
      %1353 = vmatpush1.bf16.xpose.msra.mxu0 0
      %1354 = vmatprep.subr.bf16.mxu0 0
      %1355 = vmatpush1.bf16.xpose.msra.mxu0 0
      %1356 = vmatprep.subr.bf16.mxu0 0
      %1357 = vmatpush1.bf16.xpose.msra.mxu0 0
      %1358 = vmatprep.subr.bf16.mxu0 0
      %1359 = vmatpush1.bf16.xpose.msra.mxu0 0
      %1360 = vmatprep.subr.bf16.mxu0 0
      %1361 = vmatpush1.bf16.xpose.msra.mxu0 0
      %1362 = vmatprep.subr.bf16.mxu0 0
      %1363 = vmatpush1.bf16.xpose.msra.mxu0 0
      %1364 = vmatprep.subr.bf16.mxu0 0
      %1365 = vmatpush1.bf16.xpose.msra.mxu0 0
      %1366 = vmatprep.subr.bf16.mxu0 0
      %1367 = vmatpush1.bf16.xpose.msra.mxu0 0
      %1368 = vmatprep.subr.bf16.mxu0 0
      %1369 = vmatpush1.bf16.xpose.msra.mxu0 0
      %1370 = vmatprep.subr.bf16.mxu0 0
      %1371 = vmatpush1.bf16.xpose.msra.mxu0 0
      %1372 = vmatprep.subr.bf16.mxu0 0
      %1373 = vmatpush1.bf16.xpose.msra.mxu0 0
      %1374 = vmatprep.mubr.bf16.mxu0 0
      %1375 = vmatmul.mubr.bf16.gmra.mrb[0].mxu0 %v1337
      %v1376 = vpop.f32.mrb[0].mxu0
      %v1377 = vadd.f32 0.0, %v1376
      %v1378 = vpop.f32.mrb[0].mxu0
      %v1379 = vpop.f32.mrb[0].mxu0
      %v1380 = vpop.f32.mrb[0].mxu0
      %1381 = vdwg.mxu0
      %v1382 = vmul.f32 %v1034, 0.35355338
      %v1383 = vmul.f32 %v1083, 0.35355338
      %v1384 = vmul.f32 %v1132, 0.35355338
      %v1385 = vmul.f32 %v1181, 0.35355338
      %v1386 = vmul.f32 %v1230, 0.35355338
      %v1387 = vmul.f32 %v1279, 0.35355338
      %v1388 = vmul.f32 %v1328, 0.35355338
      %v1389 = vmul.f32 %v1377, 0.35355338
      %v1390 = vsel %vm992, %v1382, -inf
      %1391 = vmax.xlane.f32.xlu0 %v1390
      %v1392 = vpop.xlane.xlu0 %1391
      %v1393 = vsel %vm992, %v1383, -inf
      %1394 = vmax.xlane.f32.xlu0 %v1393
      %v1395 = vpop.xlane.xlu0 %1394
      %v1396 = vsel %vm992, %v1384, -inf
      %1397 = vmax.xlane.f32.xlu0 %v1396
      %v1398 = vpop.xlane.xlu0 %1397
      %v1399 = vsel %vm992, %v1385, -inf
      %1400 = vmax.xlane.f32.xlu0 %v1399
      %v1401 = vpop.xlane.xlu0 %1400
      %v1402 = vsel %vm992, %v1386, -inf
      %1403 = vmax.xlane.f32.xlu0 %v1402
      %v1404 = vpop.xlane.xlu0 %1403
      %v1405 = vsel %vm992, %v1387, -inf
      %1406 = vmax.xlane.f32.xlu0 %v1405
      %v1407 = vpop.xlane.xlu0 %1406
      %v1408 = vsel %vm992, %v1388, -inf
      %1409 = vmax.xlane.f32.xlu0 %v1408
      %v1410 = vpop.xlane.xlu0 %1409
      %v1411 = vsel %vm992, %v1389, -inf
      %1412 = vmax.xlane.f32.xlu0 %v1411
      %v1413 = vpop.xlane.xlu0 %1412
      %v1414 = vsub.f32 %v1382, %v1392
      %v1415 = vsub.f32 %v1383, %v1395
      %v1416 = vsub.f32 %v1384, %v1398
      %v1417 = vsub.f32 %v1385, %v1401
      %v1418 = vsub.f32 %v1386, %v1404
      %v1419 = vsub.f32 %v1387, %v1407
      %v1420 = vsub.f32 %v1388, %v1410
      %v1421 = vsub.f32 %v1389, %v1413
      %v1422 = vmul.f32 %v1414, 1.442695
      %v1423 = vpow.pop %v1422
      %v1424 = vmul.f32 %v1415, 1.442695
      %v1425 = vpow.pop %v1424
      %v1426 = vmul.f32 %v1416, 1.442695
      %v1427 = vpow.pop %v1426
      %v1428 = vmul.f32 %v1417, 1.442695
      %v1429 = vpow.pop %v1428
      %v1430 = vmul.f32 %v1418, 1.442695
      %v1431 = vpow.pop %v1430
      %v1432 = vmul.f32 %v1419, 1.442695
      %v1433 = vpow.pop %v1432
      %v1434 = vmul.f32 %v1420, 1.442695
      %v1435 = vpow.pop %v1434
      %v1436 = vmul.f32 %v1421, 1.442695
      %v1437 = vpow.pop %v1436
      %v1438 = vsel %vm992, %v1423, 0.0
      %1439 = vadd.xlane.f32.xlu0 %v1438
      %v1440 = vpop.xlane.xlu0 %1439
      %v1441 = vsel %vm992, %v1425, 0.0
      %1442 = vadd.xlane.f32.xlu0 %v1441
      %v1443 = vpop.xlane.xlu0 %1442
      %v1444 = vsel %vm992, %v1427, 0.0
      %1445 = vadd.xlane.f32.xlu0 %v1444
      %v1446 = vpop.xlane.xlu0 %1445
      %v1447 = vsel %vm992, %v1429, 0.0
      %1448 = vadd.xlane.f32.xlu0 %v1447
      %v1449 = vpop.xlane.xlu0 %1448
      %v1450 = vsel %vm992, %v1431, 0.0
      %1451 = vadd.xlane.f32.xlu0 %v1450
      %v1452 = vpop.xlane.xlu0 %1451
      %v1453 = vsel %vm992, %v1433, 0.0
      %1454 = vadd.xlane.f32.xlu0 %v1453
      %v1455 = vpop.xlane.xlu0 %1454
      %v1456 = vsel %vm992, %v1435, 0.0
      %1457 = vadd.xlane.f32.xlu0 %v1456
      %v1458 = vpop.xlane.xlu0 %1457
      %v1459 = vsel %vm992, %v1437, 0.0
      %1460 = vadd.xlane.f32.xlu0 %v1459
      %v1461 = vpop.xlane.xlu0 %1460
      %v1462 = vrcp.pop %v1440
      %v1463 = vmul.f32 %v1423, %v1462
      %v1464 = vrcp.pop %v1443
      %v1465 = vmul.f32 %v1425, %v1464
      %v1466 = vrcp.pop %v1446
      %v1467 = vmul.f32 %v1427, %v1466
      %v1468 = vrcp.pop %v1449
      %v1469 = vmul.f32 %v1429, %v1468
      %v1470 = vrcp.pop %v1452
      %v1471 = vmul.f32 %v1431, %v1470
      %v1472 = vrcp.pop %v1455
      %v1473 = vmul.f32 %v1433, %v1472
      %v1474 = vrcp.pop %v1458
      %v1475 = vmul.f32 %v1435, %v1474
      %v1476 = vrcp.pop %v1461
      %v1477 = vmul.f32 %v1437, %v1476
      %v1478 = vpack.c.bf16 %v1463, %v1463
      %v1479 = vpack.c.bf16 %v1465, %v1465
      %v1480 = vpack.c.bf16 %v1467, %v1467
      %v1481 = vpack.c.bf16 %v1469, %v1469
      %v1482 = vpack.c.bf16 %v1471, %v1471
      %v1483 = vpack.c.bf16 %v1473, %v1473
      %v1484 = vpack.c.bf16 %v1475, %v1475
      %v1485 = vpack.c.bf16 %v1477, %v1477
      %1486 = vrot.lane.b32.xlu0 %v981, 64
      %v1487 = vpop.permute.xlu0 %1486
      %v1489 = vsel %vm992, %v1478, 0
      %vm1491 = vcmask 1043456
      %v1493 = vsel %vm1491, %v1487, 0
      %1495 = vmatprep.subr.bf16.mxu0 0
      %1496 = vmatpush1.bf16.msra.mxu0 %v1493
      %1497 = vmatprep.subr.bf16.mxu0 0
      %1498 = vmatpush1.bf16.msra.mxu0 0
      %1499 = vmatprep.subr.bf16.mxu0 0
      %1500 = vmatpush1.bf16.msra.mxu0 0
      %1501 = vmatprep.subr.bf16.mxu0 0
      %1502 = vmatpush1.bf16.msra.mxu0 0
      %1503 = vmatprep.subr.bf16.mxu0 0
      %1504 = vmatpush1.bf16.msra.mxu0 0
      %1505 = vmatprep.subr.bf16.mxu0 0
      %1506 = vmatpush1.bf16.msra.mxu0 0
      %1507 = vmatprep.subr.bf16.mxu0 0
      %1508 = vmatpush1.bf16.msra.mxu0 0
      %1509 = vmatprep.subr.bf16.mxu0 0
      %1510 = vmatpush1.bf16.msra.mxu0 0
      %1511 = vmatprep.subr.bf16.mxu0 0
      %1512 = vmatpush1.bf16.msra.mxu0 0
      %1513 = vmatprep.subr.bf16.mxu0 0
      %1514 = vmatpush1.bf16.msra.mxu0 0
      %1515 = vmatprep.subr.bf16.mxu0 0
      %1516 = vmatpush1.bf16.msra.mxu0 0
      %1517 = vmatprep.subr.bf16.mxu0 0
      %1518 = vmatpush1.bf16.msra.mxu0 0
      %1519 = vmatprep.subr.bf16.mxu0 0
      %1520 = vmatpush1.bf16.msra.mxu0 0
      %1521 = vmatprep.subr.bf16.mxu0 0
      %1522 = vmatpush1.bf16.msra.mxu0 0
      %1523 = vmatprep.subr.bf16.mxu0 0
      %1524 = vmatpush1.bf16.msra.mxu0 0
      %1525 = vmatprep.subr.bf16.mxu0 0
      %1526 = vmatpush1.bf16.msra.mxu0 0
      %1527 = vmatprep.mubr.bf16.mxu0 0
      %1528 = vmatmul.mubr.bf16.gmra.mrb[0].mxu0 %v1489
      %v1529 = vpop.f32.mrb[0].mxu0
      %v1530 = vadd.f32 0.0, %v1529
      %v1531 = vpop.f32.mrb[0].mxu0
      %v1532 = vpop.f32.mrb[0].mxu0
      %v1533 = vpop.f32.mrb[0].mxu0
      %1534 = vdwg.mxu0
      %1535 = vrot.lane.b32.xlu0 %v982, 64
      %v1536 = vpop.permute.xlu0 %1535
      %v1538 = vsel %vm992, %v1479, 0
      %v1541 = vsel %vm1491, %v1536, 0
      %1543 = vmatprep.subr.bf16.mxu0 0
      %1544 = vmatpush1.bf16.msra.mxu0 %v1541
      %1545 = vmatprep.subr.bf16.mxu0 0
      %1546 = vmatpush1.bf16.msra.mxu0 0
      %1547 = vmatprep.subr.bf16.mxu0 0
      %1548 = vmatpush1.bf16.msra.mxu0 0
      %1549 = vmatprep.subr.bf16.mxu0 0
      %1550 = vmatpush1.bf16.msra.mxu0 0
      %1551 = vmatprep.subr.bf16.mxu0 0
      %1552 = vmatpush1.bf16.msra.mxu0 0
      %1553 = vmatprep.subr.bf16.mxu0 0
      %1554 = vmatpush1.bf16.msra.mxu0 0
      %1555 = vmatprep.subr.bf16.mxu0 0
      %1556 = vmatpush1.bf16.msra.mxu0 0
      %1557 = vmatprep.subr.bf16.mxu0 0
      %1558 = vmatpush1.bf16.msra.mxu0 0
      %1559 = vmatprep.subr.bf16.mxu0 0
      %1560 = vmatpush1.bf16.msra.mxu0 0
      %1561 = vmatprep.subr.bf16.mxu0 0
      %1562 = vmatpush1.bf16.msra.mxu0 0
      %1563 = vmatprep.subr.bf16.mxu0 0
      %1564 = vmatpush1.bf16.msra.mxu0 0
      %1565 = vmatprep.subr.bf16.mxu0 0
      %1566 = vmatpush1.bf16.msra.mxu0 0
      %1567 = vmatprep.subr.bf16.mxu0 0
      %1568 = vmatpush1.bf16.msra.mxu0 0
      %1569 = vmatprep.subr.bf16.mxu0 0
      %1570 = vmatpush1.bf16.msra.mxu0 0
      %1571 = vmatprep.subr.bf16.mxu0 0
      %1572 = vmatpush1.bf16.msra.mxu0 0
      %1573 = vmatprep.subr.bf16.mxu0 0
      %1574 = vmatpush1.bf16.msra.mxu0 0
      %1575 = vmatprep.mubr.bf16.mxu0 0
      %1576 = vmatmul.mubr.bf16.gmra.mrb[0].mxu0 %v1538
      %v1577 = vpop.f32.mrb[0].mxu0
      %v1578 = vadd.f32 0.0, %v1577
      %v1579 = vpop.f32.mrb[0].mxu0
      %v1580 = vpop.f32.mrb[0].mxu0
      %v1581 = vpop.f32.mrb[0].mxu0
      %1582 = vdwg.mxu0
      %1583 = vrot.lane.b32.xlu0 %v983, 64
      %v1584 = vpop.permute.xlu0 %1583
      %v1586 = vsel %vm992, %v1480, 0
      %v1589 = vsel %vm1491, %v1584, 0
      %1591 = vmatprep.subr.bf16.mxu0 0
      %1592 = vmatpush1.bf16.msra.mxu0 %v1589
      %1593 = vmatprep.subr.bf16.mxu0 0
      %1594 = vmatpush1.bf16.msra.mxu0 0
      %1595 = vmatprep.subr.bf16.mxu0 0
      %1596 = vmatpush1.bf16.msra.mxu0 0
      %1597 = vmatprep.subr.bf16.mxu0 0
      %1598 = vmatpush1.bf16.msra.mxu0 0
      %1599 = vmatprep.subr.bf16.mxu0 0
      %1600 = vmatpush1.bf16.msra.mxu0 0
      %1601 = vmatprep.subr.bf16.mxu0 0
      %1602 = vmatpush1.bf16.msra.mxu0 0
      %1603 = vmatprep.subr.bf16.mxu0 0
      %1604 = vmatpush1.bf16.msra.mxu0 0
      %1605 = vmatprep.subr.bf16.mxu0 0
      %1606 = vmatpush1.bf16.msra.mxu0 0
      %1607 = vmatprep.subr.bf16.mxu0 0
      %1608 = vmatpush1.bf16.msra.mxu0 0
      %1609 = vmatprep.subr.bf16.mxu0 0
      %1610 = vmatpush1.bf16.msra.mxu0 0
      %1611 = vmatprep.subr.bf16.mxu0 0
      %1612 = vmatpush1.bf16.msra.mxu0 0
      %1613 = vmatprep.subr.bf16.mxu0 0
      %1614 = vmatpush1.bf16.msra.mxu0 0
      %1615 = vmatprep.subr.bf16.mxu0 0
      %1616 = vmatpush1.bf16.msra.mxu0 0
      %1617 = vmatprep.subr.bf16.mxu0 0
      %1618 = vmatpush1.bf16.msra.mxu0 0
      %1619 = vmatprep.subr.bf16.mxu0 0
      %1620 = vmatpush1.bf16.msra.mxu0 0
      %1621 = vmatprep.subr.bf16.mxu0 0
      %1622 = vmatpush1.bf16.msra.mxu0 0
      %1623 = vmatprep.mubr.bf16.mxu0 0
      %1624 = vmatmul.mubr.bf16.gmra.mrb[0].mxu0 %v1586
      %v1625 = vpop.f32.mrb[0].mxu0
      %v1626 = vadd.f32 0.0, %v1625
      %v1627 = vpop.f32.mrb[0].mxu0
      %v1628 = vpop.f32.mrb[0].mxu0
      %v1629 = vpop.f32.mrb[0].mxu0
      %1630 = vdwg.mxu0
      %1631 = vrot.lane.b32.xlu0 %v984, 64
      %v1632 = vpop.permute.xlu0 %1631
      %v1634 = vsel %vm992, %v1481, 0
      %v1637 = vsel %vm1491, %v1632, 0
      %1639 = vmatprep.subr.bf16.mxu0 0
      %1640 = vmatpush1.bf16.msra.mxu0 %v1637
      %1641 = vmatprep.subr.bf16.mxu0 0
      %1642 = vmatpush1.bf16.msra.mxu0 0
      %1643 = vmatprep.subr.bf16.mxu0 0
      %1644 = vmatpush1.bf16.msra.mxu0 0
      %1645 = vmatprep.subr.bf16.mxu0 0
      %1646 = vmatpush1.bf16.msra.mxu0 0
      %1647 = vmatprep.subr.bf16.mxu0 0
      %1648 = vmatpush1.bf16.msra.mxu0 0
      %1649 = vmatprep.subr.bf16.mxu0 0
      %1650 = vmatpush1.bf16.msra.mxu0 0
      %1651 = vmatprep.subr.bf16.mxu0 0
      %1652 = vmatpush1.bf16.msra.mxu0 0
      %1653 = vmatprep.subr.bf16.mxu0 0
      %1654 = vmatpush1.bf16.msra.mxu0 0
      %1655 = vmatprep.subr.bf16.mxu0 0
      %1656 = vmatpush1.bf16.msra.mxu0 0
      %1657 = vmatprep.subr.bf16.mxu0 0
      %1658 = vmatpush1.bf16.msra.mxu0 0
      %1659 = vmatprep.subr.bf16.mxu0 0
      %1660 = vmatpush1.bf16.msra.mxu0 0
      %1661 = vmatprep.subr.bf16.mxu0 0
      %1662 = vmatpush1.bf16.msra.mxu0 0
      %1663 = vmatprep.subr.bf16.mxu0 0
      %1664 = vmatpush1.bf16.msra.mxu0 0
      %1665 = vmatprep.subr.bf16.mxu0 0
      %1666 = vmatpush1.bf16.msra.mxu0 0
      %1667 = vmatprep.subr.bf16.mxu0 0
      %1668 = vmatpush1.bf16.msra.mxu0 0
      %1669 = vmatprep.subr.bf16.mxu0 0
      %1670 = vmatpush1.bf16.msra.mxu0 0
      %1671 = vmatprep.mubr.bf16.mxu0 0
      %1672 = vmatmul.mubr.bf16.gmra.mrb[0].mxu0 %v1634
      %v1673 = vpop.f32.mrb[0].mxu0
      %v1674 = vadd.f32 0.0, %v1673
      %v1675 = vpop.f32.mrb[0].mxu0
      %v1676 = vpop.f32.mrb[0].mxu0
      %v1677 = vpop.f32.mrb[0].mxu0
      %1678 = vdwg.mxu0
      %1679 = vrot.lane.b32.xlu0 %v985, 64
      %v1680 = vpop.permute.xlu0 %1679
      %v1682 = vsel %vm992, %v1482, 0
      %v1685 = vsel %vm1491, %v1680, 0
      %1687 = vmatprep.subr.bf16.mxu0 0
      %1688 = vmatpush1.bf16.msra.mxu0 %v1685
      %1689 = vmatprep.subr.bf16.mxu0 0
      %1690 = vmatpush1.bf16.msra.mxu0 0
      %1691 = vmatprep.subr.bf16.mxu0 0
      %1692 = vmatpush1.bf16.msra.mxu0 0
      %1693 = vmatprep.subr.bf16.mxu0 0
      %1694 = vmatpush1.bf16.msra.mxu0 0
      %1695 = vmatprep.subr.bf16.mxu0 0
      %1696 = vmatpush1.bf16.msra.mxu0 0
      %1697 = vmatprep.subr.bf16.mxu0 0
      %1698 = vmatpush1.bf16.msra.mxu0 0
      %1699 = vmatprep.subr.bf16.mxu0 0
      %1700 = vmatpush1.bf16.msra.mxu0 0
      %1701 = vmatprep.subr.bf16.mxu0 0
      %1702 = vmatpush1.bf16.msra.mxu0 0
      %1703 = vmatprep.subr.bf16.mxu0 0
      %1704 = vmatpush1.bf16.msra.mxu0 0
      %1705 = vmatprep.subr.bf16.mxu0 0
      %1706 = vmatpush1.bf16.msra.mxu0 0
      %1707 = vmatprep.subr.bf16.mxu0 0
      %1708 = vmatpush1.bf16.msra.mxu0 0
      %1709 = vmatprep.subr.bf16.mxu0 0
      %1710 = vmatpush1.bf16.msra.mxu0 0
      %1711 = vmatprep.subr.bf16.mxu0 0
      %1712 = vmatpush1.bf16.msra.mxu0 0
      %1713 = vmatprep.subr.bf16.mxu0 0
      %1714 = vmatpush1.bf16.msra.mxu0 0
      %1715 = vmatprep.subr.bf16.mxu0 0
      %1716 = vmatpush1.bf16.msra.mxu0 0
      %1717 = vmatprep.subr.bf16.mxu0 0
      %1718 = vmatpush1.bf16.msra.mxu0 0
      %1719 = vmatprep.mubr.bf16.mxu0 0
      %1720 = vmatmul.mubr.bf16.gmra.mrb[0].mxu0 %v1682
      %v1721 = vpop.f32.mrb[0].mxu0
      %v1722 = vadd.f32 0.0, %v1721
      %v1723 = vpop.f32.mrb[0].mxu0
      %v1724 = vpop.f32.mrb[0].mxu0
      %v1725 = vpop.f32.mrb[0].mxu0
      %1726 = vdwg.mxu0
      %1727 = vrot.lane.b32.xlu0 %v986, 64
      %v1728 = vpop.permute.xlu0 %1727
      %v1730 = vsel %vm992, %v1483, 0
      %v1733 = vsel %vm1491, %v1728, 0
      %1735 = vmatprep.subr.bf16.mxu0 0
      %1736 = vmatpush1.bf16.msra.mxu0 %v1733
      %1737 = vmatprep.subr.bf16.mxu0 0
      %1738 = vmatpush1.bf16.msra.mxu0 0
      %1739 = vmatprep.subr.bf16.mxu0 0
      %1740 = vmatpush1.bf16.msra.mxu0 0
      %1741 = vmatprep.subr.bf16.mxu0 0
      %1742 = vmatpush1.bf16.msra.mxu0 0
      %1743 = vmatprep.subr.bf16.mxu0 0
      %1744 = vmatpush1.bf16.msra.mxu0 0
      %1745 = vmatprep.subr.bf16.mxu0 0
      %1746 = vmatpush1.bf16.msra.mxu0 0
      %1747 = vmatprep.subr.bf16.mxu0 0
      %1748 = vmatpush1.bf16.msra.mxu0 0
      %1749 = vmatprep.subr.bf16.mxu0 0
      %1750 = vmatpush1.bf16.msra.mxu0 0
      %1751 = vmatprep.subr.bf16.mxu0 0
      %1752 = vmatpush1.bf16.msra.mxu0 0
      %1753 = vmatprep.subr.bf16.mxu0 0
      %1754 = vmatpush1.bf16.msra.mxu0 0
      %1755 = vmatprep.subr.bf16.mxu0 0
      %1756 = vmatpush1.bf16.msra.mxu0 0
      %1757 = vmatprep.subr.bf16.mxu0 0
      %1758 = vmatpush1.bf16.msra.mxu0 0
      %1759 = vmatprep.subr.bf16.mxu0 0
      %1760 = vmatpush1.bf16.msra.mxu0 0
      %1761 = vmatprep.subr.bf16.mxu0 0
      %1762 = vmatpush1.bf16.msra.mxu0 0
      %1763 = vmatprep.subr.bf16.mxu0 0
      %1764 = vmatpush1.bf16.msra.mxu0 0
      %1765 = vmatprep.subr.bf16.mxu0 0
      %1766 = vmatpush1.bf16.msra.mxu0 0
      %1767 = vmatprep.mubr.bf16.mxu0 0
      %1768 = vmatmul.mubr.bf16.gmra.mrb[0].mxu0 %v1730
      %v1769 = vpop.f32.mrb[0].mxu0
      %v1770 = vadd.f32 0.0, %v1769
      %v1771 = vpop.f32.mrb[0].mxu0
      %v1772 = vpop.f32.mrb[0].mxu0
      %v1773 = vpop.f32.mrb[0].mxu0
      %1774 = vdwg.mxu0
      %1775 = vrot.lane.b32.xlu0 %v987, 64
      %v1776 = vpop.permute.xlu0 %1775
      %v1778 = vsel %vm992, %v1484, 0
      %v1781 = vsel %vm1491, %v1776, 0
      %1783 = vmatprep.subr.bf16.mxu0 0
      %1784 = vmatpush1.bf16.msra.mxu0 %v1781
      %1785 = vmatprep.subr.bf16.mxu0 0
      %1786 = vmatpush1.bf16.msra.mxu0 0
      %1787 = vmatprep.subr.bf16.mxu0 0
      %1788 = vmatpush1.bf16.msra.mxu0 0
      %1789 = vmatprep.subr.bf16.mxu0 0
      %1790 = vmatpush1.bf16.msra.mxu0 0
      %1791 = vmatprep.subr.bf16.mxu0 0
      %1792 = vmatpush1.bf16.msra.mxu0 0
      %1793 = vmatprep.subr.bf16.mxu0 0
      %1794 = vmatpush1.bf16.msra.mxu0 0
      %1795 = vmatprep.subr.bf16.mxu0 0
      %1796 = vmatpush1.bf16.msra.mxu0 0
      %1797 = vmatprep.subr.bf16.mxu0 0
      %1798 = vmatpush1.bf16.msra.mxu0 0
      %1799 = vmatprep.subr.bf16.mxu0 0
      %1800 = vmatpush1.bf16.msra.mxu0 0
      %1801 = vmatprep.subr.bf16.mxu0 0
      %1802 = vmatpush1.bf16.msra.mxu0 0
      %1803 = vmatprep.subr.bf16.mxu0 0
      %1804 = vmatpush1.bf16.msra.mxu0 0
      %1805 = vmatprep.subr.bf16.mxu0 0
      %1806 = vmatpush1.bf16.msra.mxu0 0
      %1807 = vmatprep.subr.bf16.mxu0 0
      %1808 = vmatpush1.bf16.msra.mxu0 0
      %1809 = vmatprep.subr.bf16.mxu0 0
      %1810 = vmatpush1.bf16.msra.mxu0 0
      %1811 = vmatprep.subr.bf16.mxu0 0
      %1812 = vmatpush1.bf16.msra.mxu0 0
      %1813 = vmatprep.subr.bf16.mxu0 0
      %1814 = vmatpush1.bf16.msra.mxu0 0
      %1815 = vmatprep.mubr.bf16.mxu0 0
      %1816 = vmatmul.mubr.bf16.gmra.mrb[0].mxu0 %v1778
      %v1817 = vpop.f32.mrb[0].mxu0
      %v1818 = vadd.f32 0.0, %v1817
      %v1819 = vpop.f32.mrb[0].mxu0
      %v1820 = vpop.f32.mrb[0].mxu0
      %v1821 = vpop.f32.mrb[0].mxu0
      %1822 = vdwg.mxu0
      %1823 = vrot.lane.b32.xlu0 %v988, 64
      %v1824 = vpop.permute.xlu0 %1823
      %v1826 = vsel %vm992, %v1485, 0
      %v1829 = vsel %vm1491, %v1824, 0
      %1831 = vmatprep.subr.bf16.mxu0 0
      %1832 = vmatpush1.bf16.msra.mxu0 %v1829
      %1833 = vmatprep.subr.bf16.mxu0 0
      %1834 = vmatpush1.bf16.msra.mxu0 0
      %1835 = vmatprep.subr.bf16.mxu0 0
      %1836 = vmatpush1.bf16.msra.mxu0 0
      %1837 = vmatprep.subr.bf16.mxu0 0
      %1838 = vmatpush1.bf16.msra.mxu0 0
      %1839 = vmatprep.subr.bf16.mxu0 0
      %1840 = vmatpush1.bf16.msra.mxu0 0
      %1841 = vmatprep.subr.bf16.mxu0 0
      %1842 = vmatpush1.bf16.msra.mxu0 0
      %1843 = vmatprep.subr.bf16.mxu0 0
      %1844 = vmatpush1.bf16.msra.mxu0 0
      %1845 = vmatprep.subr.bf16.mxu0 0
      %1846 = vmatpush1.bf16.msra.mxu0 0
      %1847 = vmatprep.subr.bf16.mxu0 0
      %1848 = vmatpush1.bf16.msra.mxu0 0
      %1849 = vmatprep.subr.bf16.mxu0 0
      %1850 = vmatpush1.bf16.msra.mxu0 0
      %1851 = vmatprep.subr.bf16.mxu0 0
      %1852 = vmatpush1.bf16.msra.mxu0 0
      %1853 = vmatprep.subr.bf16.mxu0 0
      %1854 = vmatpush1.bf16.msra.mxu0 0
      %1855 = vmatprep.subr.bf16.mxu0 0
      %1856 = vmatpush1.bf16.msra.mxu0 0
      %1857 = vmatprep.subr.bf16.mxu0 0
      %1858 = vmatpush1.bf16.msra.mxu0 0
      %1859 = vmatprep.subr.bf16.mxu0 0
      %1860 = vmatpush1.bf16.msra.mxu0 0
      %1861 = vmatprep.subr.bf16.mxu0 0
      %1862 = vmatpush1.bf16.msra.mxu0 0
      %1863 = vmatprep.mubr.bf16.mxu0 0
      %1864 = vmatmul.mubr.bf16.gmra.mrb[0].mxu0 %v1826
      %v1865 = vpop.f32.mrb[0].mxu0
      %v1866 = vadd.f32 0.0, %v1865
      %v1867 = vpop.f32.mrb[0].mxu0
      %v1868 = vpop.f32.mrb[0].mxu0
      %v1869 = vpop.f32.mrb[0].mxu0
      %1870 = vdwg.mxu0
      %1873 = vrot.lane.b32.xlu0 %v1626, 8
      %v1874 = vpop.permute.xlu0 %1873
      %1875 = vrot.lane.b32.xlu0 %v1674, 8
      %v1876 = vpop.permute.xlu0 %1875
      %1881 = vrot.lane.b32.xlu0 %v1722, 16
      %v1882 = vpop.permute.xlu0 %1881
      %1883 = vrot.lane.b32.xlu0 %v1770, 16
      %v1884 = vpop.permute.xlu0 %1883
      %1889 = vrot.lane.b32.xlu0 %v1818, 24
      %v1890 = vpop.permute.xlu0 %1889
      %1891 = vrot.lane.b32.xlu0 %v1866, 24
      %v1892 = vpop.permute.xlu0 %1891
      %v1895 = vsel %vm992, %v1530, %v1874
      %v1896 = vsel %vm992, %v1578, %v1876
      %vm1897 = vcmask 130048
      %v1898 = vsel %vm1897, %v1895, %v1882
      %v1899 = vsel %vm1897, %v1896, %v1884
      %vm1900 = vcmask 195584
      %v1901 = vsel %vm1900, %v1898, %v1890
      %v1902 = vsel %vm1900, %v1899, %v1892
      %v1903 = vpack.c.bf16 %v1902, %v1901
      %v1904 = vld [vmem:[%s786] sm:$0xf]
      %v1905 = vld [vmem:[%s786 + $0x4] sm:$0xf]
      %v1906 = vld [vmem:[%s786 + $0x8] sm:$0xf]
      %v1907 = vld [vmem:[%s786 + $0xc] sm:$0xf]
      %v1908 = vld [vmem:[%s793] sm:$0x1]
      %v1910 = vlaneseq
      %v1911 = vshrl.u32 %v1910, 7
      %v1912 = vsub.s32 0, %v1911
      %v1913 = vrot.slane %v1908, %v1912
      %v1919 = vunpack.c.l.b16 %v1904
      %v1920 = vunpack.c.l.b16 %v1905
      %v1921 = vunpack.c.l.b16 %v1906
      %v1922 = vunpack.c.l.b16 %v1907
      %v1923 = vpack.c.b16 %v1920, %v1919
      %v1924 = vpack.c.b16 %v1922, %v1921
      %v1928 = vsel %vm916, %v1903, 0
      %1930 = vmatprep.subr.bf16.mxu0 0
      %1931 = vmatpush1.bf16.msra.mxu0 %v1923
      %1932 = vmatprep.subr.bf16.mxu0 0
      %1933 = vmatpush1.bf16.msra.mxu0 %v1924
      %1934 = vmatprep.subr.bf16.mxu0 0
      %1935 = vmatpush1.bf16.msra.mxu0 0
      %1936 = vmatprep.subr.bf16.mxu0 0
      %1937 = vmatpush1.bf16.msra.mxu0 0
      %1938 = vmatprep.subr.bf16.mxu0 0
      %1939 = vmatpush1.bf16.msra.mxu0 0
      %1940 = vmatprep.subr.bf16.mxu0 0
      %1941 = vmatpush1.bf16.msra.mxu0 0
      %1942 = vmatprep.subr.bf16.mxu0 0
      %1943 = vmatpush1.bf16.msra.mxu0 0
      %1944 = vmatprep.subr.bf16.mxu0 0
      %1945 = vmatpush1.bf16.msra.mxu0 0
      %1946 = vmatprep.subr.bf16.mxu0 0
      %1947 = vmatpush1.bf16.msra.mxu0 0
      %1948 = vmatprep.subr.bf16.mxu0 0
      %1949 = vmatpush1.bf16.msra.mxu0 0
      %1950 = vmatprep.subr.bf16.mxu0 0
      %1951 = vmatpush1.bf16.msra.mxu0 0
      %1952 = vmatprep.subr.bf16.mxu0 0
      %1953 = vmatpush1.bf16.msra.mxu0 0
      %1954 = vmatprep.subr.bf16.mxu0 0
      %1955 = vmatpush1.bf16.msra.mxu0 0
      %1956 = vmatprep.subr.bf16.mxu0 0
      %1957 = vmatpush1.bf16.msra.mxu0 0
      %1958 = vmatprep.subr.bf16.mxu0 0
      %1959 = vmatpush1.bf16.msra.mxu0 0
      %1960 = vmatprep.subr.bf16.mxu0 0
      %1961 = vmatpush1.bf16.msra.mxu0 0
      %1962 = vmatprep.mubr.bf16.mxu0 0
      %1963 = vmatmul.mubr.bf16.gmra.mrb[0].mxu0 %v1928
      %v1964 = vpop.f32.mrb[0].mxu0
      %v1965 = vadd.f32 %v1913, %v1964
      %v1966 = vpop.f32.mrb[0].mxu0
      %v1967 = vpop.f32.mrb[0].mxu0
      %v1968 = vadd.f32 %v1913, %v1967
      %v1969 = vpop.f32.mrb[0].mxu0
      %1970 = vdwg.mxu0
      %v1971 = vadd.f32 %v890, %v1965
      %v1972 = vadd.f32 %v891, %v1968
      %v1973 = vld [vmem:[%s833] sm:$0x1]
      %v1974 = vld [vmem:[%s840] sm:$0x1]
      %v1975 = vsel %vm916, %v1971, 0.0
      %1976 = vadd.xlane.f32.xlu0 %v1975
      %v1977 = vpop.xlane.xlu0 %1976
      %v1978 = vsel %vm916, %v1972, 0.0
      %1979 = vadd.xlane.f32.xlu0 %v1978
      %v1980 = vpop.xlane.xlu0 %1979
      %v1981 = vrcp.pop 32.0
      %v1982 = vmul.f32 %v1977, %v1981
      %v1983 = vmul.f32 %v1980, %v1981
      %v1984 = vsub.f32 %v1971, %v1982
      %v1985 = vsub.f32 %v1972, %v1983
      %v1986 = vmul.f32 %v1984, %v1984
      %v1987 = vmul.f32 %v1985, %v1985
      %v1988 = vsel %vm916, %v1986, 0.0
      %1989 = vadd.xlane.f32.xlu0 %v1988
      %v1990 = vpop.xlane.xlu0 %1989
      %v1991 = vsel %vm916, %v1987, 0.0
      %1992 = vadd.xlane.f32.xlu0 %v1991
      %v1993 = vpop.xlane.xlu0 %1992
      %v1994 = vmul.f32 %v1990, %v1981
      %v1995 = vmul.f32 %v1993, %v1981
      %v1996 = vadd.f32 %v1994, 1e-05
      %v1997 = vadd.f32 %v1995, 1e-05
      %v1998 = vrsqrt.pop %v1996
      %v1999 = vrsqrt.pop %v1997
      %v2000 = vmul.f32 %v1984, %v1998
      %v2001 = vmul.f32 %v1985, %v1999
      %v2003 = vlaneseq
      %v2004 = vshrl.u32 %v2003, 7
      %v2005 = vsub.s32 0, %v2004
      %v2006 = vrot.slane %v1973, %v2005
      %v2008 = vmul.f32 %v2000, %v2006
      %v2009 = vmul.f32 %v2001, %v2006
      %v2011 = vlaneseq
      %v2012 = vshrl.u32 %v2011, 7
      %v2013 = vsub.s32 0, %v2012
      %v2014 = vrot.slane %v1974, %v2013
      %v2016 = vadd.f32 %v2008, %v2014
      %v2017 = vadd.f32 %v2009, %v2014
      %v2018 = vpack.c.bf16 %v2017, %v2016
      %v2019 = vld [vmem:[%s802] sm:$0xff]
      %v2020 = vld [vmem:[%s802 + $0x8] sm:$0xff]
      %v2021 = vld [vmem:[%s802 + $0x10] sm:$0xff]
      %v2022 = vld [vmem:[%s802 + $0x18] sm:$0xff]
      %v2023 = vld [vmem:[%s802 + $0x20] sm:$0xff]
      %v2024 = vld [vmem:[%s802 + $0x28] sm:$0xff]
      %v2025 = vld [vmem:[%s802 + $0x30] sm:$0xff]
      %v2026 = vld [vmem:[%s802 + $0x38] sm:$0xff]
      %v2027 = vld [vmem:[%s802 + $0x40] sm:$0xff]
      %v2028 = vld [vmem:[%s802 + $0x48] sm:$0xff]
      %v2029 = vld [vmem:[%s802 + $0x50] sm:$0xff]
      %v2030 = vld [vmem:[%s802 + $0x58] sm:$0xff]
      %v2031 = vld [vmem:[%s802 + $0x60] sm:$0xff]
      %v2032 = vld [vmem:[%s802 + $0x68] sm:$0xff]
      %v2033 = vld [vmem:[%s802 + $0x70] sm:$0xff]
      %v2034 = vld [vmem:[%s802 + $0x78] sm:$0xff]
      %v2035 = vld [vmem:[%s802 + $0x80] sm:$0xff]
      %v2036 = vld [vmem:[%s802 + $0x88] sm:$0xff]
      %v2037 = vld [vmem:[%s802 + $0x90] sm:$0xff]
      %v2038 = vld [vmem:[%s802 + $0x98] sm:$0xff]
      %v2039 = vld [vmem:[%s802 + $0xa0] sm:$0xff]
      %v2040 = vld [vmem:[%s802 + $0xa8] sm:$0xff]
      %v2041 = vld [vmem:[%s802 + $0xb0] sm:$0xff]
      %v2042 = vld [vmem:[%s802 + $0xb8] sm:$0xff]
      %v2043 = vld [vmem:[%s802 + $0xc0] sm:$0xff]
      %v2044 = vld [vmem:[%s802 + $0xc8] sm:$0xff]
      %v2045 = vld [vmem:[%s802 + $0xd0] sm:$0xff]
      %v2046 = vld [vmem:[%s802 + $0xd8] sm:$0xff]
      %v2047 = vld [vmem:[%s802 + $0xe0] sm:$0xff]
      %v2048 = vld [vmem:[%s802 + $0xe8] sm:$0xff]
      %v2049 = vld [vmem:[%s802 + $0xf0] sm:$0xff]
      %v2050 = vld [vmem:[%s802 + $0xf8] sm:$0xff]
      %v2051 = vld [vmem:[%s810] sm:$0xff]
      %v2052 = vld [vmem:[%s810 + $0x8] sm:$0xff]
      %v2055 = vlaneseq
      %v2056 = vshrl.u32 %v2055, 7
      %v2057 = vsub.s32 0, %v2056
      %v2058 = vrot.slane %v2051, %v2057
      %v2059 = vlaneseq
      %v2060 = vshrl.u32 %v2059, 7
      %v2061 = vsub.s32 1, %v2060
      %v2062 = vrot.slane %v2051, %v2061
      %v2063 = vlaneseq
      %v2064 = vshrl.u32 %v2063, 7
      %v2065 = vsub.s32 2, %v2064
      %v2066 = vrot.slane %v2051, %v2065
      %v2067 = vlaneseq
      %v2068 = vshrl.u32 %v2067, 7
      %v2069 = vsub.s32 3, %v2068
      %v2070 = vrot.slane %v2051, %v2069
      %v2071 = vlaneseq
      %v2072 = vshrl.u32 %v2071, 7
      %v2073 = vsub.s32 4, %v2072
      %v2074 = vrot.slane %v2051, %v2073
      %v2075 = vlaneseq
      %v2076 = vshrl.u32 %v2075, 7
      %v2077 = vsub.s32 5, %v2076
      %v2078 = vrot.slane %v2051, %v2077
      %v2079 = vlaneseq
      %v2080 = vshrl.u32 %v2079, 7
      %v2081 = vsub.s32 6, %v2080
      %v2082 = vrot.slane %v2051, %v2081
      %v2083 = vlaneseq
      %v2084 = vshrl.u32 %v2083, 7
      %v2085 = vsub.s32 7, %v2084
      %v2086 = vrot.slane %v2051, %v2085
      %v2087 = vlaneseq
      %v2088 = vshrl.u32 %v2087, 7
      %v2089 = vsub.s32 0, %v2088
      %v2090 = vrot.slane %v2052, %v2089
      %v2091 = vlaneseq
      %v2092 = vshrl.u32 %v2091, 7
      %v2093 = vsub.s32 1, %v2092
      %v2094 = vrot.slane %v2052, %v2093
      %v2095 = vlaneseq
      %v2096 = vshrl.u32 %v2095, 7
      %v2097 = vsub.s32 2, %v2096
      %v2098 = vrot.slane %v2052, %v2097
      %v2099 = vlaneseq
      %v2100 = vshrl.u32 %v2099, 7
      %v2101 = vsub.s32 3, %v2100
      %v2102 = vrot.slane %v2052, %v2101
      %v2103 = vlaneseq
      %v2104 = vshrl.u32 %v2103, 7
      %v2105 = vsub.s32 4, %v2104
      %v2106 = vrot.slane %v2052, %v2105
      %v2107 = vlaneseq
      %v2108 = vshrl.u32 %v2107, 7
      %v2109 = vsub.s32 5, %v2108
      %v2110 = vrot.slane %v2052, %v2109
      %v2111 = vlaneseq
      %v2112 = vshrl.u32 %v2111, 7
      %v2113 = vsub.s32 6, %v2112
      %v2114 = vrot.slane %v2052, %v2113
      %v2115 = vlaneseq
      %v2116 = vshrl.u32 %v2115, 7
      %v2117 = vsub.s32 7, %v2116
      %v2118 = vrot.slane %v2052, %v2117
      %v2167 = vunpack.c.l.b16 %v2019
      %v2168 = vunpack.c.h.b16 %v2019
      %v2169 = vunpack.c.l.b16 %v2020
      %v2170 = vunpack.c.h.b16 %v2020
      %v2171 = vunpack.c.l.b16 %v2021
      %v2172 = vunpack.c.h.b16 %v2021
      %v2173 = vunpack.c.l.b16 %v2022
      %v2174 = vunpack.c.h.b16 %v2022
      %v2175 = vunpack.c.l.b16 %v2023
      %v2176 = vunpack.c.h.b16 %v2023
      %v2177 = vunpack.c.l.b16 %v2024
      %v2178 = vunpack.c.h.b16 %v2024
      %v2179 = vunpack.c.l.b16 %v2025
      %v2180 = vunpack.c.h.b16 %v2025
      %v2181 = vunpack.c.l.b16 %v2026
      %v2182 = vunpack.c.h.b16 %v2026
      %v2183 = vunpack.c.l.b16 %v2027
      %v2184 = vunpack.c.h.b16 %v2027
      %v2185 = vunpack.c.l.b16 %v2028
      %v2186 = vunpack.c.h.b16 %v2028
      %v2187 = vunpack.c.l.b16 %v2029
      %v2188 = vunpack.c.h.b16 %v2029
      %v2189 = vunpack.c.l.b16 %v2030
      %v2190 = vunpack.c.h.b16 %v2030
      %v2191 = vunpack.c.l.b16 %v2031
      %v2192 = vunpack.c.h.b16 %v2031
      %v2193 = vunpack.c.l.b16 %v2032
      %v2194 = vunpack.c.h.b16 %v2032
      %v2195 = vunpack.c.l.b16 %v2033
      %v2196 = vunpack.c.h.b16 %v2033
      %v2197 = vunpack.c.l.b16 %v2034
      %v2198 = vunpack.c.h.b16 %v2034
      %v2199 = vunpack.c.l.b16 %v2035
      %v2200 = vunpack.c.h.b16 %v2035
      %v2201 = vunpack.c.l.b16 %v2036
      %v2202 = vunpack.c.h.b16 %v2036
      %v2203 = vunpack.c.l.b16 %v2037
      %v2204 = vunpack.c.h.b16 %v2037
      %v2205 = vunpack.c.l.b16 %v2038
      %v2206 = vunpack.c.h.b16 %v2038
      %v2207 = vunpack.c.l.b16 %v2039
      %v2208 = vunpack.c.h.b16 %v2039
      %v2209 = vunpack.c.l.b16 %v2040
      %v2210 = vunpack.c.h.b16 %v2040
      %v2211 = vunpack.c.l.b16 %v2041
      %v2212 = vunpack.c.h.b16 %v2041
      %v2213 = vunpack.c.l.b16 %v2042
      %v2214 = vunpack.c.h.b16 %v2042
      %v2215 = vunpack.c.l.b16 %v2043
      %v2216 = vunpack.c.h.b16 %v2043
      %v2217 = vunpack.c.l.b16 %v2044
      %v2218 = vunpack.c.h.b16 %v2044
      %v2219 = vunpack.c.l.b16 %v2045
      %v2220 = vunpack.c.h.b16 %v2045
      %v2221 = vunpack.c.l.b16 %v2046
      %v2222 = vunpack.c.h.b16 %v2046
      %v2223 = vunpack.c.l.b16 %v2047
      %v2224 = vunpack.c.h.b16 %v2047
      %v2225 = vunpack.c.l.b16 %v2048
      %v2226 = vunpack.c.h.b16 %v2048
      %v2227 = vunpack.c.l.b16 %v2049
      %v2228 = vunpack.c.h.b16 %v2049
      %v2229 = vunpack.c.l.b16 %v2050
      %v2230 = vunpack.c.h.b16 %v2050
      %v2231 = vpack.c.b16 %v2183, %v2167
      %v2232 = vpack.c.b16 %v2184, %v2168
      %v2233 = vpack.c.b16 %v2185, %v2169
      %v2234 = vpack.c.b16 %v2186, %v2170
      %v2235 = vpack.c.b16 %v2187, %v2171
      %v2236 = vpack.c.b16 %v2188, %v2172
      %v2237 = vpack.c.b16 %v2189, %v2173
      %v2238 = vpack.c.b16 %v2190, %v2174
      %v2239 = vpack.c.b16 %v2191, %v2175
      %v2240 = vpack.c.b16 %v2192, %v2176
      %v2241 = vpack.c.b16 %v2193, %v2177
      %v2242 = vpack.c.b16 %v2194, %v2178
      %v2243 = vpack.c.b16 %v2195, %v2179
      %v2244 = vpack.c.b16 %v2196, %v2180
      %v2245 = vpack.c.b16 %v2197, %v2181
      %v2246 = vpack.c.b16 %v2198, %v2182
      %v2247 = vpack.c.b16 %v2215, %v2199
      %v2248 = vpack.c.b16 %v2216, %v2200
      %v2249 = vpack.c.b16 %v2217, %v2201
      %v2250 = vpack.c.b16 %v2218, %v2202
      %v2251 = vpack.c.b16 %v2219, %v2203
      %v2252 = vpack.c.b16 %v2220, %v2204
      %v2253 = vpack.c.b16 %v2221, %v2205
      %v2254 = vpack.c.b16 %v2222, %v2206
      %v2255 = vpack.c.b16 %v2223, %v2207
      %v2256 = vpack.c.b16 %v2224, %v2208
      %v2257 = vpack.c.b16 %v2225, %v2209
      %v2258 = vpack.c.b16 %v2226, %v2210
      %v2259 = vpack.c.b16 %v2227, %v2211
      %v2260 = vpack.c.b16 %v2228, %v2212
      %v2261 = vpack.c.b16 %v2229, %v2213
      %v2262 = vpack.c.b16 %v2230, %v2214
      %v2296 = vsel %vm916, %v2018, 0
      %2298 = vmatprep.subr.bf16.mxu0 %v2232
      %2299 = vmatpush1.bf16.msra.mxu0 %v2231
      %2300 = vmatprep.subr.bf16.mxu0 %v2248
      %2301 = vmatpush1.bf16.msra.mxu0 %v2247
      %2302 = vmatprep.subr.bf16.mxu0 0
      %2303 = vmatpush1.bf16.msra.mxu0 0
      %2304 = vmatprep.subr.bf16.mxu0 0
      %2305 = vmatpush1.bf16.msra.mxu0 0
      %2306 = vmatprep.subr.bf16.mxu0 0
      %2307 = vmatpush1.bf16.msra.mxu0 0
      %2308 = vmatprep.subr.bf16.mxu0 0
      %2309 = vmatpush1.bf16.msra.mxu0 0
      %2310 = vmatprep.subr.bf16.mxu0 0
      %2311 = vmatpush1.bf16.msra.mxu0 0
      %2312 = vmatprep.subr.bf16.mxu0 0
      %2313 = vmatpush1.bf16.msra.mxu0 0
      %2314 = vmatprep.subr.bf16.mxu0 0
      %2315 = vmatpush1.bf16.msra.mxu0 0
      %2316 = vmatprep.subr.bf16.mxu0 0
      %2317 = vmatpush1.bf16.msra.mxu0 0
      %2318 = vmatprep.subr.bf16.mxu0 0
      %2319 = vmatpush1.bf16.msra.mxu0 0
      %2320 = vmatprep.subr.bf16.mxu0 0
      %2321 = vmatpush1.bf16.msra.mxu0 0
      %2322 = vmatprep.subr.bf16.mxu0 0
      %2323 = vmatpush1.bf16.msra.mxu0 0
      %2324 = vmatprep.subr.bf16.mxu0 0
      %2325 = vmatpush1.bf16.msra.mxu0 0
      %2326 = vmatprep.subr.bf16.mxu0 0
      %2327 = vmatpush1.bf16.msra.mxu0 0
      %2328 = vmatprep.subr.bf16.mxu0 0
      %2329 = vmatpush1.bf16.msra.mxu0 0
      %2330 = vmatprep.mubr.bf16.mxu0 0
      %2331 = vmatmul.mubr.bf16.gmra.mrb[0].mxu0 %v2296
      %v2332 = vpop.f32.mrb[0].mxu0
      %v2333 = vadd.f32 %v2058, %v2332
      %v2334 = vpop.f32.mrb[0].mxu0
      %v2335 = vadd.f32 %v2062, %v2334
      %v2336 = vpop.f32.mrb[0].mxu0
      %v2337 = vadd.f32 %v2058, %v2336
      %v2338 = vpop.f32.mrb[0].mxu0
      %v2339 = vadd.f32 %v2062, %v2338
      %2340 = vdwg.mxu0
      %2341 = vmatprep.subr.bf16.mxu0 %v2234
      %2342 = vmatpush1.bf16.msra.mxu0 %v2233
      %2343 = vmatprep.subr.bf16.mxu0 %v2250
      %2344 = vmatpush1.bf16.msra.mxu0 %v2249
      %2345 = vmatprep.subr.bf16.mxu0 0
      %2346 = vmatpush1.bf16.msra.mxu0 0
      %2347 = vmatprep.subr.bf16.mxu0 0
      %2348 = vmatpush1.bf16.msra.mxu0 0
      %2349 = vmatprep.subr.bf16.mxu0 0
      %2350 = vmatpush1.bf16.msra.mxu0 0
      %2351 = vmatprep.subr.bf16.mxu0 0
      %2352 = vmatpush1.bf16.msra.mxu0 0
      %2353 = vmatprep.subr.bf16.mxu0 0
      %2354 = vmatpush1.bf16.msra.mxu0 0
      %2355 = vmatprep.subr.bf16.mxu0 0
      %2356 = vmatpush1.bf16.msra.mxu0 0
      %2357 = vmatprep.subr.bf16.mxu0 0
      %2358 = vmatpush1.bf16.msra.mxu0 0
      %2359 = vmatprep.subr.bf16.mxu0 0
      %2360 = vmatpush1.bf16.msra.mxu0 0
      %2361 = vmatprep.subr.bf16.mxu0 0
      %2362 = vmatpush1.bf16.msra.mxu0 0
      %2363 = vmatprep.subr.bf16.mxu0 0
      %2364 = vmatpush1.bf16.msra.mxu0 0
      %2365 = vmatprep.subr.bf16.mxu0 0
      %2366 = vmatpush1.bf16.msra.mxu0 0
      %2367 = vmatprep.subr.bf16.mxu0 0
      %2368 = vmatpush1.bf16.msra.mxu0 0
      %2369 = vmatprep.subr.bf16.mxu0 0
      %2370 = vmatpush1.bf16.msra.mxu0 0
      %2371 = vmatprep.subr.bf16.mxu0 0
      %2372 = vmatpush1.bf16.msra.mxu0 0
      %2373 = vmatprep.mubr.bf16.mxu0 0
      %2374 = vmatmul.mubr.bf16.gmra.mrb[0].mxu0 %v2296
      %v2375 = vpop.f32.mrb[0].mxu0
      %v2376 = vadd.f32 %v2066, %v2375
      %v2377 = vpop.f32.mrb[0].mxu0
      %v2378 = vadd.f32 %v2070, %v2377
      %v2379 = vpop.f32.mrb[0].mxu0
      %v2380 = vadd.f32 %v2066, %v2379
      %v2381 = vpop.f32.mrb[0].mxu0
      %v2382 = vadd.f32 %v2070, %v2381
      %2383 = vdwg.mxu0
      %2384 = vmatprep.subr.bf16.mxu0 %v2236
      %2385 = vmatpush1.bf16.msra.mxu0 %v2235
      %2386 = vmatprep.subr.bf16.mxu0 %v2252
      %2387 = vmatpush1.bf16.msra.mxu0 %v2251
      %2388 = vmatprep.subr.bf16.mxu0 0
      %2389 = vmatpush1.bf16.msra.mxu0 0
      %2390 = vmatprep.subr.bf16.mxu0 0
      %2391 = vmatpush1.bf16.msra.mxu0 0
      %2392 = vmatprep.subr.bf16.mxu0 0
      %2393 = vmatpush1.bf16.msra.mxu0 0
      %2394 = vmatprep.subr.bf16.mxu0 0
      %2395 = vmatpush1.bf16.msra.mxu0 0
      %2396 = vmatprep.subr.bf16.mxu0 0
      %2397 = vmatpush1.bf16.msra.mxu0 0
      %2398 = vmatprep.subr.bf16.mxu0 0
      %2399 = vmatpush1.bf16.msra.mxu0 0
      %2400 = vmatprep.subr.bf16.mxu0 0
      %2401 = vmatpush1.bf16.msra.mxu0 0
      %2402 = vmatprep.subr.bf16.mxu0 0
      %2403 = vmatpush1.bf16.msra.mxu0 0
      %2404 = vmatprep.subr.bf16.mxu0 0
      %2405 = vmatpush1.bf16.msra.mxu0 0
      %2406 = vmatprep.subr.bf16.mxu0 0
      %2407 = vmatpush1.bf16.msra.mxu0 0
      %2408 = vmatprep.subr.bf16.mxu0 0
      %2409 = vmatpush1.bf16.msra.mxu0 0
      %2410 = vmatprep.subr.bf16.mxu0 0
      %2411 = vmatpush1.bf16.msra.mxu0 0
      %2412 = vmatprep.subr.bf16.mxu0 0
      %2413 = vmatpush1.bf16.msra.mxu0 0
      %2414 = vmatprep.subr.bf16.mxu0 0
      %2415 = vmatpush1.bf16.msra.mxu0 0
      %2416 = vmatprep.mubr.bf16.mxu0 0
      %2417 = vmatmul.mubr.bf16.gmra.mrb[0].mxu0 %v2296
      %v2418 = vpop.f32.mrb[0].mxu0
      %v2419 = vadd.f32 %v2074, %v2418
      %v2420 = vpop.f32.mrb[0].mxu0
      %v2421 = vadd.f32 %v2078, %v2420
      %v2422 = vpop.f32.mrb[0].mxu0
      %v2423 = vadd.f32 %v2074, %v2422
      %v2424 = vpop.f32.mrb[0].mxu0
      %v2425 = vadd.f32 %v2078, %v2424
      %2426 = vdwg.mxu0
      %2427 = vmatprep.subr.bf16.mxu0 %v2238
      %2428 = vmatpush1.bf16.msra.mxu0 %v2237
      %2429 = vmatprep.subr.bf16.mxu0 %v2254
      %2430 = vmatpush1.bf16.msra.mxu0 %v2253
      %2431 = vmatprep.subr.bf16.mxu0 0
      %2432 = vmatpush1.bf16.msra.mxu0 0
      %2433 = vmatprep.subr.bf16.mxu0 0
      %2434 = vmatpush1.bf16.msra.mxu0 0
      %2435 = vmatprep.subr.bf16.mxu0 0
      %2436 = vmatpush1.bf16.msra.mxu0 0
      %2437 = vmatprep.subr.bf16.mxu0 0
      %2438 = vmatpush1.bf16.msra.mxu0 0
      %2439 = vmatprep.subr.bf16.mxu0 0
      %2440 = vmatpush1.bf16.msra.mxu0 0
      %2441 = vmatprep.subr.bf16.mxu0 0
      %2442 = vmatpush1.bf16.msra.mxu0 0
      %2443 = vmatprep.subr.bf16.mxu0 0
      %2444 = vmatpush1.bf16.msra.mxu0 0
      %2445 = vmatprep.subr.bf16.mxu0 0
      %2446 = vmatpush1.bf16.msra.mxu0 0
      %2447 = vmatprep.subr.bf16.mxu0 0
      %2448 = vmatpush1.bf16.msra.mxu0 0
      %2449 = vmatprep.subr.bf16.mxu0 0
      %2450 = vmatpush1.bf16.msra.mxu0 0
      %2451 = vmatprep.subr.bf16.mxu0 0
      %2452 = vmatpush1.bf16.msra.mxu0 0
      %2453 = vmatprep.subr.bf16.mxu0 0
      %2454 = vmatpush1.bf16.msra.mxu0 0
      %2455 = vmatprep.subr.bf16.mxu0 0
      %2456 = vmatpush1.bf16.msra.mxu0 0
      %2457 = vmatprep.subr.bf16.mxu0 0
      %2458 = vmatpush1.bf16.msra.mxu0 0
      %2459 = vmatprep.mubr.bf16.mxu0 0
      %2460 = vmatmul.mubr.bf16.gmra.mrb[0].mxu0 %v2296
      %v2461 = vpop.f32.mrb[0].mxu0
      %v2462 = vadd.f32 %v2082, %v2461
      %v2463 = vpop.f32.mrb[0].mxu0
      %v2464 = vadd.f32 %v2086, %v2463
      %v2465 = vpop.f32.mrb[0].mxu0
      %v2466 = vadd.f32 %v2082, %v2465
      %v2467 = vpop.f32.mrb[0].mxu0
      %v2468 = vadd.f32 %v2086, %v2467
      %2469 = vdwg.mxu0
      %2470 = vmatprep.subr.bf16.mxu0 %v2240
      %2471 = vmatpush1.bf16.msra.mxu0 %v2239
      %2472 = vmatprep.subr.bf16.mxu0 %v2256
      %2473 = vmatpush1.bf16.msra.mxu0 %v2255
      %2474 = vmatprep.subr.bf16.mxu0 0
      %2475 = vmatpush1.bf16.msra.mxu0 0
      %2476 = vmatprep.subr.bf16.mxu0 0
      %2477 = vmatpush1.bf16.msra.mxu0 0
      %2478 = vmatprep.subr.bf16.mxu0 0
      %2479 = vmatpush1.bf16.msra.mxu0 0
      %2480 = vmatprep.subr.bf16.mxu0 0
      %2481 = vmatpush1.bf16.msra.mxu0 0
      %2482 = vmatprep.subr.bf16.mxu0 0
      %2483 = vmatpush1.bf16.msra.mxu0 0
      %2484 = vmatprep.subr.bf16.mxu0 0
      %2485 = vmatpush1.bf16.msra.mxu0 0
      %2486 = vmatprep.subr.bf16.mxu0 0
      %2487 = vmatpush1.bf16.msra.mxu0 0
      %2488 = vmatprep.subr.bf16.mxu0 0
      %2489 = vmatpush1.bf16.msra.mxu0 0
      %2490 = vmatprep.subr.bf16.mxu0 0
      %2491 = vmatpush1.bf16.msra.mxu0 0
      %2492 = vmatprep.subr.bf16.mxu0 0
      %2493 = vmatpush1.bf16.msra.mxu0 0
      %2494 = vmatprep.subr.bf16.mxu0 0
      %2495 = vmatpush1.bf16.msra.mxu0 0
      %2496 = vmatprep.subr.bf16.mxu0 0
      %2497 = vmatpush1.bf16.msra.mxu0 0
      %2498 = vmatprep.subr.bf16.mxu0 0
      %2499 = vmatpush1.bf16.msra.mxu0 0
      %2500 = vmatprep.subr.bf16.mxu0 0
      %2501 = vmatpush1.bf16.msra.mxu0 0
      %2502 = vmatprep.mubr.bf16.mxu0 0
      %2503 = vmatmul.mubr.bf16.gmra.mrb[0].mxu0 %v2296
      %v2504 = vpop.f32.mrb[0].mxu0
      %v2505 = vadd.f32 %v2090, %v2504
      %v2506 = vpop.f32.mrb[0].mxu0
      %v2507 = vadd.f32 %v2094, %v2506
      %v2508 = vpop.f32.mrb[0].mxu0
      %v2509 = vadd.f32 %v2090, %v2508
      %v2510 = vpop.f32.mrb[0].mxu0
      %v2511 = vadd.f32 %v2094, %v2510
      %2512 = vdwg.mxu0
      %2513 = vmatprep.subr.bf16.mxu0 %v2242
      %2514 = vmatpush1.bf16.msra.mxu0 %v2241
      %2515 = vmatprep.subr.bf16.mxu0 %v2258
      %2516 = vmatpush1.bf16.msra.mxu0 %v2257
      %2517 = vmatprep.subr.bf16.mxu0 0
      %2518 = vmatpush1.bf16.msra.mxu0 0
      %2519 = vmatprep.subr.bf16.mxu0 0
      %2520 = vmatpush1.bf16.msra.mxu0 0
      %2521 = vmatprep.subr.bf16.mxu0 0
      %2522 = vmatpush1.bf16.msra.mxu0 0
      %2523 = vmatprep.subr.bf16.mxu0 0
      %2524 = vmatpush1.bf16.msra.mxu0 0
      %2525 = vmatprep.subr.bf16.mxu0 0
      %2526 = vmatpush1.bf16.msra.mxu0 0
      %2527 = vmatprep.subr.bf16.mxu0 0
      %2528 = vmatpush1.bf16.msra.mxu0 0
      %2529 = vmatprep.subr.bf16.mxu0 0
      %2530 = vmatpush1.bf16.msra.mxu0 0
      %2531 = vmatprep.subr.bf16.mxu0 0
      %2532 = vmatpush1.bf16.msra.mxu0 0
      %2533 = vmatprep.subr.bf16.mxu0 0
      %2534 = vmatpush1.bf16.msra.mxu0 0
      %2535 = vmatprep.subr.bf16.mxu0 0
      %2536 = vmatpush1.bf16.msra.mxu0 0
      %2537 = vmatprep.subr.bf16.mxu0 0
      %2538 = vmatpush1.bf16.msra.mxu0 0
      %2539 = vmatprep.subr.bf16.mxu0 0
      %2540 = vmatpush1.bf16.msra.mxu0 0
      %2541 = vmatprep.subr.bf16.mxu0 0
      %2542 = vmatpush1.bf16.msra.mxu0 0
      %2543 = vmatprep.subr.bf16.mxu0 0
      %2544 = vmatpush1.bf16.msra.mxu0 0
      %2545 = vmatprep.mubr.bf16.mxu0 0
      %2546 = vmatmul.mubr.bf16.gmra.mrb[0].mxu0 %v2296
      %v2547 = vpop.f32.mrb[0].mxu0
      %v2548 = vadd.f32 %v2098, %v2547
      %v2549 = vpop.f32.mrb[0].mxu0
      %v2550 = vadd.f32 %v2102, %v2549
      %v2551 = vpop.f32.mrb[0].mxu0
      %v2552 = vadd.f32 %v2098, %v2551
      %v2553 = vpop.f32.mrb[0].mxu0
      %v2554 = vadd.f32 %v2102, %v2553
      %2555 = vdwg.mxu0
      %2556 = vmatprep.subr.bf16.mxu0 %v2244
      %2557 = vmatpush1.bf16.msra.mxu0 %v2243
      %2558 = vmatprep.subr.bf16.mxu0 %v2260
      %2559 = vmatpush1.bf16.msra.mxu0 %v2259
      %2560 = vmatprep.subr.bf16.mxu0 0
      %2561 = vmatpush1.bf16.msra.mxu0 0
      %2562 = vmatprep.subr.bf16.mxu0 0
      %2563 = vmatpush1.bf16.msra.mxu0 0
      %2564 = vmatprep.subr.bf16.mxu0 0
      %2565 = vmatpush1.bf16.msra.mxu0 0
      %2566 = vmatprep.subr.bf16.mxu0 0
      %2567 = vmatpush1.bf16.msra.mxu0 0
      %2568 = vmatprep.subr.bf16.mxu0 0
      %2569 = vmatpush1.bf16.msra.mxu0 0
      %2570 = vmatprep.subr.bf16.mxu0 0
      %2571 = vmatpush1.bf16.msra.mxu0 0
      %2572 = vmatprep.subr.bf16.mxu0 0
      %2573 = vmatpush1.bf16.msra.mxu0 0
      %2574 = vmatprep.subr.bf16.mxu0 0
      %2575 = vmatpush1.bf16.msra.mxu0 0
      %2576 = vmatprep.subr.bf16.mxu0 0
      %2577 = vmatpush1.bf16.msra.mxu0 0
      %2578 = vmatprep.subr.bf16.mxu0 0
      %2579 = vmatpush1.bf16.msra.mxu0 0
      %2580 = vmatprep.subr.bf16.mxu0 0
      %2581 = vmatpush1.bf16.msra.mxu0 0
      %2582 = vmatprep.subr.bf16.mxu0 0
      %2583 = vmatpush1.bf16.msra.mxu0 0
      %2584 = vmatprep.subr.bf16.mxu0 0
      %2585 = vmatpush1.bf16.msra.mxu0 0
      %2586 = vmatprep.subr.bf16.mxu0 0
      %2587 = vmatpush1.bf16.msra.mxu0 0
      %2588 = vmatprep.mubr.bf16.mxu0 0
      %2589 = vmatmul.mubr.bf16.gmra.mrb[0].mxu0 %v2296
      %v2590 = vpop.f32.mrb[0].mxu0
      %v2591 = vadd.f32 %v2106, %v2590
      %v2592 = vpop.f32.mrb[0].mxu0
      %v2593 = vadd.f32 %v2110, %v2592
      %v2594 = vpop.f32.mrb[0].mxu0
      %v2595 = vadd.f32 %v2106, %v2594
      %v2596 = vpop.f32.mrb[0].mxu0
      %v2597 = vadd.f32 %v2110, %v2596
      %2598 = vdwg.mxu0
      %2599 = vmatprep.subr.bf16.mxu0 %v2246
      %2600 = vmatpush1.bf16.msra.mxu0 %v2245
      %2601 = vmatprep.subr.bf16.mxu0 %v2262
      %2602 = vmatpush1.bf16.msra.mxu0 %v2261
      %2603 = vmatprep.subr.bf16.mxu0 0
      %2604 = vmatpush1.bf16.msra.mxu0 0
      %2605 = vmatprep.subr.bf16.mxu0 0
      %2606 = vmatpush1.bf16.msra.mxu0 0
      %2607 = vmatprep.subr.bf16.mxu0 0
      %2608 = vmatpush1.bf16.msra.mxu0 0
      %2609 = vmatprep.subr.bf16.mxu0 0
      %2610 = vmatpush1.bf16.msra.mxu0 0
      %2611 = vmatprep.subr.bf16.mxu0 0
      %2612 = vmatpush1.bf16.msra.mxu0 0
      %2613 = vmatprep.subr.bf16.mxu0 0
      %2614 = vmatpush1.bf16.msra.mxu0 0
      %2615 = vmatprep.subr.bf16.mxu0 0
      %2616 = vmatpush1.bf16.msra.mxu0 0
      %2617 = vmatprep.subr.bf16.mxu0 0
      %2618 = vmatpush1.bf16.msra.mxu0 0
      %2619 = vmatprep.subr.bf16.mxu0 0
      %2620 = vmatpush1.bf16.msra.mxu0 0
      %2621 = vmatprep.subr.bf16.mxu0 0
      %2622 = vmatpush1.bf16.msra.mxu0 0
      %2623 = vmatprep.subr.bf16.mxu0 0
      %2624 = vmatpush1.bf16.msra.mxu0 0
      %2625 = vmatprep.subr.bf16.mxu0 0
      %2626 = vmatpush1.bf16.msra.mxu0 0
      %2627 = vmatprep.subr.bf16.mxu0 0
      %2628 = vmatpush1.bf16.msra.mxu0 0
      %2629 = vmatprep.subr.bf16.mxu0 0
      %2630 = vmatpush1.bf16.msra.mxu0 0
      %2631 = vmatprep.mubr.bf16.mxu0 0
      %2632 = vmatmul.mubr.bf16.gmra.mrb[0].mxu0 %v2296
      %v2633 = vpop.f32.mrb[0].mxu0
      %v2634 = vadd.f32 %v2114, %v2633
      %v2635 = vpop.f32.mrb[0].mxu0
      %v2636 = vadd.f32 %v2118, %v2635
      %v2637 = vpop.f32.mrb[0].mxu0
      %v2638 = vadd.f32 %v2114, %v2637
      %v2639 = vpop.f32.mrb[0].mxu0
      %v2640 = vadd.f32 %v2118, %v2639
      %2641 = vdwg.mxu0
      %v2642 = vmax.f32 %v2333, 0.0
      %v2643 = vmax.f32 %v2335, 0.0
      %v2644 = vmax.f32 %v2376, 0.0
      %v2645 = vmax.f32 %v2378, 0.0
      %v2646 = vmax.f32 %v2419, 0.0
      %v2647 = vmax.f32 %v2421, 0.0
      %v2648 = vmax.f32 %v2462, 0.0
      %v2649 = vmax.f32 %v2464, 0.0
      %v2650 = vmax.f32 %v2505, 0.0
      %v2651 = vmax.f32 %v2507, 0.0
      %v2652 = vmax.f32 %v2548, 0.0
      %v2653 = vmax.f32 %v2550, 0.0
      %v2654 = vmax.f32 %v2591, 0.0
      %v2655 = vmax.f32 %v2593, 0.0
      %v2656 = vmax.f32 %v2634, 0.0
      %v2657 = vmax.f32 %v2636, 0.0
      %v2658 = vmax.f32 %v2337, 0.0
      %v2659 = vmax.f32 %v2339, 0.0
      %v2660 = vmax.f32 %v2380, 0.0
      %v2661 = vmax.f32 %v2382, 0.0
      %v2662 = vmax.f32 %v2423, 0.0
      %v2663 = vmax.f32 %v2425, 0.0
      %v2664 = vmax.f32 %v2466, 0.0
      %v2665 = vmax.f32 %v2468, 0.0
      %v2666 = vmax.f32 %v2509, 0.0
      %v2667 = vmax.f32 %v2511, 0.0
      %v2668 = vmax.f32 %v2552, 0.0
      %v2669 = vmax.f32 %v2554, 0.0
      %v2670 = vmax.f32 %v2595, 0.0
      %v2671 = vmax.f32 %v2597, 0.0
      %v2672 = vmax.f32 %v2638, 0.0
      %v2673 = vmax.f32 %v2640, 0.0
      %v2674 = vpack.c.bf16 %v2658, %v2642
      %v2675 = vpack.c.bf16 %v2659, %v2643
      %v2676 = vpack.c.bf16 %v2660, %v2644
      %v2677 = vpack.c.bf16 %v2661, %v2645
      %v2678 = vpack.c.bf16 %v2662, %v2646
      %v2679 = vpack.c.bf16 %v2663, %v2647
      %v2680 = vpack.c.bf16 %v2664, %v2648
      %v2681 = vpack.c.bf16 %v2665, %v2649
      %v2682 = vpack.c.bf16 %v2666, %v2650
      %v2683 = vpack.c.bf16 %v2667, %v2651
      %v2684 = vpack.c.bf16 %v2668, %v2652
      %v2685 = vpack.c.bf16 %v2669, %v2653
      %v2686 = vpack.c.bf16 %v2670, %v2654
      %v2687 = vpack.c.bf16 %v2671, %v2655
      %v2688 = vpack.c.bf16 %v2672, %v2656
      %v2689 = vpack.c.bf16 %v2673, %v2657
      %v2690 = vld [vmem:[%s819] sm:$0xf]
      %v2691 = vld [vmem:[%s819 + $0x4] sm:$0xf]
      %v2692 = vld [vmem:[%s819 + $0x8] sm:$0xf]
      %v2693 = vld [vmem:[%s819 + $0xc] sm:$0xf]
      %v2694 = vld [vmem:[%s819 + $0x10] sm:$0xf]
      %v2695 = vld [vmem:[%s819 + $0x14] sm:$0xf]
      %v2696 = vld [vmem:[%s819 + $0x18] sm:$0xf]
      %v2697 = vld [vmem:[%s819 + $0x1c] sm:$0xf]
      %v2698 = vld [vmem:[%s819 + $0x20] sm:$0xf]
      %v2699 = vld [vmem:[%s819 + $0x24] sm:$0xf]
      %v2700 = vld [vmem:[%s819 + $0x28] sm:$0xf]
      %v2701 = vld [vmem:[%s819 + $0x2c] sm:$0xf]
      %v2702 = vld [vmem:[%s819 + $0x30] sm:$0xf]
      %v2703 = vld [vmem:[%s819 + $0x34] sm:$0xf]
      %v2704 = vld [vmem:[%s819 + $0x38] sm:$0xf]
      %v2705 = vld [vmem:[%s819 + $0x3c] sm:$0xf]
      %v2706 = vld [vmem:[%s819 + $0x40] sm:$0xf]
      %v2707 = vld [vmem:[%s819 + $0x44] sm:$0xf]
      %v2708 = vld [vmem:[%s819 + $0x48] sm:$0xf]
      %v2709 = vld [vmem:[%s819 + $0x4c] sm:$0xf]
      %v2710 = vld [vmem:[%s819 + $0x50] sm:$0xf]
      %v2711 = vld [vmem:[%s819 + $0x54] sm:$0xf]
      %v2712 = vld [vmem:[%s819 + $0x58] sm:$0xf]
      %v2713 = vld [vmem:[%s819 + $0x5c] sm:$0xf]
      %v2714 = vld [vmem:[%s819 + $0x60] sm:$0xf]
      %v2715 = vld [vmem:[%s819 + $0x64] sm:$0xf]
      %v2716 = vld [vmem:[%s819 + $0x68] sm:$0xf]
      %v2717 = vld [vmem:[%s819 + $0x6c] sm:$0xf]
      %v2718 = vld [vmem:[%s819 + $0x70] sm:$0xf]
      %v2719 = vld [vmem:[%s819 + $0x74] sm:$0xf]
      %v2720 = vld [vmem:[%s819 + $0x78] sm:$0xf]
      %v2721 = vld [vmem:[%s819 + $0x7c] sm:$0xf]
      %v2722 = vld [vmem:[%s819 + $0x80] sm:$0xf]
      %v2723 = vld [vmem:[%s819 + $0x84] sm:$0xf]
      %v2724 = vld [vmem:[%s819 + $0x88] sm:$0xf]
      %v2725 = vld [vmem:[%s819 + $0x8c] sm:$0xf]
      %v2726 = vld [vmem:[%s819 + $0x90] sm:$0xf]
      %v2727 = vld [vmem:[%s819 + $0x94] sm:$0xf]
      %v2728 = vld [vmem:[%s819 + $0x98] sm:$0xf]
      %v2729 = vld [vmem:[%s819 + $0x9c] sm:$0xf]
      %v2730 = vld [vmem:[%s819 + $0xa0] sm:$0xf]
      %v2731 = vld [vmem:[%s819 + $0xa4] sm:$0xf]
      %v2732 = vld [vmem:[%s819 + $0xa8] sm:$0xf]
      %v2733 = vld [vmem:[%s819 + $0xac] sm:$0xf]
      %v2734 = vld [vmem:[%s819 + $0xb0] sm:$0xf]
      %v2735 = vld [vmem:[%s819 + $0xb4] sm:$0xf]
      %v2736 = vld [vmem:[%s819 + $0xb8] sm:$0xf]
      %v2737 = vld [vmem:[%s819 + $0xbc] sm:$0xf]
      %v2738 = vld [vmem:[%s819 + $0xc0] sm:$0xf]
      %v2739 = vld [vmem:[%s819 + $0xc4] sm:$0xf]
      %v2740 = vld [vmem:[%s819 + $0xc8] sm:$0xf]
      %v2741 = vld [vmem:[%s819 + $0xcc] sm:$0xf]
      %v2742 = vld [vmem:[%s819 + $0xd0] sm:$0xf]
      %v2743 = vld [vmem:[%s819 + $0xd4] sm:$0xf]
      %v2744 = vld [vmem:[%s819 + $0xd8] sm:$0xf]
      %v2745 = vld [vmem:[%s819 + $0xdc] sm:$0xf]
      %v2746 = vld [vmem:[%s819 + $0xe0] sm:$0xf]
      %v2747 = vld [vmem:[%s819 + $0xe4] sm:$0xf]
      %v2748 = vld [vmem:[%s819 + $0xe8] sm:$0xf]
      %v2749 = vld [vmem:[%s819 + $0xec] sm:$0xf]
      %v2750 = vld [vmem:[%s819 + $0xf0] sm:$0xf]
      %v2751 = vld [vmem:[%s819 + $0xf4] sm:$0xf]
      %v2752 = vld [vmem:[%s819 + $0xf8] sm:$0xf]
      %v2753 = vld [vmem:[%s819 + $0xfc] sm:$0xf]
      %v2754 = vld [vmem:[%s819 + $0x100] sm:$0xf]
      %v2755 = vld [vmem:[%s819 + $0x104] sm:$0xf]
      %v2756 = vld [vmem:[%s819 + $0x108] sm:$0xf]
      %v2757 = vld [vmem:[%s819 + $0x10c] sm:$0xf]
      %v2758 = vld [vmem:[%s819 + $0x110] sm:$0xf]
      %v2759 = vld [vmem:[%s819 + $0x114] sm:$0xf]
      %v2760 = vld [vmem:[%s819 + $0x118] sm:$0xf]
      %v2761 = vld [vmem:[%s819 + $0x11c] sm:$0xf]
      %v2762 = vld [vmem:[%s819 + $0x120] sm:$0xf]
      %v2763 = vld [vmem:[%s819 + $0x124] sm:$0xf]
      %v2764 = vld [vmem:[%s819 + $0x128] sm:$0xf]
      %v2765 = vld [vmem:[%s819 + $0x12c] sm:$0xf]
      %v2766 = vld [vmem:[%s819 + $0x130] sm:$0xf]
      %v2767 = vld [vmem:[%s819 + $0x134] sm:$0xf]
      %v2768 = vld [vmem:[%s819 + $0x138] sm:$0xf]
      %v2769 = vld [vmem:[%s819 + $0x13c] sm:$0xf]
      %v2770 = vld [vmem:[%s819 + $0x140] sm:$0xf]
      %v2771 = vld [vmem:[%s819 + $0x144] sm:$0xf]
      %v2772 = vld [vmem:[%s819 + $0x148] sm:$0xf]
      %v2773 = vld [vmem:[%s819 + $0x14c] sm:$0xf]
      %v2774 = vld [vmem:[%s819 + $0x150] sm:$0xf]
      %v2775 = vld [vmem:[%s819 + $0x154] sm:$0xf]
      %v2776 = vld [vmem:[%s819 + $0x158] sm:$0xf]
      %v2777 = vld [vmem:[%s819 + $0x15c] sm:$0xf]
      %v2778 = vld [vmem:[%s819 + $0x160] sm:$0xf]
      %v2779 = vld [vmem:[%s819 + $0x164] sm:$0xf]
      %v2780 = vld [vmem:[%s819 + $0x168] sm:$0xf]
      %v2781 = vld [vmem:[%s819 + $0x16c] sm:$0xf]
      %v2782 = vld [vmem:[%s819 + $0x170] sm:$0xf]
      %v2783 = vld [vmem:[%s819 + $0x174] sm:$0xf]
      %v2784 = vld [vmem:[%s819 + $0x178] sm:$0xf]
      %v2785 = vld [vmem:[%s819 + $0x17c] sm:$0xf]
      %v2786 = vld [vmem:[%s819 + $0x180] sm:$0xf]
      %v2787 = vld [vmem:[%s819 + $0x184] sm:$0xf]
      %v2788 = vld [vmem:[%s819 + $0x188] sm:$0xf]
      %v2789 = vld [vmem:[%s819 + $0x18c] sm:$0xf]
      %v2790 = vld [vmem:[%s819 + $0x190] sm:$0xf]
      %v2791 = vld [vmem:[%s819 + $0x194] sm:$0xf]
      %v2792 = vld [vmem:[%s819 + $0x198] sm:$0xf]
      %v2793 = vld [vmem:[%s819 + $0x19c] sm:$0xf]
      %v2794 = vld [vmem:[%s819 + $0x1a0] sm:$0xf]
      %v2795 = vld [vmem:[%s819 + $0x1a4] sm:$0xf]
      %v2796 = vld [vmem:[%s819 + $0x1a8] sm:$0xf]
      %v2797 = vld [vmem:[%s819 + $0x1ac] sm:$0xf]
      %v2798 = vld [vmem:[%s819 + $0x1b0] sm:$0xf]
      %v2799 = vld [vmem:[%s819 + $0x1b4] sm:$0xf]
      %v2800 = vld [vmem:[%s819 + $0x1b8] sm:$0xf]
      %v2801 = vld [vmem:[%s819 + $0x1bc] sm:$0xf]
      %v2802 = vld [vmem:[%s819 + $0x1c0] sm:$0xf]
      %v2803 = vld [vmem:[%s819 + $0x1c4] sm:$0xf]
      %v2804 = vld [vmem:[%s819 + $0x1c8] sm:$0xf]
      %v2805 = vld [vmem:[%s819 + $0x1cc] sm:$0xf]
      %v2806 = vld [vmem:[%s819 + $0x1d0] sm:$0xf]
      %v2807 = vld [vmem:[%s819 + $0x1d4] sm:$0xf]
      %v2808 = vld [vmem:[%s819 + $0x1d8] sm:$0xf]
      %v2809 = vld [vmem:[%s819 + $0x1dc] sm:$0xf]
      %v2810 = vld [vmem:[%s819 + $0x1e0] sm:$0xf]
      %v2811 = vld [vmem:[%s819 + $0x1e4] sm:$0xf]
      %v2812 = vld [vmem:[%s819 + $0x1e8] sm:$0xf]
      %v2813 = vld [vmem:[%s819 + $0x1ec] sm:$0xf]
      %v2814 = vld [vmem:[%s819 + $0x1f0] sm:$0xf]
      %v2815 = vld [vmem:[%s819 + $0x1f4] sm:$0xf]
      %v2816 = vld [vmem:[%s819 + $0x1f8] sm:$0xf]
      %v2817 = vld [vmem:[%s819 + $0x1fc] sm:$0xf]
      %v2818 = vld [vmem:[%s819 + $0x200] sm:$0xf]
      %v2819 = vld [vmem:[%s819 + $0x204] sm:$0xf]
      %v2820 = vld [vmem:[%s819 + $0x208] sm:$0xf]
      %v2821 = vld [vmem:[%s819 + $0x20c] sm:$0xf]
      %v2822 = vld [vmem:[%s819 + $0x210] sm:$0xf]
      %v2823 = vld [vmem:[%s819 + $0x214] sm:$0xf]
      %v2824 = vld [vmem:[%s819 + $0x218] sm:$0xf]
      %v2825 = vld [vmem:[%s819 + $0x21c] sm:$0xf]
      %v2826 = vld [vmem:[%s819 + $0x220] sm:$0xf]
      %v2827 = vld [vmem:[%s819 + $0x224] sm:$0xf]
      %v2828 = vld [vmem:[%s819 + $0x228] sm:$0xf]
      %v2829 = vld [vmem:[%s819 + $0x22c] sm:$0xf]
      %v2830 = vld [vmem:[%s819 + $0x230] sm:$0xf]
      %v2831 = vld [vmem:[%s819 + $0x234] sm:$0xf]
      %v2832 = vld [vmem:[%s819 + $0x238] sm:$0xf]
      %v2833 = vld [vmem:[%s819 + $0x23c] sm:$0xf]
      %v2834 = vld [vmem:[%s819 + $0x240] sm:$0xf]
      %v2835 = vld [vmem:[%s819 + $0x244] sm:$0xf]
      %v2836 = vld [vmem:[%s819 + $0x248] sm:$0xf]
      %v2837 = vld [vmem:[%s819 + $0x24c] sm:$0xf]
      %v2838 = vld [vmem:[%s819 + $0x250] sm:$0xf]
      %v2839 = vld [vmem:[%s819 + $0x254] sm:$0xf]
      %v2840 = vld [vmem:[%s819 + $0x258] sm:$0xf]
      %v2841 = vld [vmem:[%s819 + $0x25c] sm:$0xf]
      %v2842 = vld [vmem:[%s819 + $0x260] sm:$0xf]
      %v2843 = vld [vmem:[%s819 + $0x264] sm:$0xf]
      %v2844 = vld [vmem:[%s819 + $0x268] sm:$0xf]
      %v2845 = vld [vmem:[%s819 + $0x26c] sm:$0xf]
      %v2846 = vld [vmem:[%s819 + $0x270] sm:$0xf]
      %v2847 = vld [vmem:[%s819 + $0x274] sm:$0xf]
      %v2848 = vld [vmem:[%s819 + $0x278] sm:$0xf]
      %v2849 = vld [vmem:[%s819 + $0x27c] sm:$0xf]
      %v2850 = vld [vmem:[%s819 + $0x280] sm:$0xf]
      %v2851 = vld [vmem:[%s819 + $0x284] sm:$0xf]
      %v2852 = vld [vmem:[%s819 + $0x288] sm:$0xf]
      %v2853 = vld [vmem:[%s819 + $0x28c] sm:$0xf]
      %v2854 = vld [vmem:[%s819 + $0x290] sm:$0xf]
      %v2855 = vld [vmem:[%s819 + $0x294] sm:$0xf]
      %v2856 = vld [vmem:[%s819 + $0x298] sm:$0xf]
      %v2857 = vld [vmem:[%s819 + $0x29c] sm:$0xf]
      %v2858 = vld [vmem:[%s819 + $0x2a0] sm:$0xf]
      %v2859 = vld [vmem:[%s819 + $0x2a4] sm:$0xf]
      %v2860 = vld [vmem:[%s819 + $0x2a8] sm:$0xf]
      %v2861 = vld [vmem:[%s819 + $0x2ac] sm:$0xf]
      %v2862 = vld [vmem:[%s819 + $0x2b0] sm:$0xf]
      %v2863 = vld [vmem:[%s819 + $0x2b4] sm:$0xf]
      %v2864 = vld [vmem:[%s819 + $0x2b8] sm:$0xf]
      %v2865 = vld [vmem:[%s819 + $0x2bc] sm:$0xf]
      %v2866 = vld [vmem:[%s819 + $0x2c0] sm:$0xf]
      %v2867 = vld [vmem:[%s819 + $0x2c4] sm:$0xf]
      %v2868 = vld [vmem:[%s819 + $0x2c8] sm:$0xf]
      %v2869 = vld [vmem:[%s819 + $0x2cc] sm:$0xf]
      %v2870 = vld [vmem:[%s819 + $0x2d0] sm:$0xf]
      %v2871 = vld [vmem:[%s819 + $0x2d4] sm:$0xf]
      %v2872 = vld [vmem:[%s819 + $0x2d8] sm:$0xf]
      %v2873 = vld [vmem:[%s819 + $0x2dc] sm:$0xf]
      %v2874 = vld [vmem:[%s819 + $0x2e0] sm:$0xf]
      %v2875 = vld [vmem:[%s819 + $0x2e4] sm:$0xf]
      %v2876 = vld [vmem:[%s819 + $0x2e8] sm:$0xf]
      %v2877 = vld [vmem:[%s819 + $0x2ec] sm:$0xf]
      %v2878 = vld [vmem:[%s819 + $0x2f0] sm:$0xf]
      %v2879 = vld [vmem:[%s819 + $0x2f4] sm:$0xf]
      %v2880 = vld [vmem:[%s819 + $0x2f8] sm:$0xf]
      %v2881 = vld [vmem:[%s819 + $0x2fc] sm:$0xf]
      %v2882 = vld [vmem:[%s819 + $0x300] sm:$0xf]
      %v2883 = vld [vmem:[%s819 + $0x304] sm:$0xf]
      %v2884 = vld [vmem:[%s819 + $0x308] sm:$0xf]
      %v2885 = vld [vmem:[%s819 + $0x30c] sm:$0xf]
      %v2886 = vld [vmem:[%s819 + $0x310] sm:$0xf]
      %v2887 = vld [vmem:[%s819 + $0x314] sm:$0xf]
      %v2888 = vld [vmem:[%s819 + $0x318] sm:$0xf]
      %v2889 = vld [vmem:[%s819 + $0x31c] sm:$0xf]
      %v2890 = vld [vmem:[%s819 + $0x320] sm:$0xf]
      %v2891 = vld [vmem:[%s819 + $0x324] sm:$0xf]
      %v2892 = vld [vmem:[%s819 + $0x328] sm:$0xf]
      %v2893 = vld [vmem:[%s819 + $0x32c] sm:$0xf]
      %v2894 = vld [vmem:[%s819 + $0x330] sm:$0xf]
      %v2895 = vld [vmem:[%s819 + $0x334] sm:$0xf]
      %v2896 = vld [vmem:[%s819 + $0x338] sm:$0xf]
      %v2897 = vld [vmem:[%s819 + $0x33c] sm:$0xf]
      %v2898 = vld [vmem:[%s819 + $0x340] sm:$0xf]
      %v2899 = vld [vmem:[%s819 + $0x344] sm:$0xf]
      %v2900 = vld [vmem:[%s819 + $0x348] sm:$0xf]
      %v2901 = vld [vmem:[%s819 + $0x34c] sm:$0xf]
      %v2902 = vld [vmem:[%s819 + $0x350] sm:$0xf]
      %v2903 = vld [vmem:[%s819 + $0x354] sm:$0xf]
      %v2904 = vld [vmem:[%s819 + $0x358] sm:$0xf]
      %v2905 = vld [vmem:[%s819 + $0x35c] sm:$0xf]
      %v2906 = vld [vmem:[%s819 + $0x360] sm:$0xf]
      %v2907 = vld [vmem:[%s819 + $0x364] sm:$0xf]
      %v2908 = vld [vmem:[%s819 + $0x368] sm:$0xf]
      %v2909 = vld [vmem:[%s819 + $0x36c] sm:$0xf]
      %v2910 = vld [vmem:[%s819 + $0x370] sm:$0xf]
      %v2911 = vld [vmem:[%s819 + $0x374] sm:$0xf]
      %v2912 = vld [vmem:[%s819 + $0x378] sm:$0xf]
      %v2913 = vld [vmem:[%s819 + $0x37c] sm:$0xf]
      %v2914 = vld [vmem:[%s819 + $0x380] sm:$0xf]
      %v2915 = vld [vmem:[%s819 + $0x384] sm:$0xf]
      %v2916 = vld [vmem:[%s819 + $0x388] sm:$0xf]
      %v2917 = vld [vmem:[%s819 + $0x38c] sm:$0xf]
      %v2918 = vld [vmem:[%s819 + $0x390] sm:$0xf]
      %v2919 = vld [vmem:[%s819 + $0x394] sm:$0xf]
      %v2920 = vld [vmem:[%s819 + $0x398] sm:$0xf]
      %v2921 = vld [vmem:[%s819 + $0x39c] sm:$0xf]
      %v2922 = vld [vmem:[%s819 + $0x3a0] sm:$0xf]
      %v2923 = vld [vmem:[%s819 + $0x3a4] sm:$0xf]
      %v2924 = vld [vmem:[%s819 + $0x3a8] sm:$0xf]
      %v2925 = vld [vmem:[%s819 + $0x3ac] sm:$0xf]
      %v2926 = vld [vmem:[%s819 + $0x3b0] sm:$0xf]
      %v2927 = vld [vmem:[%s819 + $0x3b4] sm:$0xf]
      %v2928 = vld [vmem:[%s819 + $0x3b8] sm:$0xf]
      %v2929 = vld [vmem:[%s819 + $0x3bc] sm:$0xf]
      %v2930 = vld [vmem:[%s819 + $0x3c0] sm:$0xf]
      %v2931 = vld [vmem:[%s819 + $0x3c4] sm:$0xf]
      %v2932 = vld [vmem:[%s819 + $0x3c8] sm:$0xf]
      %v2933 = vld [vmem:[%s819 + $0x3cc] sm:$0xf]
      %v2934 = vld [vmem:[%s819 + $0x3d0] sm:$0xf]
      %v2935 = vld [vmem:[%s819 + $0x3d4] sm:$0xf]
      %v2936 = vld [vmem:[%s819 + $0x3d8] sm:$0xf]
      %v2937 = vld [vmem:[%s819 + $0x3dc] sm:$0xf]
      %v2938 = vld [vmem:[%s819 + $0x3e0] sm:$0xf]
      %v2939 = vld [vmem:[%s819 + $0x3e4] sm:$0xf]
      %v2940 = vld [vmem:[%s819 + $0x3e8] sm:$0xf]
      %v2941 = vld [vmem:[%s819 + $0x3ec] sm:$0xf]
      %v2942 = vld [vmem:[%s819 + $0x3f0] sm:$0xf]
      %v2943 = vld [vmem:[%s819 + $0x3f4] sm:$0xf]
      %v2944 = vld [vmem:[%s819 + $0x3f8] sm:$0xf]
      %v2945 = vld [vmem:[%s819 + $0x3fc] sm:$0xf]
      %v2946 = vld [vmem:[%s826] sm:$0x1]
      %v2948 = vlaneseq
      %v2949 = vshrl.u32 %v2948, 7
      %v2950 = vsub.s32 0, %v2949
      %v2951 = vrot.slane %v2946, %v2950
      %v3209 = vunpack.c.l.b16 %v2690
      %v3210 = vunpack.c.l.b16 %v2691
      %v3211 = vunpack.c.l.b16 %v2692
      %v3212 = vunpack.c.l.b16 %v2693
      %v3213 = vunpack.c.l.b16 %v2694
      %v3214 = vunpack.c.l.b16 %v2695
      %v3215 = vunpack.c.l.b16 %v2696
      %v3216 = vunpack.c.l.b16 %v2697
      %v3217 = vunpack.c.l.b16 %v2698
      %v3218 = vunpack.c.l.b16 %v2699
      %v3219 = vunpack.c.l.b16 %v2700
      %v3220 = vunpack.c.l.b16 %v2701
      %v3221 = vunpack.c.l.b16 %v2702
      %v3222 = vunpack.c.l.b16 %v2703
      %v3223 = vunpack.c.l.b16 %v2704
      %v3224 = vunpack.c.l.b16 %v2705
      %v3225 = vunpack.c.l.b16 %v2706
      %v3226 = vunpack.c.l.b16 %v2707
      %v3227 = vunpack.c.l.b16 %v2708
      %v3228 = vunpack.c.l.b16 %v2709
      %v3229 = vunpack.c.l.b16 %v2710
      %v3230 = vunpack.c.l.b16 %v2711
      %v3231 = vunpack.c.l.b16 %v2712
      %v3232 = vunpack.c.l.b16 %v2713
      %v3233 = vunpack.c.l.b16 %v2714
      %v3234 = vunpack.c.l.b16 %v2715
      %v3235 = vunpack.c.l.b16 %v2716
      %v3236 = vunpack.c.l.b16 %v2717
      %v3237 = vunpack.c.l.b16 %v2718
      %v3238 = vunpack.c.l.b16 %v2719
      %v3239 = vunpack.c.l.b16 %v2720
      %v3240 = vunpack.c.l.b16 %v2721
      %v3241 = vunpack.c.l.b16 %v2722
      %v3242 = vunpack.c.l.b16 %v2723
      %v3243 = vunpack.c.l.b16 %v2724
      %v3244 = vunpack.c.l.b16 %v2725
      %v3245 = vunpack.c.l.b16 %v2726
      %v3246 = vunpack.c.l.b16 %v2727
      %v3247 = vunpack.c.l.b16 %v2728
      %v3248 = vunpack.c.l.b16 %v2729
      %v3249 = vunpack.c.l.b16 %v2730
      %v3250 = vunpack.c.l.b16 %v2731
      %v3251 = vunpack.c.l.b16 %v2732
      %v3252 = vunpack.c.l.b16 %v2733
      %v3253 = vunpack.c.l.b16 %v2734
      %v3254 = vunpack.c.l.b16 %v2735
      %v3255 = vunpack.c.l.b16 %v2736
      %v3256 = vunpack.c.l.b16 %v2737
      %v3257 = vunpack.c.l.b16 %v2738
      %v3258 = vunpack.c.l.b16 %v2739
      %v3259 = vunpack.c.l.b16 %v2740
      %v3260 = vunpack.c.l.b16 %v2741
      %v3261 = vunpack.c.l.b16 %v2742
      %v3262 = vunpack.c.l.b16 %v2743
      %v3263 = vunpack.c.l.b16 %v2744
      %v3264 = vunpack.c.l.b16 %v2745
      %v3265 = vunpack.c.l.b16 %v2746
      %v3266 = vunpack.c.l.b16 %v2747
      %v3267 = vunpack.c.l.b16 %v2748
      %v3268 = vunpack.c.l.b16 %v2749
      %v3269 = vunpack.c.l.b16 %v2750
      %v3270 = vunpack.c.l.b16 %v2751
      %v3271 = vunpack.c.l.b16 %v2752
      %v3272 = vunpack.c.l.b16 %v2753
      %v3273 = vunpack.c.l.b16 %v2754
      %v3274 = vunpack.c.l.b16 %v2755
      %v3275 = vunpack.c.l.b16 %v2756
      %v3276 = vunpack.c.l.b16 %v2757
      %v3277 = vunpack.c.l.b16 %v2758
      %v3278 = vunpack.c.l.b16 %v2759
      %v3279 = vunpack.c.l.b16 %v2760
      %v3280 = vunpack.c.l.b16 %v2761
      %v3281 = vunpack.c.l.b16 %v2762
      %v3282 = vunpack.c.l.b16 %v2763
      %v3283 = vunpack.c.l.b16 %v2764
      %v3284 = vunpack.c.l.b16 %v2765
      %v3285 = vunpack.c.l.b16 %v2766
      %v3286 = vunpack.c.l.b16 %v2767
      %v3287 = vunpack.c.l.b16 %v2768
      %v3288 = vunpack.c.l.b16 %v2769
      %v3289 = vunpack.c.l.b16 %v2770
      %v3290 = vunpack.c.l.b16 %v2771
      %v3291 = vunpack.c.l.b16 %v2772
      %v3292 = vunpack.c.l.b16 %v2773
      %v3293 = vunpack.c.l.b16 %v2774
      %v3294 = vunpack.c.l.b16 %v2775
      %v3295 = vunpack.c.l.b16 %v2776
      %v3296 = vunpack.c.l.b16 %v2777
      %v3297 = vunpack.c.l.b16 %v2778
      %v3298 = vunpack.c.l.b16 %v2779
      %v3299 = vunpack.c.l.b16 %v2780
      %v3300 = vunpack.c.l.b16 %v2781
      %v3301 = vunpack.c.l.b16 %v2782
      %v3302 = vunpack.c.l.b16 %v2783
      %v3303 = vunpack.c.l.b16 %v2784
      %v3304 = vunpack.c.l.b16 %v2785
      %v3305 = vunpack.c.l.b16 %v2786
      %v3306 = vunpack.c.l.b16 %v2787
      %v3307 = vunpack.c.l.b16 %v2788
      %v3308 = vunpack.c.l.b16 %v2789
      %v3309 = vunpack.c.l.b16 %v2790
      %v3310 = vunpack.c.l.b16 %v2791
      %v3311 = vunpack.c.l.b16 %v2792
      %v3312 = vunpack.c.l.b16 %v2793
      %v3313 = vunpack.c.l.b16 %v2794
      %v3314 = vunpack.c.l.b16 %v2795
      %v3315 = vunpack.c.l.b16 %v2796
      %v3316 = vunpack.c.l.b16 %v2797
      %v3317 = vunpack.c.l.b16 %v2798
      %v3318 = vunpack.c.l.b16 %v2799
      %v3319 = vunpack.c.l.b16 %v2800
      %v3320 = vunpack.c.l.b16 %v2801
      %v3321 = vunpack.c.l.b16 %v2802
      %v3322 = vunpack.c.l.b16 %v2803
      %v3323 = vunpack.c.l.b16 %v2804
      %v3324 = vunpack.c.l.b16 %v2805
      %v3325 = vunpack.c.l.b16 %v2806
      %v3326 = vunpack.c.l.b16 %v2807
      %v3327 = vunpack.c.l.b16 %v2808
      %v3328 = vunpack.c.l.b16 %v2809
      %v3329 = vunpack.c.l.b16 %v2810
      %v3330 = vunpack.c.l.b16 %v2811
      %v3331 = vunpack.c.l.b16 %v2812
      %v3332 = vunpack.c.l.b16 %v2813
      %v3333 = vunpack.c.l.b16 %v2814
      %v3334 = vunpack.c.l.b16 %v2815
      %v3335 = vunpack.c.l.b16 %v2816
      %v3336 = vunpack.c.l.b16 %v2817
      %v3337 = vunpack.c.l.b16 %v2818
      %v3338 = vunpack.c.l.b16 %v2819
      %v3339 = vunpack.c.l.b16 %v2820
      %v3340 = vunpack.c.l.b16 %v2821
      %v3341 = vunpack.c.l.b16 %v2822
      %v3342 = vunpack.c.l.b16 %v2823
      %v3343 = vunpack.c.l.b16 %v2824
      %v3344 = vunpack.c.l.b16 %v2825
      %v3345 = vunpack.c.l.b16 %v2826
      %v3346 = vunpack.c.l.b16 %v2827
      %v3347 = vunpack.c.l.b16 %v2828
      %v3348 = vunpack.c.l.b16 %v2829
      %v3349 = vunpack.c.l.b16 %v2830
      %v3350 = vunpack.c.l.b16 %v2831
      %v3351 = vunpack.c.l.b16 %v2832
      %v3352 = vunpack.c.l.b16 %v2833
      %v3353 = vunpack.c.l.b16 %v2834
      %v3354 = vunpack.c.l.b16 %v2835
      %v3355 = vunpack.c.l.b16 %v2836
      %v3356 = vunpack.c.l.b16 %v2837
      %v3357 = vunpack.c.l.b16 %v2838
      %v3358 = vunpack.c.l.b16 %v2839
      %v3359 = vunpack.c.l.b16 %v2840
      %v3360 = vunpack.c.l.b16 %v2841
      %v3361 = vunpack.c.l.b16 %v2842
      %v3362 = vunpack.c.l.b16 %v2843
      %v3363 = vunpack.c.l.b16 %v2844
      %v3364 = vunpack.c.l.b16 %v2845
      %v3365 = vunpack.c.l.b16 %v2846
      %v3366 = vunpack.c.l.b16 %v2847
      %v3367 = vunpack.c.l.b16 %v2848
      %v3368 = vunpack.c.l.b16 %v2849
      %v3369 = vunpack.c.l.b16 %v2850
      %v3370 = vunpack.c.l.b16 %v2851
      %v3371 = vunpack.c.l.b16 %v2852
      %v3372 = vunpack.c.l.b16 %v2853
      %v3373 = vunpack.c.l.b16 %v2854
      %v3374 = vunpack.c.l.b16 %v2855
      %v3375 = vunpack.c.l.b16 %v2856
      %v3376 = vunpack.c.l.b16 %v2857
      %v3377 = vunpack.c.l.b16 %v2858
      %v3378 = vunpack.c.l.b16 %v2859
      %v3379 = vunpack.c.l.b16 %v2860
      %v3380 = vunpack.c.l.b16 %v2861
      %v3381 = vunpack.c.l.b16 %v2862
      %v3382 = vunpack.c.l.b16 %v2863
      %v3383 = vunpack.c.l.b16 %v2864
      %v3384 = vunpack.c.l.b16 %v2865
      %v3385 = vunpack.c.l.b16 %v2866
      %v3386 = vunpack.c.l.b16 %v2867
      %v3387 = vunpack.c.l.b16 %v2868
      %v3388 = vunpack.c.l.b16 %v2869
      %v3389 = vunpack.c.l.b16 %v2870
      %v3390 = vunpack.c.l.b16 %v2871
      %v3391 = vunpack.c.l.b16 %v2872
      %v3392 = vunpack.c.l.b16 %v2873
      %v3393 = vunpack.c.l.b16 %v2874
      %v3394 = vunpack.c.l.b16 %v2875
      %v3395 = vunpack.c.l.b16 %v2876
      %v3396 = vunpack.c.l.b16 %v2877
      %v3397 = vunpack.c.l.b16 %v2878
      %v3398 = vunpack.c.l.b16 %v2879
      %v3399 = vunpack.c.l.b16 %v2880
      %v3400 = vunpack.c.l.b16 %v2881
      %v3401 = vunpack.c.l.b16 %v2882
      %v3402 = vunpack.c.l.b16 %v2883
      %v3403 = vunpack.c.l.b16 %v2884
      %v3404 = vunpack.c.l.b16 %v2885
      %v3405 = vunpack.c.l.b16 %v2886
      %v3406 = vunpack.c.l.b16 %v2887
      %v3407 = vunpack.c.l.b16 %v2888
      %v3408 = vunpack.c.l.b16 %v2889
      %v3409 = vunpack.c.l.b16 %v2890
      %v3410 = vunpack.c.l.b16 %v2891
      %v3411 = vunpack.c.l.b16 %v2892
      %v3412 = vunpack.c.l.b16 %v2893
      %v3413 = vunpack.c.l.b16 %v2894
      %v3414 = vunpack.c.l.b16 %v2895
      %v3415 = vunpack.c.l.b16 %v2896
      %v3416 = vunpack.c.l.b16 %v2897
      %v3417 = vunpack.c.l.b16 %v2898
      %v3418 = vunpack.c.l.b16 %v2899
      %v3419 = vunpack.c.l.b16 %v2900
      %v3420 = vunpack.c.l.b16 %v2901
      %v3421 = vunpack.c.l.b16 %v2902
      %v3422 = vunpack.c.l.b16 %v2903
      %v3423 = vunpack.c.l.b16 %v2904
      %v3424 = vunpack.c.l.b16 %v2905
      %v3425 = vunpack.c.l.b16 %v2906
      %v3426 = vunpack.c.l.b16 %v2907
      %v3427 = vunpack.c.l.b16 %v2908
      %v3428 = vunpack.c.l.b16 %v2909
      %v3429 = vunpack.c.l.b16 %v2910
      %v3430 = vunpack.c.l.b16 %v2911
      %v3431 = vunpack.c.l.b16 %v2912
      %v3432 = vunpack.c.l.b16 %v2913
      %v3433 = vunpack.c.l.b16 %v2914
      %v3434 = vunpack.c.l.b16 %v2915
      %v3435 = vunpack.c.l.b16 %v2916
      %v3436 = vunpack.c.l.b16 %v2917
      %v3437 = vunpack.c.l.b16 %v2918
      %v3438 = vunpack.c.l.b16 %v2919
      %v3439 = vunpack.c.l.b16 %v2920
      %v3440 = vunpack.c.l.b16 %v2921
      %v3441 = vunpack.c.l.b16 %v2922
      %v3442 = vunpack.c.l.b16 %v2923
      %v3443 = vunpack.c.l.b16 %v2924
      %v3444 = vunpack.c.l.b16 %v2925
      %v3445 = vunpack.c.l.b16 %v2926
      %v3446 = vunpack.c.l.b16 %v2927
      %v3447 = vunpack.c.l.b16 %v2928
      %v3448 = vunpack.c.l.b16 %v2929
      %v3449 = vunpack.c.l.b16 %v2930
      %v3450 = vunpack.c.l.b16 %v2931
      %v3451 = vunpack.c.l.b16 %v2932
      %v3452 = vunpack.c.l.b16 %v2933
      %v3453 = vunpack.c.l.b16 %v2934
      %v3454 = vunpack.c.l.b16 %v2935
      %v3455 = vunpack.c.l.b16 %v2936
      %v3456 = vunpack.c.l.b16 %v2937
      %v3457 = vunpack.c.l.b16 %v2938
      %v3458 = vunpack.c.l.b16 %v2939
      %v3459 = vunpack.c.l.b16 %v2940
      %v3460 = vunpack.c.l.b16 %v2941
      %v3461 = vunpack.c.l.b16 %v2942
      %v3462 = vunpack.c.l.b16 %v2943
      %v3463 = vunpack.c.l.b16 %v2944
      %v3464 = vunpack.c.l.b16 %v2945
      %v3465 = vpack.c.b16 %v3210, %v3209
      %v3466 = vpack.c.b16 %v3212, %v3211
      %v3467 = vpack.c.b16 %v3214, %v3213
      %v3468 = vpack.c.b16 %v3216, %v3215
      %v3469 = vpack.c.b16 %v3218, %v3217
      %v3470 = vpack.c.b16 %v3220, %v3219
      %v3471 = vpack.c.b16 %v3222, %v3221
      %v3472 = vpack.c.b16 %v3224, %v3223
      %v3473 = vpack.c.b16 %v3226, %v3225
      %v3474 = vpack.c.b16 %v3228, %v3227
      %v3475 = vpack.c.b16 %v3230, %v3229
      %v3476 = vpack.c.b16 %v3232, %v3231
      %v3477 = vpack.c.b16 %v3234, %v3233
      %v3478 = vpack.c.b16 %v3236, %v3235
      %v3479 = vpack.c.b16 %v3238, %v3237
      %v3480 = vpack.c.b16 %v3240, %v3239
      %v3481 = vpack.c.b16 %v3242, %v3241
      %v3482 = vpack.c.b16 %v3244, %v3243
      %v3483 = vpack.c.b16 %v3246, %v3245
      %v3484 = vpack.c.b16 %v3248, %v3247
      %v3485 = vpack.c.b16 %v3250, %v3249
      %v3486 = vpack.c.b16 %v3252, %v3251
      %v3487 = vpack.c.b16 %v3254, %v3253
      %v3488 = vpack.c.b16 %v3256, %v3255
      %v3489 = vpack.c.b16 %v3258, %v3257
      %v3490 = vpack.c.b16 %v3260, %v3259
      %v3491 = vpack.c.b16 %v3262, %v3261
      %v3492 = vpack.c.b16 %v3264, %v3263
      %v3493 = vpack.c.b16 %v3266, %v3265
      %v3494 = vpack.c.b16 %v3268, %v3267
      %v3495 = vpack.c.b16 %v3270, %v3269
      %v3496 = vpack.c.b16 %v3272, %v3271
      %v3497 = vpack.c.b16 %v3274, %v3273
      %v3498 = vpack.c.b16 %v3276, %v3275
      %v3499 = vpack.c.b16 %v3278, %v3277
      %v3500 = vpack.c.b16 %v3280, %v3279
      %v3501 = vpack.c.b16 %v3282, %v3281
      %v3502 = vpack.c.b16 %v3284, %v3283
      %v3503 = vpack.c.b16 %v3286, %v3285
      %v3504 = vpack.c.b16 %v3288, %v3287
      %v3505 = vpack.c.b16 %v3290, %v3289
      %v3506 = vpack.c.b16 %v3292, %v3291
      %v3507 = vpack.c.b16 %v3294, %v3293
      %v3508 = vpack.c.b16 %v3296, %v3295
      %v3509 = vpack.c.b16 %v3298, %v3297
      %v3510 = vpack.c.b16 %v3300, %v3299
      %v3511 = vpack.c.b16 %v3302, %v3301
      %v3512 = vpack.c.b16 %v3304, %v3303
      %v3513 = vpack.c.b16 %v3306, %v3305
      %v3514 = vpack.c.b16 %v3308, %v3307
      %v3515 = vpack.c.b16 %v3310, %v3309
      %v3516 = vpack.c.b16 %v3312, %v3311
      %v3517 = vpack.c.b16 %v3314, %v3313
      %v3518 = vpack.c.b16 %v3316, %v3315
      %v3519 = vpack.c.b16 %v3318, %v3317
      %v3520 = vpack.c.b16 %v3320, %v3319
      %v3521 = vpack.c.b16 %v3322, %v3321
      %v3522 = vpack.c.b16 %v3324, %v3323
      %v3523 = vpack.c.b16 %v3326, %v3325
      %v3524 = vpack.c.b16 %v3328, %v3327
      %v3525 = vpack.c.b16 %v3330, %v3329
      %v3526 = vpack.c.b16 %v3332, %v3331
      %v3527 = vpack.c.b16 %v3334, %v3333
      %v3528 = vpack.c.b16 %v3336, %v3335
      %v3529 = vpack.c.b16 %v3338, %v3337
      %v3530 = vpack.c.b16 %v3340, %v3339
      %v3531 = vpack.c.b16 %v3342, %v3341
      %v3532 = vpack.c.b16 %v3344, %v3343
      %v3533 = vpack.c.b16 %v3346, %v3345
      %v3534 = vpack.c.b16 %v3348, %v3347
      %v3535 = vpack.c.b16 %v3350, %v3349
      %v3536 = vpack.c.b16 %v3352, %v3351
      %v3537 = vpack.c.b16 %v3354, %v3353
      %v3538 = vpack.c.b16 %v3356, %v3355
      %v3539 = vpack.c.b16 %v3358, %v3357
      %v3540 = vpack.c.b16 %v3360, %v3359
      %v3541 = vpack.c.b16 %v3362, %v3361
      %v3542 = vpack.c.b16 %v3364, %v3363
      %v3543 = vpack.c.b16 %v3366, %v3365
      %v3544 = vpack.c.b16 %v3368, %v3367
      %v3545 = vpack.c.b16 %v3370, %v3369
      %v3546 = vpack.c.b16 %v3372, %v3371
      %v3547 = vpack.c.b16 %v3374, %v3373
      %v3548 = vpack.c.b16 %v3376, %v3375
      %v3549 = vpack.c.b16 %v3378, %v3377
      %v3550 = vpack.c.b16 %v3380, %v3379
      %v3551 = vpack.c.b16 %v3382, %v3381
      %v3552 = vpack.c.b16 %v3384, %v3383
      %v3553 = vpack.c.b16 %v3386, %v3385
      %v3554 = vpack.c.b16 %v3388, %v3387
      %v3555 = vpack.c.b16 %v3390, %v3389
      %v3556 = vpack.c.b16 %v3392, %v3391
      %v3557 = vpack.c.b16 %v3394, %v3393
      %v3558 = vpack.c.b16 %v3396, %v3395
      %v3559 = vpack.c.b16 %v3398, %v3397
      %v3560 = vpack.c.b16 %v3400, %v3399
      %v3561 = vpack.c.b16 %v3402, %v3401
      %v3562 = vpack.c.b16 %v3404, %v3403
      %v3563 = vpack.c.b16 %v3406, %v3405
      %v3564 = vpack.c.b16 %v3408, %v3407
      %v3565 = vpack.c.b16 %v3410, %v3409
      %v3566 = vpack.c.b16 %v3412, %v3411
      %v3567 = vpack.c.b16 %v3414, %v3413
      %v3568 = vpack.c.b16 %v3416, %v3415
      %v3569 = vpack.c.b16 %v3418, %v3417
      %v3570 = vpack.c.b16 %v3420, %v3419
      %v3571 = vpack.c.b16 %v3422, %v3421
      %v3572 = vpack.c.b16 %v3424, %v3423
      %v3573 = vpack.c.b16 %v3426, %v3425
      %v3574 = vpack.c.b16 %v3428, %v3427
      %v3575 = vpack.c.b16 %v3430, %v3429
      %v3576 = vpack.c.b16 %v3432, %v3431
      %v3577 = vpack.c.b16 %v3434, %v3433
      %v3578 = vpack.c.b16 %v3436, %v3435
      %v3579 = vpack.c.b16 %v3438, %v3437
      %v3580 = vpack.c.b16 %v3440, %v3439
      %v3581 = vpack.c.b16 %v3442, %v3441
      %v3582 = vpack.c.b16 %v3444, %v3443
      %v3583 = vpack.c.b16 %v3446, %v3445
      %v3584 = vpack.c.b16 %v3448, %v3447
      %v3585 = vpack.c.b16 %v3450, %v3449
      %v3586 = vpack.c.b16 %v3452, %v3451
      %v3587 = vpack.c.b16 %v3454, %v3453
      %v3588 = vpack.c.b16 %v3456, %v3455
      %v3589 = vpack.c.b16 %v3458, %v3457
      %v3590 = vpack.c.b16 %v3460, %v3459
      %v3591 = vpack.c.b16 %v3462, %v3461
      %v3592 = vpack.c.b16 %v3464, %v3463
      %3721 = vmatprep.subr.bf16.mxu0 0
      %3722 = vmatpush1.bf16.msra.mxu0 %v3465
      %3723 = vmatprep.subr.bf16.mxu0 0
      %3724 = vmatpush1.bf16.msra.mxu0 %v3466
      %3725 = vmatprep.subr.bf16.mxu0 0
      %3726 = vmatpush1.bf16.msra.mxu0 %v3467
      %3727 = vmatprep.subr.bf16.mxu0 0
      %3728 = vmatpush1.bf16.msra.mxu0 %v3468
      %3729 = vmatprep.subr.bf16.mxu0 0
      %3730 = vmatpush1.bf16.msra.mxu0 %v3469
      %3731 = vmatprep.subr.bf16.mxu0 0
      %3732 = vmatpush1.bf16.msra.mxu0 %v3470
      %3733 = vmatprep.subr.bf16.mxu0 0
      %3734 = vmatpush1.bf16.msra.mxu0 %v3471
      %3735 = vmatprep.subr.bf16.mxu0 0
      %3736 = vmatpush1.bf16.msra.mxu0 %v3472
      %3737 = vmatprep.subr.bf16.mxu0 0
      %3738 = vmatpush1.bf16.msra.mxu0 %v3473
      %3739 = vmatprep.subr.bf16.mxu0 0
      %3740 = vmatpush1.bf16.msra.mxu0 %v3474
      %3741 = vmatprep.subr.bf16.mxu0 0
      %3742 = vmatpush1.bf16.msra.mxu0 %v3475
      %3743 = vmatprep.subr.bf16.mxu0 0
      %3744 = vmatpush1.bf16.msra.mxu0 %v3476
      %3745 = vmatprep.subr.bf16.mxu0 0
      %3746 = vmatpush1.bf16.msra.mxu0 %v3477
      %3747 = vmatprep.subr.bf16.mxu0 0
      %3748 = vmatpush1.bf16.msra.mxu0 %v3478
      %3749 = vmatprep.subr.bf16.mxu0 0
      %3750 = vmatpush1.bf16.msra.mxu0 %v3479
      %3751 = vmatprep.subr.bf16.mxu0 0
      %3752 = vmatpush1.bf16.msra.mxu0 %v3480
      %3753 = vmatprep.mubr.bf16.mxu0 %v2675
      %3754 = vmatmul.mubr.bf16.gmra.mrb[0].mxu0 %v2674
      %v3755 = vpop.f32.mrb[0].mxu0
      %v3756 = vadd.f32 %v2951, %v3755
      %v3757 = vpop.f32.mrb[0].mxu0
      %v3758 = vpop.f32.mrb[0].mxu0
      %v3759 = vadd.f32 %v2951, %v3758
      %v3760 = vpop.f32.mrb[0].mxu0
      %3761 = vdwg.mxu0
      %3762 = vmatprep.subr.bf16.mxu0 0
      %3763 = vmatpush1.bf16.msra.mxu0 %v3481
      %3764 = vmatprep.subr.bf16.mxu0 0
      %3765 = vmatpush1.bf16.msra.mxu0 %v3482
      %3766 = vmatprep.subr.bf16.mxu0 0
      %3767 = vmatpush1.bf16.msra.mxu0 %v3483
      %3768 = vmatprep.subr.bf16.mxu0 0
      %3769 = vmatpush1.bf16.msra.mxu0 %v3484
      %3770 = vmatprep.subr.bf16.mxu0 0
      %3771 = vmatpush1.bf16.msra.mxu0 %v3485
      %3772 = vmatprep.subr.bf16.mxu0 0
      %3773 = vmatpush1.bf16.msra.mxu0 %v3486
      %3774 = vmatprep.subr.bf16.mxu0 0
      %3775 = vmatpush1.bf16.msra.mxu0 %v3487
      %3776 = vmatprep.subr.bf16.mxu0 0
      %3777 = vmatpush1.bf16.msra.mxu0 %v3488
      %3778 = vmatprep.subr.bf16.mxu0 0
      %3779 = vmatpush1.bf16.msra.mxu0 %v3489
      %3780 = vmatprep.subr.bf16.mxu0 0
      %3781 = vmatpush1.bf16.msra.mxu0 %v3490
      %3782 = vmatprep.subr.bf16.mxu0 0
      %3783 = vmatpush1.bf16.msra.mxu0 %v3491
      %3784 = vmatprep.subr.bf16.mxu0 0
      %3785 = vmatpush1.bf16.msra.mxu0 %v3492
      %3786 = vmatprep.subr.bf16.mxu0 0
      %3787 = vmatpush1.bf16.msra.mxu0 %v3493
      %3788 = vmatprep.subr.bf16.mxu0 0
      %3789 = vmatpush1.bf16.msra.mxu0 %v3494
      %3790 = vmatprep.subr.bf16.mxu0 0
      %3791 = vmatpush1.bf16.msra.mxu0 %v3495
      %3792 = vmatprep.subr.bf16.mxu0 0
      %3793 = vmatpush1.bf16.msra.mxu0 %v3496
      %3794 = vmatprep.mubr.bf16.mxu0 %v2677
      %3795 = vmatmul.mubr.bf16.gmra.mrb[0].mxu0 %v2676
      %v3796 = vpop.f32.mrb[0].mxu0
      %v3797 = vadd.f32 %v3756, %v3796
      %v3798 = vpop.f32.mrb[0].mxu0
      %v3799 = vpop.f32.mrb[0].mxu0
      %v3800 = vadd.f32 %v3759, %v3799
      %v3801 = vpop.f32.mrb[0].mxu0
      %3802 = vdwg.mxu0
      %3803 = vmatprep.subr.bf16.mxu0 0
      %3804 = vmatpush1.bf16.msra.mxu0 %v3497
      %3805 = vmatprep.subr.bf16.mxu0 0
      %3806 = vmatpush1.bf16.msra.mxu0 %v3498
      %3807 = vmatprep.subr.bf16.mxu0 0
      %3808 = vmatpush1.bf16.msra.mxu0 %v3499
      %3809 = vmatprep.subr.bf16.mxu0 0
      %3810 = vmatpush1.bf16.msra.mxu0 %v3500
      %3811 = vmatprep.subr.bf16.mxu0 0
      %3812 = vmatpush1.bf16.msra.mxu0 %v3501
      %3813 = vmatprep.subr.bf16.mxu0 0
      %3814 = vmatpush1.bf16.msra.mxu0 %v3502
      %3815 = vmatprep.subr.bf16.mxu0 0
      %3816 = vmatpush1.bf16.msra.mxu0 %v3503
      %3817 = vmatprep.subr.bf16.mxu0 0
      %3818 = vmatpush1.bf16.msra.mxu0 %v3504
      %3819 = vmatprep.subr.bf16.mxu0 0
      %3820 = vmatpush1.bf16.msra.mxu0 %v3505
      %3821 = vmatprep.subr.bf16.mxu0 0
      %3822 = vmatpush1.bf16.msra.mxu0 %v3506
      %3823 = vmatprep.subr.bf16.mxu0 0
      %3824 = vmatpush1.bf16.msra.mxu0 %v3507
      %3825 = vmatprep.subr.bf16.mxu0 0
      %3826 = vmatpush1.bf16.msra.mxu0 %v3508
      %3827 = vmatprep.subr.bf16.mxu0 0
      %3828 = vmatpush1.bf16.msra.mxu0 %v3509
      %3829 = vmatprep.subr.bf16.mxu0 0
      %3830 = vmatpush1.bf16.msra.mxu0 %v3510
      %3831 = vmatprep.subr.bf16.mxu0 0
      %3832 = vmatpush1.bf16.msra.mxu0 %v3511
      %3833 = vmatprep.subr.bf16.mxu0 0
      %3834 = vmatpush1.bf16.msra.mxu0 %v3512
      %3835 = vmatprep.mubr.bf16.mxu0 %v2679
      %3836 = vmatmul.mubr.bf16.gmra.mrb[0].mxu0 %v2678
      %v3837 = vpop.f32.mrb[0].mxu0
      %v3838 = vadd.f32 %v3797, %v3837
      %v3839 = vpop.f32.mrb[0].mxu0
      %v3840 = vpop.f32.mrb[0].mxu0
      %v3841 = vadd.f32 %v3800, %v3840
      %v3842 = vpop.f32.mrb[0].mxu0
      %3843 = vdwg.mxu0
      %3844 = vmatprep.subr.bf16.mxu0 0
      %3845 = vmatpush1.bf16.msra.mxu0 %v3513
      %3846 = vmatprep.subr.bf16.mxu0 0
      %3847 = vmatpush1.bf16.msra.mxu0 %v3514
      %3848 = vmatprep.subr.bf16.mxu0 0
      %3849 = vmatpush1.bf16.msra.mxu0 %v3515
      %3850 = vmatprep.subr.bf16.mxu0 0
      %3851 = vmatpush1.bf16.msra.mxu0 %v3516
      %3852 = vmatprep.subr.bf16.mxu0 0
      %3853 = vmatpush1.bf16.msra.mxu0 %v3517
      %3854 = vmatprep.subr.bf16.mxu0 0
      %3855 = vmatpush1.bf16.msra.mxu0 %v3518
      %3856 = vmatprep.subr.bf16.mxu0 0
      %3857 = vmatpush1.bf16.msra.mxu0 %v3519
      %3858 = vmatprep.subr.bf16.mxu0 0
      %3859 = vmatpush1.bf16.msra.mxu0 %v3520
      %3860 = vmatprep.subr.bf16.mxu0 0
      %3861 = vmatpush1.bf16.msra.mxu0 %v3521
      %3862 = vmatprep.subr.bf16.mxu0 0
      %3863 = vmatpush1.bf16.msra.mxu0 %v3522
      %3864 = vmatprep.subr.bf16.mxu0 0
      %3865 = vmatpush1.bf16.msra.mxu0 %v3523
      %3866 = vmatprep.subr.bf16.mxu0 0
      %3867 = vmatpush1.bf16.msra.mxu0 %v3524
      %3868 = vmatprep.subr.bf16.mxu0 0
      %3869 = vmatpush1.bf16.msra.mxu0 %v3525
      %3870 = vmatprep.subr.bf16.mxu0 0
      %3871 = vmatpush1.bf16.msra.mxu0 %v3526
      %3872 = vmatprep.subr.bf16.mxu0 0
      %3873 = vmatpush1.bf16.msra.mxu0 %v3527
      %3874 = vmatprep.subr.bf16.mxu0 0
      %3875 = vmatpush1.bf16.msra.mxu0 %v3528
      %3876 = vmatprep.mubr.bf16.mxu0 %v2681
      %3877 = vmatmul.mubr.bf16.gmra.mrb[0].mxu0 %v2680
      %v3878 = vpop.f32.mrb[0].mxu0
      %v3879 = vadd.f32 %v3838, %v3878
      %v3880 = vpop.f32.mrb[0].mxu0
      %v3881 = vpop.f32.mrb[0].mxu0
      %v3882 = vadd.f32 %v3841, %v3881
      %v3883 = vpop.f32.mrb[0].mxu0
      %3884 = vdwg.mxu0
      %3885 = vmatprep.subr.bf16.mxu0 0
      %3886 = vmatpush1.bf16.msra.mxu0 %v3529
      %3887 = vmatprep.subr.bf16.mxu0 0
      %3888 = vmatpush1.bf16.msra.mxu0 %v3530
      %3889 = vmatprep.subr.bf16.mxu0 0
      %3890 = vmatpush1.bf16.msra.mxu0 %v3531
      %3891 = vmatprep.subr.bf16.mxu0 0
      %3892 = vmatpush1.bf16.msra.mxu0 %v3532
      %3893 = vmatprep.subr.bf16.mxu0 0
      %3894 = vmatpush1.bf16.msra.mxu0 %v3533
      %3895 = vmatprep.subr.bf16.mxu0 0
      %3896 = vmatpush1.bf16.msra.mxu0 %v3534
      %3897 = vmatprep.subr.bf16.mxu0 0
      %3898 = vmatpush1.bf16.msra.mxu0 %v3535
      %3899 = vmatprep.subr.bf16.mxu0 0
      %3900 = vmatpush1.bf16.msra.mxu0 %v3536
      %3901 = vmatprep.subr.bf16.mxu0 0
      %3902 = vmatpush1.bf16.msra.mxu0 %v3537
      %3903 = vmatprep.subr.bf16.mxu0 0
      %3904 = vmatpush1.bf16.msra.mxu0 %v3538
      %3905 = vmatprep.subr.bf16.mxu0 0
      %3906 = vmatpush1.bf16.msra.mxu0 %v3539
      %3907 = vmatprep.subr.bf16.mxu0 0
      %3908 = vmatpush1.bf16.msra.mxu0 %v3540
      %3909 = vmatprep.subr.bf16.mxu0 0
      %3910 = vmatpush1.bf16.msra.mxu0 %v3541
      %3911 = vmatprep.subr.bf16.mxu0 0
      %3912 = vmatpush1.bf16.msra.mxu0 %v3542
      %3913 = vmatprep.subr.bf16.mxu0 0
      %3914 = vmatpush1.bf16.msra.mxu0 %v3543
      %3915 = vmatprep.subr.bf16.mxu0 0
      %3916 = vmatpush1.bf16.msra.mxu0 %v3544
      %3917 = vmatprep.mubr.bf16.mxu0 %v2683
      %3918 = vmatmul.mubr.bf16.gmra.mrb[0].mxu0 %v2682
      %v3919 = vpop.f32.mrb[0].mxu0
      %v3920 = vadd.f32 %v3879, %v3919
      %v3921 = vpop.f32.mrb[0].mxu0
      %v3922 = vpop.f32.mrb[0].mxu0
      %v3923 = vadd.f32 %v3882, %v3922
      %v3924 = vpop.f32.mrb[0].mxu0
      %3925 = vdwg.mxu0
      %3926 = vmatprep.subr.bf16.mxu0 0
      %3927 = vmatpush1.bf16.msra.mxu0 %v3545
      %3928 = vmatprep.subr.bf16.mxu0 0
      %3929 = vmatpush1.bf16.msra.mxu0 %v3546
      %3930 = vmatprep.subr.bf16.mxu0 0
      %3931 = vmatpush1.bf16.msra.mxu0 %v3547
      %3932 = vmatprep.subr.bf16.mxu0 0
      %3933 = vmatpush1.bf16.msra.mxu0 %v3548
      %3934 = vmatprep.subr.bf16.mxu0 0
      %3935 = vmatpush1.bf16.msra.mxu0 %v3549
      %3936 = vmatprep.subr.bf16.mxu0 0
      %3937 = vmatpush1.bf16.msra.mxu0 %v3550
      %3938 = vmatprep.subr.bf16.mxu0 0
      %3939 = vmatpush1.bf16.msra.mxu0 %v3551
      %3940 = vmatprep.subr.bf16.mxu0 0
      %3941 = vmatpush1.bf16.msra.mxu0 %v3552
      %3942 = vmatprep.subr.bf16.mxu0 0
      %3943 = vmatpush1.bf16.msra.mxu0 %v3553
      %3944 = vmatprep.subr.bf16.mxu0 0
      %3945 = vmatpush1.bf16.msra.mxu0 %v3554
      %3946 = vmatprep.subr.bf16.mxu0 0
      %3947 = vmatpush1.bf16.msra.mxu0 %v3555
      %3948 = vmatprep.subr.bf16.mxu0 0
      %3949 = vmatpush1.bf16.msra.mxu0 %v3556
      %3950 = vmatprep.subr.bf16.mxu0 0
      %3951 = vmatpush1.bf16.msra.mxu0 %v3557
      %3952 = vmatprep.subr.bf16.mxu0 0
      %3953 = vmatpush1.bf16.msra.mxu0 %v3558
      %3954 = vmatprep.subr.bf16.mxu0 0
      %3955 = vmatpush1.bf16.msra.mxu0 %v3559
      %3956 = vmatprep.subr.bf16.mxu0 0
      %3957 = vmatpush1.bf16.msra.mxu0 %v3560
      %3958 = vmatprep.mubr.bf16.mxu0 %v2685
      %3959 = vmatmul.mubr.bf16.gmra.mrb[0].mxu0 %v2684
      %v3960 = vpop.f32.mrb[0].mxu0
      %v3961 = vadd.f32 %v3920, %v3960
      %v3962 = vpop.f32.mrb[0].mxu0
      %v3963 = vpop.f32.mrb[0].mxu0
      %v3964 = vadd.f32 %v3923, %v3963
      %v3965 = vpop.f32.mrb[0].mxu0
      %3966 = vdwg.mxu0
      %3967 = vmatprep.subr.bf16.mxu0 0
      %3968 = vmatpush1.bf16.msra.mxu0 %v3561
      %3969 = vmatprep.subr.bf16.mxu0 0
      %3970 = vmatpush1.bf16.msra.mxu0 %v3562
      %3971 = vmatprep.subr.bf16.mxu0 0
      %3972 = vmatpush1.bf16.msra.mxu0 %v3563
      %3973 = vmatprep.subr.bf16.mxu0 0
      %3974 = vmatpush1.bf16.msra.mxu0 %v3564
      %3975 = vmatprep.subr.bf16.mxu0 0
      %3976 = vmatpush1.bf16.msra.mxu0 %v3565
      %3977 = vmatprep.subr.bf16.mxu0 0
      %3978 = vmatpush1.bf16.msra.mxu0 %v3566
      %3979 = vmatprep.subr.bf16.mxu0 0
      %3980 = vmatpush1.bf16.msra.mxu0 %v3567
      %3981 = vmatprep.subr.bf16.mxu0 0
      %3982 = vmatpush1.bf16.msra.mxu0 %v3568
      %3983 = vmatprep.subr.bf16.mxu0 0
      %3984 = vmatpush1.bf16.msra.mxu0 %v3569
      %3985 = vmatprep.subr.bf16.mxu0 0
      %3986 = vmatpush1.bf16.msra.mxu0 %v3570
      %3987 = vmatprep.subr.bf16.mxu0 0
      %3988 = vmatpush1.bf16.msra.mxu0 %v3571
      %3989 = vmatprep.subr.bf16.mxu0 0
      %3990 = vmatpush1.bf16.msra.mxu0 %v3572
      %3991 = vmatprep.subr.bf16.mxu0 0
      %3992 = vmatpush1.bf16.msra.mxu0 %v3573
      %3993 = vmatprep.subr.bf16.mxu0 0
      %3994 = vmatpush1.bf16.msra.mxu0 %v3574
      %3995 = vmatprep.subr.bf16.mxu0 0
      %3996 = vmatpush1.bf16.msra.mxu0 %v3575
      %3997 = vmatprep.subr.bf16.mxu0 0
      %3998 = vmatpush1.bf16.msra.mxu0 %v3576
      %3999 = vmatprep.mubr.bf16.mxu0 %v2687
      %4000 = vmatmul.mubr.bf16.gmra.mrb[0].mxu0 %v2686
      %v4001 = vpop.f32.mrb[0].mxu0
      %v4002 = vadd.f32 %v3961, %v4001
      %v4003 = vpop.f32.mrb[0].mxu0
      %v4004 = vpop.f32.mrb[0].mxu0
      %v4005 = vadd.f32 %v3964, %v4004
      %v4006 = vpop.f32.mrb[0].mxu0
      %4007 = vdwg.mxu0
      %4008 = vmatprep.subr.bf16.mxu0 0
      %4009 = vmatpush1.bf16.msra.mxu0 %v3577
      %4010 = vmatprep.subr.bf16.mxu0 0
      %4011 = vmatpush1.bf16.msra.mxu0 %v3578
      %4012 = vmatprep.subr.bf16.mxu0 0
      %4013 = vmatpush1.bf16.msra.mxu0 %v3579
      %4014 = vmatprep.subr.bf16.mxu0 0
      %4015 = vmatpush1.bf16.msra.mxu0 %v3580
      %4016 = vmatprep.subr.bf16.mxu0 0
      %4017 = vmatpush1.bf16.msra.mxu0 %v3581
      %4018 = vmatprep.subr.bf16.mxu0 0
      %4019 = vmatpush1.bf16.msra.mxu0 %v3582
      %4020 = vmatprep.subr.bf16.mxu0 0
      %4021 = vmatpush1.bf16.msra.mxu0 %v3583
      %4022 = vmatprep.subr.bf16.mxu0 0
      %4023 = vmatpush1.bf16.msra.mxu0 %v3584
      %4024 = vmatprep.subr.bf16.mxu0 0
      %4025 = vmatpush1.bf16.msra.mxu0 %v3585
      %4026 = vmatprep.subr.bf16.mxu0 0
      %4027 = vmatpush1.bf16.msra.mxu0 %v3586
      %4028 = vmatprep.subr.bf16.mxu0 0
      %4029 = vmatpush1.bf16.msra.mxu0 %v3587
      %4030 = vmatprep.subr.bf16.mxu0 0
      %4031 = vmatpush1.bf16.msra.mxu0 %v3588
      %4032 = vmatprep.subr.bf16.mxu0 0
      %4033 = vmatpush1.bf16.msra.mxu0 %v3589
      %4034 = vmatprep.subr.bf16.mxu0 0
      %4035 = vmatpush1.bf16.msra.mxu0 %v3590
      %4036 = vmatprep.subr.bf16.mxu0 0
      %4037 = vmatpush1.bf16.msra.mxu0 %v3591
      %4038 = vmatprep.subr.bf16.mxu0 0
      %4039 = vmatpush1.bf16.msra.mxu0 %v3592
      %4040 = vmatprep.mubr.bf16.mxu0 %v2689
      %4041 = vmatmul.mubr.bf16.gmra.mrb[0].mxu0 %v2688
      %v4042 = vpop.f32.mrb[0].mxu0
      %v4043 = vadd.f32 %v4002, %v4042
      %v4044 = vpop.f32.mrb[0].mxu0
      %v4045 = vpop.f32.mrb[0].mxu0
      %v4046 = vadd.f32 %v4005, %v4045
      %v4047 = vpop.f32.mrb[0].mxu0
      %4048 = vdwg.mxu0
      %v4049 = vadd.f32 %v2016, %v4043
      %v4050 = vadd.f32 %v2017, %v4046
      %v4051 = vld [vmem:[%s847] sm:$0x1]
      %v4052 = vld [vmem:[%s854] sm:$0x1]
      %v4053 = vsel %vm916, %v4049, 0.0
      %4054 = vadd.xlane.f32.xlu0 %v4053
      %v4055 = vpop.xlane.xlu0 %4054
      %v4056 = vsel %vm916, %v4050, 0.0
      %4057 = vadd.xlane.f32.xlu0 %v4056
      %v4058 = vpop.xlane.xlu0 %4057
      %v4059 = vmul.f32 %v4055, %v1981
      %v4060 = vmul.f32 %v4058, %v1981
      %v4061 = vsub.f32 %v4049, %v4059
      %v4062 = vsub.f32 %v4050, %v4060
      %v4063 = vmul.f32 %v4061, %v4061
      %v4064 = vmul.f32 %v4062, %v4062
      %v4065 = vsel %vm916, %v4063, 0.0
      %4066 = vadd.xlane.f32.xlu0 %v4065
      %v4067 = vpop.xlane.xlu0 %4066
      %v4068 = vsel %vm916, %v4064, 0.0
      %4069 = vadd.xlane.f32.xlu0 %v4068
      %v4070 = vpop.xlane.xlu0 %4069
      %v4071 = vmul.f32 %v4067, %v1981
      %v4072 = vmul.f32 %v4070, %v1981
      %v4073 = vadd.f32 %v4071, 1e-05
      %v4074 = vadd.f32 %v4072, 1e-05
      %v4075 = vrsqrt.pop %v4073
      %v4076 = vrsqrt.pop %v4074
      %v4077 = vmul.f32 %v4061, %v4075
      %v4078 = vmul.f32 %v4062, %v4076
      %v4080 = vlaneseq
      %v4081 = vshrl.u32 %v4080, 7
      %v4082 = vsub.s32 0, %v4081
      %v4083 = vrot.slane %v4051, %v4082
      %v4085 = vmul.f32 %v4077, %v4083
      %v4086 = vmul.f32 %v4078, %v4083
      %v4088 = vlaneseq
      %v4089 = vshrl.u32 %v4088, 7
      %v4090 = vsub.s32 0, %v4089
      %v4091 = vrot.slane %v4052, %v4090
      %v4093 = vadd.f32 %v4085, %v4091
      %v4094 = vadd.f32 %v4086, %v4091
      %4095 = vst.msk [vmem:[#allocation2] sm:$0xff] %vm916, %v4093
      %4096 = vst.msk [vmem:[#allocation2 + $0x8] sm:$0xff] %vm916, %v4094
      %p4097 = scmp.eq.s32.totalorder %s30, 1
      // Predicated region
      $region81: #{hama_block_forward.4} parent=75 // pred_check
        %p4098 = pneg %p4097
      $region82: #{hama_block_forward.4} parent=75 // pred_check_branch
        %4100 = sbr.rel (%p4098) target = $region84
      $region83: #{hama_block_forward.4} parent=75 // pred_region
        %v4101 = vpack.c.bf16 %v4093, %v4093
        %v4102 = vpack.c.bf16 %v4094, %v4094
        %vm4103 = vcmask 257024
        %4104 = vst.msk [vmem:[%s859] sm:$0xf] %vm4103, %v4101
        %4105 = vst.msk [vmem:[%s859 + $0x4] sm:$0xf] %vm4103, %v4102
      $region84: #{hama_block_forward.4} parent=75 // pred_fallthru
        _
      %p4106 = scmp.lt.s32.totalorder %s29, 3
      %s4107 = scalar_select %p4106, %s29, 3
      %s4108 = smul.addr %s4107, 2
      %s4109 = smul.addr %s4108, 4
      %s4110 = scalar_lea.vmem %s14, %s4109
      // Predicated region
      $region85: #{hama_block_forward.4} parent=75 // pred_check
        %p4111 = pneg %p443
      $region86: #{hama_block_forward.4} parent=75 // pred_check_branch
        %4113 = sbr.rel (%p4111) target = $region88
      $region87: #{hama_block_forward.4} parent=75 // pred_region
        _
      $region88: #{hama_block_forward.4} parent=75 // pred_fallthru
        _
    $region76: #{hama_block_forward.4} parent=5 // pred_fallthru
      _
    %p4114 = scmp.le.s32.totalorder 2, %s20
    // Predicated region
    $region89: #{hama_block_forward.4} parent=5 // pred_check
      %p4115 = pneg %p4114
    $region90: #{hama_block_forward.4} parent=5 // pred_check_branch
      %4117 = sbr.rel (%p4115) target = $region92
    $region91: #{hama_block_forward.4} parent=5 // pred_region
      %s4118 = ssub.s32 %s20, 2
      // Predicated region
      $region93: #{hama_block_forward.4} parent=91 // pred_check
        %p4119 = pneg %p449
      $region94: #{hama_block_forward.4} parent=91 // pred_check_branch
        %4121 = sbr.rel (%p4119) target = $region96
      $region95: #{hama_block_forward.4} parent=91 // pred_region
        %p4122 = scmp.lt.s32.totalorder %s31, 3
        %s4123 = scalar_select %p4122, %s31, 3
        %s4124 = smul.addr %s4123, 2
        %s4125 = smul.addr %s4124, 4
        %s4126 = scalar_lea.vmem %s14, %s4125
      $region96: #{hama_block_forward.4} parent=91 // pred_fallthru
        _
    $region92: #{hama_block_forward.4} parent=5 // pred_fallthru
      _
  $region6: #{hama_block_forward.4} parent=0 // loop_footer
    %s24 = sadd.s32 1, %s20
  $region7: #{hama_block_forward.4} parent=0 // loop_footer_branch
    %19 = sbr.rel target = $region3
  $region8: #{hama_block_forward.4} parent=0 // loop_exit
    _

// kernel: hama_block_forward.3
$region0: #{hama_block_forward.3}
  #allocation0 [shape = 'u32[]', space=smem, size = 0x4, offset = 0x4, fixed_abs, tag = 'smem constant byte address 0x4 - core index']
  #allocation1 [shape = 'u32[144,128]{1,0:T(1,128)}', space=vmem, size = 0x12000, scoped, tag = 'internal scratch']
  #allocation2 [shape = 'f32[2,8,32]{2,1,0:T(8,128)}', space=vmem, size = 0x2000, scoped, tag = 'scratch operand']
  %s0 = inlined_call_operand.vmem [shape: f32[1,32], index: 0, kind: input, shape index: {}]
  %s1 = inlined_call_operand.vmem [shape: f32[1,32], index: 1, kind: input, shape index: {}]
  %s2 = inlined_call_operand.vmem [shape: f32[4,8,32], index: 2, kind: input, shape index: {}]
  %s3 = inlined_call_operand.vmem [shape: f32[4,8,32], index: 3, kind: input, shape index: {}]
  %s4 = inlined_call_operand.vmem [shape: f32[4,2,8,32], index: 4, kind: input, shape index: {}]
  %s5 = inlined_call_operand.vmem [shape: bf16[4,2,32,96], index: 5, kind: input, shape index: {}]
  %s6 = inlined_call_operand.vmem [shape: f32[4,2,1,96], index: 6, kind: input, shape index: {}]
  %s7 = inlined_call_operand.vmem [shape: bf16[4,2,32,32], index: 7, kind: input, shape index: {}]
  %s8 = inlined_call_operand.vmem [shape: f32[4,2,1,32], index: 8, kind: input, shape index: {}]
  %s9 = inlined_call_operand.vmem [shape: bf16[4,2,32,2048], index: 9, kind: input, shape index: {}]
  %s10 = inlined_call_operand.vmem [shape: f32[4,2,1,2048], index: 10, kind: input, shape index: {}]
  %s11 = inlined_call_operand.vmem [shape: bf16[4,2,2048,32], index: 11, kind: input, shape index: {}]
  %s12 = inlined_call_operand.vmem [shape: f32[4,2,1,32], index: 12, kind: input, shape index: {}]
  %s13 = inlined_call_operand.vmem [shape: f32[4,2,1,32], index: 13, kind: input, shape index: {}]
  %s14 = inlined_call_operand.vmem [shape: f32[4,2,1,32], index: 14, kind: input, shape index: {}]
  %s15 = inlined_call_operand.vmem [shape: f32[4,2,1,32], index: 15, kind: input, shape index: {}]
  %s16 = inlined_call_operand.vmem [shape: f32[4,2,1,32], index: 16, kind: input, shape index: {}]
  %s17 = inlined_call_operand.vmem [shape: bf16[4,2,8,32], index: 17, kind: output, shape index: {0}]
  %s18 = inlined_call_operand.vmem [shape: f32[4,2,8], index: 18, kind: output, shape index: {1}]
  %19 = xla_tuple %s17, %s18
  %s20 = sld [smem:[#allocation0]]
  $region117: #{hama_block_forward.3} parent=0
    _
  %s22 = ssub.s32 1, %s20
  %s23 = scalar_select 0, %s22, %s20
  loop: start=0, step=1, limit=10
  $region2: #{hama_block_forward.3} parent=0 // loop_pre_header
    _
  $region3: #{hama_block_forward.3} parent=0 // loop_header
    %s25 = sphi 0, %s29
    %p26 = scmp.ge.s32.totalorder %s25, 10
    %s32 = sphi 0, %s44
    %s33 = sphi 0, %s40
    %s34 = sphi 0, %s32
    %s35 = sphi 0, %s33
    %s36 = sphi 0, %s34
    %s37 = sphi 0, %s35
    %s45 = sphi 0, %s45
    %s47 = sphi 0, %s45
    %s48 = sphi 0, %s47
    %s62 = sphi 0, %s48
    %s66 = sphi 0, %s66
    %s68 = sphi 0, %s66
    %s69 = sphi 0, %s68
    %s83 = sphi 0, %s69
    %s89 = sphi 0, %s91
    %s92 = sphi 0, %s89
    %s93 = sphi 0, %s92
    %s109 = sphi 0, %s93
    %s115 = sphi 0, %s117
    %s118 = sphi 0, %s115
    %s119 = sphi 0, %s118
    %s135 = sphi 0, %s119
    %s141 = sphi 0, %s143
    %s144 = sphi 0, %s141
    %s145 = sphi 0, %s144
    %s161 = sphi 0, %s145
    %s169 = sphi 0, %s171
    %s172 = sphi 0, %s169
    %s173 = sphi 0, %s172
    %s189 = sphi 0, %s173
    %s197 = sphi 0, %s199
    %s200 = sphi 0, %s197
    %s201 = sphi 0, %s200
    %s217 = sphi 0, %s201
    %s225 = sphi 0, %s227
    %s228 = sphi 0, %s225
    %s229 = sphi 0, %s228
    %s245 = sphi 0, %s229
    %s253 = sphi 0, %s255
    %s256 = sphi 0, %s253
    %s257 = sphi 0, %s256
    %s273 = sphi 0, %s257
    %s281 = sphi 0, %s283
    %s284 = sphi 0, %s281
    %s285 = sphi 0, %s284
    %s301 = sphi 0, %s285
    %s309 = sphi 0, %s311
    %s312 = sphi 0, %s309
    %s313 = sphi 0, %s312
    %s329 = sphi 0, %s313
    %s337 = sphi 0, %s339
    %s340 = sphi 0, %s337
    %s341 = sphi 0, %s340
    %s357 = sphi 0, %s341
    %s365 = sphi 0, %s367
    %s368 = sphi 0, %s365
    %s369 = sphi 0, %s368
    %s385 = sphi 0, %s369
    %s393 = sphi 0, %s395
    %s396 = sphi 0, %s393
    %s397 = sphi 0, %s396
    %s413 = sphi 0, %s397
    %s421 = sphi 0, %s423
    %s424 = sphi 0, %s421
    %s425 = sphi 0, %s424
    %s441 = sphi 0, %s425
    %s449 = sphi 0, %s451
    %s452 = sphi 0, %s449
    %s453 = sphi 0, %s452
    %s469 = sphi 0, %s453
    %s477 = sphi 0, %s479
    %s480 = sphi 0, %s477
    %s481 = sphi 0, %s480
    %s497 = sphi 0, %s481
    %s503 = sphi 0, %s505
    %s506 = sphi 0, %s503
    %s507 = sphi 0, %s506
    %s523 = sphi 0, %s507
    %s529 = sphi 0, %s531
    %s532 = sphi 0, %s529
    %s533 = sphi 0, %s532
    %s549 = sphi 0, %s533
  $region4: #{hama_block_forward.3} parent=0 // loop_header_branch
    %28 = sbr.rel (%p26) target = $region8
  $region5: #{hama_block_forward.3} parent=0 // loop_body
    %s30 = ssub.s32 %s25, 1
    %s31 = ssub.s32 %s25, 2
    %s38 = sadd.s32 1, %s33
    %p39 = scmp.ge.s32.totalorder %s38, 2
    %s40 = scalar_select %p39, 0, %s38
    %s41 = sadd.s32 1, %s32
    %s42 = scalar_select %p39, %s41, %s32
    %p43 = scmp.ge.s32.totalorder %s42, 4
    %s44 = scalar_select %p43, 0, %s42
    %s46 = sadd.s32 %s45, 1
    %p49 = scmp.eq.s32.totalorder %s25, 7
    %p50 = scmp.ne.s32.totalorder %s45, %s47
    %p51 = scmp.eq.s32.totalorder %s25, 0
    %p52 = por %p50, %p51
    %p53 = scmp.ne.s32.totalorder %s45, %s47
    %p54 = scmp.eq.s32.totalorder %s30, 7
    %p55 = por %p53, %p54
    %p56 = scmp.ne.s32.totalorder %s47, %s48
    %p57 = scmp.eq.s32.totalorder %s30, 0
    %p58 = por %p56, %p57
    %p59 = scmp.ne.s32.totalorder %s47, %s48
    %p60 = scmp.eq.s32.totalorder %s31, 7
    %p61 = por %p59, %p60
    %p63 = scmp.ne.s32.totalorder %s48, %s62
    %p64 = scmp.eq.s32.totalorder %s31, 0
    %p65 = por %p63, %p64
    %s67 = sadd.s32 %s66, 1
    %p70 = scmp.eq.s32.totalorder %s25, 7
    %p71 = scmp.ne.s32.totalorder %s66, %s68
    %p72 = scmp.eq.s32.totalorder %s25, 0
    %p73 = por %p71, %p72
    %p74 = scmp.ne.s32.totalorder %s66, %s68
    %p75 = scmp.eq.s32.totalorder %s30, 7
    %p76 = por %p74, %p75
    %p77 = scmp.ne.s32.totalorder %s68, %s69
    %p78 = scmp.eq.s32.totalorder %s30, 0
    %p79 = por %p77, %p78
    %p80 = scmp.ne.s32.totalorder %s68, %s69
    %p81 = scmp.eq.s32.totalorder %s31, 7
    %p82 = por %p80, %p81
    %p84 = scmp.ne.s32.totalorder %s69, %s83
    %p85 = scmp.eq.s32.totalorder %s31, 0
    %p86 = por %p84, %p85
    %s87 = ssub.s32 %s32, %s44
    %p88 = scmp.eq.s32.totalorder %s87, 0
    %s90 = sadd.s32 %s89, 1
    %s91 = scalar_select %p88, %s89, %s90
    %p94 = pneg %p88
    %p95 = scmp.eq.s32.totalorder %s25, 7
    %p96 = por %p94, %p95
    %p97 = scmp.ne.s32.totalorder %s89, %s92
    %p98 = scmp.eq.s32.totalorder %s25, 0
    %p99 = por %p97, %p98
    %p100 = scmp.ne.s32.totalorder %s89, %s92
    %p101 = scmp.eq.s32.totalorder %s30, 7
    %p102 = por %p100, %p101
    %p103 = scmp.ne.s32.totalorder %s92, %s93
    %p104 = scmp.eq.s32.totalorder %s30, 0
    %p105 = por %p103, %p104
    %p106 = scmp.ne.s32.totalorder %s92, %s93
    %p107 = scmp.eq.s32.totalorder %s31, 7
    %p108 = por %p106, %p107
    %p110 = scmp.ne.s32.totalorder %s93, %s109
    %p111 = scmp.eq.s32.totalorder %s31, 0
    %p112 = por %p110, %p111
    %s113 = ssub.s32 %s32, %s44
    %p114 = scmp.eq.s32.totalorder %s113, 0
    %s116 = sadd.s32 %s115, 1
    %s117 = scalar_select %p114, %s115, %s116
    %p120 = pneg %p114
    %p121 = scmp.eq.s32.totalorder %s25, 7
    %p122 = por %p120, %p121
    %p123 = scmp.ne.s32.totalorder %s115, %s118
    %p124 = scmp.eq.s32.totalorder %s25, 0
    %p125 = por %p123, %p124
    %p126 = scmp.ne.s32.totalorder %s115, %s118
    %p127 = scmp.eq.s32.totalorder %s30, 7
    %p128 = por %p126, %p127
    %p129 = scmp.ne.s32.totalorder %s118, %s119
    %p130 = scmp.eq.s32.totalorder %s30, 0
    %p131 = por %p129, %p130
    %p132 = scmp.ne.s32.totalorder %s118, %s119
    %p133 = scmp.eq.s32.totalorder %s31, 7
    %p134 = por %p132, %p133
    %p136 = scmp.ne.s32.totalorder %s119, %s135
    %p137 = scmp.eq.s32.totalorder %s31, 0
    %p138 = por %p136, %p137
    %s139 = ssub.s32 %s32, %s44
    %p140 = scmp.eq.s32.totalorder %s139, 0
    %s142 = sadd.s32 %s141, 1
    %s143 = scalar_select %p140, %s141, %s142
    %p146 = pneg %p140
    %p147 = scmp.eq.s32.totalorder %s25, 7
    %p148 = por %p146, %p147
    %p149 = scmp.ne.s32.totalorder %s141, %s144
    %p150 = scmp.eq.s32.totalorder %s25, 0
    %p151 = por %p149, %p150
    %p152 = scmp.ne.s32.totalorder %s141, %s144
    %p153 = scmp.eq.s32.totalorder %s30, 7
    %p154 = por %p152, %p153
    %p155 = scmp.ne.s32.totalorder %s144, %s145
    %p156 = scmp.eq.s32.totalorder %s30, 0
    %p157 = por %p155, %p156
    %p158 = scmp.ne.s32.totalorder %s144, %s145
    %p159 = scmp.eq.s32.totalorder %s31, 7
    %p160 = por %p158, %p159
    %p162 = scmp.ne.s32.totalorder %s145, %s161
    %p163 = scmp.eq.s32.totalorder %s31, 0
    %p164 = por %p162, %p163
    %s165 = ssub.s32 %s32, %s44
    %s166 = ssub.s32 %s33, %s40
    %s167 = sor.u32 %s165, %s166
    %p168 = scmp.eq.s32.totalorder %s167, 0
    %s170 = sadd.s32 %s169, 1
    %s171 = scalar_select %p168, %s169, %s170
    %p174 = pneg %p168
    %p175 = scmp.eq.s32.totalorder %s25, 7
    %p176 = por %p174, %p175
    %p177 = scmp.ne.s32.totalorder %s169, %s172
    %p178 = scmp.eq.s32.totalorder %s25, 0
    %p179 = por %p177, %p178
    %p180 = scmp.ne.s32.totalorder %s169, %s172
    %p181 = scmp.eq.s32.totalorder %s30, 7
    %p182 = por %p180, %p181
    %p183 = scmp.ne.s32.totalorder %s172, %s173
    %p184 = scmp.eq.s32.totalorder %s30, 0
    %p185 = por %p183, %p184
    %p186 = scmp.ne.s32.totalorder %s172, %s173
    %p187 = scmp.eq.s32.totalorder %s31, 7
    %p188 = por %p186, %p187
    %p190 = scmp.ne.s32.totalorder %s173, %s189
    %p191 = scmp.eq.s32.totalorder %s31, 0
    %p192 = por %p190, %p191
    %s193 = ssub.s32 %s32, %s44
    %s194 = ssub.s32 %s33, %s40
    %s195 = sor.u32 %s193, %s194
    %p196 = scmp.eq.s32.totalorder %s195, 0
    %s198 = sadd.s32 %s197, 1
    %s199 = scalar_select %p196, %s197, %s198
    %p202 = pneg %p196
    %p203 = scmp.eq.s32.totalorder %s25, 7
    %p204 = por %p202, %p203
    %p205 = scmp.ne.s32.totalorder %s197, %s200
    %p206 = scmp.eq.s32.totalorder %s25, 0
    %p207 = por %p205, %p206
    %p208 = scmp.ne.s32.totalorder %s197, %s200
    %p209 = scmp.eq.s32.totalorder %s30, 7
    %p210 = por %p208, %p209
    %p211 = scmp.ne.s32.totalorder %s200, %s201
    %p212 = scmp.eq.s32.totalorder %s30, 0
    %p213 = por %p211, %p212
    %p214 = scmp.ne.s32.totalorder %s200, %s201
    %p215 = scmp.eq.s32.totalorder %s31, 7
    %p216 = por %p214, %p215
    %p218 = scmp.ne.s32.totalorder %s201, %s217
    %p219 = scmp.eq.s32.totalorder %s31, 0
    %p220 = por %p218, %p219
    %s221 = ssub.s32 %s32, %s44
    %s222 = ssub.s32 %s33, %s40
    %s223 = sor.u32 %s221, %s222
    %p224 = scmp.eq.s32.totalorder %s223, 0
    %s226 = sadd.s32 %s225, 1
    %s227 = scalar_select %p224, %s225, %s226
    %p230 = pneg %p224
    %p231 = scmp.eq.s32.totalorder %s25, 7
    %p232 = por %p230, %p231
    %p233 = scmp.ne.s32.totalorder %s225, %s228
    %p234 = scmp.eq.s32.totalorder %s25, 0
    %p235 = por %p233, %p234
    %p236 = scmp.ne.s32.totalorder %s225, %s228
    %p237 = scmp.eq.s32.totalorder %s30, 7
    %p238 = por %p236, %p237
    %p239 = scmp.ne.s32.totalorder %s228, %s229
    %p240 = scmp.eq.s32.totalorder %s30, 0
    %p241 = por %p239, %p240
    %p242 = scmp.ne.s32.totalorder %s228, %s229
    %p243 = scmp.eq.s32.totalorder %s31, 7
    %p244 = por %p242, %p243
    %p246 = scmp.ne.s32.totalorder %s229, %s245
    %p247 = scmp.eq.s32.totalorder %s31, 0
    %p248 = por %p246, %p247
    %s249 = ssub.s32 %s32, %s44
    %s250 = ssub.s32 %s33, %s40
    %s251 = sor.u32 %s249, %s250
    %p252 = scmp.eq.s32.totalorder %s251, 0
    %s254 = sadd.s32 %s253, 1
    %s255 = scalar_select %p252, %s253, %s254
    %p258 = pneg %p252
    %p259 = scmp.eq.s32.totalorder %s25, 7
    %p260 = por %p258, %p259
    %p261 = scmp.ne.s32.totalorder %s253, %s256
    %p262 = scmp.eq.s32.totalorder %s25, 0
    %p263 = por %p261, %p262
    %p264 = scmp.ne.s32.totalorder %s253, %s256
    %p265 = scmp.eq.s32.totalorder %s30, 7
    %p266 = por %p264, %p265
    %p267 = scmp.ne.s32.totalorder %s256, %s257
    %p268 = scmp.eq.s32.totalorder %s30, 0
    %p269 = por %p267, %p268
    %p270 = scmp.ne.s32.totalorder %s256, %s257
    %p271 = scmp.eq.s32.totalorder %s31, 7
    %p272 = por %p270, %p271
    %p274 = scmp.ne.s32.totalorder %s257, %s273
    %p275 = scmp.eq.s32.totalorder %s31, 0
    %p276 = por %p274, %p275
    %s277 = ssub.s32 %s32, %s44
    %s278 = ssub.s32 %s33, %s40
    %s279 = sor.u32 %s277, %s278
    %p280 = scmp.eq.s32.totalorder %s279, 0
    %s282 = sadd.s32 %s281, 1
    %s283 = scalar_select %p280, %s281, %s282
    %p286 = pneg %p280
    %p287 = scmp.eq.s32.totalorder %s25, 7
    %p288 = por %p286, %p287
    %p289 = scmp.ne.s32.totalorder %s281, %s284
    %p290 = scmp.eq.s32.totalorder %s25, 0
    %p291 = por %p289, %p290
    %p292 = scmp.ne.s32.totalorder %s281, %s284
    %p293 = scmp.eq.s32.totalorder %s30, 7
    %p294 = por %p292, %p293
    %p295 = scmp.ne.s32.totalorder %s284, %s285
    %p296 = scmp.eq.s32.totalorder %s30, 0
    %p297 = por %p295, %p296
    %p298 = scmp.ne.s32.totalorder %s284, %s285
    %p299 = scmp.eq.s32.totalorder %s31, 7
    %p300 = por %p298, %p299
    %p302 = scmp.ne.s32.totalorder %s285, %s301
    %p303 = scmp.eq.s32.totalorder %s31, 0
    %p304 = por %p302, %p303
    %s305 = ssub.s32 %s32, %s44
    %s306 = ssub.s32 %s33, %s40
    %s307 = sor.u32 %s305, %s306
    %p308 = scmp.eq.s32.totalorder %s307, 0
    %s310 = sadd.s32 %s309, 1
    %s311 = scalar_select %p308, %s309, %s310
    %p314 = pneg %p308
    %p315 = scmp.eq.s32.totalorder %s25, 7
    %p316 = por %p314, %p315
    %p317 = scmp.ne.s32.totalorder %s309, %s312
    %p318 = scmp.eq.s32.totalorder %s25, 0
    %p319 = por %p317, %p318
    %p320 = scmp.ne.s32.totalorder %s309, %s312
    %p321 = scmp.eq.s32.totalorder %s30, 7
    %p322 = por %p320, %p321
    %p323 = scmp.ne.s32.totalorder %s312, %s313
    %p324 = scmp.eq.s32.totalorder %s30, 0
    %p325 = por %p323, %p324
    %p326 = scmp.ne.s32.totalorder %s312, %s313
    %p327 = scmp.eq.s32.totalorder %s31, 7
    %p328 = por %p326, %p327
    %p330 = scmp.ne.s32.totalorder %s313, %s329
    %p331 = scmp.eq.s32.totalorder %s31, 0
    %p332 = por %p330, %p331
    %s333 = ssub.s32 %s32, %s44
    %s334 = ssub.s32 %s33, %s40
    %s335 = sor.u32 %s333, %s334
    %p336 = scmp.eq.s32.totalorder %s335, 0
    %s338 = sadd.s32 %s337, 1
    %s339 = scalar_select %p336, %s337, %s338
    %p342 = pneg %p336
    %p343 = scmp.eq.s32.totalorder %s25, 7
    %p344 = por %p342, %p343
    %p345 = scmp.ne.s32.totalorder %s337, %s340
    %p346 = scmp.eq.s32.totalorder %s25, 0
    %p347 = por %p345, %p346
    %p348 = scmp.ne.s32.totalorder %s337, %s340
    %p349 = scmp.eq.s32.totalorder %s30, 7
    %p350 = por %p348, %p349
    %p351 = scmp.ne.s32.totalorder %s340, %s341
    %p352 = scmp.eq.s32.totalorder %s30, 0
    %p353 = por %p351, %p352
    %p354 = scmp.ne.s32.totalorder %s340, %s341
    %p355 = scmp.eq.s32.totalorder %s31, 7
    %p356 = por %p354, %p355
    %p358 = scmp.ne.s32.totalorder %s341, %s357
    %p359 = scmp.eq.s32.totalorder %s31, 0
    %p360 = por %p358, %p359
    %s361 = ssub.s32 %s32, %s44
    %s362 = ssub.s32 %s33, %s40
    %s363 = sor.u32 %s361, %s362
    %p364 = scmp.eq.s32.totalorder %s363, 0
    %s366 = sadd.s32 %s365, 1
    %s367 = scalar_select %p364, %s365, %s366
    %p370 = pneg %p364
    %p371 = scmp.eq.s32.totalorder %s25, 7
    %p372 = por %p370, %p371
    %p373 = scmp.ne.s32.totalorder %s365, %s368
    %p374 = scmp.eq.s32.totalorder %s25, 0
    %p375 = por %p373, %p374
    %p376 = scmp.ne.s32.totalorder %s365, %s368
    %p377 = scmp.eq.s32.totalorder %s30, 7
    %p378 = por %p376, %p377
    %p379 = scmp.ne.s32.totalorder %s368, %s369
    %p380 = scmp.eq.s32.totalorder %s30, 0
    %p381 = por %p379, %p380
    %p382 = scmp.ne.s32.totalorder %s368, %s369
    %p383 = scmp.eq.s32.totalorder %s31, 7
    %p384 = por %p382, %p383
    %p386 = scmp.ne.s32.totalorder %s369, %s385
    %p387 = scmp.eq.s32.totalorder %s31, 0
    %p388 = por %p386, %p387
    %s389 = ssub.s32 %s32, %s44
    %s390 = ssub.s32 %s33, %s40
    %s391 = sor.u32 %s389, %s390
    %p392 = scmp.eq.s32.totalorder %s391, 0
    %s394 = sadd.s32 %s393, 1
    %s395 = scalar_select %p392, %s393, %s394
    %p398 = pneg %p392
    %p399 = scmp.eq.s32.totalorder %s25, 7
    %p400 = por %p398, %p399
    %p401 = scmp.ne.s32.totalorder %s393, %s396
    %p402 = scmp.eq.s32.totalorder %s25, 0
    %p403 = por %p401, %p402
    %p404 = scmp.ne.s32.totalorder %s393, %s396
    %p405 = scmp.eq.s32.totalorder %s30, 7
    %p406 = por %p404, %p405
    %p407 = scmp.ne.s32.totalorder %s396, %s397
    %p408 = scmp.eq.s32.totalorder %s30, 0
    %p409 = por %p407, %p408
    %p410 = scmp.ne.s32.totalorder %s396, %s397
    %p411 = scmp.eq.s32.totalorder %s31, 7
    %p412 = por %p410, %p411
    %p414 = scmp.ne.s32.totalorder %s397, %s413
    %p415 = scmp.eq.s32.totalorder %s31, 0
    %p416 = por %p414, %p415
    %s417 = ssub.s32 %s32, %s44
    %s418 = ssub.s32 %s33, %s40
    %s419 = sor.u32 %s417, %s418
    %p420 = scmp.eq.s32.totalorder %s419, 0
    %s422 = sadd.s32 %s421, 1
    %s423 = scalar_select %p420, %s421, %s422
    %p426 = pneg %p420
    %p427 = scmp.eq.s32.totalorder %s25, 7
    %p428 = por %p426, %p427
    %p429 = scmp.ne.s32.totalorder %s421, %s424
    %p430 = scmp.eq.s32.totalorder %s25, 0
    %p431 = por %p429, %p430
    %p432 = scmp.ne.s32.totalorder %s421, %s424
    %p433 = scmp.eq.s32.totalorder %s30, 7
    %p434 = por %p432, %p433
    %p435 = scmp.ne.s32.totalorder %s424, %s425
    %p436 = scmp.eq.s32.totalorder %s30, 0
    %p437 = por %p435, %p436
    %p438 = scmp.ne.s32.totalorder %s424, %s425
    %p439 = scmp.eq.s32.totalorder %s31, 7
    %p440 = por %p438, %p439
    %p442 = scmp.ne.s32.totalorder %s425, %s441
    %p443 = scmp.eq.s32.totalorder %s31, 0
    %p444 = por %p442, %p443
    %s445 = ssub.s32 %s32, %s44
    %s446 = ssub.s32 %s33, %s40
    %s447 = sor.u32 %s445, %s446
    %p448 = scmp.eq.s32.totalorder %s447, 0
    %s450 = sadd.s32 %s449, 1
    %s451 = scalar_select %p448, %s449, %s450
    %p454 = pneg %p448
    %p455 = scmp.eq.s32.totalorder %s25, 7
    %p456 = por %p454, %p455
    %p457 = scmp.ne.s32.totalorder %s449, %s452
    %p458 = scmp.eq.s32.totalorder %s25, 0
    %p459 = por %p457, %p458
    %p460 = scmp.ne.s32.totalorder %s449, %s452
    %p461 = scmp.eq.s32.totalorder %s30, 7
    %p462 = por %p460, %p461
    %p463 = scmp.ne.s32.totalorder %s452, %s453
    %p464 = scmp.eq.s32.totalorder %s30, 0
    %p465 = por %p463, %p464
    %p466 = scmp.ne.s32.totalorder %s452, %s453
    %p467 = scmp.eq.s32.totalorder %s31, 7
    %p468 = por %p466, %p467
    %p470 = scmp.ne.s32.totalorder %s453, %s469
    %p471 = scmp.eq.s32.totalorder %s31, 0
    %p472 = por %p470, %p471
    %s473 = ssub.s32 %s32, %s44
    %s474 = ssub.s32 %s33, %s40
    %s475 = sor.u32 %s473, %s474
    %p476 = scmp.eq.s32.totalorder %s475, 0
    %s478 = sadd.s32 %s477, 1
    %s479 = scalar_select %p476, %s477, %s478
    %p482 = pneg %p476
    %p483 = scmp.eq.s32.totalorder %s25, 7
    %p484 = por %p482, %p483
    %p485 = scmp.ne.s32.totalorder %s477, %s480
    %p486 = scmp.eq.s32.totalorder %s25, 0
    %p487 = por %p485, %p486
    %p488 = scmp.ne.s32.totalorder %s477, %s480
    %p489 = scmp.eq.s32.totalorder %s30, 7
    %p490 = por %p488, %p489
    %p491 = scmp.ne.s32.totalorder %s480, %s481
    %p492 = scmp.eq.s32.totalorder %s30, 0
    %p493 = por %p491, %p492
    %p494 = scmp.ne.s32.totalorder %s480, %s481
    %p495 = scmp.eq.s32.totalorder %s31, 7
    %p496 = por %p494, %p495
    %p498 = scmp.ne.s32.totalorder %s481, %s497
    %p499 = scmp.eq.s32.totalorder %s31, 0
    %p500 = por %p498, %p499
    %s501 = ssub.s32 %s32, %s44
    %p502 = scmp.eq.s32.totalorder %s501, 0
    %s504 = sadd.s32 %s503, 1
    %s505 = scalar_select %p502, %s503, %s504
    %p508 = pneg %p502
    %p509 = scmp.eq.s32.totalorder %s25, 7
    %p510 = por %p508, %p509
    %p511 = scmp.ne.s32.totalorder %s503, %s506
    %p512 = scmp.eq.s32.totalorder %s25, 0
    %p513 = por %p511, %p512
    %p514 = scmp.ne.s32.totalorder %s503, %s506
    %p515 = scmp.eq.s32.totalorder %s30, 7
    %p516 = por %p514, %p515
    %p517 = scmp.ne.s32.totalorder %s506, %s507
    %p518 = scmp.eq.s32.totalorder %s30, 0
    %p519 = por %p517, %p518
    %p520 = scmp.ne.s32.totalorder %s506, %s507
    %p521 = scmp.eq.s32.totalorder %s31, 7
    %p522 = por %p520, %p521
    %p524 = scmp.ne.s32.totalorder %s507, %s523
    %p525 = scmp.eq.s32.totalorder %s31, 0
    %p526 = por %p524, %p525
    %s527 = ssub.s32 %s32, %s44
    %p528 = scmp.eq.s32.totalorder %s527, 0
    %s530 = sadd.s32 %s529, 1
    %s531 = scalar_select %p528, %s529, %s530
    %p534 = pneg %p528
    %p535 = scmp.eq.s32.totalorder %s25, 7
    %p536 = por %p534, %p535
    %p537 = scmp.ne.s32.totalorder %s529, %s532
    %p538 = scmp.eq.s32.totalorder %s25, 0
    %p539 = por %p537, %p538
    %p540 = scmp.ne.s32.totalorder %s529, %s532
    %p541 = scmp.eq.s32.totalorder %s30, 7
    %p542 = por %p540, %p541
    %p543 = scmp.ne.s32.totalorder %s532, %s533
    %p544 = scmp.eq.s32.totalorder %s30, 0
    %p545 = por %p543, %p544
    %p546 = scmp.ne.s32.totalorder %s532, %s533
    %p547 = scmp.eq.s32.totalorder %s31, 7
    %p548 = por %p546, %p547
    %p550 = scmp.ne.s32.totalorder %s533, %s549
    %p551 = scmp.eq.s32.totalorder %s31, 0
    %p552 = por %p550, %p551
    %p553 = scmp.le.s32.totalorder 1, %s25
    %p554 = scmp.lt.s32.totalorder %s25, 9
    %p555 = pnand %p553, %p554
    %p556 = pneg %p555
    // Predicated region
    $region9: #{hama_block_forward.3} parent=5 // pred_check
      _
    $region10: #{hama_block_forward.3} parent=5 // pred_check_branch
      %558 = sbr.rel (%p555) target = $region12
    $region11: #{hama_block_forward.3} parent=5 // pred_region
      %s559 = ssub.s32 %s25, 1
      // Predicated region
      $region13: #{hama_block_forward.3} parent=11 // pred_check
        %p560 = pneg %p58
      $region14: #{hama_block_forward.3} parent=11 // pred_check_branch
        %562 = sbr.rel (%p560) target = $region16
      $region15: #{hama_block_forward.3} parent=11 // pred_region
        _
      $region16: #{hama_block_forward.3} parent=11 // pred_fallthru
        _
      // Predicated region
      $region17: #{hama_block_forward.3} parent=11 // pred_check
        %p563 = pneg %p79
      $region18: #{hama_block_forward.3} parent=11 // pred_check_branch
        %565 = sbr.rel (%p563) target = $region20
      $region19: #{hama_block_forward.3} parent=11 // pred_region
        _
      $region20: #{hama_block_forward.3} parent=11 // pred_fallthru
        _
    $region12: #{hama_block_forward.3} parent=5 // pred_fallthru
      _
    %p566 = scmp.lt.s32.totalorder %s25, 8
    // Predicated region
    $region21: #{hama_block_forward.3} parent=5 // pred_check
      %p567 = pneg %p566
    $region22: #{hama_block_forward.3} parent=5 // pred_check_branch
      %569 = sbr.rel (%p567) target = $region24
    $region23: #{hama_block_forward.3} parent=5 // pred_region
      // Predicated region
      $region25: #{hama_block_forward.3} parent=23 // pred_check
        %p570 = pneg %p99
      $region26: #{hama_block_forward.3} parent=23 // pred_check_branch
        %572 = sbr.rel (%p570) target = $region28
      $region27: #{hama_block_forward.3} parent=23 // pred_region
        %p573 = scmp.lt.s32.totalorder %s32, 3
        %s574 = scalar_select %p573, %s32, 3
        %s575 = smul.addr %s574, 8
        %s576 = scalar_lea.vmem %s2, %s575
      $region28: #{hama_block_forward.3} parent=23 // pred_fallthru
        _
      // Predicated region
      $region29: #{hama_block_forward.3} parent=23 // pred_check
        %p577 = pneg %p125
      $region30: #{hama_block_forward.3} parent=23 // pred_check_branch
        %579 = sbr.rel (%p577) target = $region32
      $region31: #{hama_block_forward.3} parent=23 // pred_region
        %p580 = scmp.lt.s32.totalorder %s32, 3
        %s581 = scalar_select %p580, %s32, 3
        %s582 = smul.addr %s581, 8
        %s583 = scalar_lea.vmem %s3, %s582
      $region32: #{hama_block_forward.3} parent=23 // pred_fallthru
        _
      // Predicated region
      $region33: #{hama_block_forward.3} parent=23 // pred_check
        %p584 = pneg %p151
      $region34: #{hama_block_forward.3} parent=23 // pred_check_branch
        %586 = sbr.rel (%p584) target = $region36
      $region35: #{hama_block_forward.3} parent=23 // pred_region
        %p587 = scmp.lt.s32.totalorder %s32, 3
        %s588 = scalar_select %p587, %s32, 3
        %s589 = smul.addr %s588, 2
        %s590 = smul.addr %s589, 8
        %s591 = scalar_lea.vmem %s4, %s590
      $region36: #{hama_block_forward.3} parent=23 // pred_fallthru
        _
      // Predicated region
      $region37: #{hama_block_forward.3} parent=23 // pred_check
        %p592 = pneg %p179
      $region38: #{hama_block_forward.3} parent=23 // pred_check_branch
        %594 = sbr.rel (%p592) target = $region40
      $region39: #{hama_block_forward.3} parent=23 // pred_region
        %p595 = scmp.lt.s32.totalorder %s32, 3
        %s596 = scalar_select %p595, %s32, 3
        %p597 = scmp.lt.s32.totalorder %s33, 1
        %s598 = scalar_select %p597, %s33, 1
        %s599 = smul.addr %s598, 4
        %s600 = smul.addr %s596, 8
        %s601 = sadd.s32 %s599, %s600
        %s602 = smul.addr %s601, 4
        %s603 = scalar_lea.vmem %s5, %s602
      $region40: #{hama_block_forward.3} parent=23 // pred_fallthru
        _
      // Predicated region
      $region41: #{hama_block_forward.3} parent=23 // pred_check
        %p604 = pneg %p207
      $region42: #{hama_block_forward.3} parent=23 // pred_check_branch
        %606 = sbr.rel (%p604) target = $region44
      $region43: #{hama_block_forward.3} parent=23 // pred_region
        %p607 = scmp.lt.s32.totalorder %s32, 3
        %s608 = scalar_select %p607, %s32, 3
        %p609 = scmp.lt.s32.totalorder %s33, 1
        %s610 = scalar_select %p609, %s33, 1
        %s611 = smul.addr %s608, 2
        %s612 = sadd.s32 %s610, %s611
        %s613 = scalar_lea.vmem %s6, %s612
      $region44: #{hama_block_forward.3} parent=23 // pred_fallthru
        _
      // Predicated region
      $region45: #{hama_block_forward.3} parent=23 // pred_check
        %p614 = pneg %p235
      $region46: #{hama_block_forward.3} parent=23 // pred_check_branch
        %616 = sbr.rel (%p614) target = $region48
      $region47: #{hama_block_forward.3} parent=23 // pred_region
        %p617 = scmp.lt.s32.totalorder %s32, 3
        %s618 = scalar_select %p617, %s32, 3
        %p619 = scmp.lt.s32.totalorder %s33, 1
        %s620 = scalar_select %p619, %s33, 1
        %s621 = smul.addr %s620, 4
        %s622 = smul.addr %s618, 8
        %s623 = sadd.s32 %s621, %s622
        %s624 = smul.addr %s623, 4
        %s625 = scalar_lea.vmem %s7, %s624
      $region48: #{hama_block_forward.3} parent=23 // pred_fallthru
        _
      // Predicated region
      $region49: #{hama_block_forward.3} parent=23 // pred_check
        %p626 = pneg %p263
      $region50: #{hama_block_forward.3} parent=23 // pred_check_branch
        %628 = sbr.rel (%p626) target = $region52
      $region51: #{hama_block_forward.3} parent=23 // pred_region
        %p629 = scmp.lt.s32.totalorder %s32, 3
        %s630 = scalar_select %p629, %s32, 3
        %p631 = scmp.lt.s32.totalorder %s33, 1
        %s632 = scalar_select %p631, %s33, 1
        %s633 = smul.addr %s630, 2
        %s634 = sadd.s32 %s632, %s633
        %s635 = scalar_lea.vmem %s8, %s634
      $region52: #{hama_block_forward.3} parent=23 // pred_fallthru
        _
      // Predicated region
      $region53: #{hama_block_forward.3} parent=23 // pred_check
        %p636 = pneg %p291
      $region54: #{hama_block_forward.3} parent=23 // pred_check_branch
        %638 = sbr.rel (%p636) target = $region56
      $region55: #{hama_block_forward.3} parent=23 // pred_region
        %p639 = scmp.lt.s32.totalorder %s32, 3
        %s640 = scalar_select %p639, %s32, 3
        %p641 = scmp.lt.s32.totalorder %s33, 1
        %s642 = scalar_select %p641, %s33, 1
        %s643 = smul.addr %s642, 64
        %s644 = smul.addr %s640, 128
        %s645 = sadd.s32 %s643, %s644
        %s646 = smul.addr %s645, 4
        %s647 = scalar_lea.vmem %s9, %s646
      $region56: #{hama_block_forward.3} parent=23 // pred_fallthru
        _
      // Predicated region
      $region57: #{hama_block_forward.3} parent=23 // pred_check
        %p648 = pneg %p319
      $region58: #{hama_block_forward.3} parent=23 // pred_check_branch
        %650 = sbr.rel (%p648) target = $region60
      $region59: #{hama_block_forward.3} parent=23 // pred_region
        %p651 = scmp.lt.s32.totalorder %s32, 3
        %s652 = scalar_select %p651, %s32, 3
        %p653 = scmp.lt.s32.totalorder %s33, 1
        %s654 = scalar_select %p653, %s33, 1
        %s655 = smul.addr %s654, 16
        %s656 = smul.addr %s652, 32
        %s657 = sadd.s32 %s655, %s656
        %s658 = scalar_lea.vmem %s10, %s657
      $region60: #{hama_block_forward.3} parent=23 // pred_fallthru
        _
      // Predicated region
      $region61: #{hama_block_forward.3} parent=23 // pred_check
        %p659 = pneg %p347
      $region62: #{hama_block_forward.3} parent=23 // pred_check_branch
        %661 = sbr.rel (%p659) target = $region64
      $region63: #{hama_block_forward.3} parent=23 // pred_region
        %p662 = scmp.lt.s32.totalorder %s32, 3
        %s663 = scalar_select %p662, %s32, 3
        %p664 = scmp.lt.s32.totalorder %s33, 1
        %s665 = scalar_select %p664, %s33, 1
        %s666 = smul.addr %s665, 256
        %s667 = smul.addr %s663, 512
        %s668 = sadd.s32 %s666, %s667
        %s669 = smul.addr %s668, 4
        %s670 = scalar_lea.vmem %s11, %s669
      $region64: #{hama_block_forward.3} parent=23 // pred_fallthru
        _
      // Predicated region
      $region65: #{hama_block_forward.3} parent=23 // pred_check
        %p671 = pneg %p375
      $region66: #{hama_block_forward.3} parent=23 // pred_check_branch
        %673 = sbr.rel (%p671) target = $region68
      $region67: #{hama_block_forward.3} parent=23 // pred_region
        %p674 = scmp.lt.s32.totalorder %s32, 3
        %s675 = scalar_select %p674, %s32, 3
        %p676 = scmp.lt.s32.totalorder %s33, 1
        %s677 = scalar_select %p676, %s33, 1
        %s678 = smul.addr %s675, 2
        %s679 = sadd.s32 %s677, %s678
        %s680 = scalar_lea.vmem %s12, %s679
      $region68: #{hama_block_forward.3} parent=23 // pred_fallthru
        _
      // Predicated region
      $region69: #{hama_block_forward.3} parent=23 // pred_check
        %p681 = pneg %p403
      $region70: #{hama_block_forward.3} parent=23 // pred_check_branch
        %683 = sbr.rel (%p681) target = $region72
      $region71: #{hama_block_forward.3} parent=23 // pred_region
        %p684 = scmp.lt.s32.totalorder %s32, 3
        %s685 = scalar_select %p684, %s32, 3
        %p686 = scmp.lt.s32.totalorder %s33, 1
        %s687 = scalar_select %p686, %s33, 1
        %s688 = smul.addr %s685, 2
        %s689 = sadd.s32 %s687, %s688
        %s690 = scalar_lea.vmem %s13, %s689
      $region72: #{hama_block_forward.3} parent=23 // pred_fallthru
        _
      // Predicated region
      $region73: #{hama_block_forward.3} parent=23 // pred_check
        %p691 = pneg %p431
      $region74: #{hama_block_forward.3} parent=23 // pred_check_branch
        %693 = sbr.rel (%p691) target = $region76
      $region75: #{hama_block_forward.3} parent=23 // pred_region
        %p694 = scmp.lt.s32.totalorder %s32, 3
        %s695 = scalar_select %p694, %s32, 3
        %p696 = scmp.lt.s32.totalorder %s33, 1
        %s697 = scalar_select %p696, %s33, 1
        %s698 = smul.addr %s695, 2
        %s699 = sadd.s32 %s697, %s698
        %s700 = scalar_lea.vmem %s14, %s699
      $region76: #{hama_block_forward.3} parent=23 // pred_fallthru
        _
      // Predicated region
      $region77: #{hama_block_forward.3} parent=23 // pred_check
        %p701 = pneg %p459
      $region78: #{hama_block_forward.3} parent=23 // pred_check_branch
        %703 = sbr.rel (%p701) target = $region80
      $region79: #{hama_block_forward.3} parent=23 // pred_region
        %p704 = scmp.lt.s32.totalorder %s32, 3
        %s705 = scalar_select %p704, %s32, 3
        %p706 = scmp.lt.s32.totalorder %s33, 1
        %s707 = scalar_select %p706, %s33, 1
        %s708 = smul.addr %s705, 2
        %s709 = sadd.s32 %s707, %s708
        %s710 = scalar_lea.vmem %s15, %s709
      $region80: #{hama_block_forward.3} parent=23 // pred_fallthru
        _
      // Predicated region
      $region81: #{hama_block_forward.3} parent=23 // pred_check
        %p711 = pneg %p487
      $region82: #{hama_block_forward.3} parent=23 // pred_check_branch
        %713 = sbr.rel (%p711) target = $region84
      $region83: #{hama_block_forward.3} parent=23 // pred_region
        %p714 = scmp.lt.s32.totalorder %s32, 3
        %s715 = scalar_select %p714, %s32, 3
        %p716 = scmp.lt.s32.totalorder %s33, 1
        %s717 = scalar_select %p716, %s33, 1
        %s718 = smul.addr %s715, 2
        %s719 = sadd.s32 %s717, %s718
        %s720 = scalar_lea.vmem %s16, %s719
      $region84: #{hama_block_forward.3} parent=23 // pred_fallthru
        _
    $region24: #{hama_block_forward.3} parent=5 // pred_fallthru
      _
    %p721 = scmp.le.s32.totalorder 1, %s25
    %p722 = scmp.lt.s32.totalorder %s25, 9
    %p723 = pnand %p721, %p722
    %p724 = pneg %p723
    // Predicated region
    $region85: #{hama_block_forward.3} parent=5 // pred_check
      _
    $region86: #{hama_block_forward.3} parent=5 // pred_check_branch
      %726 = sbr.rel (%p723) target = $region88
    $region87: #{hama_block_forward.3} parent=5 // pred_region
      %s727 = ssub.s32 %s25, 1
      %p728 = pneg %p58
      %p729 = pneg %p55
      %p730 = pneg %p79
      %p731 = pneg %p76
      %p732 = scmp.lt.s32.totalorder %s34, 3
      %s733 = scalar_select %p732, %s34, 3
      %s734 = smul.addr %s733, 8
      %s735 = scalar_lea.vmem %s2, %s734
      %p736 = pneg %p105
      %p737 = pneg %p102
      %p738 = scmp.lt.s32.totalorder %s34, 3
      %s739 = scalar_select %p738, %s34, 3
      %s740 = smul.addr %s739, 8
      %s741 = scalar_lea.vmem %s3, %s740
      %p742 = pneg %p131
      %p743 = pneg %p128
      %p744 = scmp.lt.s32.totalorder %s34, 3
      %s745 = scalar_select %p744, %s34, 3
      %s746 = smul.addr %s745, 2
      %s747 = smul.addr %s746, 8
      %s748 = scalar_lea.vmem %s4, %s747
      %p749 = pneg %p157
      %p750 = pneg %p154
      %p751 = scmp.lt.s32.totalorder %s34, 3
      %s752 = scalar_select %p751, %s34, 3
      %p753 = scmp.lt.s32.totalorder %s35, 1
      %s754 = scalar_select %p753, %s35, 1
      %s755 = smul.addr %s754, 4
      %s756 = smul.addr %s752, 8
      %s757 = sadd.s32 %s755, %s756
      %s758 = smul.addr %s757, 4
      %s759 = scalar_lea.vmem %s5, %s758
      %p760 = pneg %p185
      %p761 = pneg %p182
      %p762 = scmp.lt.s32.totalorder %s34, 3
      %s763 = scalar_select %p762, %s34, 3
      %p764 = scmp.lt.s32.totalorder %s35, 1
      %s765 = scalar_select %p764, %s35, 1
      %s766 = smul.addr %s763, 2
      %s767 = sadd.s32 %s765, %s766
      %s768 = scalar_lea.vmem %s6, %s767
      %p769 = pneg %p213
      %p770 = pneg %p210
      %p771 = scmp.lt.s32.totalorder %s34, 3
      %s772 = scalar_select %p771, %s34, 3
      %p773 = scmp.lt.s32.totalorder %s35, 1
      %s774 = scalar_select %p773, %s35, 1
      %s775 = smul.addr %s774, 4
      %s776 = smul.addr %s772, 8
      %s777 = sadd.s32 %s775, %s776
      %s778 = smul.addr %s777, 4
      %s779 = scalar_lea.vmem %s7, %s778
      %p780 = pneg %p241
      %p781 = pneg %p238
      %p782 = scmp.lt.s32.totalorder %s34, 3
      %s783 = scalar_select %p782, %s34, 3
      %p784 = scmp.lt.s32.totalorder %s35, 1
      %s785 = scalar_select %p784, %s35, 1
      %s786 = smul.addr %s783, 2
      %s787 = sadd.s32 %s785, %s786
      %s788 = scalar_lea.vmem %s8, %s787
      %p789 = pneg %p269
      %p790 = pneg %p266
      %p791 = scmp.lt.s32.totalorder %s34, 3
      %s792 = scalar_select %p791, %s34, 3
      %p793 = scmp.lt.s32.totalorder %s35, 1
      %s794 = scalar_select %p793, %s35, 1
      %s795 = smul.addr %s794, 64
      %s796 = smul.addr %s792, 128
      %s797 = sadd.s32 %s795, %s796
      %s798 = smul.addr %s797, 4
      %s799 = scalar_lea.vmem %s9, %s798
      %p800 = pneg %p297
      %p801 = pneg %p294
      %p802 = scmp.lt.s32.totalorder %s34, 3
      %s803 = scalar_select %p802, %s34, 3
      %p804 = scmp.lt.s32.totalorder %s35, 1
      %s805 = scalar_select %p804, %s35, 1
      %s806 = smul.addr %s805, 16
      %s807 = smul.addr %s803, 32
      %s808 = sadd.s32 %s806, %s807
      %s809 = scalar_lea.vmem %s10, %s808
      %p810 = pneg %p325
      %p811 = pneg %p322
      %p812 = scmp.lt.s32.totalorder %s34, 3
      %s813 = scalar_select %p812, %s34, 3
      %p814 = scmp.lt.s32.totalorder %s35, 1
      %s815 = scalar_select %p814, %s35, 1
      %s816 = smul.addr %s815, 256
      %s817 = smul.addr %s813, 512
      %s818 = sadd.s32 %s816, %s817
      %s819 = smul.addr %s818, 4
      %s820 = scalar_lea.vmem %s11, %s819
      %p821 = pneg %p353
      %p822 = pneg %p350
      %p823 = scmp.lt.s32.totalorder %s34, 3
      %s824 = scalar_select %p823, %s34, 3
      %p825 = scmp.lt.s32.totalorder %s35, 1
      %s826 = scalar_select %p825, %s35, 1
      %s827 = smul.addr %s824, 2
      %s828 = sadd.s32 %s826, %s827
      %s829 = scalar_lea.vmem %s12, %s828
      %p830 = pneg %p381
      %p831 = pneg %p378
      %p832 = scmp.lt.s32.totalorder %s34, 3
      %s833 = scalar_select %p832, %s34, 3
      %p834 = scmp.lt.s32.totalorder %s35, 1
      %s835 = scalar_select %p834, %s35, 1
      %s836 = smul.addr %s833, 2
      %s837 = sadd.s32 %s835, %s836
      %s838 = scalar_lea.vmem %s13, %s837
      %p839 = pneg %p409
      %p840 = pneg %p406
      %p841 = scmp.lt.s32.totalorder %s34, 3
      %s842 = scalar_select %p841, %s34, 3
      %p843 = scmp.lt.s32.totalorder %s35, 1
      %s844 = scalar_select %p843, %s35, 1
      %s845 = smul.addr %s842, 2
      %s846 = sadd.s32 %s844, %s845
      %s847 = scalar_lea.vmem %s14, %s846
      %p848 = pneg %p437
      %p849 = pneg %p434
      %p850 = scmp.lt.s32.totalorder %s34, 3
      %s851 = scalar_select %p850, %s34, 3
      %p852 = scmp.lt.s32.totalorder %s35, 1
      %s853 = scalar_select %p852, %s35, 1
      %s854 = smul.addr %s851, 2
      %s855 = sadd.s32 %s853, %s854
      %s856 = scalar_lea.vmem %s15, %s855
      %p857 = pneg %p465
      %p858 = pneg %p462
      %p859 = scmp.lt.s32.totalorder %s34, 3
      %s860 = scalar_select %p859, %s34, 3
      %p861 = scmp.lt.s32.totalorder %s35, 1
      %s862 = scalar_select %p861, %s35, 1
      %s863 = smul.addr %s860, 2
      %s864 = sadd.s32 %s862, %s863
      %s865 = scalar_lea.vmem %s16, %s864
      %p866 = pneg %p493
      %p867 = pneg %p490
      %p868 = pneg %p519
      %p869 = pneg %p516
      %p870 = scmp.lt.s32.totalorder %s34, 3
      %s871 = scalar_select %p870, %s34, 3
      %s872 = smul.addr %s871, 2
      %s873 = smul.addr %s872, 4
      %s874 = scalar_lea.vmem %s17, %s873
      %p875 = pneg %p545
      %p876 = pneg %p542
      %p877 = scmp.lt.s32.totalorder %s34, 3
      %s878 = scalar_select %p877, %s34, 3
      %s879 = smul.addr %s878, 2
      %s880 = scalar_lea.vmem %s18, %s879
      %p881 = scmp.lt.s32.totalorder %s34, 3
      %s882 = scalar_select %p881, %s34, 3
      %s883 = smul.addr %s882, 8
      %s884 = scalar_lea.vmem %s2, %s883
      %p885 = scmp.lt.s32.totalorder %s34, 3
      %s886 = scalar_select %p885, %s34, 3
      %s887 = smul.addr %s886, 8
      %s888 = scalar_lea.vmem %s3, %s887
      %p889 = scmp.lt.s32.totalorder %s34, 3
      %s890 = scalar_select %p889, %s34, 3
      %s891 = smul.addr %s890, 2
      %s892 = smul.addr %s891, 8
      %s893 = scalar_lea.vmem %s4, %s892
      %p894 = scmp.lt.s32.totalorder %s34, 3
      %s895 = scalar_select %p894, %s34, 3
      %p896 = scmp.lt.s32.totalorder %s35, 1
      %s897 = scalar_select %p896, %s35, 1
      %s898 = smul.addr %s897, 4
      %s899 = smul.addr %s895, 8
      %s900 = sadd.s32 %s898, %s899
      %s901 = smul.addr %s900, 4
      %s902 = scalar_lea.vmem %s5, %s901
      %p903 = scmp.lt.s32.totalorder %s34, 3
      %s904 = scalar_select %p903, %s34, 3
      %p905 = scmp.lt.s32.totalorder %s35, 1
      %s906 = scalar_select %p905, %s35, 1
      %s907 = smul.addr %s904, 2
      %s908 = sadd.s32 %s906, %s907
      %s909 = scalar_lea.vmem %s6, %s908
      %p910 = scmp.lt.s32.totalorder %s34, 3
      %s911 = scalar_select %p910, %s34, 3
      %p912 = scmp.lt.s32.totalorder %s35, 1
      %s913 = scalar_select %p912, %s35, 1
      %s914 = smul.addr %s913, 4
      %s915 = smul.addr %s911, 8
      %s916 = sadd.s32 %s914, %s915
      %s917 = smul.addr %s916, 4
      %s918 = scalar_lea.vmem %s7, %s917
      %p919 = scmp.lt.s32.totalorder %s34, 3
      %s920 = scalar_select %p919, %s34, 3
      %p921 = scmp.lt.s32.totalorder %s35, 1
      %s922 = scalar_select %p921, %s35, 1
      %s923 = smul.addr %s920, 2
      %s924 = sadd.s32 %s922, %s923
      %s925 = scalar_lea.vmem %s8, %s924
      %p926 = scmp.lt.s32.totalorder %s34, 3
      %s927 = scalar_select %p926, %s34, 3
      %p928 = scmp.lt.s32.totalorder %s35, 1
      %s929 = scalar_select %p928, %s35, 1
      %s930 = smul.addr %s929, 64
      %s931 = smul.addr %s927, 128
      %s932 = sadd.s32 %s930, %s931
      %s933 = smul.addr %s932, 4
      %s934 = scalar_lea.vmem %s9, %s933
      %p935 = scmp.lt.s32.totalorder %s34, 3
      %s936 = scalar_select %p935, %s34, 3
      %p937 = scmp.lt.s32.totalorder %s35, 1
      %s938 = scalar_select %p937, %s35, 1
      %s939 = smul.addr %s938, 16
      %s940 = smul.addr %s936, 32
      %s941 = sadd.s32 %s939, %s940
      %s942 = scalar_lea.vmem %s10, %s941
      %p943 = scmp.lt.s32.totalorder %s34, 3
      %s944 = scalar_select %p943, %s34, 3
      %p945 = scmp.lt.s32.totalorder %s35, 1
      %s946 = scalar_select %p945, %s35, 1
      %s947 = smul.addr %s946, 256
      %s948 = smul.addr %s944, 512
      %s949 = sadd.s32 %s947, %s948
      %s950 = smul.addr %s949, 4
      %s951 = scalar_lea.vmem %s11, %s950
      %p952 = scmp.lt.s32.totalorder %s34, 3
      %s953 = scalar_select %p952, %s34, 3
      %p954 = scmp.lt.s32.totalorder %s35, 1
      %s955 = scalar_select %p954, %s35, 1
      %s956 = smul.addr %s953, 2
      %s957 = sadd.s32 %s955, %s956
      %s958 = scalar_lea.vmem %s12, %s957
      %p959 = scmp.lt.s32.totalorder %s34, 3
      %s960 = scalar_select %p959, %s34, 3
      %p961 = scmp.lt.s32.totalorder %s35, 1
      %s962 = scalar_select %p961, %s35, 1
      %s963 = smul.addr %s960, 2
      %s964 = sadd.s32 %s962, %s963
      %s965 = scalar_lea.vmem %s13, %s964
      %p966 = scmp.lt.s32.totalorder %s34, 3
      %s967 = scalar_select %p966, %s34, 3
      %p968 = scmp.lt.s32.totalorder %s35, 1
      %s969 = scalar_select %p968, %s35, 1
      %s970 = smul.addr %s967, 2
      %s971 = sadd.s32 %s969, %s970
      %s972 = scalar_lea.vmem %s14, %s971
      %p973 = scmp.lt.s32.totalorder %s34, 3
      %s974 = scalar_select %p973, %s34, 3
      %p975 = scmp.lt.s32.totalorder %s35, 1
      %s976 = scalar_select %p975, %s35, 1
      %s977 = smul.addr %s974, 2
      %s978 = sadd.s32 %s976, %s977
      %s979 = scalar_lea.vmem %s15, %s978
      %p980 = scmp.lt.s32.totalorder %s34, 3
      %s981 = scalar_select %p980, %s34, 3
      %p982 = scmp.lt.s32.totalorder %s35, 1
      %s983 = scalar_select %p982, %s35, 1
      %s984 = smul.addr %s981, 2
      %s985 = sadd.s32 %s983, %s984
      %s986 = scalar_lea.vmem %s16, %s985
      %p987 = scmp.lt.s32.totalorder %s34, 3
      %s988 = scalar_select %p987, %s34, 3
      %s989 = smul.addr %s988, 2
      %s990 = smul.addr %s989, 4
      %s991 = scalar_lea.vmem %s17, %s990
      %p992 = scmp.lt.s32.totalorder %s34, 3
      %s993 = scalar_select %p992, %s34, 3
      %s994 = smul.addr %s993, 2
      %s995 = scalar_lea.vmem %s18, %s994
      %p997 = scmp.eq.s32.totalorder %s35, 0
      // Predicated region
      $region89: #{hama_block_forward.3} parent=87 // pred_check
        %p998 = pneg %p997
      $region90: #{hama_block_forward.3} parent=87 // pred_check_branch
        %1000 = sbr.rel (%p998) target = $region92
      $region91: #{hama_block_forward.3} parent=87 // pred_region
        %v1001 = vld [vmem:[%s893] sm:$0xff]
        %v1002 = vld [vmem:[%s893 + $0x8] sm:$0xff]
        %v1003 = vld [vmem:[%s0] sm:$0x1]
        %v1004 = vld [vmem:[%s1] sm:$0x1]
        %vm1005 = vcmask 261120
        %v1006 = vsel %vm1005, %v1001, 0.0
        %1007 = vadd.xlane.f32.xlu0 %v1006
        %v1008 = vpop.xlane.xlu0 %1007
        %v1009 = vsel %vm1005, %v1002, 0.0
        %1010 = vadd.xlane.f32.xlu0 %v1009
        %v1011 = vpop.xlane.xlu0 %1010
        %v1012 = vrcp.pop 32.0
        %v1013 = vmul.f32 %v1008, %v1012
        %v1014 = vmul.f32 %v1011, %v1012
        %v1015 = vsub.f32 %v1001, %v1013
        %v1016 = vsub.f32 %v1002, %v1014
        %v1017 = vmul.f32 %v1015, %v1015
        %v1018 = vmul.f32 %v1016, %v1016
        %v1019 = vsel %vm1005, %v1017, 0.0
        %1020 = vadd.xlane.f32.xlu0 %v1019
        %v1021 = vpop.xlane.xlu0 %1020
        %v1022 = vsel %vm1005, %v1018, 0.0
        %1023 = vadd.xlane.f32.xlu0 %v1022
        %v1024 = vpop.xlane.xlu0 %1023
        %v1025 = vmul.f32 %v1021, %v1012
        %v1026 = vmul.f32 %v1024, %v1012
        %v1027 = vadd.f32 %v1025, 1e-05
        %v1028 = vadd.f32 %v1026, 1e-05
        %v1029 = vrsqrt.pop %v1027
        %v1030 = vrsqrt.pop %v1028
        %v1031 = vmul.f32 %v1015, %v1029
        %v1032 = vmul.f32 %v1016, %v1030
        %v1034 = vlaneseq
        %v1035 = vshrl.u32 %v1034, 7
        %v1036 = vsub.s32 0, %v1035
        %v1037 = vrot.slane %v1003, %v1036
        %v1039 = vmul.f32 %v1031, %v1037
        %v1040 = vmul.f32 %v1032, %v1037
        %v1042 = vlaneseq
        %v1043 = vshrl.u32 %v1042, 7
        %v1044 = vsub.s32 0, %v1043
        %v1045 = vrot.slane %v1004, %v1044
        %v1047 = vadd.f32 %v1039, %v1045
        %v1048 = vadd.f32 %v1040, %v1045
        %v1049 = vld [vmem:[%s884] sm:$0xff]
        %v1050 = vmul.f32 %v1047, %v1049
        %v1051 = vmul.f32 %v1048, %v1049
        %v1052 = vld [vmem:[%s888] sm:$0xff]
        %v1053 = vadd.f32 %v1050, %v1052
        %v1054 = vadd.f32 %v1051, %v1052
        %1055 = vst.msk [vmem:[#allocation2] sm:$0xff] %vm1005, %v1053
        %1056 = vst.msk [vmem:[#allocation2 + $0x8] sm:$0xff] %vm1005, %v1054
      $region92: #{hama_block_forward.3} parent=87 // pred_fallthru
        _
      %v1057 = vld [vmem:[#allocation2] sm:$0xff]
      %v1058 = vld [vmem:[#allocation2 + $0x8] sm:$0xff]
      %v1059 = vpack.c.bf16 %v1058, %v1057
      %v1060 = vld [vmem:[%s902] sm:$0xf]
      %v1061 = vld [vmem:[%s902 + $0x4] sm:$0xf]
      %v1062 = vld [vmem:[%s902 + $0x8] sm:$0xf]
      %v1063 = vld [vmem:[%s902 + $0xc] sm:$0xf]
      %v1064 = vld [vmem:[%s909] sm:$0x1]
      %v1066 = vlaneseq
      %v1067 = vshrl.u32 %v1066, 7
      %v1068 = vsub.s32 0, %v1067
      %v1069 = vrot.slane %v1064, %v1068
      %v1075 = vunpack.c.l.b16 %v1060
      %v1076 = vunpack.c.l.b16 %v1061
      %v1077 = vunpack.c.l.b16 %v1062
      %v1078 = vunpack.c.l.b16 %v1063
      %v1079 = vpack.c.b16 %v1076, %v1075
      %v1080 = vpack.c.b16 %v1078, %v1077
      %vm1083 = vcmask 261120
      %v1085 = vsel %vm1083, %v1059, 0
      %1087 = vmatprep.subr.bf16.mxu0 0
      %1088 = vmatpush1.bf16.msra.mxu0 %v1079
      %1089 = vmatprep.subr.bf16.mxu0 0
      %1090 = vmatpush1.bf16.msra.mxu0 %v1080
      %1091 = vmatprep.subr.bf16.mxu0 0
      %1092 = vmatpush1.bf16.msra.mxu0 0
      %1093 = vmatprep.subr.bf16.mxu0 0
      %1094 = vmatpush1.bf16.msra.mxu0 0
      %1095 = vmatprep.subr.bf16.mxu0 0
      %1096 = vmatpush1.bf16.msra.mxu0 0
      %1097 = vmatprep.subr.bf16.mxu0 0
      %1098 = vmatpush1.bf16.msra.mxu0 0
      %1099 = vmatprep.subr.bf16.mxu0 0
      %1100 = vmatpush1.bf16.msra.mxu0 0
      %1101 = vmatprep.subr.bf16.mxu0 0
      %1102 = vmatpush1.bf16.msra.mxu0 0
      %1103 = vmatprep.subr.bf16.mxu0 0
      %1104 = vmatpush1.bf16.msra.mxu0 0
      %1105 = vmatprep.subr.bf16.mxu0 0
      %1106 = vmatpush1.bf16.msra.mxu0 0
      %1107 = vmatprep.subr.bf16.mxu0 0
      %1108 = vmatpush1.bf16.msra.mxu0 0
      %1109 = vmatprep.subr.bf16.mxu0 0
      %1110 = vmatpush1.bf16.msra.mxu0 0
      %1111 = vmatprep.subr.bf16.mxu0 0
      %1112 = vmatpush1.bf16.msra.mxu0 0
      %1113 = vmatprep.subr.bf16.mxu0 0
      %1114 = vmatpush1.bf16.msra.mxu0 0
      %1115 = vmatprep.subr.bf16.mxu0 0
      %1116 = vmatpush1.bf16.msra.mxu0 0
      %1117 = vmatprep.subr.bf16.mxu0 0
      %1118 = vmatpush1.bf16.msra.mxu0 0
      %1119 = vmatprep.mubr.bf16.mxu0 0
      %1120 = vmatmul.mubr.bf16.gmra.mrb[0].mxu0 %v1085
      %v1121 = vpop.f32.mrb[0].mxu0
      %v1122 = vadd.f32 %v1069, %v1121
      %v1123 = vpop.f32.mrb[0].mxu0
      %v1124 = vpop.f32.mrb[0].mxu0
      %v1125 = vadd.f32 %v1069, %v1124
      %v1126 = vpop.f32.mrb[0].mxu0
      %1127 = vdwg.mxu0
      %1130 = vrot.lane.b32.xlu0 %v1122, 120
      %v1131 = vpop.permute.xlu0 %1130
      %1132 = vrot.lane.b32.xlu0 %v1125, 120
      %v1133 = vpop.permute.xlu0 %1132
      %1136 = vrot.lane.b32.xlu0 %v1122, 112
      %v1137 = vpop.permute.xlu0 %1136
      %1138 = vrot.lane.b32.xlu0 %v1125, 112
      %v1139 = vpop.permute.xlu0 %1138
      %1142 = vrot.lane.b32.xlu0 %v1122, 104
      %v1143 = vpop.permute.xlu0 %1142
      %1144 = vrot.lane.b32.xlu0 %v1125, 104
      %v1145 = vpop.permute.xlu0 %1144
      %v1148 = vpack.c.bf16 %v1122, %v1122
      %v1149 = vpack.c.bf16 %v1125, %v1125
      %v1150 = vpack.c.bf16 %v1131, %v1131
      %v1151 = vpack.c.bf16 %v1133, %v1133
      %v1152 = vpack.c.bf16 %v1137, %v1137
      %v1153 = vpack.c.bf16 %v1139, %v1139
      %v1154 = vpack.c.bf16 %v1143, %v1143
      %v1155 = vpack.c.bf16 %v1145, %v1145
      %1157 = vrot.lane.b32.xlu0 %v1148, 96
      %v1158 = vpop.permute.xlu0 %1157
      %vm1159 = vcmask 64512
      %v1161 = vsel %vm1159, %v1148, 0
      %v1164 = vsel %vm1159, %v1158, 0
      %1166 = vmatprep.subr.bf16.mxu0 0
      %1167 = vmatpush1.bf16.xpose.msra.mxu0 %v1164
      %1168 = vmatprep.subr.bf16.mxu0 0
      %1169 = vmatpush1.bf16.xpose.msra.mxu0 0
      %1170 = vmatprep.subr.bf16.mxu0 0
      %1171 = vmatpush1.bf16.xpose.msra.mxu0 0
      %1172 = vmatprep.subr.bf16.mxu0 0
      %1173 = vmatpush1.bf16.xpose.msra.mxu0 0
      %1174 = vmatprep.subr.bf16.mxu0 0
      %1175 = vmatpush1.bf16.xpose.msra.mxu0 0
      %1176 = vmatprep.subr.bf16.mxu0 0
      %1177 = vmatpush1.bf16.xpose.msra.mxu0 0
      %1178 = vmatprep.subr.bf16.mxu0 0
      %1179 = vmatpush1.bf16.xpose.msra.mxu0 0
      %1180 = vmatprep.subr.bf16.mxu0 0
      %1181 = vmatpush1.bf16.xpose.msra.mxu0 0
      %1182 = vmatprep.subr.bf16.mxu0 0
      %1183 = vmatpush1.bf16.xpose.msra.mxu0 0
      %1184 = vmatprep.subr.bf16.mxu0 0
      %1185 = vmatpush1.bf16.xpose.msra.mxu0 0
      %1186 = vmatprep.subr.bf16.mxu0 0
      %1187 = vmatpush1.bf16.xpose.msra.mxu0 0
      %1188 = vmatprep.subr.bf16.mxu0 0
      %1189 = vmatpush1.bf16.xpose.msra.mxu0 0
      %1190 = vmatprep.subr.bf16.mxu0 0
      %1191 = vmatpush1.bf16.xpose.msra.mxu0 0
      %1192 = vmatprep.subr.bf16.mxu0 0
      %1193 = vmatpush1.bf16.xpose.msra.mxu0 0
      %1194 = vmatprep.subr.bf16.mxu0 0
      %1195 = vmatpush1.bf16.xpose.msra.mxu0 0
      %1196 = vmatprep.subr.bf16.mxu0 0
      %1197 = vmatpush1.bf16.xpose.msra.mxu0 0
      %1198 = vmatprep.mubr.bf16.mxu0 0
      %1199 = vmatmul.mubr.bf16.gmra.mrb[0].mxu0 %v1161
      %v1200 = vpop.f32.mrb[0].mxu0
      %v1201 = vadd.f32 0.0, %v1200
      %v1202 = vpop.f32.mrb[0].mxu0
      %v1203 = vpop.f32.mrb[0].mxu0
      %v1204 = vpop.f32.mrb[0].mxu0
      %1205 = vdwg.mxu0
      %1207 = vrot.lane.b32.xlu0 %v1149, 96
      %v1208 = vpop.permute.xlu0 %1207
      %v1210 = vsel %vm1159, %v1149, 0
      %v1213 = vsel %vm1159, %v1208, 0
      %1215 = vmatprep.subr.bf16.mxu0 0
      %1216 = vmatpush1.bf16.xpose.msra.mxu0 %v1213
      %1217 = vmatprep.subr.bf16.mxu0 0
      %1218 = vmatpush1.bf16.xpose.msra.mxu0 0
      %1219 = vmatprep.subr.bf16.mxu0 0
      %1220 = vmatpush1.bf16.xpose.msra.mxu0 0
      %1221 = vmatprep.subr.bf16.mxu0 0
      %1222 = vmatpush1.bf16.xpose.msra.mxu0 0
      %1223 = vmatprep.subr.bf16.mxu0 0
      %1224 = vmatpush1.bf16.xpose.msra.mxu0 0
      %1225 = vmatprep.subr.bf16.mxu0 0
      %1226 = vmatpush1.bf16.xpose.msra.mxu0 0
      %1227 = vmatprep.subr.bf16.mxu0 0
      %1228 = vmatpush1.bf16.xpose.msra.mxu0 0
      %1229 = vmatprep.subr.bf16.mxu0 0
      %1230 = vmatpush1.bf16.xpose.msra.mxu0 0
      %1231 = vmatprep.subr.bf16.mxu0 0
      %1232 = vmatpush1.bf16.xpose.msra.mxu0 0
      %1233 = vmatprep.subr.bf16.mxu0 0
      %1234 = vmatpush1.bf16.xpose.msra.mxu0 0
      %1235 = vmatprep.subr.bf16.mxu0 0
      %1236 = vmatpush1.bf16.xpose.msra.mxu0 0
      %1237 = vmatprep.subr.bf16.mxu0 0
      %1238 = vmatpush1.bf16.xpose.msra.mxu0 0
      %1239 = vmatprep.subr.bf16.mxu0 0
      %1240 = vmatpush1.bf16.xpose.msra.mxu0 0
      %1241 = vmatprep.subr.bf16.mxu0 0
      %1242 = vmatpush1.bf16.xpose.msra.mxu0 0
      %1243 = vmatprep.subr.bf16.mxu0 0
      %1244 = vmatpush1.bf16.xpose.msra.mxu0 0
      %1245 = vmatprep.subr.bf16.mxu0 0
      %1246 = vmatpush1.bf16.xpose.msra.mxu0 0
      %1247 = vmatprep.mubr.bf16.mxu0 0
      %1248 = vmatmul.mubr.bf16.gmra.mrb[0].mxu0 %v1210
      %v1249 = vpop.f32.mrb[0].mxu0
      %v1250 = vadd.f32 0.0, %v1249
      %v1251 = vpop.f32.mrb[0].mxu0
      %v1252 = vpop.f32.mrb[0].mxu0
      %v1253 = vpop.f32.mrb[0].mxu0
      %1254 = vdwg.mxu0
      %1256 = vrot.lane.b32.xlu0 %v1150, 96
      %v1257 = vpop.permute.xlu0 %1256
      %v1259 = vsel %vm1159, %v1150, 0
      %v1262 = vsel %vm1159, %v1257, 0
      %1264 = vmatprep.subr.bf16.mxu0 0
      %1265 = vmatpush1.bf16.xpose.msra.mxu0 %v1262
      %1266 = vmatprep.subr.bf16.mxu0 0
      %1267 = vmatpush1.bf16.xpose.msra.mxu0 0
      %1268 = vmatprep.subr.bf16.mxu0 0
      %1269 = vmatpush1.bf16.xpose.msra.mxu0 0
      %1270 = vmatprep.subr.bf16.mxu0 0
      %1271 = vmatpush1.bf16.xpose.msra.mxu0 0
      %1272 = vmatprep.subr.bf16.mxu0 0
      %1273 = vmatpush1.bf16.xpose.msra.mxu0 0
      %1274 = vmatprep.subr.bf16.mxu0 0
      %1275 = vmatpush1.bf16.xpose.msra.mxu0 0
      %1276 = vmatprep.subr.bf16.mxu0 0
      %1277 = vmatpush1.bf16.xpose.msra.mxu0 0
      %1278 = vmatprep.subr.bf16.mxu0 0
      %1279 = vmatpush1.bf16.xpose.msra.mxu0 0
      %1280 = vmatprep.subr.bf16.mxu0 0
      %1281 = vmatpush1.bf16.xpose.msra.mxu0 0
      %1282 = vmatprep.subr.bf16.mxu0 0
      %1283 = vmatpush1.bf16.xpose.msra.mxu0 0
      %1284 = vmatprep.subr.bf16.mxu0 0
      %1285 = vmatpush1.bf16.xpose.msra.mxu0 0
      %1286 = vmatprep.subr.bf16.mxu0 0
      %1287 = vmatpush1.bf16.xpose.msra.mxu0 0
      %1288 = vmatprep.subr.bf16.mxu0 0
      %1289 = vmatpush1.bf16.xpose.msra.mxu0 0
      %1290 = vmatprep.subr.bf16.mxu0 0
      %1291 = vmatpush1.bf16.xpose.msra.mxu0 0
      %1292 = vmatprep.subr.bf16.mxu0 0
      %1293 = vmatpush1.bf16.xpose.msra.mxu0 0
      %1294 = vmatprep.subr.bf16.mxu0 0
      %1295 = vmatpush1.bf16.xpose.msra.mxu0 0
      %1296 = vmatprep.mubr.bf16.mxu0 0
      %1297 = vmatmul.mubr.bf16.gmra.mrb[0].mxu0 %v1259
      %v1298 = vpop.f32.mrb[0].mxu0
      %v1299 = vadd.f32 0.0, %v1298
      %v1300 = vpop.f32.mrb[0].mxu0
      %v1301 = vpop.f32.mrb[0].mxu0
      %v1302 = vpop.f32.mrb[0].mxu0
      %1303 = vdwg.mxu0
      %1305 = vrot.lane.b32.xlu0 %v1151, 96
      %v1306 = vpop.permute.xlu0 %1305
      %v1308 = vsel %vm1159, %v1151, 0
      %v1311 = vsel %vm1159, %v1306, 0
      %1313 = vmatprep.subr.bf16.mxu0 0
      %1314 = vmatpush1.bf16.xpose.msra.mxu0 %v1311
      %1315 = vmatprep.subr.bf16.mxu0 0
      %1316 = vmatpush1.bf16.xpose.msra.mxu0 0
      %1317 = vmatprep.subr.bf16.mxu0 0
      %1318 = vmatpush1.bf16.xpose.msra.mxu0 0
      %1319 = vmatprep.subr.bf16.mxu0 0
      %1320 = vmatpush1.bf16.xpose.msra.mxu0 0
      %1321 = vmatprep.subr.bf16.mxu0 0
      %1322 = vmatpush1.bf16.xpose.msra.mxu0 0
      %1323 = vmatprep.subr.bf16.mxu0 0
      %1324 = vmatpush1.bf16.xpose.msra.mxu0 0
      %1325 = vmatprep.subr.bf16.mxu0 0
      %1326 = vmatpush1.bf16.xpose.msra.mxu0 0
      %1327 = vmatprep.subr.bf16.mxu0 0
      %1328 = vmatpush1.bf16.xpose.msra.mxu0 0
      %1329 = vmatprep.subr.bf16.mxu0 0
      %1330 = vmatpush1.bf16.xpose.msra.mxu0 0
      %1331 = vmatprep.subr.bf16.mxu0 0
      %1332 = vmatpush1.bf16.xpose.msra.mxu0 0
      %1333 = vmatprep.subr.bf16.mxu0 0
      %1334 = vmatpush1.bf16.xpose.msra.mxu0 0
      %1335 = vmatprep.subr.bf16.mxu0 0
      %1336 = vmatpush1.bf16.xpose.msra.mxu0 0
      %1337 = vmatprep.subr.bf16.mxu0 0
      %1338 = vmatpush1.bf16.xpose.msra.mxu0 0
      %1339 = vmatprep.subr.bf16.mxu0 0
      %1340 = vmatpush1.bf16.xpose.msra.mxu0 0
      %1341 = vmatprep.subr.bf16.mxu0 0
      %1342 = vmatpush1.bf16.xpose.msra.mxu0 0
      %1343 = vmatprep.subr.bf16.mxu0 0
      %1344 = vmatpush1.bf16.xpose.msra.mxu0 0
      %1345 = vmatprep.mubr.bf16.mxu0 0
      %1346 = vmatmul.mubr.bf16.gmra.mrb[0].mxu0 %v1308
      %v1347 = vpop.f32.mrb[0].mxu0
      %v1348 = vadd.f32 0.0, %v1347
      %v1349 = vpop.f32.mrb[0].mxu0
      %v1350 = vpop.f32.mrb[0].mxu0
      %v1351 = vpop.f32.mrb[0].mxu0
      %1352 = vdwg.mxu0
      %1354 = vrot.lane.b32.xlu0 %v1152, 96
      %v1355 = vpop.permute.xlu0 %1354
      %v1357 = vsel %vm1159, %v1152, 0
      %v1360 = vsel %vm1159, %v1355, 0
      %1362 = vmatprep.subr.bf16.mxu0 0
      %1363 = vmatpush1.bf16.xpose.msra.mxu0 %v1360
      %1364 = vmatprep.subr.bf16.mxu0 0
      %1365 = vmatpush1.bf16.xpose.msra.mxu0 0
      %1366 = vmatprep.subr.bf16.mxu0 0
      %1367 = vmatpush1.bf16.xpose.msra.mxu0 0
      %1368 = vmatprep.subr.bf16.mxu0 0
      %1369 = vmatpush1.bf16.xpose.msra.mxu0 0
      %1370 = vmatprep.subr.bf16.mxu0 0
      %1371 = vmatpush1.bf16.xpose.msra.mxu0 0
      %1372 = vmatprep.subr.bf16.mxu0 0
      %1373 = vmatpush1.bf16.xpose.msra.mxu0 0
      %1374 = vmatprep.subr.bf16.mxu0 0
      %1375 = vmatpush1.bf16.xpose.msra.mxu0 0
      %1376 = vmatprep.subr.bf16.mxu0 0
      %1377 = vmatpush1.bf16.xpose.msra.mxu0 0
      %1378 = vmatprep.subr.bf16.mxu0 0
      %1379 = vmatpush1.bf16.xpose.msra.mxu0 0
      %1380 = vmatprep.subr.bf16.mxu0 0
      %1381 = vmatpush1.bf16.xpose.msra.mxu0 0
      %1382 = vmatprep.subr.bf16.mxu0 0
      %1383 = vmatpush1.bf16.xpose.msra.mxu0 0
      %1384 = vmatprep.subr.bf16.mxu0 0
      %1385 = vmatpush1.bf16.xpose.msra.mxu0 0
      %1386 = vmatprep.subr.bf16.mxu0 0
      %1387 = vmatpush1.bf16.xpose.msra.mxu0 0
      %1388 = vmatprep.subr.bf16.mxu0 0
      %1389 = vmatpush1.bf16.xpose.msra.mxu0 0
      %1390 = vmatprep.subr.bf16.mxu0 0
      %1391 = vmatpush1.bf16.xpose.msra.mxu0 0
      %1392 = vmatprep.subr.bf16.mxu0 0
      %1393 = vmatpush1.bf16.xpose.msra.mxu0 0
      %1394 = vmatprep.mubr.bf16.mxu0 0
      %1395 = vmatmul.mubr.bf16.gmra.mrb[0].mxu0 %v1357
      %v1396 = vpop.f32.mrb[0].mxu0
      %v1397 = vadd.f32 0.0, %v1396
      %v1398 = vpop.f32.mrb[0].mxu0
      %v1399 = vpop.f32.mrb[0].mxu0
      %v1400 = vpop.f32.mrb[0].mxu0
      %1401 = vdwg.mxu0
      %1403 = vrot.lane.b32.xlu0 %v1153, 96
      %v1404 = vpop.permute.xlu0 %1403
      %v1406 = vsel %vm1159, %v1153, 0
      %v1409 = vsel %vm1159, %v1404, 0
      %1411 = vmatprep.subr.bf16.mxu0 0
      %1412 = vmatpush1.bf16.xpose.msra.mxu0 %v1409
      %1413 = vmatprep.subr.bf16.mxu0 0
      %1414 = vmatpush1.bf16.xpose.msra.mxu0 0
      %1415 = vmatprep.subr.bf16.mxu0 0
      %1416 = vmatpush1.bf16.xpose.msra.mxu0 0
      %1417 = vmatprep.subr.bf16.mxu0 0
      %1418 = vmatpush1.bf16.xpose.msra.mxu0 0
      %1419 = vmatprep.subr.bf16.mxu0 0
      %1420 = vmatpush1.bf16.xpose.msra.mxu0 0
      %1421 = vmatprep.subr.bf16.mxu0 0
      %1422 = vmatpush1.bf16.xpose.msra.mxu0 0
      %1423 = vmatprep.subr.bf16.mxu0 0
      %1424 = vmatpush1.bf16.xpose.msra.mxu0 0
      %1425 = vmatprep.subr.bf16.mxu0 0
      %1426 = vmatpush1.bf16.xpose.msra.mxu0 0
      %1427 = vmatprep.subr.bf16.mxu0 0
      %1428 = vmatpush1.bf16.xpose.msra.mxu0 0
      %1429 = vmatprep.subr.bf16.mxu0 0
      %1430 = vmatpush1.bf16.xpose.msra.mxu0 0
      %1431 = vmatprep.subr.bf16.mxu0 0
      %1432 = vmatpush1.bf16.xpose.msra.mxu0 0
      %1433 = vmatprep.subr.bf16.mxu0 0
      %1434 = vmatpush1.bf16.xpose.msra.mxu0 0
      %1435 = vmatprep.subr.bf16.mxu0 0
      %1436 = vmatpush1.bf16.xpose.msra.mxu0 0
      %1437 = vmatprep.subr.bf16.mxu0 0
      %1438 = vmatpush1.bf16.xpose.msra.mxu0 0
      %1439 = vmatprep.subr.bf16.mxu0 0
      %1440 = vmatpush1.bf16.xpose.msra.mxu0 0
      %1441 = vmatprep.subr.bf16.mxu0 0
      %1442 = vmatpush1.bf16.xpose.msra.mxu0 0
      %1443 = vmatprep.mubr.bf16.mxu0 0
      %1444 = vmatmul.mubr.bf16.gmra.mrb[0].mxu0 %v1406
      %v1445 = vpop.f32.mrb[0].mxu0
      %v1446 = vadd.f32 0.0, %v1445
      %v1447 = vpop.f32.mrb[0].mxu0
      %v1448 = vpop.f32.mrb[0].mxu0
      %v1449 = vpop.f32.mrb[0].mxu0
      %1450 = vdwg.mxu0
      %1452 = vrot.lane.b32.xlu0 %v1154, 96
      %v1453 = vpop.permute.xlu0 %1452
      %v1455 = vsel %vm1159, %v1154, 0
      %v1458 = vsel %vm1159, %v1453, 0
      %1460 = vmatprep.subr.bf16.mxu0 0
      %1461 = vmatpush1.bf16.xpose.msra.mxu0 %v1458
      %1462 = vmatprep.subr.bf16.mxu0 0
      %1463 = vmatpush1.bf16.xpose.msra.mxu0 0
      %1464 = vmatprep.subr.bf16.mxu0 0
      %1465 = vmatpush1.bf16.xpose.msra.mxu0 0
      %1466 = vmatprep.subr.bf16.mxu0 0
      %1467 = vmatpush1.bf16.xpose.msra.mxu0 0
      %1468 = vmatprep.subr.bf16.mxu0 0
      %1469 = vmatpush1.bf16.xpose.msra.mxu0 0
      %1470 = vmatprep.subr.bf16.mxu0 0
      %1471 = vmatpush1.bf16.xpose.msra.mxu0 0
      %1472 = vmatprep.subr.bf16.mxu0 0
      %1473 = vmatpush1.bf16.xpose.msra.mxu0 0
      %1474 = vmatprep.subr.bf16.mxu0 0
      %1475 = vmatpush1.bf16.xpose.msra.mxu0 0
      %1476 = vmatprep.subr.bf16.mxu0 0
      %1477 = vmatpush1.bf16.xpose.msra.mxu0 0
      %1478 = vmatprep.subr.bf16.mxu0 0
      %1479 = vmatpush1.bf16.xpose.msra.mxu0 0
      %1480 = vmatprep.subr.bf16.mxu0 0
      %1481 = vmatpush1.bf16.xpose.msra.mxu0 0
      %1482 = vmatprep.subr.bf16.mxu0 0
      %1483 = vmatpush1.bf16.xpose.msra.mxu0 0
      %1484 = vmatprep.subr.bf16.mxu0 0
      %1485 = vmatpush1.bf16.xpose.msra.mxu0 0
      %1486 = vmatprep.subr.bf16.mxu0 0
      %1487 = vmatpush1.bf16.xpose.msra.mxu0 0
      %1488 = vmatprep.subr.bf16.mxu0 0
      %1489 = vmatpush1.bf16.xpose.msra.mxu0 0
      %1490 = vmatprep.subr.bf16.mxu0 0
      %1491 = vmatpush1.bf16.xpose.msra.mxu0 0
      %1492 = vmatprep.mubr.bf16.mxu0 0
      %1493 = vmatmul.mubr.bf16.gmra.mrb[0].mxu0 %v1455
      %v1494 = vpop.f32.mrb[0].mxu0
      %v1495 = vadd.f32 0.0, %v1494
      %v1496 = vpop.f32.mrb[0].mxu0
      %v1497 = vpop.f32.mrb[0].mxu0
      %v1498 = vpop.f32.mrb[0].mxu0
      %1499 = vdwg.mxu0
      %1501 = vrot.lane.b32.xlu0 %v1155, 96
      %v1502 = vpop.permute.xlu0 %1501
      %v1504 = vsel %vm1159, %v1155, 0
      %v1507 = vsel %vm1159, %v1502, 0
      %1509 = vmatprep.subr.bf16.mxu0 0
      %1510 = vmatpush1.bf16.xpose.msra.mxu0 %v1507
      %1511 = vmatprep.subr.bf16.mxu0 0
      %1512 = vmatpush1.bf16.xpose.msra.mxu0 0
      %1513 = vmatprep.subr.bf16.mxu0 0
      %1514 = vmatpush1.bf16.xpose.msra.mxu0 0
      %1515 = vmatprep.subr.bf16.mxu0 0
      %1516 = vmatpush1.bf16.xpose.msra.mxu0 0
      %1517 = vmatprep.subr.bf16.mxu0 0
      %1518 = vmatpush1.bf16.xpose.msra.mxu0 0
      %1519 = vmatprep.subr.bf16.mxu0 0
      %1520 = vmatpush1.bf16.xpose.msra.mxu0 0
      %1521 = vmatprep.subr.bf16.mxu0 0
      %1522 = vmatpush1.bf16.xpose.msra.mxu0 0
      %1523 = vmatprep.subr.bf16.mxu0 0
      %1524 = vmatpush1.bf16.xpose.msra.mxu0 0
      %1525 = vmatprep.subr.bf16.mxu0 0
      %1526 = vmatpush1.bf16.xpose.msra.mxu0 0
      %1527 = vmatprep.subr.bf16.mxu0 0
      %1528 = vmatpush1.bf16.xpose.msra.mxu0 0
      %1529 = vmatprep.subr.bf16.mxu0 0
      %1530 = vmatpush1.bf16.xpose.msra.mxu0 0
      %1531 = vmatprep.subr.bf16.mxu0 0
      %1532 = vmatpush1.bf16.xpose.msra.mxu0 0
      %1533 = vmatprep.subr.bf16.mxu0 0
      %1534 = vmatpush1.bf16.xpose.msra.mxu0 0
      %1535 = vmatprep.subr.bf16.mxu0 0
      %1536 = vmatpush1.bf16.xpose.msra.mxu0 0
      %1537 = vmatprep.subr.bf16.mxu0 0
      %1538 = vmatpush1.bf16.xpose.msra.mxu0 0
      %1539 = vmatprep.subr.bf16.mxu0 0
      %1540 = vmatpush1.bf16.xpose.msra.mxu0 0
      %1541 = vmatprep.mubr.bf16.mxu0 0
      %1542 = vmatmul.mubr.bf16.gmra.mrb[0].mxu0 %v1504
      %v1543 = vpop.f32.mrb[0].mxu0
      %v1544 = vadd.f32 0.0, %v1543
      %v1545 = vpop.f32.mrb[0].mxu0
      %v1546 = vpop.f32.mrb[0].mxu0
      %v1547 = vpop.f32.mrb[0].mxu0
      %1548 = vdwg.mxu0
      %v1549 = vmul.f32 %v1201, 0.35355338
      %v1550 = vmul.f32 %v1250, 0.35355338
      %v1551 = vmul.f32 %v1299, 0.35355338
      %v1552 = vmul.f32 %v1348, 0.35355338
      %v1553 = vmul.f32 %v1397, 0.35355338
      %v1554 = vmul.f32 %v1446, 0.35355338
      %v1555 = vmul.f32 %v1495, 0.35355338
      %v1556 = vmul.f32 %v1544, 0.35355338
      %v1557 = vsel %vm1159, %v1549, -inf
      %1558 = vmax.xlane.f32.xlu0 %v1557
      %v1559 = vpop.xlane.xlu0 %1558
      %v1560 = vsel %vm1159, %v1550, -inf
      %1561 = vmax.xlane.f32.xlu0 %v1560
      %v1562 = vpop.xlane.xlu0 %1561
      %v1563 = vsel %vm1159, %v1551, -inf
      %1564 = vmax.xlane.f32.xlu0 %v1563
      %v1565 = vpop.xlane.xlu0 %1564
      %v1566 = vsel %vm1159, %v1552, -inf
      %1567 = vmax.xlane.f32.xlu0 %v1566
      %v1568 = vpop.xlane.xlu0 %1567
      %v1569 = vsel %vm1159, %v1553, -inf
      %1570 = vmax.xlane.f32.xlu0 %v1569
      %v1571 = vpop.xlane.xlu0 %1570
      %v1572 = vsel %vm1159, %v1554, -inf
      %1573 = vmax.xlane.f32.xlu0 %v1572
      %v1574 = vpop.xlane.xlu0 %1573
      %v1575 = vsel %vm1159, %v1555, -inf
      %1576 = vmax.xlane.f32.xlu0 %v1575
      %v1577 = vpop.xlane.xlu0 %1576
      %v1578 = vsel %vm1159, %v1556, -inf
      %1579 = vmax.xlane.f32.xlu0 %v1578
      %v1580 = vpop.xlane.xlu0 %1579
      %v1581 = vsub.f32 %v1549, %v1559
      %v1582 = vsub.f32 %v1550, %v1562
      %v1583 = vsub.f32 %v1551, %v1565
      %v1584 = vsub.f32 %v1552, %v1568
      %v1585 = vsub.f32 %v1553, %v1571
      %v1586 = vsub.f32 %v1554, %v1574
      %v1587 = vsub.f32 %v1555, %v1577
      %v1588 = vsub.f32 %v1556, %v1580
      %v1589 = vmul.f32 %v1581, 1.442695
      %v1590 = vpow.pop %v1589
      %v1591 = vmul.f32 %v1582, 1.442695
      %v1592 = vpow.pop %v1591
      %v1593 = vmul.f32 %v1583, 1.442695
      %v1594 = vpow.pop %v1593
      %v1595 = vmul.f32 %v1584, 1.442695
      %v1596 = vpow.pop %v1595
      %v1597 = vmul.f32 %v1585, 1.442695
      %v1598 = vpow.pop %v1597
      %v1599 = vmul.f32 %v1586, 1.442695
      %v1600 = vpow.pop %v1599
      %v1601 = vmul.f32 %v1587, 1.442695
      %v1602 = vpow.pop %v1601
      %v1603 = vmul.f32 %v1588, 1.442695
      %v1604 = vpow.pop %v1603
      %v1605 = vsel %vm1159, %v1590, 0.0
      %1606 = vadd.xlane.f32.xlu0 %v1605
      %v1607 = vpop.xlane.xlu0 %1606
      %v1608 = vsel %vm1159, %v1592, 0.0
      %1609 = vadd.xlane.f32.xlu0 %v1608
      %v1610 = vpop.xlane.xlu0 %1609
      %v1611 = vsel %vm1159, %v1594, 0.0
      %1612 = vadd.xlane.f32.xlu0 %v1611
      %v1613 = vpop.xlane.xlu0 %1612
      %v1614 = vsel %vm1159, %v1596, 0.0
      %1615 = vadd.xlane.f32.xlu0 %v1614
      %v1616 = vpop.xlane.xlu0 %1615
      %v1617 = vsel %vm1159, %v1598, 0.0
      %1618 = vadd.xlane.f32.xlu0 %v1617
      %v1619 = vpop.xlane.xlu0 %1618
      %v1620 = vsel %vm1159, %v1600, 0.0
      %1621 = vadd.xlane.f32.xlu0 %v1620
      %v1622 = vpop.xlane.xlu0 %1621
      %v1623 = vsel %vm1159, %v1602, 0.0
      %1624 = vadd.xlane.f32.xlu0 %v1623
      %v1625 = vpop.xlane.xlu0 %1624
      %v1626 = vsel %vm1159, %v1604, 0.0
      %1627 = vadd.xlane.f32.xlu0 %v1626
      %v1628 = vpop.xlane.xlu0 %1627
      %v1629 = vrcp.pop %v1607
      %v1630 = vmul.f32 %v1590, %v1629
      %v1631 = vrcp.pop %v1610
      %v1632 = vmul.f32 %v1592, %v1631
      %v1633 = vrcp.pop %v1613
      %v1634 = vmul.f32 %v1594, %v1633
      %v1635 = vrcp.pop %v1616
      %v1636 = vmul.f32 %v1596, %v1635
      %v1637 = vrcp.pop %v1619
      %v1638 = vmul.f32 %v1598, %v1637
      %v1639 = vrcp.pop %v1622
      %v1640 = vmul.f32 %v1600, %v1639
      %v1641 = vrcp.pop %v1625
      %v1642 = vmul.f32 %v1602, %v1641
      %v1643 = vrcp.pop %v1628
      %v1644 = vmul.f32 %v1604, %v1643
      %v1645 = vpack.c.bf16 %v1630, %v1630
      %v1646 = vpack.c.bf16 %v1632, %v1632
      %v1647 = vpack.c.bf16 %v1634, %v1634
      %v1648 = vpack.c.bf16 %v1636, %v1636
      %v1649 = vpack.c.bf16 %v1638, %v1638
      %v1650 = vpack.c.bf16 %v1640, %v1640
      %v1651 = vpack.c.bf16 %v1642, %v1642
      %v1652 = vpack.c.bf16 %v1644, %v1644
      %1653 = vrot.lane.b32.xlu0 %v1148, 64
      %v1654 = vpop.permute.xlu0 %1653
      %v1656 = vsel %vm1159, %v1645, 0
      %vm1658 = vcmask 1043456
      %v1660 = vsel %vm1658, %v1654, 0
      %1662 = vmatprep.subr.bf16.mxu0 0
      %1663 = vmatpush1.bf16.msra.mxu0 %v1660
      %1664 = vmatprep.subr.bf16.mxu0 0
      %1665 = vmatpush1.bf16.msra.mxu0 0
      %1666 = vmatprep.subr.bf16.mxu0 0
      %1667 = vmatpush1.bf16.msra.mxu0 0
      %1668 = vmatprep.subr.bf16.mxu0 0
      %1669 = vmatpush1.bf16.msra.mxu0 0
      %1670 = vmatprep.subr.bf16.mxu0 0
      %1671 = vmatpush1.bf16.msra.mxu0 0
      %1672 = vmatprep.subr.bf16.mxu0 0
      %1673 = vmatpush1.bf16.msra.mxu0 0
      %1674 = vmatprep.subr.bf16.mxu0 0
      %1675 = vmatpush1.bf16.msra.mxu0 0
      %1676 = vmatprep.subr.bf16.mxu0 0
      %1677 = vmatpush1.bf16.msra.mxu0 0
      %1678 = vmatprep.subr.bf16.mxu0 0
      %1679 = vmatpush1.bf16.msra.mxu0 0
      %1680 = vmatprep.subr.bf16.mxu0 0
      %1681 = vmatpush1.bf16.msra.mxu0 0
      %1682 = vmatprep.subr.bf16.mxu0 0
      %1683 = vmatpush1.bf16.msra.mxu0 0
      %1684 = vmatprep.subr.bf16.mxu0 0
      %1685 = vmatpush1.bf16.msra.mxu0 0
      %1686 = vmatprep.subr.bf16.mxu0 0
      %1687 = vmatpush1.bf16.msra.mxu0 0
      %1688 = vmatprep.subr.bf16.mxu0 0
      %1689 = vmatpush1.bf16.msra.mxu0 0
      %1690 = vmatprep.subr.bf16.mxu0 0
      %1691 = vmatpush1.bf16.msra.mxu0 0
      %1692 = vmatprep.subr.bf16.mxu0 0
      %1693 = vmatpush1.bf16.msra.mxu0 0
      %1694 = vmatprep.mubr.bf16.mxu0 0
      %1695 = vmatmul.mubr.bf16.gmra.mrb[0].mxu0 %v1656
      %v1696 = vpop.f32.mrb[0].mxu0
      %v1697 = vadd.f32 0.0, %v1696
      %v1698 = vpop.f32.mrb[0].mxu0
      %v1699 = vpop.f32.mrb[0].mxu0
      %v1700 = vpop.f32.mrb[0].mxu0
      %1701 = vdwg.mxu0
      %1702 = vrot.lane.b32.xlu0 %v1149, 64
      %v1703 = vpop.permute.xlu0 %1702
      %v1705 = vsel %vm1159, %v1646, 0
      %v1708 = vsel %vm1658, %v1703, 0
      %1710 = vmatprep.subr.bf16.mxu0 0
      %1711 = vmatpush1.bf16.msra.mxu0 %v1708
      %1712 = vmatprep.subr.bf16.mxu0 0
      %1713 = vmatpush1.bf16.msra.mxu0 0
      %1714 = vmatprep.subr.bf16.mxu0 0
      %1715 = vmatpush1.bf16.msra.mxu0 0
      %1716 = vmatprep.subr.bf16.mxu0 0
      %1717 = vmatpush1.bf16.msra.mxu0 0
      %1718 = vmatprep.subr.bf16.mxu0 0
      %1719 = vmatpush1.bf16.msra.mxu0 0
      %1720 = vmatprep.subr.bf16.mxu0 0
      %1721 = vmatpush1.bf16.msra.mxu0 0
      %1722 = vmatprep.subr.bf16.mxu0 0
      %1723 = vmatpush1.bf16.msra.mxu0 0
      %1724 = vmatprep.subr.bf16.mxu0 0
      %1725 = vmatpush1.bf16.msra.mxu0 0
      %1726 = vmatprep.subr.bf16.mxu0 0
      %1727 = vmatpush1.bf16.msra.mxu0 0
      %1728 = vmatprep.subr.bf16.mxu0 0
      %1729 = vmatpush1.bf16.msra.mxu0 0
      %1730 = vmatprep.subr.bf16.mxu0 0
      %1731 = vmatpush1.bf16.msra.mxu0 0
      %1732 = vmatprep.subr.bf16.mxu0 0
      %1733 = vmatpush1.bf16.msra.mxu0 0
      %1734 = vmatprep.subr.bf16.mxu0 0
      %1735 = vmatpush1.bf16.msra.mxu0 0
      %1736 = vmatprep.subr.bf16.mxu0 0
      %1737 = vmatpush1.bf16.msra.mxu0 0
      %1738 = vmatprep.subr.bf16.mxu0 0
      %1739 = vmatpush1.bf16.msra.mxu0 0
      %1740 = vmatprep.subr.bf16.mxu0 0
      %1741 = vmatpush1.bf16.msra.mxu0 0
      %1742 = vmatprep.mubr.bf16.mxu0 0
      %1743 = vmatmul.mubr.bf16.gmra.mrb[0].mxu0 %v1705
      %v1744 = vpop.f32.mrb[0].mxu0
      %v1745 = vadd.f32 0.0, %v1744
      %v1746 = vpop.f32.mrb[0].mxu0
      %v1747 = vpop.f32.mrb[0].mxu0
      %v1748 = vpop.f32.mrb[0].mxu0
      %1749 = vdwg.mxu0
      %1750 = vrot.lane.b32.xlu0 %v1150, 64
      %v1751 = vpop.permute.xlu0 %1750
      %v1753 = vsel %vm1159, %v1647, 0
      %v1756 = vsel %vm1658, %v1751, 0
      %1758 = vmatprep.subr.bf16.mxu0 0
      %1759 = vmatpush1.bf16.msra.mxu0 %v1756
      %1760 = vmatprep.subr.bf16.mxu0 0
      %1761 = vmatpush1.bf16.msra.mxu0 0
      %1762 = vmatprep.subr.bf16.mxu0 0
      %1763 = vmatpush1.bf16.msra.mxu0 0
      %1764 = vmatprep.subr.bf16.mxu0 0
      %1765 = vmatpush1.bf16.msra.mxu0 0
      %1766 = vmatprep.subr.bf16.mxu0 0
      %1767 = vmatpush1.bf16.msra.mxu0 0
      %1768 = vmatprep.subr.bf16.mxu0 0
      %1769 = vmatpush1.bf16.msra.mxu0 0
      %1770 = vmatprep.subr.bf16.mxu0 0
      %1771 = vmatpush1.bf16.msra.mxu0 0
      %1772 = vmatprep.subr.bf16.mxu0 0
      %1773 = vmatpush1.bf16.msra.mxu0 0
      %1774 = vmatprep.subr.bf16.mxu0 0
      %1775 = vmatpush1.bf16.msra.mxu0 0
      %1776 = vmatprep.subr.bf16.mxu0 0
      %1777 = vmatpush1.bf16.msra.mxu0 0
      %1778 = vmatprep.subr.bf16.mxu0 0
      %1779 = vmatpush1.bf16.msra.mxu0 0
      %1780 = vmatprep.subr.bf16.mxu0 0
      %1781 = vmatpush1.bf16.msra.mxu0 0
      %1782 = vmatprep.subr.bf16.mxu0 0
      %1783 = vmatpush1.bf16.msra.mxu0 0
      %1784 = vmatprep.subr.bf16.mxu0 0
      %1785 = vmatpush1.bf16.msra.mxu0 0
      %1786 = vmatprep.subr.bf16.mxu0 0
      %1787 = vmatpush1.bf16.msra.mxu0 0
      %1788 = vmatprep.subr.bf16.mxu0 0
      %1789 = vmatpush1.bf16.msra.mxu0 0
      %1790 = vmatprep.mubr.bf16.mxu0 0
      %1791 = vmatmul.mubr.bf16.gmra.mrb[0].mxu0 %v1753
      %v1792 = vpop.f32.mrb[0].mxu0
      %v1793 = vadd.f32 0.0, %v1792
      %v1794 = vpop.f32.mrb[0].mxu0
      %v1795 = vpop.f32.mrb[0].mxu0
      %v1796 = vpop.f32.mrb[0].mxu0
      %1797 = vdwg.mxu0
      %1798 = vrot.lane.b32.xlu0 %v1151, 64
      %v1799 = vpop.permute.xlu0 %1798
      %v1801 = vsel %vm1159, %v1648, 0
      %v1804 = vsel %vm1658, %v1799, 0
      %1806 = vmatprep.subr.bf16.mxu0 0
      %1807 = vmatpush1.bf16.msra.mxu0 %v1804
      %1808 = vmatprep.subr.bf16.mxu0 0
      %1809 = vmatpush1.bf16.msra.mxu0 0
      %1810 = vmatprep.subr.bf16.mxu0 0
      %1811 = vmatpush1.bf16.msra.mxu0 0
      %1812 = vmatprep.subr.bf16.mxu0 0
      %1813 = vmatpush1.bf16.msra.mxu0 0
      %1814 = vmatprep.subr.bf16.mxu0 0
      %1815 = vmatpush1.bf16.msra.mxu0 0
      %1816 = vmatprep.subr.bf16.mxu0 0
      %1817 = vmatpush1.bf16.msra.mxu0 0
      %1818 = vmatprep.subr.bf16.mxu0 0
      %1819 = vmatpush1.bf16.msra.mxu0 0
      %1820 = vmatprep.subr.bf16.mxu0 0
      %1821 = vmatpush1.bf16.msra.mxu0 0
      %1822 = vmatprep.subr.bf16.mxu0 0
      %1823 = vmatpush1.bf16.msra.mxu0 0
      %1824 = vmatprep.subr.bf16.mxu0 0
      %1825 = vmatpush1.bf16.msra.mxu0 0
      %1826 = vmatprep.subr.bf16.mxu0 0
      %1827 = vmatpush1.bf16.msra.mxu0 0
      %1828 = vmatprep.subr.bf16.mxu0 0
      %1829 = vmatpush1.bf16.msra.mxu0 0
      %1830 = vmatprep.subr.bf16.mxu0 0
      %1831 = vmatpush1.bf16.msra.mxu0 0
      %1832 = vmatprep.subr.bf16.mxu0 0
      %1833 = vmatpush1.bf16.msra.mxu0 0
      %1834 = vmatprep.subr.bf16.mxu0 0
      %1835 = vmatpush1.bf16.msra.mxu0 0
      %1836 = vmatprep.subr.bf16.mxu0 0
      %1837 = vmatpush1.bf16.msra.mxu0 0
      %1838 = vmatprep.mubr.bf16.mxu0 0
      %1839 = vmatmul.mubr.bf16.gmra.mrb[0].mxu0 %v1801
      %v1840 = vpop.f32.mrb[0].mxu0
      %v1841 = vadd.f32 0.0, %v1840
      %v1842 = vpop.f32.mrb[0].mxu0
      %v1843 = vpop.f32.mrb[0].mxu0
      %v1844 = vpop.f32.mrb[0].mxu0
      %1845 = vdwg.mxu0
      %1846 = vrot.lane.b32.xlu0 %v1152, 64
      %v1847 = vpop.permute.xlu0 %1846
      %v1849 = vsel %vm1159, %v1649, 0
      %v1852 = vsel %vm1658, %v1847, 0
      %1854 = vmatprep.subr.bf16.mxu0 0
      %1855 = vmatpush1.bf16.msra.mxu0 %v1852
      %1856 = vmatprep.subr.bf16.mxu0 0
      %1857 = vmatpush1.bf16.msra.mxu0 0
      %1858 = vmatprep.subr.bf16.mxu0 0
      %1859 = vmatpush1.bf16.msra.mxu0 0
      %1860 = vmatprep.subr.bf16.mxu0 0
      %1861 = vmatpush1.bf16.msra.mxu0 0
      %1862 = vmatprep.subr.bf16.mxu0 0
      %1863 = vmatpush1.bf16.msra.mxu0 0
      %1864 = vmatprep.subr.bf16.mxu0 0
      %1865 = vmatpush1.bf16.msra.mxu0 0
      %1866 = vmatprep.subr.bf16.mxu0 0
      %1867 = vmatpush1.bf16.msra.mxu0 0
      %1868 = vmatprep.subr.bf16.mxu0 0
      %1869 = vmatpush1.bf16.msra.mxu0 0
      %1870 = vmatprep.subr.bf16.mxu0 0
      %1871 = vmatpush1.bf16.msra.mxu0 0
      %1872 = vmatprep.subr.bf16.mxu0 0
      %1873 = vmatpush1.bf16.msra.mxu0 0
      %1874 = vmatprep.subr.bf16.mxu0 0
      %1875 = vmatpush1.bf16.msra.mxu0 0
      %1876 = vmatprep.subr.bf16.mxu0 0
      %1877 = vmatpush1.bf16.msra.mxu0 0
      %1878 = vmatprep.subr.bf16.mxu0 0
      %1879 = vmatpush1.bf16.msra.mxu0 0
      %1880 = vmatprep.subr.bf16.mxu0 0
      %1881 = vmatpush1.bf16.msra.mxu0 0
      %1882 = vmatprep.subr.bf16.mxu0 0
      %1883 = vmatpush1.bf16.msra.mxu0 0
      %1884 = vmatprep.subr.bf16.mxu0 0
      %1885 = vmatpush1.bf16.msra.mxu0 0
      %1886 = vmatprep.mubr.bf16.mxu0 0
      %1887 = vmatmul.mubr.bf16.gmra.mrb[0].mxu0 %v1849
      %v1888 = vpop.f32.mrb[0].mxu0
      %v1889 = vadd.f32 0.0, %v1888
      %v1890 = vpop.f32.mrb[0].mxu0
      %v1891 = vpop.f32.mrb[0].mxu0
      %v1892 = vpop.f32.mrb[0].mxu0
      %1893 = vdwg.mxu0
      %1894 = vrot.lane.b32.xlu0 %v1153, 64
      %v1895 = vpop.permute.xlu0 %1894
      %v1897 = vsel %vm1159, %v1650, 0
      %v1900 = vsel %vm1658, %v1895, 0
      %1902 = vmatprep.subr.bf16.mxu0 0
      %1903 = vmatpush1.bf16.msra.mxu0 %v1900
      %1904 = vmatprep.subr.bf16.mxu0 0
      %1905 = vmatpush1.bf16.msra.mxu0 0
      %1906 = vmatprep.subr.bf16.mxu0 0
      %1907 = vmatpush1.bf16.msra.mxu0 0
      %1908 = vmatprep.subr.bf16.mxu0 0
      %1909 = vmatpush1.bf16.msra.mxu0 0
      %1910 = vmatprep.subr.bf16.mxu0 0
      %1911 = vmatpush1.bf16.msra.mxu0 0
      %1912 = vmatprep.subr.bf16.mxu0 0
      %1913 = vmatpush1.bf16.msra.mxu0 0
      %1914 = vmatprep.subr.bf16.mxu0 0
      %1915 = vmatpush1.bf16.msra.mxu0 0
      %1916 = vmatprep.subr.bf16.mxu0 0
      %1917 = vmatpush1.bf16.msra.mxu0 0
      %1918 = vmatprep.subr.bf16.mxu0 0
      %1919 = vmatpush1.bf16.msra.mxu0 0
      %1920 = vmatprep.subr.bf16.mxu0 0
      %1921 = vmatpush1.bf16.msra.mxu0 0
      %1922 = vmatprep.subr.bf16.mxu0 0
      %1923 = vmatpush1.bf16.msra.mxu0 0
      %1924 = vmatprep.subr.bf16.mxu0 0
      %1925 = vmatpush1.bf16.msra.mxu0 0
      %1926 = vmatprep.subr.bf16.mxu0 0
      %1927 = vmatpush1.bf16.msra.mxu0 0
      %1928 = vmatprep.subr.bf16.mxu0 0
      %1929 = vmatpush1.bf16.msra.mxu0 0
      %1930 = vmatprep.subr.bf16.mxu0 0
      %1931 = vmatpush1.bf16.msra.mxu0 0
      %1932 = vmatprep.subr.bf16.mxu0 0
      %1933 = vmatpush1.bf16.msra.mxu0 0
      %1934 = vmatprep.mubr.bf16.mxu0 0
      %1935 = vmatmul.mubr.bf16.gmra.mrb[0].mxu0 %v1897
      %v1936 = vpop.f32.mrb[0].mxu0
      %v1937 = vadd.f32 0.0, %v1936
      %v1938 = vpop.f32.mrb[0].mxu0
      %v1939 = vpop.f32.mrb[0].mxu0
      %v1940 = vpop.f32.mrb[0].mxu0
      %1941 = vdwg.mxu0
      %1942 = vrot.lane.b32.xlu0 %v1154, 64
      %v1943 = vpop.permute.xlu0 %1942
      %v1945 = vsel %vm1159, %v1651, 0
      %v1948 = vsel %vm1658, %v1943, 0
      %1950 = vmatprep.subr.bf16.mxu0 0
      %1951 = vmatpush1.bf16.msra.mxu0 %v1948
      %1952 = vmatprep.subr.bf16.mxu0 0
      %1953 = vmatpush1.bf16.msra.mxu0 0
      %1954 = vmatprep.subr.bf16.mxu0 0
      %1955 = vmatpush1.bf16.msra.mxu0 0
      %1956 = vmatprep.subr.bf16.mxu0 0
      %1957 = vmatpush1.bf16.msra.mxu0 0
      %1958 = vmatprep.subr.bf16.mxu0 0
      %1959 = vmatpush1.bf16.msra.mxu0 0
      %1960 = vmatprep.subr.bf16.mxu0 0
      %1961 = vmatpush1.bf16.msra.mxu0 0
      %1962 = vmatprep.subr.bf16.mxu0 0
      %1963 = vmatpush1.bf16.msra.mxu0 0
      %1964 = vmatprep.subr.bf16.mxu0 0
      %1965 = vmatpush1.bf16.msra.mxu0 0
      %1966 = vmatprep.subr.bf16.mxu0 0
      %1967 = vmatpush1.bf16.msra.mxu0 0
      %1968 = vmatprep.subr.bf16.mxu0 0
      %1969 = vmatpush1.bf16.msra.mxu0 0
      %1970 = vmatprep.subr.bf16.mxu0 0
      %1971 = vmatpush1.bf16.msra.mxu0 0
      %1972 = vmatprep.subr.bf16.mxu0 0
      %1973 = vmatpush1.bf16.msra.mxu0 0
      %1974 = vmatprep.subr.bf16.mxu0 0
      %1975 = vmatpush1.bf16.msra.mxu0 0
      %1976 = vmatprep.subr.bf16.mxu0 0
      %1977 = vmatpush1.bf16.msra.mxu0 0
      %1978 = vmatprep.subr.bf16.mxu0 0
      %1979 = vmatpush1.bf16.msra.mxu0 0
      %1980 = vmatprep.subr.bf16.mxu0 0
      %1981 = vmatpush1.bf16.msra.mxu0 0
      %1982 = vmatprep.mubr.bf16.mxu0 0
      %1983 = vmatmul.mubr.bf16.gmra.mrb[0].mxu0 %v1945
      %v1984 = vpop.f32.mrb[0].mxu0
      %v1985 = vadd.f32 0.0, %v1984
      %v1986 = vpop.f32.mrb[0].mxu0
      %v1987 = vpop.f32.mrb[0].mxu0
      %v1988 = vpop.f32.mrb[0].mxu0
      %1989 = vdwg.mxu0
      %1990 = vrot.lane.b32.xlu0 %v1155, 64
      %v1991 = vpop.permute.xlu0 %1990
      %v1993 = vsel %vm1159, %v1652, 0
      %v1996 = vsel %vm1658, %v1991, 0
      %1998 = vmatprep.subr.bf16.mxu0 0
      %1999 = vmatpush1.bf16.msra.mxu0 %v1996
      %2000 = vmatprep.subr.bf16.mxu0 0
      %2001 = vmatpush1.bf16.msra.mxu0 0
      %2002 = vmatprep.subr.bf16.mxu0 0
      %2003 = vmatpush1.bf16.msra.mxu0 0
      %2004 = vmatprep.subr.bf16.mxu0 0
      %2005 = vmatpush1.bf16.msra.mxu0 0
      %2006 = vmatprep.subr.bf16.mxu0 0
      %2007 = vmatpush1.bf16.msra.mxu0 0
      %2008 = vmatprep.subr.bf16.mxu0 0
      %2009 = vmatpush1.bf16.msra.mxu0 0
      %2010 = vmatprep.subr.bf16.mxu0 0
      %2011 = vmatpush1.bf16.msra.mxu0 0
      %2012 = vmatprep.subr.bf16.mxu0 0
      %2013 = vmatpush1.bf16.msra.mxu0 0
      %2014 = vmatprep.subr.bf16.mxu0 0
      %2015 = vmatpush1.bf16.msra.mxu0 0
      %2016 = vmatprep.subr.bf16.mxu0 0
      %2017 = vmatpush1.bf16.msra.mxu0 0
      %2018 = vmatprep.subr.bf16.mxu0 0
      %2019 = vmatpush1.bf16.msra.mxu0 0
      %2020 = vmatprep.subr.bf16.mxu0 0
      %2021 = vmatpush1.bf16.msra.mxu0 0
      %2022 = vmatprep.subr.bf16.mxu0 0
      %2023 = vmatpush1.bf16.msra.mxu0 0
      %2024 = vmatprep.subr.bf16.mxu0 0
      %2025 = vmatpush1.bf16.msra.mxu0 0
      %2026 = vmatprep.subr.bf16.mxu0 0
      %2027 = vmatpush1.bf16.msra.mxu0 0
      %2028 = vmatprep.subr.bf16.mxu0 0
      %2029 = vmatpush1.bf16.msra.mxu0 0
      %2030 = vmatprep.mubr.bf16.mxu0 0
      %2031 = vmatmul.mubr.bf16.gmra.mrb[0].mxu0 %v1993
      %v2032 = vpop.f32.mrb[0].mxu0
      %v2033 = vadd.f32 0.0, %v2032
      %v2034 = vpop.f32.mrb[0].mxu0
      %v2035 = vpop.f32.mrb[0].mxu0
      %v2036 = vpop.f32.mrb[0].mxu0
      %2037 = vdwg.mxu0
      %2040 = vrot.lane.b32.xlu0 %v1793, 8
      %v2041 = vpop.permute.xlu0 %2040
      %2042 = vrot.lane.b32.xlu0 %v1841, 8
      %v2043 = vpop.permute.xlu0 %2042
      %2048 = vrot.lane.b32.xlu0 %v1889, 16
      %v2049 = vpop.permute.xlu0 %2048
      %2050 = vrot.lane.b32.xlu0 %v1937, 16
      %v2051 = vpop.permute.xlu0 %2050
      %2056 = vrot.lane.b32.xlu0 %v1985, 24
      %v2057 = vpop.permute.xlu0 %2056
      %2058 = vrot.lane.b32.xlu0 %v2033, 24
      %v2059 = vpop.permute.xlu0 %2058
      %v2062 = vsel %vm1159, %v1697, %v2041
      %v2063 = vsel %vm1159, %v1745, %v2043
      %vm2064 = vcmask 130048
      %v2065 = vsel %vm2064, %v2062, %v2049
      %v2066 = vsel %vm2064, %v2063, %v2051
      %vm2067 = vcmask 195584
      %v2068 = vsel %vm2067, %v2065, %v2057
      %v2069 = vsel %vm2067, %v2066, %v2059
      %v2070 = vpack.c.bf16 %v2069, %v2068
      %v2071 = vld [vmem:[%s918] sm:$0xf]
      %v2072 = vld [vmem:[%s918 + $0x4] sm:$0xf]
      %v2073 = vld [vmem:[%s918 + $0x8] sm:$0xf]
      %v2074 = vld [vmem:[%s918 + $0xc] sm:$0xf]
      %v2075 = vld [vmem:[%s925] sm:$0x1]
      %v2077 = vlaneseq
      %v2078 = vshrl.u32 %v2077, 7
      %v2079 = vsub.s32 0, %v2078
      %v2080 = vrot.slane %v2075, %v2079
      %v2086 = vunpack.c.l.b16 %v2071
      %v2087 = vunpack.c.l.b16 %v2072
      %v2088 = vunpack.c.l.b16 %v2073
      %v2089 = vunpack.c.l.b16 %v2074
      %v2090 = vpack.c.b16 %v2087, %v2086
      %v2091 = vpack.c.b16 %v2089, %v2088
      %v2095 = vsel %vm1083, %v2070, 0
      %2097 = vmatprep.subr.bf16.mxu0 0
      %2098 = vmatpush1.bf16.msra.mxu0 %v2090
      %2099 = vmatprep.subr.bf16.mxu0 0
      %2100 = vmatpush1.bf16.msra.mxu0 %v2091
      %2101 = vmatprep.subr.bf16.mxu0 0
      %2102 = vmatpush1.bf16.msra.mxu0 0
      %2103 = vmatprep.subr.bf16.mxu0 0
      %2104 = vmatpush1.bf16.msra.mxu0 0
      %2105 = vmatprep.subr.bf16.mxu0 0
      %2106 = vmatpush1.bf16.msra.mxu0 0
      %2107 = vmatprep.subr.bf16.mxu0 0
      %2108 = vmatpush1.bf16.msra.mxu0 0
      %2109 = vmatprep.subr.bf16.mxu0 0
      %2110 = vmatpush1.bf16.msra.mxu0 0
      %2111 = vmatprep.subr.bf16.mxu0 0
      %2112 = vmatpush1.bf16.msra.mxu0 0
      %2113 = vmatprep.subr.bf16.mxu0 0
      %2114 = vmatpush1.bf16.msra.mxu0 0
      %2115 = vmatprep.subr.bf16.mxu0 0
      %2116 = vmatpush1.bf16.msra.mxu0 0
      %2117 = vmatprep.subr.bf16.mxu0 0
      %2118 = vmatpush1.bf16.msra.mxu0 0
      %2119 = vmatprep.subr.bf16.mxu0 0
      %2120 = vmatpush1.bf16.msra.mxu0 0
      %2121 = vmatprep.subr.bf16.mxu0 0
      %2122 = vmatpush1.bf16.msra.mxu0 0
      %2123 = vmatprep.subr.bf16.mxu0 0
      %2124 = vmatpush1.bf16.msra.mxu0 0
      %2125 = vmatprep.subr.bf16.mxu0 0
      %2126 = vmatpush1.bf16.msra.mxu0 0
      %2127 = vmatprep.subr.bf16.mxu0 0
      %2128 = vmatpush1.bf16.msra.mxu0 0
      %2129 = vmatprep.mubr.bf16.mxu0 0
      %2130 = vmatmul.mubr.bf16.gmra.mrb[0].mxu0 %v2095
      %v2131 = vpop.f32.mrb[0].mxu0
      %v2132 = vadd.f32 %v2080, %v2131
      %v2133 = vpop.f32.mrb[0].mxu0
      %v2134 = vpop.f32.mrb[0].mxu0
      %v2135 = vadd.f32 %v2080, %v2134
      %v2136 = vpop.f32.mrb[0].mxu0
      %2137 = vdwg.mxu0
      %v2138 = vadd.f32 %v1057, %v2132
      %v2139 = vadd.f32 %v1058, %v2135
      %v2140 = vld [vmem:[%s965] sm:$0x1]
      %v2141 = vld [vmem:[%s972] sm:$0x1]
      %v2142 = vsel %vm1083, %v2138, 0.0
      %2143 = vadd.xlane.f32.xlu0 %v2142
      %v2144 = vpop.xlane.xlu0 %2143
      %v2145 = vsel %vm1083, %v2139, 0.0
      %2146 = vadd.xlane.f32.xlu0 %v2145
      %v2147 = vpop.xlane.xlu0 %2146
      %v2148 = vrcp.pop 32.0
      %v2149 = vmul.f32 %v2144, %v2148
      %v2150 = vmul.f32 %v2147, %v2148
      %v2151 = vsub.f32 %v2138, %v2149
      %v2152 = vsub.f32 %v2139, %v2150
      %v2153 = vmul.f32 %v2151, %v2151
      %v2154 = vmul.f32 %v2152, %v2152
      %v2155 = vsel %vm1083, %v2153, 0.0
      %2156 = vadd.xlane.f32.xlu0 %v2155
      %v2157 = vpop.xlane.xlu0 %2156
      %v2158 = vsel %vm1083, %v2154, 0.0
      %2159 = vadd.xlane.f32.xlu0 %v2158
      %v2160 = vpop.xlane.xlu0 %2159
      %v2161 = vmul.f32 %v2157, %v2148
      %v2162 = vmul.f32 %v2160, %v2148
      %v2163 = vadd.f32 %v2161, 1e-05
      %v2164 = vadd.f32 %v2162, 1e-05
      %v2165 = vrsqrt.pop %v2163
      %v2166 = vrsqrt.pop %v2164
      %v2167 = vmul.f32 %v2151, %v2165
      %v2168 = vmul.f32 %v2152, %v2166
      %v2170 = vlaneseq
      %v2171 = vshrl.u32 %v2170, 7
      %v2172 = vsub.s32 0, %v2171
      %v2173 = vrot.slane %v2140, %v2172
      %v2175 = vmul.f32 %v2167, %v2173
      %v2176 = vmul.f32 %v2168, %v2173
      %v2178 = vlaneseq
      %v2179 = vshrl.u32 %v2178, 7
      %v2180 = vsub.s32 0, %v2179
      %v2181 = vrot.slane %v2141, %v2180
      %v2183 = vadd.f32 %v2175, %v2181
      %v2184 = vadd.f32 %v2176, %v2181
      %v2185 = vpack.c.bf16 %v2184, %v2183
      %v2186 = vld [vmem:[%s934] sm:$0xff]
      %v2187 = vld [vmem:[%s934 + $0x8] sm:$0xff]
      %v2188 = vld [vmem:[%s934 + $0x10] sm:$0xff]
      %v2189 = vld [vmem:[%s934 + $0x18] sm:$0xff]
      %v2190 = vld [vmem:[%s934 + $0x20] sm:$0xff]
      %v2191 = vld [vmem:[%s934 + $0x28] sm:$0xff]
      %v2192 = vld [vmem:[%s934 + $0x30] sm:$0xff]
      %v2193 = vld [vmem:[%s934 + $0x38] sm:$0xff]
      %v2194 = vld [vmem:[%s934 + $0x40] sm:$0xff]
      %v2195 = vld [vmem:[%s934 + $0x48] sm:$0xff]
      %v2196 = vld [vmem:[%s934 + $0x50] sm:$0xff]
      %v2197 = vld [vmem:[%s934 + $0x58] sm:$0xff]
      %v2198 = vld [vmem:[%s934 + $0x60] sm:$0xff]
      %v2199 = vld [vmem:[%s934 + $0x68] sm:$0xff]
      %v2200 = vld [vmem:[%s934 + $0x70] sm:$0xff]
      %v2201 = vld [vmem:[%s934 + $0x78] sm:$0xff]
      %v2202 = vld [vmem:[%s934 + $0x80] sm:$0xff]
      %v2203 = vld [vmem:[%s934 + $0x88] sm:$0xff]
      %v2204 = vld [vmem:[%s934 + $0x90] sm:$0xff]
      %v2205 = vld [vmem:[%s934 + $0x98] sm:$0xff]
      %v2206 = vld [vmem:[%s934 + $0xa0] sm:$0xff]
      %v2207 = vld [vmem:[%s934 + $0xa8] sm:$0xff]
      %v2208 = vld [vmem:[%s934 + $0xb0] sm:$0xff]
      %v2209 = vld [vmem:[%s934 + $0xb8] sm:$0xff]
      %v2210 = vld [vmem:[%s934 + $0xc0] sm:$0xff]
      %v2211 = vld [vmem:[%s934 + $0xc8] sm:$0xff]
      %v2212 = vld [vmem:[%s934 + $0xd0] sm:$0xff]
      %v2213 = vld [vmem:[%s934 + $0xd8] sm:$0xff]
      %v2214 = vld [vmem:[%s934 + $0xe0] sm:$0xff]
      %v2215 = vld [vmem:[%s934 + $0xe8] sm:$0xff]
      %v2216 = vld [vmem:[%s934 + $0xf0] sm:$0xff]
      %v2217 = vld [vmem:[%s934 + $0xf8] sm:$0xff]
      %v2218 = vld [vmem:[%s942] sm:$0xff]
      %v2219 = vld [vmem:[%s942 + $0x8] sm:$0xff]
      %v2222 = vlaneseq
      %v2223 = vshrl.u32 %v2222, 7
      %v2224 = vsub.s32 0, %v2223
      %v2225 = vrot.slane %v2218, %v2224
      %v2226 = vlaneseq
      %v2227 = vshrl.u32 %v2226, 7
      %v2228 = vsub.s32 1, %v2227
      %v2229 = vrot.slane %v2218, %v2228
      %v2230 = vlaneseq
      %v2231 = vshrl.u32 %v2230, 7
      %v2232 = vsub.s32 2, %v2231
      %v2233 = vrot.slane %v2218, %v2232
      %v2234 = vlaneseq
      %v2235 = vshrl.u32 %v2234, 7
      %v2236 = vsub.s32 3, %v2235
      %v2237 = vrot.slane %v2218, %v2236
      %v2238 = vlaneseq
      %v2239 = vshrl.u32 %v2238, 7
      %v2240 = vsub.s32 4, %v2239
      %v2241 = vrot.slane %v2218, %v2240
      %v2242 = vlaneseq
      %v2243 = vshrl.u32 %v2242, 7
      %v2244 = vsub.s32 5, %v2243
      %v2245 = vrot.slane %v2218, %v2244
      %v2246 = vlaneseq
      %v2247 = vshrl.u32 %v2246, 7
      %v2248 = vsub.s32 6, %v2247
      %v2249 = vrot.slane %v2218, %v2248
      %v2250 = vlaneseq
      %v2251 = vshrl.u32 %v2250, 7
      %v2252 = vsub.s32 7, %v2251
      %v2253 = vrot.slane %v2218, %v2252
      %v2254 = vlaneseq
      %v2255 = vshrl.u32 %v2254, 7
      %v2256 = vsub.s32 0, %v2255
      %v2257 = vrot.slane %v2219, %v2256
      %v2258 = vlaneseq
      %v2259 = vshrl.u32 %v2258, 7
      %v2260 = vsub.s32 1, %v2259
      %v2261 = vrot.slane %v2219, %v2260
      %v2262 = vlaneseq
      %v2263 = vshrl.u32 %v2262, 7
      %v2264 = vsub.s32 2, %v2263
      %v2265 = vrot.slane %v2219, %v2264
      %v2266 = vlaneseq
      %v2267 = vshrl.u32 %v2266, 7
      %v2268 = vsub.s32 3, %v2267
      %v2269 = vrot.slane %v2219, %v2268
      %v2270 = vlaneseq
      %v2271 = vshrl.u32 %v2270, 7
      %v2272 = vsub.s32 4, %v2271
      %v2273 = vrot.slane %v2219, %v2272
      %v2274 = vlaneseq
      %v2275 = vshrl.u32 %v2274, 7
      %v2276 = vsub.s32 5, %v2275
      %v2277 = vrot.slane %v2219, %v2276
      %v2278 = vlaneseq
      %v2279 = vshrl.u32 %v2278, 7
      %v2280 = vsub.s32 6, %v2279
      %v2281 = vrot.slane %v2219, %v2280
      %v2282 = vlaneseq
      %v2283 = vshrl.u32 %v2282, 7
      %v2284 = vsub.s32 7, %v2283
      %v2285 = vrot.slane %v2219, %v2284
      %v2334 = vunpack.c.l.b16 %v2186
      %v2335 = vunpack.c.h.b16 %v2186
      %v2336 = vunpack.c.l.b16 %v2187
      %v2337 = vunpack.c.h.b16 %v2187
      %v2338 = vunpack.c.l.b16 %v2188
      %v2339 = vunpack.c.h.b16 %v2188
      %v2340 = vunpack.c.l.b16 %v2189
      %v2341 = vunpack.c.h.b16 %v2189
      %v2342 = vunpack.c.l.b16 %v2190
      %v2343 = vunpack.c.h.b16 %v2190
      %v2344 = vunpack.c.l.b16 %v2191
      %v2345 = vunpack.c.h.b16 %v2191
      %v2346 = vunpack.c.l.b16 %v2192
      %v2347 = vunpack.c.h.b16 %v2192
      %v2348 = vunpack.c.l.b16 %v2193
      %v2349 = vunpack.c.h.b16 %v2193
      %v2350 = vunpack.c.l.b16 %v2194
      %v2351 = vunpack.c.h.b16 %v2194
      %v2352 = vunpack.c.l.b16 %v2195
      %v2353 = vunpack.c.h.b16 %v2195
      %v2354 = vunpack.c.l.b16 %v2196
      %v2355 = vunpack.c.h.b16 %v2196
      %v2356 = vunpack.c.l.b16 %v2197
      %v2357 = vunpack.c.h.b16 %v2197
      %v2358 = vunpack.c.l.b16 %v2198
      %v2359 = vunpack.c.h.b16 %v2198
      %v2360 = vunpack.c.l.b16 %v2199
      %v2361 = vunpack.c.h.b16 %v2199
      %v2362 = vunpack.c.l.b16 %v2200
      %v2363 = vunpack.c.h.b16 %v2200
      %v2364 = vunpack.c.l.b16 %v2201
      %v2365 = vunpack.c.h.b16 %v2201
      %v2366 = vunpack.c.l.b16 %v2202
      %v2367 = vunpack.c.h.b16 %v2202
      %v2368 = vunpack.c.l.b16 %v2203
      %v2369 = vunpack.c.h.b16 %v2203
      %v2370 = vunpack.c.l.b16 %v2204
      %v2371 = vunpack.c.h.b16 %v2204
      %v2372 = vunpack.c.l.b16 %v2205
      %v2373 = vunpack.c.h.b16 %v2205
      %v2374 = vunpack.c.l.b16 %v2206
      %v2375 = vunpack.c.h.b16 %v2206
      %v2376 = vunpack.c.l.b16 %v2207
      %v2377 = vunpack.c.h.b16 %v2207
      %v2378 = vunpack.c.l.b16 %v2208
      %v2379 = vunpack.c.h.b16 %v2208
      %v2380 = vunpack.c.l.b16 %v2209
      %v2381 = vunpack.c.h.b16 %v2209
      %v2382 = vunpack.c.l.b16 %v2210
      %v2383 = vunpack.c.h.b16 %v2210
      %v2384 = vunpack.c.l.b16 %v2211
      %v2385 = vunpack.c.h.b16 %v2211
      %v2386 = vunpack.c.l.b16 %v2212
      %v2387 = vunpack.c.h.b16 %v2212
      %v2388 = vunpack.c.l.b16 %v2213
      %v2389 = vunpack.c.h.b16 %v2213
      %v2390 = vunpack.c.l.b16 %v2214
      %v2391 = vunpack.c.h.b16 %v2214
      %v2392 = vunpack.c.l.b16 %v2215
      %v2393 = vunpack.c.h.b16 %v2215
      %v2394 = vunpack.c.l.b16 %v2216
      %v2395 = vunpack.c.h.b16 %v2216
      %v2396 = vunpack.c.l.b16 %v2217
      %v2397 = vunpack.c.h.b16 %v2217
      %v2398 = vpack.c.b16 %v2350, %v2334
      %v2399 = vpack.c.b16 %v2351, %v2335
      %v2400 = vpack.c.b16 %v2352, %v2336
      %v2401 = vpack.c.b16 %v2353, %v2337
      %v2402 = vpack.c.b16 %v2354, %v2338
      %v2403 = vpack.c.b16 %v2355, %v2339
      %v2404 = vpack.c.b16 %v2356, %v2340
      %v2405 = vpack.c.b16 %v2357, %v2341
      %v2406 = vpack.c.b16 %v2358, %v2342
      %v2407 = vpack.c.b16 %v2359, %v2343
      %v2408 = vpack.c.b16 %v2360, %v2344
      %v2409 = vpack.c.b16 %v2361, %v2345
      %v2410 = vpack.c.b16 %v2362, %v2346
      %v2411 = vpack.c.b16 %v2363, %v2347
      %v2412 = vpack.c.b16 %v2364, %v2348
      %v2413 = vpack.c.b16 %v2365, %v2349
      %v2414 = vpack.c.b16 %v2382, %v2366
      %v2415 = vpack.c.b16 %v2383, %v2367
      %v2416 = vpack.c.b16 %v2384, %v2368
      %v2417 = vpack.c.b16 %v2385, %v2369
      %v2418 = vpack.c.b16 %v2386, %v2370
      %v2419 = vpack.c.b16 %v2387, %v2371
      %v2420 = vpack.c.b16 %v2388, %v2372
      %v2421 = vpack.c.b16 %v2389, %v2373
      %v2422 = vpack.c.b16 %v2390, %v2374
      %v2423 = vpack.c.b16 %v2391, %v2375
      %v2424 = vpack.c.b16 %v2392, %v2376
      %v2425 = vpack.c.b16 %v2393, %v2377
      %v2426 = vpack.c.b16 %v2394, %v2378
      %v2427 = vpack.c.b16 %v2395, %v2379
      %v2428 = vpack.c.b16 %v2396, %v2380
      %v2429 = vpack.c.b16 %v2397, %v2381
      %v2463 = vsel %vm1083, %v2185, 0
      %2465 = vmatprep.subr.bf16.mxu0 %v2399
      %2466 = vmatpush1.bf16.msra.mxu0 %v2398
      %2467 = vmatprep.subr.bf16.mxu0 %v2415
      %2468 = vmatpush1.bf16.msra.mxu0 %v2414
      %2469 = vmatprep.subr.bf16.mxu0 0
      %2470 = vmatpush1.bf16.msra.mxu0 0
      %2471 = vmatprep.subr.bf16.mxu0 0
      %2472 = vmatpush1.bf16.msra.mxu0 0
      %2473 = vmatprep.subr.bf16.mxu0 0
      %2474 = vmatpush1.bf16.msra.mxu0 0
      %2475 = vmatprep.subr.bf16.mxu0 0
      %2476 = vmatpush1.bf16.msra.mxu0 0
      %2477 = vmatprep.subr.bf16.mxu0 0
      %2478 = vmatpush1.bf16.msra.mxu0 0
      %2479 = vmatprep.subr.bf16.mxu0 0
      %2480 = vmatpush1.bf16.msra.mxu0 0
      %2481 = vmatprep.subr.bf16.mxu0 0
      %2482 = vmatpush1.bf16.msra.mxu0 0
      %2483 = vmatprep.subr.bf16.mxu0 0
      %2484 = vmatpush1.bf16.msra.mxu0 0
      %2485 = vmatprep.subr.bf16.mxu0 0
      %2486 = vmatpush1.bf16.msra.mxu0 0
      %2487 = vmatprep.subr.bf16.mxu0 0
      %2488 = vmatpush1.bf16.msra.mxu0 0
      %2489 = vmatprep.subr.bf16.mxu0 0
      %2490 = vmatpush1.bf16.msra.mxu0 0
      %2491 = vmatprep.subr.bf16.mxu0 0
      %2492 = vmatpush1.bf16.msra.mxu0 0
      %2493 = vmatprep.subr.bf16.mxu0 0
      %2494 = vmatpush1.bf16.msra.mxu0 0
      %2495 = vmatprep.subr.bf16.mxu0 0
      %2496 = vmatpush1.bf16.msra.mxu0 0
      %2497 = vmatprep.mubr.bf16.mxu0 0
      %2498 = vmatmul.mubr.bf16.gmra.mrb[0].mxu0 %v2463
      %v2499 = vpop.f32.mrb[0].mxu0
      %v2500 = vadd.f32 %v2225, %v2499
      %v2501 = vpop.f32.mrb[0].mxu0
      %v2502 = vadd.f32 %v2229, %v2501
      %v2503 = vpop.f32.mrb[0].mxu0
      %v2504 = vadd.f32 %v2225, %v2503
      %v2505 = vpop.f32.mrb[0].mxu0
      %v2506 = vadd.f32 %v2229, %v2505
      %2507 = vdwg.mxu0
      %2508 = vmatprep.subr.bf16.mxu0 %v2401
      %2509 = vmatpush1.bf16.msra.mxu0 %v2400
      %2510 = vmatprep.subr.bf16.mxu0 %v2417
      %2511 = vmatpush1.bf16.msra.mxu0 %v2416
      %2512 = vmatprep.subr.bf16.mxu0 0
      %2513 = vmatpush1.bf16.msra.mxu0 0
      %2514 = vmatprep.subr.bf16.mxu0 0
      %2515 = vmatpush1.bf16.msra.mxu0 0
      %2516 = vmatprep.subr.bf16.mxu0 0
      %2517 = vmatpush1.bf16.msra.mxu0 0
      %2518 = vmatprep.subr.bf16.mxu0 0
      %2519 = vmatpush1.bf16.msra.mxu0 0
      %2520 = vmatprep.subr.bf16.mxu0 0
      %2521 = vmatpush1.bf16.msra.mxu0 0
      %2522 = vmatprep.subr.bf16.mxu0 0
      %2523 = vmatpush1.bf16.msra.mxu0 0
      %2524 = vmatprep.subr.bf16.mxu0 0
      %2525 = vmatpush1.bf16.msra.mxu0 0
      %2526 = vmatprep.subr.bf16.mxu0 0
      %2527 = vmatpush1.bf16.msra.mxu0 0
      %2528 = vmatprep.subr.bf16.mxu0 0
      %2529 = vmatpush1.bf16.msra.mxu0 0
      %2530 = vmatprep.subr.bf16.mxu0 0
      %2531 = vmatpush1.bf16.msra.mxu0 0
      %2532 = vmatprep.subr.bf16.mxu0 0
      %2533 = vmatpush1.bf16.msra.mxu0 0
      %2534 = vmatprep.subr.bf16.mxu0 0
      %2535 = vmatpush1.bf16.msra.mxu0 0
      %2536 = vmatprep.subr.bf16.mxu0 0
      %2537 = vmatpush1.bf16.msra.mxu0 0
      %2538 = vmatprep.subr.bf16.mxu0 0
      %2539 = vmatpush1.bf16.msra.mxu0 0
      %2540 = vmatprep.mubr.bf16.mxu0 0
      %2541 = vmatmul.mubr.bf16.gmra.mrb[0].mxu0 %v2463
      %v2542 = vpop.f32.mrb[0].mxu0
      %v2543 = vadd.f32 %v2233, %v2542
      %v2544 = vpop.f32.mrb[0].mxu0
      %v2545 = vadd.f32 %v2237, %v2544
      %v2546 = vpop.f32.mrb[0].mxu0
      %v2547 = vadd.f32 %v2233, %v2546
      %v2548 = vpop.f32.mrb[0].mxu0
      %v2549 = vadd.f32 %v2237, %v2548
      %2550 = vdwg.mxu0
      %2551 = vmatprep.subr.bf16.mxu0 %v2403
      %2552 = vmatpush1.bf16.msra.mxu0 %v2402
      %2553 = vmatprep.subr.bf16.mxu0 %v2419
      %2554 = vmatpush1.bf16.msra.mxu0 %v2418
      %2555 = vmatprep.subr.bf16.mxu0 0
      %2556 = vmatpush1.bf16.msra.mxu0 0
      %2557 = vmatprep.subr.bf16.mxu0 0
      %2558 = vmatpush1.bf16.msra.mxu0 0
      %2559 = vmatprep.subr.bf16.mxu0 0
      %2560 = vmatpush1.bf16.msra.mxu0 0
      %2561 = vmatprep.subr.bf16.mxu0 0
      %2562 = vmatpush1.bf16.msra.mxu0 0
      %2563 = vmatprep.subr.bf16.mxu0 0
      %2564 = vmatpush1.bf16.msra.mxu0 0
      %2565 = vmatprep.subr.bf16.mxu0 0
      %2566 = vmatpush1.bf16.msra.mxu0 0
      %2567 = vmatprep.subr.bf16.mxu0 0
      %2568 = vmatpush1.bf16.msra.mxu0 0
      %2569 = vmatprep.subr.bf16.mxu0 0
      %2570 = vmatpush1.bf16.msra.mxu0 0
      %2571 = vmatprep.subr.bf16.mxu0 0
      %2572 = vmatpush1.bf16.msra.mxu0 0
      %2573 = vmatprep.subr.bf16.mxu0 0
      %2574 = vmatpush1.bf16.msra.mxu0 0
      %2575 = vmatprep.subr.bf16.mxu0 0
      %2576 = vmatpush1.bf16.msra.mxu0 0
      %2577 = vmatprep.subr.bf16.mxu0 0
      %2578 = vmatpush1.bf16.msra.mxu0 0
      %2579 = vmatprep.subr.bf16.mxu0 0
      %2580 = vmatpush1.bf16.msra.mxu0 0
      %2581 = vmatprep.subr.bf16.mxu0 0
      %2582 = vmatpush1.bf16.msra.mxu0 0
      %2583 = vmatprep.mubr.bf16.mxu0 0
      %2584 = vmatmul.mubr.bf16.gmra.mrb[0].mxu0 %v2463
      %v2585 = vpop.f32.mrb[0].mxu0
      %v2586 = vadd.f32 %v2241, %v2585
      %v2587 = vpop.f32.mrb[0].mxu0
      %v2588 = vadd.f32 %v2245, %v2587
      %v2589 = vpop.f32.mrb[0].mxu0
      %v2590 = vadd.f32 %v2241, %v2589
      %v2591 = vpop.f32.mrb[0].mxu0
      %v2592 = vadd.f32 %v2245, %v2591
      %2593 = vdwg.mxu0
      %2594 = vmatprep.subr.bf16.mxu0 %v2405
      %2595 = vmatpush1.bf16.msra.mxu0 %v2404
      %2596 = vmatprep.subr.bf16.mxu0 %v2421
      %2597 = vmatpush1.bf16.msra.mxu0 %v2420
      %2598 = vmatprep.subr.bf16.mxu0 0
      %2599 = vmatpush1.bf16.msra.mxu0 0
      %2600 = vmatprep.subr.bf16.mxu0 0
      %2601 = vmatpush1.bf16.msra.mxu0 0
      %2602 = vmatprep.subr.bf16.mxu0 0
      %2603 = vmatpush1.bf16.msra.mxu0 0
      %2604 = vmatprep.subr.bf16.mxu0 0
      %2605 = vmatpush1.bf16.msra.mxu0 0
      %2606 = vmatprep.subr.bf16.mxu0 0
      %2607 = vmatpush1.bf16.msra.mxu0 0
      %2608 = vmatprep.subr.bf16.mxu0 0
      %2609 = vmatpush1.bf16.msra.mxu0 0
      %2610 = vmatprep.subr.bf16.mxu0 0
      %2611 = vmatpush1.bf16.msra.mxu0 0
      %2612 = vmatprep.subr.bf16.mxu0 0
      %2613 = vmatpush1.bf16.msra.mxu0 0
      %2614 = vmatprep.subr.bf16.mxu0 0
      %2615 = vmatpush1.bf16.msra.mxu0 0
      %2616 = vmatprep.subr.bf16.mxu0 0
      %2617 = vmatpush1.bf16.msra.mxu0 0
      %2618 = vmatprep.subr.bf16.mxu0 0
      %2619 = vmatpush1.bf16.msra.mxu0 0
      %2620 = vmatprep.subr.bf16.mxu0 0
      %2621 = vmatpush1.bf16.msra.mxu0 0
      %2622 = vmatprep.subr.bf16.mxu0 0
      %2623 = vmatpush1.bf16.msra.mxu0 0
      %2624 = vmatprep.subr.bf16.mxu0 0
      %2625 = vmatpush1.bf16.msra.mxu0 0
      %2626 = vmatprep.mubr.bf16.mxu0 0
      %2627 = vmatmul.mubr.bf16.gmra.mrb[0].mxu0 %v2463
      %v2628 = vpop.f32.mrb[0].mxu0
      %v2629 = vadd.f32 %v2249, %v2628
      %v2630 = vpop.f32.mrb[0].mxu0
      %v2631 = vadd.f32 %v2253, %v2630
      %v2632 = vpop.f32.mrb[0].mxu0
      %v2633 = vadd.f32 %v2249, %v2632
      %v2634 = vpop.f32.mrb[0].mxu0
      %v2635 = vadd.f32 %v2253, %v2634
      %2636 = vdwg.mxu0
      %2637 = vmatprep.subr.bf16.mxu0 %v2407
      %2638 = vmatpush1.bf16.msra.mxu0 %v2406
      %2639 = vmatprep.subr.bf16.mxu0 %v2423
      %2640 = vmatpush1.bf16.msra.mxu0 %v2422
      %2641 = vmatprep.subr.bf16.mxu0 0
      %2642 = vmatpush1.bf16.msra.mxu0 0
      %2643 = vmatprep.subr.bf16.mxu0 0
      %2644 = vmatpush1.bf16.msra.mxu0 0
      %2645 = vmatprep.subr.bf16.mxu0 0
      %2646 = vmatpush1.bf16.msra.mxu0 0
      %2647 = vmatprep.subr.bf16.mxu0 0
      %2648 = vmatpush1.bf16.msra.mxu0 0
      %2649 = vmatprep.subr.bf16.mxu0 0
      %2650 = vmatpush1.bf16.msra.mxu0 0
      %2651 = vmatprep.subr.bf16.mxu0 0
      %2652 = vmatpush1.bf16.msra.mxu0 0
      %2653 = vmatprep.subr.bf16.mxu0 0
      %2654 = vmatpush1.bf16.msra.mxu0 0
      %2655 = vmatprep.subr.bf16.mxu0 0
      %2656 = vmatpush1.bf16.msra.mxu0 0
      %2657 = vmatprep.subr.bf16.mxu0 0
      %2658 = vmatpush1.bf16.msra.mxu0 0
      %2659 = vmatprep.subr.bf16.mxu0 0
      %2660 = vmatpush1.bf16.msra.mxu0 0
      %2661 = vmatprep.subr.bf16.mxu0 0
      %2662 = vmatpush1.bf16.msra.mxu0 0
      %2663 = vmatprep.subr.bf16.mxu0 0
      %2664 = vmatpush1.bf16.msra.mxu0 0
      %2665 = vmatprep.subr.bf16.mxu0 0
      %2666 = vmatpush1.bf16.msra.mxu0 0
      %2667 = vmatprep.subr.bf16.mxu0 0
      %2668 = vmatpush1.bf16.msra.mxu0 0
      %2669 = vmatprep.mubr.bf16.mxu0 0
      %2670 = vmatmul.mubr.bf16.gmra.mrb[0].mxu0 %v2463
      %v2671 = vpop.f32.mrb[0].mxu0
      %v2672 = vadd.f32 %v2257, %v2671
      %v2673 = vpop.f32.mrb[0].mxu0
      %v2674 = vadd.f32 %v2261, %v2673
      %v2675 = vpop.f32.mrb[0].mxu0
      %v2676 = vadd.f32 %v2257, %v2675
      %v2677 = vpop.f32.mrb[0].mxu0
      %v2678 = vadd.f32 %v2261, %v2677
      %2679 = vdwg.mxu0
      %2680 = vmatprep.subr.bf16.mxu0 %v2409
      %2681 = vmatpush1.bf16.msra.mxu0 %v2408
      %2682 = vmatprep.subr.bf16.mxu0 %v2425
      %2683 = vmatpush1.bf16.msra.mxu0 %v2424
      %2684 = vmatprep.subr.bf16.mxu0 0
      %2685 = vmatpush1.bf16.msra.mxu0 0
      %2686 = vmatprep.subr.bf16.mxu0 0
      %2687 = vmatpush1.bf16.msra.mxu0 0
      %2688 = vmatprep.subr.bf16.mxu0 0
      %2689 = vmatpush1.bf16.msra.mxu0 0
      %2690 = vmatprep.subr.bf16.mxu0 0
      %2691 = vmatpush1.bf16.msra.mxu0 0
      %2692 = vmatprep.subr.bf16.mxu0 0
      %2693 = vmatpush1.bf16.msra.mxu0 0
      %2694 = vmatprep.subr.bf16.mxu0 0
      %2695 = vmatpush1.bf16.msra.mxu0 0
      %2696 = vmatprep.subr.bf16.mxu0 0
      %2697 = vmatpush1.bf16.msra.mxu0 0
      %2698 = vmatprep.subr.bf16.mxu0 0
      %2699 = vmatpush1.bf16.msra.mxu0 0
      %2700 = vmatprep.subr.bf16.mxu0 0
      %2701 = vmatpush1.bf16.msra.mxu0 0
      %2702 = vmatprep.subr.bf16.mxu0 0
      %2703 = vmatpush1.bf16.msra.mxu0 0
      %2704 = vmatprep.subr.bf16.mxu0 0
      %2705 = vmatpush1.bf16.msra.mxu0 0
      %2706 = vmatprep.subr.bf16.mxu0 0
      %2707 = vmatpush1.bf16.msra.mxu0 0
      %2708 = vmatprep.subr.bf16.mxu0 0
      %2709 = vmatpush1.bf16.msra.mxu0 0
      %2710 = vmatprep.subr.bf16.mxu0 0
      %2711 = vmatpush1.bf16.msra.mxu0 0
      %2712 = vmatprep.mubr.bf16.mxu0 0
      %2713 = vmatmul.mubr.bf16.gmra.mrb[0].mxu0 %v2463
      %v2714 = vpop.f32.mrb[0].mxu0
      %v2715 = vadd.f32 %v2265, %v2714
      %v2716 = vpop.f32.mrb[0].mxu0
      %v2717 = vadd.f32 %v2269, %v2716
      %v2718 = vpop.f32.mrb[0].mxu0
      %v2719 = vadd.f32 %v2265, %v2718
      %v2720 = vpop.f32.mrb[0].mxu0
      %v2721 = vadd.f32 %v2269, %v2720
      %2722 = vdwg.mxu0
      %2723 = vmatprep.subr.bf16.mxu0 %v2411
      %2724 = vmatpush1.bf16.msra.mxu0 %v2410
      %2725 = vmatprep.subr.bf16.mxu0 %v2427
      %2726 = vmatpush1.bf16.msra.mxu0 %v2426
      %2727 = vmatprep.subr.bf16.mxu0 0
      %2728 = vmatpush1.bf16.msra.mxu0 0
      %2729 = vmatprep.subr.bf16.mxu0 0
      %2730 = vmatpush1.bf16.msra.mxu0 0
      %2731 = vmatprep.subr.bf16.mxu0 0
      %2732 = vmatpush1.bf16.msra.mxu0 0
      %2733 = vmatprep.subr.bf16.mxu0 0
      %2734 = vmatpush1.bf16.msra.mxu0 0
      %2735 = vmatprep.subr.bf16.mxu0 0
      %2736 = vmatpush1.bf16.msra.mxu0 0
      %2737 = vmatprep.subr.bf16.mxu0 0
      %2738 = vmatpush1.bf16.msra.mxu0 0
      %2739 = vmatprep.subr.bf16.mxu0 0
      %2740 = vmatpush1.bf16.msra.mxu0 0
      %2741 = vmatprep.subr.bf16.mxu0 0
      %2742 = vmatpush1.bf16.msra.mxu0 0
      %2743 = vmatprep.subr.bf16.mxu0 0
      %2744 = vmatpush1.bf16.msra.mxu0 0
      %2745 = vmatprep.subr.bf16.mxu0 0
      %2746 = vmatpush1.bf16.msra.mxu0 0
      %2747 = vmatprep.subr.bf16.mxu0 0
      %2748 = vmatpush1.bf16.msra.mxu0 0
      %2749 = vmatprep.subr.bf16.mxu0 0
      %2750 = vmatpush1.bf16.msra.mxu0 0
      %2751 = vmatprep.subr.bf16.mxu0 0
      %2752 = vmatpush1.bf16.msra.mxu0 0
      %2753 = vmatprep.subr.bf16.mxu0 0
      %2754 = vmatpush1.bf16.msra.mxu0 0
      %2755 = vmatprep.mubr.bf16.mxu0 0
      %2756 = vmatmul.mubr.bf16.gmra.mrb[0].mxu0 %v2463
      %v2757 = vpop.f32.mrb[0].mxu0
      %v2758 = vadd.f32 %v2273, %v2757
      %v2759 = vpop.f32.mrb[0].mxu0
      %v2760 = vadd.f32 %v2277, %v2759
      %v2761 = vpop.f32.mrb[0].mxu0
      %v2762 = vadd.f32 %v2273, %v2761
      %v2763 = vpop.f32.mrb[0].mxu0
      %v2764 = vadd.f32 %v2277, %v2763
      %2765 = vdwg.mxu0
      %2766 = vmatprep.subr.bf16.mxu0 %v2413
      %2767 = vmatpush1.bf16.msra.mxu0 %v2412
      %2768 = vmatprep.subr.bf16.mxu0 %v2429
      %2769 = vmatpush1.bf16.msra.mxu0 %v2428
      %2770 = vmatprep.subr.bf16.mxu0 0
      %2771 = vmatpush1.bf16.msra.mxu0 0
      %2772 = vmatprep.subr.bf16.mxu0 0
      %2773 = vmatpush1.bf16.msra.mxu0 0
      %2774 = vmatprep.subr.bf16.mxu0 0
      %2775 = vmatpush1.bf16.msra.mxu0 0
      %2776 = vmatprep.subr.bf16.mxu0 0
      %2777 = vmatpush1.bf16.msra.mxu0 0
      %2778 = vmatprep.subr.bf16.mxu0 0
      %2779 = vmatpush1.bf16.msra.mxu0 0
      %2780 = vmatprep.subr.bf16.mxu0 0
      %2781 = vmatpush1.bf16.msra.mxu0 0
      %2782 = vmatprep.subr.bf16.mxu0 0
      %2783 = vmatpush1.bf16.msra.mxu0 0
      %2784 = vmatprep.subr.bf16.mxu0 0
      %2785 = vmatpush1.bf16.msra.mxu0 0
      %2786 = vmatprep.subr.bf16.mxu0 0
      %2787 = vmatpush1.bf16.msra.mxu0 0
      %2788 = vmatprep.subr.bf16.mxu0 0
      %2789 = vmatpush1.bf16.msra.mxu0 0
      %2790 = vmatprep.subr.bf16.mxu0 0
      %2791 = vmatpush1.bf16.msra.mxu0 0
      %2792 = vmatprep.subr.bf16.mxu0 0
      %2793 = vmatpush1.bf16.msra.mxu0 0
      %2794 = vmatprep.subr.bf16.mxu0 0
      %2795 = vmatpush1.bf16.msra.mxu0 0
      %2796 = vmatprep.subr.bf16.mxu0 0
      %2797 = vmatpush1.bf16.msra.mxu0 0
      %2798 = vmatprep.mubr.bf16.mxu0 0
      %2799 = vmatmul.mubr.bf16.gmra.mrb[0].mxu0 %v2463
      %v2800 = vpop.f32.mrb[0].mxu0
      %v2801 = vadd.f32 %v2281, %v2800
      %v2802 = vpop.f32.mrb[0].mxu0
      %v2803 = vadd.f32 %v2285, %v2802
      %v2804 = vpop.f32.mrb[0].mxu0
      %v2805 = vadd.f32 %v2281, %v2804
      %v2806 = vpop.f32.mrb[0].mxu0
      %v2807 = vadd.f32 %v2285, %v2806
      %2808 = vdwg.mxu0
      %v2809 = vmax.f32 %v2500, 0.0
      %v2810 = vmax.f32 %v2502, 0.0
      %v2811 = vmax.f32 %v2543, 0.0
      %v2812 = vmax.f32 %v2545, 0.0
      %v2813 = vmax.f32 %v2586, 0.0
      %v2814 = vmax.f32 %v2588, 0.0
      %v2815 = vmax.f32 %v2629, 0.0
      %v2816 = vmax.f32 %v2631, 0.0
      %v2817 = vmax.f32 %v2672, 0.0
      %v2818 = vmax.f32 %v2674, 0.0
      %v2819 = vmax.f32 %v2715, 0.0
      %v2820 = vmax.f32 %v2717, 0.0
      %v2821 = vmax.f32 %v2758, 0.0
      %v2822 = vmax.f32 %v2760, 0.0
      %v2823 = vmax.f32 %v2801, 0.0
      %v2824 = vmax.f32 %v2803, 0.0
      %v2825 = vmax.f32 %v2504, 0.0
      %v2826 = vmax.f32 %v2506, 0.0
      %v2827 = vmax.f32 %v2547, 0.0
      %v2828 = vmax.f32 %v2549, 0.0
      %v2829 = vmax.f32 %v2590, 0.0
      %v2830 = vmax.f32 %v2592, 0.0
      %v2831 = vmax.f32 %v2633, 0.0
      %v2832 = vmax.f32 %v2635, 0.0
      %v2833 = vmax.f32 %v2676, 0.0
      %v2834 = vmax.f32 %v2678, 0.0
      %v2835 = vmax.f32 %v2719, 0.0
      %v2836 = vmax.f32 %v2721, 0.0
      %v2837 = vmax.f32 %v2762, 0.0
      %v2838 = vmax.f32 %v2764, 0.0
      %v2839 = vmax.f32 %v2805, 0.0
      %v2840 = vmax.f32 %v2807, 0.0
      %v2841 = vpack.c.bf16 %v2825, %v2809
      %v2842 = vpack.c.bf16 %v2826, %v2810
      %v2843 = vpack.c.bf16 %v2827, %v2811
      %v2844 = vpack.c.bf16 %v2828, %v2812
      %v2845 = vpack.c.bf16 %v2829, %v2813
      %v2846 = vpack.c.bf16 %v2830, %v2814
      %v2847 = vpack.c.bf16 %v2831, %v2815
      %v2848 = vpack.c.bf16 %v2832, %v2816
      %v2849 = vpack.c.bf16 %v2833, %v2817
      %v2850 = vpack.c.bf16 %v2834, %v2818
      %v2851 = vpack.c.bf16 %v2835, %v2819
      %v2852 = vpack.c.bf16 %v2836, %v2820
      %v2853 = vpack.c.bf16 %v2837, %v2821
      %v2854 = vpack.c.bf16 %v2838, %v2822
      %v2855 = vpack.c.bf16 %v2839, %v2823
      %v2856 = vpack.c.bf16 %v2840, %v2824
      %v2857 = vld [vmem:[%s951] sm:$0xf]
      %v2858 = vld [vmem:[%s951 + $0x4] sm:$0xf]
      %v2859 = vld [vmem:[%s951 + $0x8] sm:$0xf]
      %v2860 = vld [vmem:[%s951 + $0xc] sm:$0xf]
      %v2861 = vld [vmem:[%s951 + $0x10] sm:$0xf]
      %v2862 = vld [vmem:[%s951 + $0x14] sm:$0xf]
      %v2863 = vld [vmem:[%s951 + $0x18] sm:$0xf]
      %v2864 = vld [vmem:[%s951 + $0x1c] sm:$0xf]
      %v2865 = vld [vmem:[%s951 + $0x20] sm:$0xf]
      %v2866 = vld [vmem:[%s951 + $0x24] sm:$0xf]
      %v2867 = vld [vmem:[%s951 + $0x28] sm:$0xf]
      %v2868 = vld [vmem:[%s951 + $0x2c] sm:$0xf]
      %v2869 = vld [vmem:[%s951 + $0x30] sm:$0xf]
      %v2870 = vld [vmem:[%s951 + $0x34] sm:$0xf]
      %v2871 = vld [vmem:[%s951 + $0x38] sm:$0xf]
      %v2872 = vld [vmem:[%s951 + $0x3c] sm:$0xf]
      %v2873 = vld [vmem:[%s951 + $0x40] sm:$0xf]
      %v2874 = vld [vmem:[%s951 + $0x44] sm:$0xf]
      %v2875 = vld [vmem:[%s951 + $0x48] sm:$0xf]
      %v2876 = vld [vmem:[%s951 + $0x4c] sm:$0xf]
      %v2877 = vld [vmem:[%s951 + $0x50] sm:$0xf]
      %v2878 = vld [vmem:[%s951 + $0x54] sm:$0xf]
      %v2879 = vld [vmem:[%s951 + $0x58] sm:$0xf]
      %v2880 = vld [vmem:[%s951 + $0x5c] sm:$0xf]
      %v2881 = vld [vmem:[%s951 + $0x60] sm:$0xf]
      %v2882 = vld [vmem:[%s951 + $0x64] sm:$0xf]
      %v2883 = vld [vmem:[%s951 + $0x68] sm:$0xf]
      %v2884 = vld [vmem:[%s951 + $0x6c] sm:$0xf]
      %v2885 = vld [vmem:[%s951 + $0x70] sm:$0xf]
      %v2886 = vld [vmem:[%s951 + $0x74] sm:$0xf]
      %v2887 = vld [vmem:[%s951 + $0x78] sm:$0xf]
      %v2888 = vld [vmem:[%s951 + $0x7c] sm:$0xf]
      %v2889 = vld [vmem:[%s951 + $0x80] sm:$0xf]
      %v2890 = vld [vmem:[%s951 + $0x84] sm:$0xf]
      %v2891 = vld [vmem:[%s951 + $0x88] sm:$0xf]
      %v2892 = vld [vmem:[%s951 + $0x8c] sm:$0xf]
      %v2893 = vld [vmem:[%s951 + $0x90] sm:$0xf]
      %v2894 = vld [vmem:[%s951 + $0x94] sm:$0xf]
      %v2895 = vld [vmem:[%s951 + $0x98] sm:$0xf]
      %v2896 = vld [vmem:[%s951 + $0x9c] sm:$0xf]
      %v2897 = vld [vmem:[%s951 + $0xa0] sm:$0xf]
      %v2898 = vld [vmem:[%s951 + $0xa4] sm:$0xf]
      %v2899 = vld [vmem:[%s951 + $0xa8] sm:$0xf]
      %v2900 = vld [vmem:[%s951 + $0xac] sm:$0xf]
      %v2901 = vld [vmem:[%s951 + $0xb0] sm:$0xf]
      %v2902 = vld [vmem:[%s951 + $0xb4] sm:$0xf]
      %v2903 = vld [vmem:[%s951 + $0xb8] sm:$0xf]
      %v2904 = vld [vmem:[%s951 + $0xbc] sm:$0xf]
      %v2905 = vld [vmem:[%s951 + $0xc0] sm:$0xf]
      %v2906 = vld [vmem:[%s951 + $0xc4] sm:$0xf]
      %v2907 = vld [vmem:[%s951 + $0xc8] sm:$0xf]
      %v2908 = vld [vmem:[%s951 + $0xcc] sm:$0xf]
      %v2909 = vld [vmem:[%s951 + $0xd0] sm:$0xf]
      %v2910 = vld [vmem:[%s951 + $0xd4] sm:$0xf]
      %v2911 = vld [vmem:[%s951 + $0xd8] sm:$0xf]
      %v2912 = vld [vmem:[%s951 + $0xdc] sm:$0xf]
      %v2913 = vld [vmem:[%s951 + $0xe0] sm:$0xf]
      %v2914 = vld [vmem:[%s951 + $0xe4] sm:$0xf]
      %v2915 = vld [vmem:[%s951 + $0xe8] sm:$0xf]
      %v2916 = vld [vmem:[%s951 + $0xec] sm:$0xf]
      %v2917 = vld [vmem:[%s951 + $0xf0] sm:$0xf]
      %v2918 = vld [vmem:[%s951 + $0xf4] sm:$0xf]
      %v2919 = vld [vmem:[%s951 + $0xf8] sm:$0xf]
      %v2920 = vld [vmem:[%s951 + $0xfc] sm:$0xf]
      %v2921 = vld [vmem:[%s951 + $0x100] sm:$0xf]
      %v2922 = vld [vmem:[%s951 + $0x104] sm:$0xf]
      %v2923 = vld [vmem:[%s951 + $0x108] sm:$0xf]
      %v2924 = vld [vmem:[%s951 + $0x10c] sm:$0xf]
      %v2925 = vld [vmem:[%s951 + $0x110] sm:$0xf]
      %v2926 = vld [vmem:[%s951 + $0x114] sm:$0xf]
      %v2927 = vld [vmem:[%s951 + $0x118] sm:$0xf]
      %v2928 = vld [vmem:[%s951 + $0x11c] sm:$0xf]
      %v2929 = vld [vmem:[%s951 + $0x120] sm:$0xf]
      %v2930 = vld [vmem:[%s951 + $0x124] sm:$0xf]
      %v2931 = vld [vmem:[%s951 + $0x128] sm:$0xf]
      %v2932 = vld [vmem:[%s951 + $0x12c] sm:$0xf]
      %v2933 = vld [vmem:[%s951 + $0x130] sm:$0xf]
      %v2934 = vld [vmem:[%s951 + $0x134] sm:$0xf]
      %v2935 = vld [vmem:[%s951 + $0x138] sm:$0xf]
      %v2936 = vld [vmem:[%s951 + $0x13c] sm:$0xf]
      %v2937 = vld [vmem:[%s951 + $0x140] sm:$0xf]
      %v2938 = vld [vmem:[%s951 + $0x144] sm:$0xf]
      %v2939 = vld [vmem:[%s951 + $0x148] sm:$0xf]
      %v2940 = vld [vmem:[%s951 + $0x14c] sm:$0xf]
      %v2941 = vld [vmem:[%s951 + $0x150] sm:$0xf]
      %v2942 = vld [vmem:[%s951 + $0x154] sm:$0xf]
      %v2943 = vld [vmem:[%s951 + $0x158] sm:$0xf]
      %v2944 = vld [vmem:[%s951 + $0x15c] sm:$0xf]
      %v2945 = vld [vmem:[%s951 + $0x160] sm:$0xf]
      %v2946 = vld [vmem:[%s951 + $0x164] sm:$0xf]
      %v2947 = vld [vmem:[%s951 + $0x168] sm:$0xf]
      %v2948 = vld [vmem:[%s951 + $0x16c] sm:$0xf]
      %v2949 = vld [vmem:[%s951 + $0x170] sm:$0xf]
      %v2950 = vld [vmem:[%s951 + $0x174] sm:$0xf]
      %v2951 = vld [vmem:[%s951 + $0x178] sm:$0xf]
      %v2952 = vld [vmem:[%s951 + $0x17c] sm:$0xf]
      %v2953 = vld [vmem:[%s951 + $0x180] sm:$0xf]
      %v2954 = vld [vmem:[%s951 + $0x184] sm:$0xf]
      %v2955 = vld [vmem:[%s951 + $0x188] sm:$0xf]
      %v2956 = vld [vmem:[%s951 + $0x18c] sm:$0xf]
      %v2957 = vld [vmem:[%s951 + $0x190] sm:$0xf]
      %v2958 = vld [vmem:[%s951 + $0x194] sm:$0xf]
      %v2959 = vld [vmem:[%s951 + $0x198] sm:$0xf]
      %v2960 = vld [vmem:[%s951 + $0x19c] sm:$0xf]
      %v2961 = vld [vmem:[%s951 + $0x1a0] sm:$0xf]
      %v2962 = vld [vmem:[%s951 + $0x1a4] sm:$0xf]
      %v2963 = vld [vmem:[%s951 + $0x1a8] sm:$0xf]
      %v2964 = vld [vmem:[%s951 + $0x1ac] sm:$0xf]
      %v2965 = vld [vmem:[%s951 + $0x1b0] sm:$0xf]
      %v2966 = vld [vmem:[%s951 + $0x1b4] sm:$0xf]
      %v2967 = vld [vmem:[%s951 + $0x1b8] sm:$0xf]
      %v2968 = vld [vmem:[%s951 + $0x1bc] sm:$0xf]
      %v2969 = vld [vmem:[%s951 + $0x1c0] sm:$0xf]
      %v2970 = vld [vmem:[%s951 + $0x1c4] sm:$0xf]
      %v2971 = vld [vmem:[%s951 + $0x1c8] sm:$0xf]
      %v2972 = vld [vmem:[%s951 + $0x1cc] sm:$0xf]
      %v2973 = vld [vmem:[%s951 + $0x1d0] sm:$0xf]
      %v2974 = vld [vmem:[%s951 + $0x1d4] sm:$0xf]
      %v2975 = vld [vmem:[%s951 + $0x1d8] sm:$0xf]
      %v2976 = vld [vmem:[%s951 + $0x1dc] sm:$0xf]
      %v2977 = vld [vmem:[%s951 + $0x1e0] sm:$0xf]
      %v2978 = vld [vmem:[%s951 + $0x1e4] sm:$0xf]
      %v2979 = vld [vmem:[%s951 + $0x1e8] sm:$0xf]
      %v2980 = vld [vmem:[%s951 + $0x1ec] sm:$0xf]
      %v2981 = vld [vmem:[%s951 + $0x1f0] sm:$0xf]
      %v2982 = vld [vmem:[%s951 + $0x1f4] sm:$0xf]
      %v2983 = vld [vmem:[%s951 + $0x1f8] sm:$0xf]
      %v2984 = vld [vmem:[%s951 + $0x1fc] sm:$0xf]
      %v2985 = vld [vmem:[%s951 + $0x200] sm:$0xf]
      %v2986 = vld [vmem:[%s951 + $0x204] sm:$0xf]
      %v2987 = vld [vmem:[%s951 + $0x208] sm:$0xf]
      %v2988 = vld [vmem:[%s951 + $0x20c] sm:$0xf]
      %v2989 = vld [vmem:[%s951 + $0x210] sm:$0xf]
      %v2990 = vld [vmem:[%s951 + $0x214] sm:$0xf]
      %v2991 = vld [vmem:[%s951 + $0x218] sm:$0xf]
      %v2992 = vld [vmem:[%s951 + $0x21c] sm:$0xf]
      %v2993 = vld [vmem:[%s951 + $0x220] sm:$0xf]
      %v2994 = vld [vmem:[%s951 + $0x224] sm:$0xf]
      %v2995 = vld [vmem:[%s951 + $0x228] sm:$0xf]
      %v2996 = vld [vmem:[%s951 + $0x22c] sm:$0xf]
      %v2997 = vld [vmem:[%s951 + $0x230] sm:$0xf]
      %v2998 = vld [vmem:[%s951 + $0x234] sm:$0xf]
      %v2999 = vld [vmem:[%s951 + $0x238] sm:$0xf]
      %v3000 = vld [vmem:[%s951 + $0x23c] sm:$0xf]
      %v3001 = vld [vmem:[%s951 + $0x240] sm:$0xf]
      %v3002 = vld [vmem:[%s951 + $0x244] sm:$0xf]
      %v3003 = vld [vmem:[%s951 + $0x248] sm:$0xf]
      %v3004 = vld [vmem:[%s951 + $0x24c] sm:$0xf]
      %v3005 = vld [vmem:[%s951 + $0x250] sm:$0xf]
      %v3006 = vld [vmem:[%s951 + $0x254] sm:$0xf]
      %v3007 = vld [vmem:[%s951 + $0x258] sm:$0xf]
      %v3008 = vld [vmem:[%s951 + $0x25c] sm:$0xf]
      %v3009 = vld [vmem:[%s951 + $0x260] sm:$0xf]
      %v3010 = vld [vmem:[%s951 + $0x264] sm:$0xf]
      %v3011 = vld [vmem:[%s951 + $0x268] sm:$0xf]
      %v3012 = vld [vmem:[%s951 + $0x26c] sm:$0xf]
      %v3013 = vld [vmem:[%s951 + $0x270] sm:$0xf]
      %v3014 = vld [vmem:[%s951 + $0x274] sm:$0xf]
      %v3015 = vld [vmem:[%s951 + $0x278] sm:$0xf]
      %v3016 = vld [vmem:[%s951 + $0x27c] sm:$0xf]
      %v3017 = vld [vmem:[%s951 + $0x280] sm:$0xf]
      %v3018 = vld [vmem:[%s951 + $0x284] sm:$0xf]
      %v3019 = vld [vmem:[%s951 + $0x288] sm:$0xf]
      %v3020 = vld [vmem:[%s951 + $0x28c] sm:$0xf]
      %v3021 = vld [vmem:[%s951 + $0x290] sm:$0xf]
      %v3022 = vld [vmem:[%s951 + $0x294] sm:$0xf]
      %v3023 = vld [vmem:[%s951 + $0x298] sm:$0xf]
      %v3024 = vld [vmem:[%s951 + $0x29c] sm:$0xf]
      %v3025 = vld [vmem:[%s951 + $0x2a0] sm:$0xf]
      %v3026 = vld [vmem:[%s951 + $0x2a4] sm:$0xf]
      %v3027 = vld [vmem:[%s951 + $0x2a8] sm:$0xf]
      %v3028 = vld [vmem:[%s951 + $0x2ac] sm:$0xf]
      %v3029 = vld [vmem:[%s951 + $0x2b0] sm:$0xf]
      %v3030 = vld [vmem:[%s951 + $0x2b4] sm:$0xf]
      %v3031 = vld [vmem:[%s951 + $0x2b8] sm:$0xf]
      %v3032 = vld [vmem:[%s951 + $0x2bc] sm:$0xf]
      %v3033 = vld [vmem:[%s951 + $0x2c0] sm:$0xf]
      %v3034 = vld [vmem:[%s951 + $0x2c4] sm:$0xf]
      %v3035 = vld [vmem:[%s951 + $0x2c8] sm:$0xf]
      %v3036 = vld [vmem:[%s951 + $0x2cc] sm:$0xf]
      %v3037 = vld [vmem:[%s951 + $0x2d0] sm:$0xf]
      %v3038 = vld [vmem:[%s951 + $0x2d4] sm:$0xf]
      %v3039 = vld [vmem:[%s951 + $0x2d8] sm:$0xf]
      %v3040 = vld [vmem:[%s951 + $0x2dc] sm:$0xf]
      %v3041 = vld [vmem:[%s951 + $0x2e0] sm:$0xf]
      %v3042 = vld [vmem:[%s951 + $0x2e4] sm:$0xf]
      %v3043 = vld [vmem:[%s951 + $0x2e8] sm:$0xf]
      %v3044 = vld [vmem:[%s951 + $0x2ec] sm:$0xf]
      %v3045 = vld [vmem:[%s951 + $0x2f0] sm:$0xf]
      %v3046 = vld [vmem:[%s951 + $0x2f4] sm:$0xf]
      %v3047 = vld [vmem:[%s951 + $0x2f8] sm:$0xf]
      %v3048 = vld [vmem:[%s951 + $0x2fc] sm:$0xf]
      %v3049 = vld [vmem:[%s951 + $0x300] sm:$0xf]
      %v3050 = vld [vmem:[%s951 + $0x304] sm:$0xf]
      %v3051 = vld [vmem:[%s951 + $0x308] sm:$0xf]
      %v3052 = vld [vmem:[%s951 + $0x30c] sm:$0xf]
      %v3053 = vld [vmem:[%s951 + $0x310] sm:$0xf]
      %v3054 = vld [vmem:[%s951 + $0x314] sm:$0xf]
      %v3055 = vld [vmem:[%s951 + $0x318] sm:$0xf]
      %v3056 = vld [vmem:[%s951 + $0x31c] sm:$0xf]
      %v3057 = vld [vmem:[%s951 + $0x320] sm:$0xf]
      %v3058 = vld [vmem:[%s951 + $0x324] sm:$0xf]
      %v3059 = vld [vmem:[%s951 + $0x328] sm:$0xf]
      %v3060 = vld [vmem:[%s951 + $0x32c] sm:$0xf]
      %v3061 = vld [vmem:[%s951 + $0x330] sm:$0xf]
      %v3062 = vld [vmem:[%s951 + $0x334] sm:$0xf]
      %v3063 = vld [vmem:[%s951 + $0x338] sm:$0xf]
      %v3064 = vld [vmem:[%s951 + $0x33c] sm:$0xf]
      %v3065 = vld [vmem:[%s951 + $0x340] sm:$0xf]
      %v3066 = vld [vmem:[%s951 + $0x344] sm:$0xf]
      %v3067 = vld [vmem:[%s951 + $0x348] sm:$0xf]
      %v3068 = vld [vmem:[%s951 + $0x34c] sm:$0xf]
      %v3069 = vld [vmem:[%s951 + $0x350] sm:$0xf]
      %v3070 = vld [vmem:[%s951 + $0x354] sm:$0xf]
      %v3071 = vld [vmem:[%s951 + $0x358] sm:$0xf]
      %v3072 = vld [vmem:[%s951 + $0x35c] sm:$0xf]
      %v3073 = vld [vmem:[%s951 + $0x360] sm:$0xf]
      %v3074 = vld [vmem:[%s951 + $0x364] sm:$0xf]
      %v3075 = vld [vmem:[%s951 + $0x368] sm:$0xf]
      %v3076 = vld [vmem:[%s951 + $0x36c] sm:$0xf]
      %v3077 = vld [vmem:[%s951 + $0x370] sm:$0xf]
      %v3078 = vld [vmem:[%s951 + $0x374] sm:$0xf]
      %v3079 = vld [vmem:[%s951 + $0x378] sm:$0xf]
      %v3080 = vld [vmem:[%s951 + $0x37c] sm:$0xf]
      %v3081 = vld [vmem:[%s951 + $0x380] sm:$0xf]
      %v3082 = vld [vmem:[%s951 + $0x384] sm:$0xf]
      %v3083 = vld [vmem:[%s951 + $0x388] sm:$0xf]
      %v3084 = vld [vmem:[%s951 + $0x38c] sm:$0xf]
      %v3085 = vld [vmem:[%s951 + $0x390] sm:$0xf]
      %v3086 = vld [vmem:[%s951 + $0x394] sm:$0xf]
      %v3087 = vld [vmem:[%s951 + $0x398] sm:$0xf]
      %v3088 = vld [vmem:[%s951 + $0x39c] sm:$0xf]
      %v3089 = vld [vmem:[%s951 + $0x3a0] sm:$0xf]
      %v3090 = vld [vmem:[%s951 + $0x3a4] sm:$0xf]
      %v3091 = vld [vmem:[%s951 + $0x3a8] sm:$0xf]
      %v3092 = vld [vmem:[%s951 + $0x3ac] sm:$0xf]
      %v3093 = vld [vmem:[%s951 + $0x3b0] sm:$0xf]
      %v3094 = vld [vmem:[%s951 + $0x3b4] sm:$0xf]
      %v3095 = vld [vmem:[%s951 + $0x3b8] sm:$0xf]
      %v3096 = vld [vmem:[%s951 + $0x3bc] sm:$0xf]
      %v3097 = vld [vmem:[%s951 + $0x3c0] sm:$0xf]
      %v3098 = vld [vmem:[%s951 + $0x3c4] sm:$0xf]
      %v3099 = vld [vmem:[%s951 + $0x3c8] sm:$0xf]
      %v3100 = vld [vmem:[%s951 + $0x3cc] sm:$0xf]
      %v3101 = vld [vmem:[%s951 + $0x3d0] sm:$0xf]
      %v3102 = vld [vmem:[%s951 + $0x3d4] sm:$0xf]
      %v3103 = vld [vmem:[%s951 + $0x3d8] sm:$0xf]
      %v3104 = vld [vmem:[%s951 + $0x3dc] sm:$0xf]
      %v3105 = vld [vmem:[%s951 + $0x3e0] sm:$0xf]
      %v3106 = vld [vmem:[%s951 + $0x3e4] sm:$0xf]
      %v3107 = vld [vmem:[%s951 + $0x3e8] sm:$0xf]
      %v3108 = vld [vmem:[%s951 + $0x3ec] sm:$0xf]
      %v3109 = vld [vmem:[%s951 + $0x3f0] sm:$0xf]
      %v3110 = vld [vmem:[%s951 + $0x3f4] sm:$0xf]
      %v3111 = vld [vmem:[%s951 + $0x3f8] sm:$0xf]
      %v3112 = vld [vmem:[%s951 + $0x3fc] sm:$0xf]
      %v3113 = vld [vmem:[%s958] sm:$0x1]
      %v3115 = vlaneseq
      %v3116 = vshrl.u32 %v3115, 7
      %v3117 = vsub.s32 0, %v3116
      %v3118 = vrot.slane %v3113, %v3117
      %v3376 = vunpack.c.l.b16 %v2857
      %v3377 = vunpack.c.l.b16 %v2858
      %v3378 = vunpack.c.l.b16 %v2859
      %v3379 = vunpack.c.l.b16 %v2860
      %v3380 = vunpack.c.l.b16 %v2861
      %v3381 = vunpack.c.l.b16 %v2862
      %v3382 = vunpack.c.l.b16 %v2863
      %v3383 = vunpack.c.l.b16 %v2864
      %v3384 = vunpack.c.l.b16 %v2865
      %v3385 = vunpack.c.l.b16 %v2866
      %v3386 = vunpack.c.l.b16 %v2867
      %v3387 = vunpack.c.l.b16 %v2868
      %v3388 = vunpack.c.l.b16 %v2869
      %v3389 = vunpack.c.l.b16 %v2870
      %v3390 = vunpack.c.l.b16 %v2871
      %v3391 = vunpack.c.l.b16 %v2872
      %v3392 = vunpack.c.l.b16 %v2873
      %v3393 = vunpack.c.l.b16 %v2874
      %v3394 = vunpack.c.l.b16 %v2875
      %v3395 = vunpack.c.l.b16 %v2876
      %v3396 = vunpack.c.l.b16 %v2877
      %v3397 = vunpack.c.l.b16 %v2878
      %v3398 = vunpack.c.l.b16 %v2879
      %v3399 = vunpack.c.l.b16 %v2880
      %v3400 = vunpack.c.l.b16 %v2881
      %v3401 = vunpack.c.l.b16 %v2882
      %v3402 = vunpack.c.l.b16 %v2883
      %v3403 = vunpack.c.l.b16 %v2884
      %v3404 = vunpack.c.l.b16 %v2885
      %v3405 = vunpack.c.l.b16 %v2886
      %v3406 = vunpack.c.l.b16 %v2887
      %v3407 = vunpack.c.l.b16 %v2888
      %v3408 = vunpack.c.l.b16 %v2889
      %v3409 = vunpack.c.l.b16 %v2890
      %v3410 = vunpack.c.l.b16 %v2891
      %v3411 = vunpack.c.l.b16 %v2892
      %v3412 = vunpack.c.l.b16 %v2893
      %v3413 = vunpack.c.l.b16 %v2894
      %v3414 = vunpack.c.l.b16 %v2895
      %v3415 = vunpack.c.l.b16 %v2896
      %v3416 = vunpack.c.l.b16 %v2897
      %v3417 = vunpack.c.l.b16 %v2898
      %v3418 = vunpack.c.l.b16 %v2899
      %v3419 = vunpack.c.l.b16 %v2900
      %v3420 = vunpack.c.l.b16 %v2901
      %v3421 = vunpack.c.l.b16 %v2902
      %v3422 = vunpack.c.l.b16 %v2903
      %v3423 = vunpack.c.l.b16 %v2904
      %v3424 = vunpack.c.l.b16 %v2905
      %v3425 = vunpack.c.l.b16 %v2906
      %v3426 = vunpack.c.l.b16 %v2907
      %v3427 = vunpack.c.l.b16 %v2908
      %v3428 = vunpack.c.l.b16 %v2909
      %v3429 = vunpack.c.l.b16 %v2910
      %v3430 = vunpack.c.l.b16 %v2911
      %v3431 = vunpack.c.l.b16 %v2912
      %v3432 = vunpack.c.l.b16 %v2913
      %v3433 = vunpack.c.l.b16 %v2914
      %v3434 = vunpack.c.l.b16 %v2915
      %v3435 = vunpack.c.l.b16 %v2916
      %v3436 = vunpack.c.l.b16 %v2917
      %v3437 = vunpack.c.l.b16 %v2918
      %v3438 = vunpack.c.l.b16 %v2919
      %v3439 = vunpack.c.l.b16 %v2920
      %v3440 = vunpack.c.l.b16 %v2921
      %v3441 = vunpack.c.l.b16 %v2922
      %v3442 = vunpack.c.l.b16 %v2923
      %v3443 = vunpack.c.l.b16 %v2924
      %v3444 = vunpack.c.l.b16 %v2925
      %v3445 = vunpack.c.l.b16 %v2926
      %v3446 = vunpack.c.l.b16 %v2927
      %v3447 = vunpack.c.l.b16 %v2928
      %v3448 = vunpack.c.l.b16 %v2929
      %v3449 = vunpack.c.l.b16 %v2930
      %v3450 = vunpack.c.l.b16 %v2931
      %v3451 = vunpack.c.l.b16 %v2932
      %v3452 = vunpack.c.l.b16 %v2933
      %v3453 = vunpack.c.l.b16 %v2934
      %v3454 = vunpack.c.l.b16 %v2935
      %v3455 = vunpack.c.l.b16 %v2936
      %v3456 = vunpack.c.l.b16 %v2937
      %v3457 = vunpack.c.l.b16 %v2938
      %v3458 = vunpack.c.l.b16 %v2939
      %v3459 = vunpack.c.l.b16 %v2940
      %v3460 = vunpack.c.l.b16 %v2941
      %v3461 = vunpack.c.l.b16 %v2942
      %v3462 = vunpack.c.l.b16 %v2943
      %v3463 = vunpack.c.l.b16 %v2944
      %v3464 = vunpack.c.l.b16 %v2945
      %v3465 = vunpack.c.l.b16 %v2946
      %v3466 = vunpack.c.l.b16 %v2947
      %v3467 = vunpack.c.l.b16 %v2948
      %v3468 = vunpack.c.l.b16 %v2949
      %v3469 = vunpack.c.l.b16 %v2950
      %v3470 = vunpack.c.l.b16 %v2951
      %v3471 = vunpack.c.l.b16 %v2952
      %v3472 = vunpack.c.l.b16 %v2953
      %v3473 = vunpack.c.l.b16 %v2954
      %v3474 = vunpack.c.l.b16 %v2955
      %v3475 = vunpack.c.l.b16 %v2956
      %v3476 = vunpack.c.l.b16 %v2957
      %v3477 = vunpack.c.l.b16 %v2958
      %v3478 = vunpack.c.l.b16 %v2959
      %v3479 = vunpack.c.l.b16 %v2960
      %v3480 = vunpack.c.l.b16 %v2961
      %v3481 = vunpack.c.l.b16 %v2962
      %v3482 = vunpack.c.l.b16 %v2963
      %v3483 = vunpack.c.l.b16 %v2964
      %v3484 = vunpack.c.l.b16 %v2965
      %v3485 = vunpack.c.l.b16 %v2966
      %v3486 = vunpack.c.l.b16 %v2967
      %v3487 = vunpack.c.l.b16 %v2968
      %v3488 = vunpack.c.l.b16 %v2969
      %v3489 = vunpack.c.l.b16 %v2970
      %v3490 = vunpack.c.l.b16 %v2971
      %v3491 = vunpack.c.l.b16 %v2972
      %v3492 = vunpack.c.l.b16 %v2973
      %v3493 = vunpack.c.l.b16 %v2974
      %v3494 = vunpack.c.l.b16 %v2975
      %v3495 = vunpack.c.l.b16 %v2976
      %v3496 = vunpack.c.l.b16 %v2977
      %v3497 = vunpack.c.l.b16 %v2978
      %v3498 = vunpack.c.l.b16 %v2979
      %v3499 = vunpack.c.l.b16 %v2980
      %v3500 = vunpack.c.l.b16 %v2981
      %v3501 = vunpack.c.l.b16 %v2982
      %v3502 = vunpack.c.l.b16 %v2983
      %v3503 = vunpack.c.l.b16 %v2984
      %v3504 = vunpack.c.l.b16 %v2985
      %v3505 = vunpack.c.l.b16 %v2986
      %v3506 = vunpack.c.l.b16 %v2987
      %v3507 = vunpack.c.l.b16 %v2988
      %v3508 = vunpack.c.l.b16 %v2989
      %v3509 = vunpack.c.l.b16 %v2990
      %v3510 = vunpack.c.l.b16 %v2991
      %v3511 = vunpack.c.l.b16 %v2992
      %v3512 = vunpack.c.l.b16 %v2993
      %v3513 = vunpack.c.l.b16 %v2994
      %v3514 = vunpack.c.l.b16 %v2995
      %v3515 = vunpack.c.l.b16 %v2996
      %v3516 = vunpack.c.l.b16 %v2997
      %v3517 = vunpack.c.l.b16 %v2998
      %v3518 = vunpack.c.l.b16 %v2999
      %v3519 = vunpack.c.l.b16 %v3000
      %v3520 = vunpack.c.l.b16 %v3001
      %v3521 = vunpack.c.l.b16 %v3002
      %v3522 = vunpack.c.l.b16 %v3003
      %v3523 = vunpack.c.l.b16 %v3004
      %v3524 = vunpack.c.l.b16 %v3005
      %v3525 = vunpack.c.l.b16 %v3006
      %v3526 = vunpack.c.l.b16 %v3007
      %v3527 = vunpack.c.l.b16 %v3008
      %v3528 = vunpack.c.l.b16 %v3009
      %v3529 = vunpack.c.l.b16 %v3010
      %v3530 = vunpack.c.l.b16 %v3011
      %v3531 = vunpack.c.l.b16 %v3012
      %v3532 = vunpack.c.l.b16 %v3013
      %v3533 = vunpack.c.l.b16 %v3014
      %v3534 = vunpack.c.l.b16 %v3015
      %v3535 = vunpack.c.l.b16 %v3016
      %v3536 = vunpack.c.l.b16 %v3017
      %v3537 = vunpack.c.l.b16 %v3018
      %v3538 = vunpack.c.l.b16 %v3019
      %v3539 = vunpack.c.l.b16 %v3020
      %v3540 = vunpack.c.l.b16 %v3021
      %v3541 = vunpack.c.l.b16 %v3022
      %v3542 = vunpack.c.l.b16 %v3023
      %v3543 = vunpack.c.l.b16 %v3024
      %v3544 = vunpack.c.l.b16 %v3025
      %v3545 = vunpack.c.l.b16 %v3026
      %v3546 = vunpack.c.l.b16 %v3027
      %v3547 = vunpack.c.l.b16 %v3028
      %v3548 = vunpack.c.l.b16 %v3029
      %v3549 = vunpack.c.l.b16 %v3030
      %v3550 = vunpack.c.l.b16 %v3031
      %v3551 = vunpack.c.l.b16 %v3032
      %v3552 = vunpack.c.l.b16 %v3033
      %v3553 = vunpack.c.l.b16 %v3034
      %v3554 = vunpack.c.l.b16 %v3035
      %v3555 = vunpack.c.l.b16 %v3036
      %v3556 = vunpack.c.l.b16 %v3037
      %v3557 = vunpack.c.l.b16 %v3038
      %v3558 = vunpack.c.l.b16 %v3039
      %v3559 = vunpack.c.l.b16 %v3040
      %v3560 = vunpack.c.l.b16 %v3041
      %v3561 = vunpack.c.l.b16 %v3042
      %v3562 = vunpack.c.l.b16 %v3043
      %v3563 = vunpack.c.l.b16 %v3044
      %v3564 = vunpack.c.l.b16 %v3045
      %v3565 = vunpack.c.l.b16 %v3046
      %v3566 = vunpack.c.l.b16 %v3047
      %v3567 = vunpack.c.l.b16 %v3048
      %v3568 = vunpack.c.l.b16 %v3049
      %v3569 = vunpack.c.l.b16 %v3050
      %v3570 = vunpack.c.l.b16 %v3051
      %v3571 = vunpack.c.l.b16 %v3052
      %v3572 = vunpack.c.l.b16 %v3053
      %v3573 = vunpack.c.l.b16 %v3054
      %v3574 = vunpack.c.l.b16 %v3055
      %v3575 = vunpack.c.l.b16 %v3056
      %v3576 = vunpack.c.l.b16 %v3057
      %v3577 = vunpack.c.l.b16 %v3058
      %v3578 = vunpack.c.l.b16 %v3059
      %v3579 = vunpack.c.l.b16 %v3060
      %v3580 = vunpack.c.l.b16 %v3061
      %v3581 = vunpack.c.l.b16 %v3062
      %v3582 = vunpack.c.l.b16 %v3063
      %v3583 = vunpack.c.l.b16 %v3064
      %v3584 = vunpack.c.l.b16 %v3065
      %v3585 = vunpack.c.l.b16 %v3066
      %v3586 = vunpack.c.l.b16 %v3067
      %v3587 = vunpack.c.l.b16 %v3068
      %v3588 = vunpack.c.l.b16 %v3069
      %v3589 = vunpack.c.l.b16 %v3070
      %v3590 = vunpack.c.l.b16 %v3071
      %v3591 = vunpack.c.l.b16 %v3072
      %v3592 = vunpack.c.l.b16 %v3073
      %v3593 = vunpack.c.l.b16 %v3074
      %v3594 = vunpack.c.l.b16 %v3075
      %v3595 = vunpack.c.l.b16 %v3076
      %v3596 = vunpack.c.l.b16 %v3077
      %v3597 = vunpack.c.l.b16 %v3078
      %v3598 = vunpack.c.l.b16 %v3079
      %v3599 = vunpack.c.l.b16 %v3080
      %v3600 = vunpack.c.l.b16 %v3081
      %v3601 = vunpack.c.l.b16 %v3082
      %v3602 = vunpack.c.l.b16 %v3083
      %v3603 = vunpack.c.l.b16 %v3084
      %v3604 = vunpack.c.l.b16 %v3085
      %v3605 = vunpack.c.l.b16 %v3086
      %v3606 = vunpack.c.l.b16 %v3087
      %v3607 = vunpack.c.l.b16 %v3088
      %v3608 = vunpack.c.l.b16 %v3089
      %v3609 = vunpack.c.l.b16 %v3090
      %v3610 = vunpack.c.l.b16 %v3091
      %v3611 = vunpack.c.l.b16 %v3092
      %v3612 = vunpack.c.l.b16 %v3093
      %v3613 = vunpack.c.l.b16 %v3094
      %v3614 = vunpack.c.l.b16 %v3095
      %v3615 = vunpack.c.l.b16 %v3096
      %v3616 = vunpack.c.l.b16 %v3097
      %v3617 = vunpack.c.l.b16 %v3098
      %v3618 = vunpack.c.l.b16 %v3099
      %v3619 = vunpack.c.l.b16 %v3100
      %v3620 = vunpack.c.l.b16 %v3101
      %v3621 = vunpack.c.l.b16 %v3102
      %v3622 = vunpack.c.l.b16 %v3103
      %v3623 = vunpack.c.l.b16 %v3104
      %v3624 = vunpack.c.l.b16 %v3105
      %v3625 = vunpack.c.l.b16 %v3106
      %v3626 = vunpack.c.l.b16 %v3107
      %v3627 = vunpack.c.l.b16 %v3108
      %v3628 = vunpack.c.l.b16 %v3109
      %v3629 = vunpack.c.l.b16 %v3110
      %v3630 = vunpack.c.l.b16 %v3111
      %v3631 = vunpack.c.l.b16 %v3112
      %v3632 = vpack.c.b16 %v3377, %v3376
      %v3633 = vpack.c.b16 %v3379, %v3378
      %v3634 = vpack.c.b16 %v3381, %v3380
      %v3635 = vpack.c.b16 %v3383, %v3382
      %v3636 = vpack.c.b16 %v3385, %v3384
      %v3637 = vpack.c.b16 %v3387, %v3386
      %v3638 = vpack.c.b16 %v3389, %v3388
      %v3639 = vpack.c.b16 %v3391, %v3390
      %v3640 = vpack.c.b16 %v3393, %v3392
      %v3641 = vpack.c.b16 %v3395, %v3394
      %v3642 = vpack.c.b16 %v3397, %v3396
      %v3643 = vpack.c.b16 %v3399, %v3398
      %v3644 = vpack.c.b16 %v3401, %v3400
      %v3645 = vpack.c.b16 %v3403, %v3402
      %v3646 = vpack.c.b16 %v3405, %v3404
      %v3647 = vpack.c.b16 %v3407, %v3406
      %v3648 = vpack.c.b16 %v3409, %v3408
      %v3649 = vpack.c.b16 %v3411, %v3410
      %v3650 = vpack.c.b16 %v3413, %v3412
      %v3651 = vpack.c.b16 %v3415, %v3414
      %v3652 = vpack.c.b16 %v3417, %v3416
      %v3653 = vpack.c.b16 %v3419, %v3418
      %v3654 = vpack.c.b16 %v3421, %v3420
      %v3655 = vpack.c.b16 %v3423, %v3422
      %v3656 = vpack.c.b16 %v3425, %v3424
      %v3657 = vpack.c.b16 %v3427, %v3426
      %v3658 = vpack.c.b16 %v3429, %v3428
      %v3659 = vpack.c.b16 %v3431, %v3430
      %v3660 = vpack.c.b16 %v3433, %v3432
      %v3661 = vpack.c.b16 %v3435, %v3434
      %v3662 = vpack.c.b16 %v3437, %v3436
      %v3663 = vpack.c.b16 %v3439, %v3438
      %v3664 = vpack.c.b16 %v3441, %v3440
      %v3665 = vpack.c.b16 %v3443, %v3442
      %v3666 = vpack.c.b16 %v3445, %v3444
      %v3667 = vpack.c.b16 %v3447, %v3446
      %v3668 = vpack.c.b16 %v3449, %v3448
      %v3669 = vpack.c.b16 %v3451, %v3450
      %v3670 = vpack.c.b16 %v3453, %v3452
      %v3671 = vpack.c.b16 %v3455, %v3454
      %v3672 = vpack.c.b16 %v3457, %v3456
      %v3673 = vpack.c.b16 %v3459, %v3458
      %v3674 = vpack.c.b16 %v3461, %v3460
      %v3675 = vpack.c.b16 %v3463, %v3462
      %v3676 = vpack.c.b16 %v3465, %v3464
      %v3677 = vpack.c.b16 %v3467, %v3466
      %v3678 = vpack.c.b16 %v3469, %v3468
      %v3679 = vpack.c.b16 %v3471, %v3470
      %v3680 = vpack.c.b16 %v3473, %v3472
      %v3681 = vpack.c.b16 %v3475, %v3474
      %v3682 = vpack.c.b16 %v3477, %v3476
      %v3683 = vpack.c.b16 %v3479, %v3478
      %v3684 = vpack.c.b16 %v3481, %v3480
      %v3685 = vpack.c.b16 %v3483, %v3482
      %v3686 = vpack.c.b16 %v3485, %v3484
      %v3687 = vpack.c.b16 %v3487, %v3486
      %v3688 = vpack.c.b16 %v3489, %v3488
      %v3689 = vpack.c.b16 %v3491, %v3490
      %v3690 = vpack.c.b16 %v3493, %v3492
      %v3691 = vpack.c.b16 %v3495, %v3494
      %v3692 = vpack.c.b16 %v3497, %v3496
      %v3693 = vpack.c.b16 %v3499, %v3498
      %v3694 = vpack.c.b16 %v3501, %v3500
      %v3695 = vpack.c.b16 %v3503, %v3502
      %v3696 = vpack.c.b16 %v3505, %v3504
      %v3697 = vpack.c.b16 %v3507, %v3506
      %v3698 = vpack.c.b16 %v3509, %v3508
      %v3699 = vpack.c.b16 %v3511, %v3510
      %v3700 = vpack.c.b16 %v3513, %v3512
      %v3701 = vpack.c.b16 %v3515, %v3514
      %v3702 = vpack.c.b16 %v3517, %v3516
      %v3703 = vpack.c.b16 %v3519, %v3518
      %v3704 = vpack.c.b16 %v3521, %v3520
      %v3705 = vpack.c.b16 %v3523, %v3522
      %v3706 = vpack.c.b16 %v3525, %v3524
      %v3707 = vpack.c.b16 %v3527, %v3526
      %v3708 = vpack.c.b16 %v3529, %v3528
      %v3709 = vpack.c.b16 %v3531, %v3530
      %v3710 = vpack.c.b16 %v3533, %v3532
      %v3711 = vpack.c.b16 %v3535, %v3534
      %v3712 = vpack.c.b16 %v3537, %v3536
      %v3713 = vpack.c.b16 %v3539, %v3538
      %v3714 = vpack.c.b16 %v3541, %v3540
      %v3715 = vpack.c.b16 %v3543, %v3542
      %v3716 = vpack.c.b16 %v3545, %v3544
      %v3717 = vpack.c.b16 %v3547, %v3546
      %v3718 = vpack.c.b16 %v3549, %v3548
      %v3719 = vpack.c.b16 %v3551, %v3550
      %v3720 = vpack.c.b16 %v3553, %v3552
      %v3721 = vpack.c.b16 %v3555, %v3554
      %v3722 = vpack.c.b16 %v3557, %v3556
      %v3723 = vpack.c.b16 %v3559, %v3558
      %v3724 = vpack.c.b16 %v3561, %v3560
      %v3725 = vpack.c.b16 %v3563, %v3562
      %v3726 = vpack.c.b16 %v3565, %v3564
      %v3727 = vpack.c.b16 %v3567, %v3566
      %v3728 = vpack.c.b16 %v3569, %v3568
      %v3729 = vpack.c.b16 %v3571, %v3570
      %v3730 = vpack.c.b16 %v3573, %v3572
      %v3731 = vpack.c.b16 %v3575, %v3574
      %v3732 = vpack.c.b16 %v3577, %v3576
      %v3733 = vpack.c.b16 %v3579, %v3578
      %v3734 = vpack.c.b16 %v3581, %v3580
      %v3735 = vpack.c.b16 %v3583, %v3582
      %v3736 = vpack.c.b16 %v3585, %v3584
      %v3737 = vpack.c.b16 %v3587, %v3586
      %v3738 = vpack.c.b16 %v3589, %v3588
      %v3739 = vpack.c.b16 %v3591, %v3590
      %v3740 = vpack.c.b16 %v3593, %v3592
      %v3741 = vpack.c.b16 %v3595, %v3594
      %v3742 = vpack.c.b16 %v3597, %v3596
      %v3743 = vpack.c.b16 %v3599, %v3598
      %v3744 = vpack.c.b16 %v3601, %v3600
      %v3745 = vpack.c.b16 %v3603, %v3602
      %v3746 = vpack.c.b16 %v3605, %v3604
      %v3747 = vpack.c.b16 %v3607, %v3606
      %v3748 = vpack.c.b16 %v3609, %v3608
      %v3749 = vpack.c.b16 %v3611, %v3610
      %v3750 = vpack.c.b16 %v3613, %v3612
      %v3751 = vpack.c.b16 %v3615, %v3614
      %v3752 = vpack.c.b16 %v3617, %v3616
      %v3753 = vpack.c.b16 %v3619, %v3618
      %v3754 = vpack.c.b16 %v3621, %v3620
      %v3755 = vpack.c.b16 %v3623, %v3622
      %v3756 = vpack.c.b16 %v3625, %v3624
      %v3757 = vpack.c.b16 %v3627, %v3626
      %v3758 = vpack.c.b16 %v3629, %v3628
      %v3759 = vpack.c.b16 %v3631, %v3630
      %3888 = vmatprep.subr.bf16.mxu0 0
      %3889 = vmatpush1.bf16.msra.mxu0 %v3632
      %3890 = vmatprep.subr.bf16.mxu0 0
      %3891 = vmatpush1.bf16.msra.mxu0 %v3633
      %3892 = vmatprep.subr.bf16.mxu0 0
      %3893 = vmatpush1.bf16.msra.mxu0 %v3634
      %3894 = vmatprep.subr.bf16.mxu0 0
      %3895 = vmatpush1.bf16.msra.mxu0 %v3635
      %3896 = vmatprep.subr.bf16.mxu0 0
      %3897 = vmatpush1.bf16.msra.mxu0 %v3636
      %3898 = vmatprep.subr.bf16.mxu0 0
      %3899 = vmatpush1.bf16.msra.mxu0 %v3637
      %3900 = vmatprep.subr.bf16.mxu0 0
      %3901 = vmatpush1.bf16.msra.mxu0 %v3638
      %3902 = vmatprep.subr.bf16.mxu0 0
      %3903 = vmatpush1.bf16.msra.mxu0 %v3639
      %3904 = vmatprep.subr.bf16.mxu0 0
      %3905 = vmatpush1.bf16.msra.mxu0 %v3640
      %3906 = vmatprep.subr.bf16.mxu0 0
      %3907 = vmatpush1.bf16.msra.mxu0 %v3641
      %3908 = vmatprep.subr.bf16.mxu0 0
      %3909 = vmatpush1.bf16.msra.mxu0 %v3642
      %3910 = vmatprep.subr.bf16.mxu0 0
      %3911 = vmatpush1.bf16.msra.mxu0 %v3643
      %3912 = vmatprep.subr.bf16.mxu0 0
      %3913 = vmatpush1.bf16.msra.mxu0 %v3644
      %3914 = vmatprep.subr.bf16.mxu0 0
      %3915 = vmatpush1.bf16.msra.mxu0 %v3645
      %3916 = vmatprep.subr.bf16.mxu0 0
      %3917 = vmatpush1.bf16.msra.mxu0 %v3646
      %3918 = vmatprep.subr.bf16.mxu0 0
      %3919 = vmatpush1.bf16.msra.mxu0 %v3647
      %3920 = vmatprep.mubr.bf16.mxu0 %v2842
      %3921 = vmatmul.mubr.bf16.gmra.mrb[0].mxu0 %v2841
      %v3922 = vpop.f32.mrb[0].mxu0
      %v3923 = vadd.f32 %v3118, %v3922
      %v3924 = vpop.f32.mrb[0].mxu0
      %v3925 = vpop.f32.mrb[0].mxu0
      %v3926 = vadd.f32 %v3118, %v3925
      %v3927 = vpop.f32.mrb[0].mxu0
      %3928 = vdwg.mxu0
      %3929 = vmatprep.subr.bf16.mxu0 0
      %3930 = vmatpush1.bf16.msra.mxu0 %v3648
      %3931 = vmatprep.subr.bf16.mxu0 0
      %3932 = vmatpush1.bf16.msra.mxu0 %v3649
      %3933 = vmatprep.subr.bf16.mxu0 0
      %3934 = vmatpush1.bf16.msra.mxu0 %v3650
      %3935 = vmatprep.subr.bf16.mxu0 0
      %3936 = vmatpush1.bf16.msra.mxu0 %v3651
      %3937 = vmatprep.subr.bf16.mxu0 0
      %3938 = vmatpush1.bf16.msra.mxu0 %v3652
      %3939 = vmatprep.subr.bf16.mxu0 0
      %3940 = vmatpush1.bf16.msra.mxu0 %v3653
      %3941 = vmatprep.subr.bf16.mxu0 0
      %3942 = vmatpush1.bf16.msra.mxu0 %v3654
      %3943 = vmatprep.subr.bf16.mxu0 0
      %3944 = vmatpush1.bf16.msra.mxu0 %v3655
      %3945 = vmatprep.subr.bf16.mxu0 0
      %3946 = vmatpush1.bf16.msra.mxu0 %v3656
      %3947 = vmatprep.subr.bf16.mxu0 0
      %3948 = vmatpush1.bf16.msra.mxu0 %v3657
      %3949 = vmatprep.subr.bf16.mxu0 0
      %3950 = vmatpush1.bf16.msra.mxu0 %v3658
      %3951 = vmatprep.subr.bf16.mxu0 0
      %3952 = vmatpush1.bf16.msra.mxu0 %v3659
      %3953 = vmatprep.subr.bf16.mxu0 0
      %3954 = vmatpush1.bf16.msra.mxu0 %v3660
      %3955 = vmatprep.subr.bf16.mxu0 0
      %3956 = vmatpush1.bf16.msra.mxu0 %v3661
      %3957 = vmatprep.subr.bf16.mxu0 0
      %3958 = vmatpush1.bf16.msra.mxu0 %v3662
      %3959 = vmatprep.subr.bf16.mxu0 0
      %3960 = vmatpush1.bf16.msra.mxu0 %v3663
      %3961 = vmatprep.mubr.bf16.mxu0 %v2844
      %3962 = vmatmul.mubr.bf16.gmra.mrb[0].mxu0 %v2843
      %v3963 = vpop.f32.mrb[0].mxu0
      %v3964 = vadd.f32 %v3923, %v3963
      %v3965 = vpop.f32.mrb[0].mxu0
      %v3966 = vpop.f32.mrb[0].mxu0
      %v3967 = vadd.f32 %v3926, %v3966
      %v3968 = vpop.f32.mrb[0].mxu0
      %3969 = vdwg.mxu0
      %3970 = vmatprep.subr.bf16.mxu0 0
      %3971 = vmatpush1.bf16.msra.mxu0 %v3664
      %3972 = vmatprep.subr.bf16.mxu0 0
      %3973 = vmatpush1.bf16.msra.mxu0 %v3665
      %3974 = vmatprep.subr.bf16.mxu0 0
      %3975 = vmatpush1.bf16.msra.mxu0 %v3666
      %3976 = vmatprep.subr.bf16.mxu0 0
      %3977 = vmatpush1.bf16.msra.mxu0 %v3667
      %3978 = vmatprep.subr.bf16.mxu0 0
      %3979 = vmatpush1.bf16.msra.mxu0 %v3668
      %3980 = vmatprep.subr.bf16.mxu0 0
      %3981 = vmatpush1.bf16.msra.mxu0 %v3669
      %3982 = vmatprep.subr.bf16.mxu0 0
      %3983 = vmatpush1.bf16.msra.mxu0 %v3670
      %3984 = vmatprep.subr.bf16.mxu0 0
      %3985 = vmatpush1.bf16.msra.mxu0 %v3671
      %3986 = vmatprep.subr.bf16.mxu0 0
      %3987 = vmatpush1.bf16.msra.mxu0 %v3672
      %3988 = vmatprep.subr.bf16.mxu0 0
      %3989 = vmatpush1.bf16.msra.mxu0 %v3673
      %3990 = vmatprep.subr.bf16.mxu0 0
      %3991 = vmatpush1.bf16.msra.mxu0 %v3674
      %3992 = vmatprep.subr.bf16.mxu0 0
      %3993 = vmatpush1.bf16.msra.mxu0 %v3675
      %3994 = vmatprep.subr.bf16.mxu0 0
      %3995 = vmatpush1.bf16.msra.mxu0 %v3676
      %3996 = vmatprep.subr.bf16.mxu0 0
      %3997 = vmatpush1.bf16.msra.mxu0 %v3677
      %3998 = vmatprep.subr.bf16.mxu0 0
      %3999 = vmatpush1.bf16.msra.mxu0 %v3678
      %4000 = vmatprep.subr.bf16.mxu0 0
      %4001 = vmatpush1.bf16.msra.mxu0 %v3679
      %4002 = vmatprep.mubr.bf16.mxu0 %v2846
      %4003 = vmatmul.mubr.bf16.gmra.mrb[0].mxu0 %v2845
      %v4004 = vpop.f32.mrb[0].mxu0
      %v4005 = vadd.f32 %v3964, %v4004
      %v4006 = vpop.f32.mrb[0].mxu0
      %v4007 = vpop.f32.mrb[0].mxu0
      %v4008 = vadd.f32 %v3967, %v4007
      %v4009 = vpop.f32.mrb[0].mxu0
      %4010 = vdwg.mxu0
      %4011 = vmatprep.subr.bf16.mxu0 0
      %4012 = vmatpush1.bf16.msra.mxu0 %v3680
      %4013 = vmatprep.subr.bf16.mxu0 0
      %4014 = vmatpush1.bf16.msra.mxu0 %v3681
      %4015 = vmatprep.subr.bf16.mxu0 0
      %4016 = vmatpush1.bf16.msra.mxu0 %v3682
      %4017 = vmatprep.subr.bf16.mxu0 0
      %4018 = vmatpush1.bf16.msra.mxu0 %v3683
      %4019 = vmatprep.subr.bf16.mxu0 0
      %4020 = vmatpush1.bf16.msra.mxu0 %v3684
      %4021 = vmatprep.subr.bf16.mxu0 0
      %4022 = vmatpush1.bf16.msra.mxu0 %v3685
      %4023 = vmatprep.subr.bf16.mxu0 0
      %4024 = vmatpush1.bf16.msra.mxu0 %v3686
      %4025 = vmatprep.subr.bf16.mxu0 0
      %4026 = vmatpush1.bf16.msra.mxu0 %v3687
      %4027 = vmatprep.subr.bf16.mxu0 0
      %4028 = vmatpush1.bf16.msra.mxu0 %v3688
      %4029 = vmatprep.subr.bf16.mxu0 0
      %4030 = vmatpush1.bf16.msra.mxu0 %v3689
      %4031 = vmatprep.subr.bf16.mxu0 0
      %4032 = vmatpush1.bf16.msra.mxu0 %v3690
      %4033 = vmatprep.subr.bf16.mxu0 0
      %4034 = vmatpush1.bf16.msra.mxu0 %v3691
      %4035 = vmatprep.subr.bf16.mxu0 0
      %4036 = vmatpush1.bf16.msra.mxu0 %v3692
      %4037 = vmatprep.subr.bf16.mxu0 0
      %4038 = vmatpush1.bf16.msra.mxu0 %v3693
      %4039 = vmatprep.subr.bf16.mxu0 0
      %4040 = vmatpush1.bf16.msra.mxu0 %v3694
      %4041 = vmatprep.subr.bf16.mxu0 0
      %4042 = vmatpush1.bf16.msra.mxu0 %v3695
      %4043 = vmatprep.mubr.bf16.mxu0 %v2848
      %4044 = vmatmul.mubr.bf16.gmra.mrb[0].mxu0 %v2847
      %v4045 = vpop.f32.mrb[0].mxu0
      %v4046 = vadd.f32 %v4005, %v4045
      %v4047 = vpop.f32.mrb[0].mxu0
      %v4048 = vpop.f32.mrb[0].mxu0
      %v4049 = vadd.f32 %v4008, %v4048
      %v4050 = vpop.f32.mrb[0].mxu0
      %4051 = vdwg.mxu0
      %4052 = vmatprep.subr.bf16.mxu0 0
      %4053 = vmatpush1.bf16.msra.mxu0 %v3696
      %4054 = vmatprep.subr.bf16.mxu0 0
      %4055 = vmatpush1.bf16.msra.mxu0 %v3697
      %4056 = vmatprep.subr.bf16.mxu0 0
      %4057 = vmatpush1.bf16.msra.mxu0 %v3698
      %4058 = vmatprep.subr.bf16.mxu0 0
      %4059 = vmatpush1.bf16.msra.mxu0 %v3699
      %4060 = vmatprep.subr.bf16.mxu0 0
      %4061 = vmatpush1.bf16.msra.mxu0 %v3700
      %4062 = vmatprep.subr.bf16.mxu0 0
      %4063 = vmatpush1.bf16.msra.mxu0 %v3701
      %4064 = vmatprep.subr.bf16.mxu0 0
      %4065 = vmatpush1.bf16.msra.mxu0 %v3702
      %4066 = vmatprep.subr.bf16.mxu0 0
      %4067 = vmatpush1.bf16.msra.mxu0 %v3703
      %4068 = vmatprep.subr.bf16.mxu0 0
      %4069 = vmatpush1.bf16.msra.mxu0 %v3704
      %4070 = vmatprep.subr.bf16.mxu0 0
      %4071 = vmatpush1.bf16.msra.mxu0 %v3705
      %4072 = vmatprep.subr.bf16.mxu0 0
      %4073 = vmatpush1.bf16.msra.mxu0 %v3706
      %4074 = vmatprep.subr.bf16.mxu0 0
      %4075 = vmatpush1.bf16.msra.mxu0 %v3707
      %4076 = vmatprep.subr.bf16.mxu0 0
      %4077 = vmatpush1.bf16.msra.mxu0 %v3708
      %4078 = vmatprep.subr.bf16.mxu0 0
      %4079 = vmatpush1.bf16.msra.mxu0 %v3709
      %4080 = vmatprep.subr.bf16.mxu0 0
      %4081 = vmatpush1.bf16.msra.mxu0 %v3710
      %4082 = vmatprep.subr.bf16.mxu0 0
      %4083 = vmatpush1.bf16.msra.mxu0 %v3711
      %4084 = vmatprep.mubr.bf16.mxu0 %v2850
      %4085 = vmatmul.mubr.bf16.gmra.mrb[0].mxu0 %v2849
      %v4086 = vpop.f32.mrb[0].mxu0
      %v4087 = vadd.f32 %v4046, %v4086
      %v4088 = vpop.f32.mrb[0].mxu0
      %v4089 = vpop.f32.mrb[0].mxu0
      %v4090 = vadd.f32 %v4049, %v4089
      %v4091 = vpop.f32.mrb[0].mxu0
      %4092 = vdwg.mxu0
      %4093 = vmatprep.subr.bf16.mxu0 0
      %4094 = vmatpush1.bf16.msra.mxu0 %v3712
      %4095 = vmatprep.subr.bf16.mxu0 0
      %4096 = vmatpush1.bf16.msra.mxu0 %v3713
      %4097 = vmatprep.subr.bf16.mxu0 0
      %4098 = vmatpush1.bf16.msra.mxu0 %v3714
      %4099 = vmatprep.subr.bf16.mxu0 0
      %4100 = vmatpush1.bf16.msra.mxu0 %v3715
      %4101 = vmatprep.subr.bf16.mxu0 0
      %4102 = vmatpush1.bf16.msra.mxu0 %v3716
      %4103 = vmatprep.subr.bf16.mxu0 0
      %4104 = vmatpush1.bf16.msra.mxu0 %v3717
      %4105 = vmatprep.subr.bf16.mxu0 0
      %4106 = vmatpush1.bf16.msra.mxu0 %v3718
      %4107 = vmatprep.subr.bf16.mxu0 0
      %4108 = vmatpush1.bf16.msra.mxu0 %v3719
      %4109 = vmatprep.subr.bf16.mxu0 0
      %4110 = vmatpush1.bf16.msra.mxu0 %v3720
      %4111 = vmatprep.subr.bf16.mxu0 0
      %4112 = vmatpush1.bf16.msra.mxu0 %v3721
      %4113 = vmatprep.subr.bf16.mxu0 0
      %4114 = vmatpush1.bf16.msra.mxu0 %v3722
      %4115 = vmatprep.subr.bf16.mxu0 0
      %4116 = vmatpush1.bf16.msra.mxu0 %v3723
      %4117 = vmatprep.subr.bf16.mxu0 0
      %4118 = vmatpush1.bf16.msra.mxu0 %v3724
      %4119 = vmatprep.subr.bf16.mxu0 0
      %4120 = vmatpush1.bf16.msra.mxu0 %v3725
      %4121 = vmatprep.subr.bf16.mxu0 0
      %4122 = vmatpush1.bf16.msra.mxu0 %v3726
      %4123 = vmatprep.subr.bf16.mxu0 0
      %4124 = vmatpush1.bf16.msra.mxu0 %v3727
      %4125 = vmatprep.mubr.bf16.mxu0 %v2852
      %4126 = vmatmul.mubr.bf16.gmra.mrb[0].mxu0 %v2851
      %v4127 = vpop.f32.mrb[0].mxu0
      %v4128 = vadd.f32 %v4087, %v4127
      %v4129 = vpop.f32.mrb[0].mxu0
      %v4130 = vpop.f32.mrb[0].mxu0
      %v4131 = vadd.f32 %v4090, %v4130
      %v4132 = vpop.f32.mrb[0].mxu0
      %4133 = vdwg.mxu0
      %4134 = vmatprep.subr.bf16.mxu0 0
      %4135 = vmatpush1.bf16.msra.mxu0 %v3728
      %4136 = vmatprep.subr.bf16.mxu0 0
      %4137 = vmatpush1.bf16.msra.mxu0 %v3729
      %4138 = vmatprep.subr.bf16.mxu0 0
      %4139 = vmatpush1.bf16.msra.mxu0 %v3730
      %4140 = vmatprep.subr.bf16.mxu0 0
      %4141 = vmatpush1.bf16.msra.mxu0 %v3731
      %4142 = vmatprep.subr.bf16.mxu0 0
      %4143 = vmatpush1.bf16.msra.mxu0 %v3732
      %4144 = vmatprep.subr.bf16.mxu0 0
      %4145 = vmatpush1.bf16.msra.mxu0 %v3733
      %4146 = vmatprep.subr.bf16.mxu0 0
      %4147 = vmatpush1.bf16.msra.mxu0 %v3734
      %4148 = vmatprep.subr.bf16.mxu0 0
      %4149 = vmatpush1.bf16.msra.mxu0 %v3735
      %4150 = vmatprep.subr.bf16.mxu0 0
      %4151 = vmatpush1.bf16.msra.mxu0 %v3736
      %4152 = vmatprep.subr.bf16.mxu0 0
      %4153 = vmatpush1.bf16.msra.mxu0 %v3737
      %4154 = vmatprep.subr.bf16.mxu0 0
      %4155 = vmatpush1.bf16.msra.mxu0 %v3738
      %4156 = vmatprep.subr.bf16.mxu0 0
      %4157 = vmatpush1.bf16.msra.mxu0 %v3739
      %4158 = vmatprep.subr.bf16.mxu0 0
      %4159 = vmatpush1.bf16.msra.mxu0 %v3740
      %4160 = vmatprep.subr.bf16.mxu0 0
      %4161 = vmatpush1.bf16.msra.mxu0 %v3741
      %4162 = vmatprep.subr.bf16.mxu0 0
      %4163 = vmatpush1.bf16.msra.mxu0 %v3742
      %4164 = vmatprep.subr.bf16.mxu0 0
      %4165 = vmatpush1.bf16.msra.mxu0 %v3743
      %4166 = vmatprep.mubr.bf16.mxu0 %v2854
      %4167 = vmatmul.mubr.bf16.gmra.mrb[0].mxu0 %v2853
      %v4168 = vpop.f32.mrb[0].mxu0
      %v4169 = vadd.f32 %v4128, %v4168
      %v4170 = vpop.f32.mrb[0].mxu0
      %v4171 = vpop.f32.mrb[0].mxu0
      %v4172 = vadd.f32 %v4131, %v4171
      %v4173 = vpop.f32.mrb[0].mxu0
      %4174 = vdwg.mxu0
      %4175 = vmatprep.subr.bf16.mxu0 0
      %4176 = vmatpush1.bf16.msra.mxu0 %v3744
      %4177 = vmatprep.subr.bf16.mxu0 0
      %4178 = vmatpush1.bf16.msra.mxu0 %v3745
      %4179 = vmatprep.subr.bf16.mxu0 0
      %4180 = vmatpush1.bf16.msra.mxu0 %v3746
      %4181 = vmatprep.subr.bf16.mxu0 0
      %4182 = vmatpush1.bf16.msra.mxu0 %v3747
      %4183 = vmatprep.subr.bf16.mxu0 0
      %4184 = vmatpush1.bf16.msra.mxu0 %v3748
      %4185 = vmatprep.subr.bf16.mxu0 0
      %4186 = vmatpush1.bf16.msra.mxu0 %v3749
      %4187 = vmatprep.subr.bf16.mxu0 0
      %4188 = vmatpush1.bf16.msra.mxu0 %v3750
      %4189 = vmatprep.subr.bf16.mxu0 0
      %4190 = vmatpush1.bf16.msra.mxu0 %v3751
      %4191 = vmatprep.subr.bf16.mxu0 0
      %4192 = vmatpush1.bf16.msra.mxu0 %v3752
      %4193 = vmatprep.subr.bf16.mxu0 0
      %4194 = vmatpush1.bf16.msra.mxu0 %v3753
      %4195 = vmatprep.subr.bf16.mxu0 0
      %4196 = vmatpush1.bf16.msra.mxu0 %v3754
      %4197 = vmatprep.subr.bf16.mxu0 0
      %4198 = vmatpush1.bf16.msra.mxu0 %v3755
      %4199 = vmatprep.subr.bf16.mxu0 0
      %4200 = vmatpush1.bf16.msra.mxu0 %v3756
      %4201 = vmatprep.subr.bf16.mxu0 0
      %4202 = vmatpush1.bf16.msra.mxu0 %v3757
      %4203 = vmatprep.subr.bf16.mxu0 0
      %4204 = vmatpush1.bf16.msra.mxu0 %v3758
      %4205 = vmatprep.subr.bf16.mxu0 0
      %4206 = vmatpush1.bf16.msra.mxu0 %v3759
      %4207 = vmatprep.mubr.bf16.mxu0 %v2856
      %4208 = vmatmul.mubr.bf16.gmra.mrb[0].mxu0 %v2855
      %v4209 = vpop.f32.mrb[0].mxu0
      %v4210 = vadd.f32 %v4169, %v4209
      %v4211 = vpop.f32.mrb[0].mxu0
      %v4212 = vpop.f32.mrb[0].mxu0
      %v4213 = vadd.f32 %v4172, %v4212
      %v4214 = vpop.f32.mrb[0].mxu0
      %4215 = vdwg.mxu0
      %v4216 = vadd.f32 %v2183, %v4210
      %v4217 = vadd.f32 %v2184, %v4213
      %v4218 = vld [vmem:[%s979] sm:$0x1]
      %v4219 = vld [vmem:[%s986] sm:$0x1]
      %v4220 = vsel %vm1083, %v4216, 0.0
      %4221 = vadd.xlane.f32.xlu0 %v4220
      %v4222 = vpop.xlane.xlu0 %4221
      %v4223 = vsel %vm1083, %v4217, 0.0
      %4224 = vadd.xlane.f32.xlu0 %v4223
      %v4225 = vpop.xlane.xlu0 %4224
      %v4226 = vmul.f32 %v4222, %v2148
      %v4227 = vmul.f32 %v4225, %v2148
      %v4228 = vsub.f32 %v4216, %v4226
      %v4229 = vsub.f32 %v4217, %v4227
      %v4230 = vmul.f32 %v4228, %v4228
      %v4231 = vmul.f32 %v4229, %v4229
      %v4232 = vsel %vm1083, %v4230, 0.0
      %4233 = vadd.xlane.f32.xlu0 %v4232
      %v4234 = vpop.xlane.xlu0 %4233
      %v4235 = vsel %vm1083, %v4231, 0.0
      %4236 = vadd.xlane.f32.xlu0 %v4235
      %v4237 = vpop.xlane.xlu0 %4236
      %v4238 = vmul.f32 %v4234, %v2148
      %v4239 = vmul.f32 %v4237, %v2148
      %v4240 = vadd.f32 %v4238, 1e-05
      %v4241 = vadd.f32 %v4239, 1e-05
      %v4242 = vrsqrt.pop %v4240
      %v4243 = vrsqrt.pop %v4241
      %v4244 = vmul.f32 %v4228, %v4242
      %v4245 = vmul.f32 %v4229, %v4243
      %v4247 = vlaneseq
      %v4248 = vshrl.u32 %v4247, 7
      %v4249 = vsub.s32 0, %v4248
      %v4250 = vrot.slane %v4218, %v4249
      %v4252 = vmul.f32 %v4244, %v4250
      %v4253 = vmul.f32 %v4245, %v4250
      %v4255 = vlaneseq
      %v4256 = vshrl.u32 %v4255, 7
      %v4257 = vsub.s32 0, %v4256
      %v4258 = vrot.slane %v4219, %v4257
      %v4260 = vadd.f32 %v4252, %v4258
      %v4261 = vadd.f32 %v4253, %v4258
      %4262 = vst.msk [vmem:[#allocation2] sm:$0xff] %vm1083, %v4260
      %4263 = vst.msk [vmem:[#allocation2 + $0x8] sm:$0xff] %vm1083, %v4261
      %p4264 = scmp.eq.s32.totalorder %s35, 1
      // Predicated region
      $region93: #{hama_block_forward.3} parent=87 // pred_check
        %p4265 = pneg %p4264
      $region94: #{hama_block_forward.3} parent=87 // pred_check_branch
        %4267 = sbr.rel (%p4265) target = $region96
      $region95: #{hama_block_forward.3} parent=87 // pred_region
        %v4268 = vpack.c.bf16 %v4260, %v4260
        %v4269 = vpack.c.bf16 %v4261, %v4261
        %vm4270 = vcmask 257024
        %4271 = vst.msk [vmem:[%s991] sm:$0xf] %vm4270, %v4268
        %4272 = vst.msk [vmem:[%s991 + $0x4] sm:$0xf] %vm4270, %v4269
        %v4273 = vmul.f32 %v4260, %v4260
        %v4274 = vmul.f32 %v4261, %v4261
        %v4275 = vsel %vm1083, %v4273, 0.0
        %4276 = vadd.xlane.f32.xlu0 %v4275
        %v4277 = vpop.xlane.xlu0 %4276
        %v4278 = vsel %vm1083, %v4274, 0.0
        %4279 = vadd.xlane.f32.xlu0 %v4278
        %v4280 = vpop.xlane.xlu0 %4279
        %v4281 = vrsqrt.pop %v4277
        %v4282 = vmul.f32 %v4277, %v4281
        %vm4283 = vcmp.eq.f32.partialorder %v4277, inf
        %v4284 = vsel %vm4283, %v4277, %v4282
        %vm4285 = vcmp.eq.f32.partialorder %v4277, 0.0
        %v4286 = vand.u32 %v4277, 2147483648
        %v4287 = vsel %vm4285, %v4286, %v4284
        %v4288 = vrsqrt.pop %v4280
        %v4289 = vmul.f32 %v4280, %v4288
        %vm4290 = vcmp.eq.f32.partialorder %v4280, inf
        %v4291 = vsel %vm4290, %v4280, %v4289
        %vm4292 = vcmp.eq.f32.partialorder %v4280, 0.0
        %v4293 = vand.u32 %v4280, 2147483648
        %v4294 = vsel %vm4292, %v4293, %v4291
        %v4297 = vlaneseq
        %v4298 = vand.u32 %v4297, 127
        %v4299 = vlaneseq
        %v4300 = vshrl.u32 %v4299, 7
        %v4301 = vsub.s32 %v4298, %v4300
        %v4302 = vrot.slane %v4287, %v4301
        %v4303 = vlaneseq
        %v4304 = vshrl.u32 %v4303, 7
        %v4305 = vsub.s32 %v4298, %v4304
        %v4306 = vrot.slane %v4294, %v4305
        %vm4307 = vcmask 1041409
        %v4308 = vsel %vm4307, %v4306, %v4302
        %vm4310 = vcmask 58368
        %4311 = vst.msk [vmem:[%s995] sm:$0x3] %vm4310, %v4308
      $region96: #{hama_block_forward.3} parent=87 // pred_fallthru
        _
      %p4312 = scmp.lt.s32.totalorder %s34, 3
      %s4313 = scalar_select %p4312, %s34, 3
      %s4314 = smul.addr %s4313, 2
      %s4315 = smul.addr %s4314, 4
      %s4316 = scalar_lea.vmem %s17, %s4315
      %p4317 = scmp.lt.s32.totalorder %s34, 3
      %s4318 = scalar_select %p4317, %s34, 3
      %s4319 = smul.addr %s4318, 2
      %s4320 = scalar_lea.vmem %s18, %s4319
      // Predicated region
      $region97: #{hama_block_forward.3} parent=87 // pred_check
        %p4321 = pneg %p516
      $region98: #{hama_block_forward.3} parent=87 // pred_check_branch
        %4323 = sbr.rel (%p4321) target = $region100
      $region99: #{hama_block_forward.3} parent=87 // pred_region
        _
      $region100: #{hama_block_forward.3} parent=87 // pred_fallthru
        _
      // Predicated region
      $region101: #{hama_block_forward.3} parent=87 // pred_check
        %p4324 = pneg %p542
      $region102: #{hama_block_forward.3} parent=87 // pred_check_branch
        %4326 = sbr.rel (%p4324) target = $region104
      $region103: #{hama_block_forward.3} parent=87 // pred_region
        _
      $region104: #{hama_block_forward.3} parent=87 // pred_fallthru
        _
    $region88: #{hama_block_forward.3} parent=5 // pred_fallthru
      _
    %p4327 = scmp.le.s32.totalorder 2, %s25
    // Predicated region
    $region105: #{hama_block_forward.3} parent=5 // pred_check
      %p4328 = pneg %p4327
    $region106: #{hama_block_forward.3} parent=5 // pred_check_branch
      %4330 = sbr.rel (%p4328) target = $region108
    $region107: #{hama_block_forward.3} parent=5 // pred_region
      %s4331 = ssub.s32 %s25, 2
      // Predicated region
      $region109: #{hama_block_forward.3} parent=107 // pred_check
        %p4332 = pneg %p522
      $region110: #{hama_block_forward.3} parent=107 // pred_check_branch
        %4334 = sbr.rel (%p4332) target = $region112
      $region111: #{hama_block_forward.3} parent=107 // pred_region
        %p4335 = scmp.lt.s32.totalorder %s36, 3
        %s4336 = scalar_select %p4335, %s36, 3
        %s4337 = smul.addr %s4336, 2
        %s4338 = smul.addr %s4337, 4
        %s4339 = scalar_lea.vmem %s17, %s4338
      $region112: #{hama_block_forward.3} parent=107 // pred_fallthru
        _
      // Predicated region
      $region113: #{hama_block_forward.3} parent=107 // pred_check
        %p4340 = pneg %p548
      $region114: #{hama_block_forward.3} parent=107 // pred_check_branch
        %4342 = sbr.rel (%p4340) target = $region116
      $region115: #{hama_block_forward.3} parent=107 // pred_region
        %p4343 = scmp.lt.s32.totalorder %s36, 3
        %s4344 = scalar_select %p4343, %s36, 3
        %s4345 = smul.addr %s4344, 2
        %s4346 = scalar_lea.vmem %s18, %s4345
      $region116: #{hama_block_forward.3} parent=107 // pred_fallthru
        _
    $region108: #{hama_block_forward.3} parent=5 // pred_fallthru
      _
  $region6: #{hama_block_forward.3} parent=0 // loop_footer
    %s29 = sadd.s32 1, %s25
  $region7: #{hama_block_forward.3} parent=0 // loop_footer_branch
    %24 = sbr.rel target = $region3
  $region8: #{hama_block_forward.3} parent=0 // loop_exit
    _

</llo_original>
